<compile_context>
chip_gen: v7x
topology: tpu7x:2x2x1
jax: 0.10.0
libtpu: 0.0.40
codegen_flags: <defaults>
</compile_context>

<pallas_src>
import math

import jax
import jax.numpy as jnp
from jax.experimental import pallas as pl
from jax.experimental.pallas import tpu as pltpu

# ---------------- config consistent with the module ----------------
LATENT_DIM  = 32     # latent_dim of incoming `embeds`
EMBED_DIM   = 32     # transformer embed_dim
DEPTH       = 2
NUM_HEADS   = 4
NUM_QUERIES = 16     # -> hw_size = 4
HW          = 4
MLP_RATIO   = 4
PATCH       = 4      # patch_size of to_pixel ConvTranspose2d
BATCH       = 2
LEN_SRC     = 8      # source sequence length of `embeds`

HEAD_DIM = EMBED_DIM // NUM_HEADS
HIDDEN   = MLP_RATIO * EMBED_DIM
PIX_DIM  = 3 * PATCH * PATCH

VMEM = pl.BlockSpec(memory_space=pltpu.MemorySpace.VMEM)

# Per-layer parameters, stacked along a leading DEPTH axis, in this fixed order.
LAYER_PARAM_NAMES = (
    'inproj_w1', 'inproj_b1', 'inproj_w2', 'inproj_b2', 'inproj_ln_g', 'inproj_ln_b',
    'sa_wq', 'sa_bq', 'sa_wk', 'sa_bk', 'sa_wv', 'sa_bv', 'sa_wo', 'sa_bo',
    'ln1_g', 'ln1_b',
    'ca_wq', 'ca_bq', 'ca_wk', 'ca_bk', 'ca_wv', 'ca_bv', 'ca_wo', 'ca_bo',
    'ln2_g', 'ln2_b',
    'ffn_w1', 'ffn_b1', 'ffn_w2', 'ffn_b2', 'ln3_g', 'ln3_b',
)


# ============================ fused Pallas kernel ============================

def _reader_decoder_kernel(*refs):
    """Entire TransformerDecoder forward + to_pixel matmul, VMEM resident.

    Inputs (in order):
      embeds2d  (B*LEN_SRC, LATENT)
      mask_add  (1, B*LEN_SRC)        additive key-padding mask (0 / -1e9)
      tgt_full  (B*NQ, E)             tgt_embed tiled over batch
      pos_full  (B*NQ, E)             sine positional embedding tiled over batch
      <32 stacked per-layer params, leading dim DEPTH>
      tp_w      (E, 3*P*P), tp_b (1, 3*P*P)
    Output:
      pix       (B*NQ, 3*P*P)
    """
    n_layer = len(LAYER_PARAM_NAMES)
    embeds_ref, mask_ref, tgt_ref, pos_ref = refs[0:4]
    lp = dict(zip(LAYER_PARAM_NAMES, refs[4:4 + n_layer]))
    tp_w_ref, tp_b_ref = refs[4 + n_layer: 4 + n_layer + 2]
    out_ref = refs[4 + n_layer + 2]

    B, NQ, LS, E, H, Dh = BATCH, NUM_QUERIES, LEN_SRC, EMBED_DIM, NUM_HEADS, HEAD_DIM
    scale = 1.0 / math.sqrt(Dh)
    f32 = jnp.float32

    # ---- hoisted, loop-invariant constants (built once per kernel) ----
    # Per-head lane masks over the feature dim: head h owns lanes [h*Dh, (h+1)*Dh).
    lane = jax.lax.broadcasted_iota(jnp.int32, (1, E), 1)
    head_masks = [((lane >= h * Dh) & (lane < (h + 1) * Dh)).astype(f32)
                  for h in range(H)]

    def block_diag_bias(lq, lk, extra=None):
        # Additive bias that restricts each query row to its own batch's keys
        # (and optionally applies the key-padding mask).
        r = jax.lax.broadcasted_iota(jnp.int32, (B * lq, B * lk), 0)
        c = jax.lax.broadcasted_iota(jnp.int32, (B * lq, B * lk), 1)
        same = (r < lq) & (c < lk)
        for b in range(1, B):
            same = same | (((r >= b * lq) & (r < (b + 1) * lq)) &
                           ((c >= b * lk) & (c < (b + 1) * lk)))
        bias = jnp.where(same, 0.0, -1e9).astype(f32)
        if extra is not None:
            bias = bias + extra           # (1, B*lk) broadcasts over rows
        return bias

    cross_bias = block_diag_bias(NQ, LS, extra=mask_ref[...])
    self_bias = block_diag_bias(NQ, NQ) if DEPTH > 1 else None

    # ---- fused building blocks (pure VPU/EUP/MXU, all on VMEM-resident data) ----
    def matmul(x, w, b=None):
        y = jnp.dot(x, w, preferred_element_type=f32)
        return y if b is None else y + b

    def layernorm(x, g, b):
        mu = jnp.mean(x, axis=-1, keepdims=True)
        var = jnp.mean(jnp.square(x - mu), axis=-1, keepdims=True)
        return (x - mu) * jax.lax.rsqrt(var + 1e-5) * g + b

    def gelu(x):
        # TODO(synk): PyTorch nn.GELU default is the exact erf form; tanh
        # approximation used in-kernel (small numeric drift).
        return jax.nn.gelu(x, approximate=True)

    def mha(q_in, k_in, v_in, wq, bq, wk, bk, wv, bv, wo, bo, bias):
        # q_in: (B*Lq, E); k_in, v_in: (B*Lk, E); bias: (B*Lq, B*Lk) additive.
        q = matmul(q_in, wq, bq) * scale
        k = matmul(k_in, wk, bk)
        v = matmul(v_in, wv, bv)
        ctx = None
        for hm in head_masks:
            # scores for this head: contract only the head's lanes (others zeroed)
            s = jax.lax.dot_general(q * hm, k, (((1,), (1,)), ((), ())),
                                    preferred_element_type=f32) + bias
            s = s - jnp.max(s, axis=-1, keepdims=True)
            p = jnp.exp(s)
            # NOTE: a fully-masked key row would give 0/0 here, same as the
            # PyTorch reference; not reachable with the current mask.
            p = p * pl.reciprocal(jnp.sum(p, axis=-1, keepdims=True), approx=True)
            part = jnp.dot(p, v * hm, preferred_element_type=f32)
            ctx = part if ctx is None else ctx + part
        return matmul(ctx, wo, bo)

    # ---- forward ----
    e2d = embeds_ref[...]       # (B*LS, LATENT) -- loaded once, reused per layer
    pos = pos_ref[...]          # (B*NQ, E)
    tgts = tgt_ref[...]         # (B*NQ, E)

    # TODO(synk): TransformerDecoderLayer source not provided; using the
    # standard DETR-style post-norm layer (self-attn / cross-attn / FFN,
    # query_pos added to q & k of self-attn and to q of cross-attn).
    for l in range(DEPTH):
        g = lambda name: lp[name][l]   # noqa: E731  (static layer index -> (r, c) load)

        # in_projs[l]: MLPBlock(latent -> latent -> embed) + LayerNorm(embed)
        x = gelu(matmul(e2d, g('inproj_w1'), g('inproj_b1')))
        x = matmul(x, g('inproj_w2'), g('inproj_b2'))
        c_emb = layernorm(x, g('inproj_ln_g'), g('inproj_ln_b'))   # (B*LS, E)

        if l != 0:   # layer 0 has no self-attention
            qk_in = tgts + pos
            sa = mha(qk_in, qk_in, tgts,
                     g('sa_wq'), g('sa_bq'), g('sa_wk'), g('sa_bk'),
                     g('sa_wv'), g('sa_bv'), g('sa_wo'), g('sa_bo'), self_bias)
            tgts = layernorm(tgts + sa, g('ln1_g'), g('ln1_b'))

        ca = mha(tgts + pos, c_emb, c_emb,
                 g('ca_wq'), g('ca_bq'), g('ca_wk'), g('ca_bk'),
                 g('ca_wv'), g('ca_bv'), g('ca_wo'), g('ca_bo'), cross_bias)
        tgts = layernorm(tgts + ca, g('ln2_g'), g('ln2_b'))

        h1 = gelu(matmul(tgts, g('ffn_w1'), g('ffn_b1')))
        h2 = matmul(h1, g('ffn_w2'), g('ffn_b2'))
        tgts = layernorm(tgts + h2, g('ln3_g'), g('ln3_b'))

    # to_pixel ConvTranspose2d(E, 3, k=P, s=P)  ==  per-token matmul
    out_ref[...] = matmul(tgts, tp_w_ref[...], tp_b_ref[...])   # (B*NQ, 3*P*P)


# ============================ JAX glue / params ============================

def sine_pos_embed(hw, dim):
    """DETR-style PositionEmbeddingSine(num_pos_feats=dim//2, normalize=True)."""
    num_pos_feats = dim // 2
    temperature = 10000.0
    eps = 1e-6
    scale = 2 * math.pi
    ones = jnp.ones((hw, hw), jnp.float32)
    y_embed = jnp.cumsum(ones, axis=0)
    x_embed = jnp.cumsum(ones, axis=1)
    y_embed = y_embed / (y_embed[-1:, :] + eps) * scale
    x_embed = x_embed / (x_embed[:, -1:] + eps) * scale
    dim_t = jnp.arange(num_pos_feats, dtype=jnp.float32)
    dim_t = temperature ** (2 * (dim_t // 2) / num_pos_feats)
    pos_x = x_embed[:, :, None] / dim_t
    pos_y = y_embed[:, :, None] / dim_t
    pos_x = jnp.stack([jnp.sin(pos_x[:, :, 0::2]),
                       jnp.cos(pos_x[:, :, 1::2])], axis=3).reshape(hw, hw, -1)
    pos_y = jnp.stack([jnp.sin(pos_y[:, :, 0::2]),
                       jnp.cos(pos_y[:, :, 1::2])], axis=3).reshape(hw, hw, -1)
    pos = jnp.concatenate([pos_y, pos_x], axis=-1)        # (hw, hw, dim)
    return pos.reshape(hw * hw, dim)                       # (num_queries, dim)


def init_params(key):
    keys = iter(jax.random.split(key, 64))
    E = EMBED_DIM

    def WD(i, o, std=0.02):     # per-layer weight, stacked over DEPTH
        return jax.random.normal(next(keys), (DEPTH, i, o), jnp.float32) * std

    def BD(o):
        return jnp.zeros((DEPTH, 1, o), jnp.float32)

    def GD(o):
        return jnp.ones((DEPTH, 1, o), jnp.float32)

    layers = dict(
        inproj_w1=WD(LATENT_DIM, LATENT_DIM), inproj_b1=BD(LATENT_DIM),
        inproj_w2=WD(LATENT_DIM, E),          inproj_b2=BD(E),
        inproj_ln_g=GD(E), inproj_ln_b=BD(E),
        # layer 0's self-attn params are allocated but statically unused
        sa_wq=WD(E, E), sa_bq=BD(E), sa_wk=WD(E, E), sa_bk=BD(E),
        sa_wv=WD(E, E), sa_bv=BD(E), sa_wo=WD(E, E), sa_bo=BD(E),
        ln1_g=GD(E), ln1_b=BD(E),
        ca_wq=WD(E, E), ca_bq=BD(E), ca_wk=WD(E, E), ca_bk=BD(E),
        ca_wv=WD(E, E), ca_bv=BD(E), ca_wo=WD(E, E), ca_bo=BD(E),
        ln2_g=GD(E), ln2_b=BD(E),
        ffn_w1=WD(E, HIDDEN), ffn_b1=BD(HIDDEN),
        ffn_w2=WD(HIDDEN, E), ffn_b2=BD(E),
        ln3_g=GD(E), ln3_b=BD(E),
    )

    # tgt_embed: nn.Embedding(num_queries, embed_dim), normal_(std=1) init
    tgt_embed = jax.random.normal(next(keys), (NUM_QUERIES, E), jnp.float32)

    # to_pixel: ConvTranspose2d(E, 3, kernel=PATCH, stride=PATCH)
    # weight (E, 3, P, P) -> per-token matmul weight (E, 3*P*P)
    w_tp = jax.random.normal(next(keys), (E, 3, PATCH, PATCH), jnp.float32) * 0.02
    to_pixel_w = w_tp.reshape(E, PIX_DIM)
    to_pixel_b = jnp.zeros((1, PIX_DIM), jnp.float32)

    return dict(layers=layers, tgt_embed=tgt_embed,
                to_pixel_w=to_pixel_w, to_pixel_b=to_pixel_b,
                patch_pos=sine_pos_embed(HW, E))


# ============================ model forward ============================

def reader_decoder_forward(params, embeds, attn_mask_bool):
    """embeds: (B, LEN_SRC, LATENT_DIM) f32; attn_mask_bool: (B, LEN_SRC) bool
    (True = masked / disallowed key position, matching nn.MultiheadAttention)."""
    B, NQ, E = BATCH, NUM_QUERIES, EMBED_DIM

    embeds2d = embeds.reshape(B * LEN_SRC, LATENT_DIM)
    # tiny additive key-padding mask row; the (B*H, NQ, LS) tensor is never built
    mask_add = jnp.where(attn_mask_bool, -1e9, 0.0).astype(jnp.float32)
    mask_add = mask_add.reshape(1, B * LEN_SRC)
    tgt_full = jnp.tile(params['tgt_embed'], (B, 1))     # (B*NQ, E)
    pos_full = jnp.tile(params['patch_pos'], (B, 1))     # (B*NQ, E)

    inputs = [embeds2d, mask_add, tgt_full, pos_full]
    inputs += [params['layers'][name] for name in LAYER_PARAM_NAMES]
    inputs += [params['to_pixel_w'], params['to_pixel_b']]

    pix = pl.pallas_call(
        _reader_decoder_kernel,
        out_shape=jax.ShapeDtypeStruct((B * NQ, PIX_DIM), jnp.float32),
        in_specs=[VMEM] * len(inputs),
        out_specs=VMEM,
    )(*inputs)

    # unpatchify: (B*NQ, 3*P*P) -> NCHW (B, 3, HW*P, HW*P)   (tiny XLA transpose)
    pix = pix.reshape(B, HW, HW, 3, PATCH, PATCH)
    recon = pix.transpose(0, 3, 1, 4, 2, 5).reshape(B, 3, HW * PATCH, HW * PATCH)
    return dict(recon_samples=recon)

    # TODO(synk): add_conv ResBlock stack, LPIPS / L1 loss branch (get_loss=True),
    # use_aug and re_norm paths are disabled in this configuration and omitted.


# ================================ main ================================

if __name__ == "__main__":
    key = jax.random.PRNGKey(0)
    k_params, k_embeds = jax.random.split(key)

    params = init_params(k_params)
    embeds = jax.random.normal(k_embeds, (BATCH, LEN_SRC, LATENT_DIM), jnp.float32)
    # boolean key-padding mask: mask out the last 2 source positions
    attn_mask = jnp.zeros((BATCH, LEN_SRC), jnp.bool_).at[:, -2:].set(True)

    fwd = jax.jit(reader_decoder_forward)
    out = fwd(params, embeds, attn_mask)
    recon = jax.block_until_ready(out["recon_samples"])

    assert recon.shape == (BATCH, 3, HW * PATCH, HW * PATCH), recon.shape
    assert recon.dtype == jnp.float32
    assert bool(jnp.all(jnp.isfinite(recon)))
    print("KERNEL_OK")
</pallas_src>

<mosaic_0001>
module attributes {stable_mosaic.version = 11 : i64} {
  func.func @_reader_decoder_kernel(%arg0: memref<16x32xf32, #tpu.memory_space<vmem>>, %arg1: memref<1x16xf32, #tpu.memory_space<vmem>>, %arg2: memref<32x32xf32, #tpu.memory_space<vmem>>, %arg3: memref<32x32xf32, #tpu.memory_space<vmem>>, %arg4: memref<2x32x32xf32, #tpu.memory_space<vmem>>, %arg5: memref<2x1x32xf32, #tpu.memory_space<vmem>>, %arg6: memref<2x32x32xf32, #tpu.memory_space<vmem>>, %arg7: memref<2x1x32xf32, #tpu.memory_space<vmem>>, %arg8: memref<2x1x32xf32, #tpu.memory_space<vmem>>, %arg9: memref<2x1x32xf32, #tpu.memory_space<vmem>>, %arg10: memref<2x32x32xf32, #tpu.memory_space<vmem>>, %arg11: memref<2x1x32xf32, #tpu.memory_space<vmem>>, %arg12: memref<2x32x32xf32, #tpu.memory_space<vmem>>, %arg13: memref<2x1x32xf32, #tpu.memory_space<vmem>>, %arg14: memref<2x32x32xf32, #tpu.memory_space<vmem>>, %arg15: memref<2x1x32xf32, #tpu.memory_space<vmem>>, %arg16: memref<2x32x32xf32, #tpu.memory_space<vmem>>, %arg17: memref<2x1x32xf32, #tpu.memory_space<vmem>>, %arg18: memref<2x1x32xf32, #tpu.memory_space<vmem>>, %arg19: memref<2x1x32xf32, #tpu.memory_space<vmem>>, %arg20: memref<2x32x32xf32, #tpu.memory_space<vmem>>, %arg21: memref<2x1x32xf32, #tpu.memory_space<vmem>>, %arg22: memref<2x32x32xf32, #tpu.memory_space<vmem>>, %arg23: memref<2x1x32xf32, #tpu.memory_space<vmem>>, %arg24: memref<2x32x32xf32, #tpu.memory_space<vmem>>, %arg25: memref<2x1x32xf32, #tpu.memory_space<vmem>>, %arg26: memref<2x32x32xf32, #tpu.memory_space<vmem>>, %arg27: memref<2x1x32xf32, #tpu.memory_space<vmem>>, %arg28: memref<2x1x32xf32, #tpu.memory_space<vmem>>, %arg29: memref<2x1x32xf32, #tpu.memory_space<vmem>>, %arg30: memref<2x32x128xf32, #tpu.memory_space<vmem>>, %arg31: memref<2x1x128xf32, #tpu.memory_space<vmem>>, %arg32: memref<2x128x32xf32, #tpu.memory_space<vmem>>, %arg33: memref<2x1x32xf32, #tpu.memory_space<vmem>>, %arg34: memref<2x1x32xf32, #tpu.memory_space<vmem>>, %arg35: memref<2x1x32xf32, #tpu.memory_space<vmem>>, %arg36: memref<32x48xf32, #tpu.memory_space<vmem>>, %arg37: memref<1x48xf32, #tpu.memory_space<vmem>>, %arg38: memref<32x48xf32, #tpu.memory_space<vmem>>) attributes {dimension_semantics = [], scalar_prefetch = 0 : i64, scratch_operands = 0 : i64, tpu.core_type = #tpu.core_type<tc>} {
    %0 = tpu.iota {dimensions = array<i32: 1>} : vector<1x32xi32>
    %c0_i32 = arith.constant 0 : i32
    %1 = vector.broadcast %c0_i32 : i32 to vector<1x32xi32>
    %2 = arith.cmpi sge, %0, %1 : vector<1x32xi32>
    %c8_i32 = arith.constant 8 : i32
    %3 = vector.broadcast %c8_i32 : i32 to vector<1x32xi32>
    %4 = arith.cmpi slt, %0, %3 : vector<1x32xi32>
    %5 = arith.andi %2, %4 : vector<1x32xi1>
    %6 = arith.extui %5 : vector<1x32xi1> to vector<1x32xi32>
    %7 = arith.sitofp %6 : vector<1x32xi32> to vector<1x32xf32>
    %c8_i32_0 = arith.constant 8 : i32
    %8 = vector.broadcast %c8_i32_0 : i32 to vector<1x32xi32>
    %9 = arith.cmpi sge, %0, %8 : vector<1x32xi32>
    %c16_i32 = arith.constant 16 : i32
    %10 = vector.broadcast %c16_i32 : i32 to vector<1x32xi32>
    %11 = arith.cmpi slt, %0, %10 : vector<1x32xi32>
    %12 = arith.andi %9, %11 : vector<1x32xi1>
    %13 = arith.extui %12 : vector<1x32xi1> to vector<1x32xi32>
    %14 = arith.sitofp %13 : vector<1x32xi32> to vector<1x32xf32>
    %c16_i32_1 = arith.constant 16 : i32
    %15 = vector.broadcast %c16_i32_1 : i32 to vector<1x32xi32>
    %16 = arith.cmpi sge, %0, %15 : vector<1x32xi32>
    %c24_i32 = arith.constant 24 : i32
    %17 = vector.broadcast %c24_i32 : i32 to vector<1x32xi32>
    %18 = arith.cmpi slt, %0, %17 : vector<1x32xi32>
    %19 = arith.andi %16, %18 : vector<1x32xi1>
    %20 = arith.extui %19 : vector<1x32xi1> to vector<1x32xi32>
    %21 = arith.sitofp %20 : vector<1x32xi32> to vector<1x32xf32>
    %c24_i32_2 = arith.constant 24 : i32
    %22 = vector.broadcast %c24_i32_2 : i32 to vector<1x32xi32>
    %23 = arith.cmpi sge, %0, %22 : vector<1x32xi32>
    %c32_i32 = arith.constant 32 : i32
    %24 = vector.broadcast %c32_i32 : i32 to vector<1x32xi32>
    %25 = arith.cmpi slt, %0, %24 : vector<1x32xi32>
    %26 = arith.andi %23, %25 : vector<1x32xi1>
    %27 = arith.extui %26 : vector<1x32xi1> to vector<1x32xi32>
    %28 = arith.sitofp %27 : vector<1x32xi32> to vector<1x32xf32>
    %c0 = arith.constant 0 : index
    %c0_3 = arith.constant 0 : index
    %29 = vector.load %arg1[%c0, %c0_3] : memref<1x16xf32, #tpu.memory_space<vmem>>, vector<1x16xf32>
    %30 = tpu.iota {dimensions = array<i32: 0>} : vector<32x16xi32>
    %31 = tpu.iota {dimensions = array<i32: 1>} : vector<32x16xi32>
    %c16_i32_4 = arith.constant 16 : i32
    %32 = vector.broadcast %c16_i32_4 : i32 to vector<32x16xi32>
    %33 = arith.cmpi slt, %30, %32 : vector<32x16xi32>
    %c8_i32_5 = arith.constant 8 : i32
    %34 = vector.broadcast %c8_i32_5 : i32 to vector<32x16xi32>
    %35 = arith.cmpi slt, %31, %34 : vector<32x16xi32>
    %36 = arith.andi %33, %35 : vector<32x16xi1>
    %c16_i32_6 = arith.constant 16 : i32
    %37 = vector.broadcast %c16_i32_6 : i32 to vector<32x16xi32>
    %38 = arith.cmpi sge, %30, %37 : vector<32x16xi32>
    %c32_i32_7 = arith.constant 32 : i32
    %39 = vector.broadcast %c32_i32_7 : i32 to vector<32x16xi32>
    %40 = arith.cmpi slt, %30, %39 : vector<32x16xi32>
    %41 = arith.andi %38, %40 : vector<32x16xi1>
    %c8_i32_8 = arith.constant 8 : i32
    %42 = vector.broadcast %c8_i32_8 : i32 to vector<32x16xi32>
    %43 = arith.cmpi sge, %31, %42 : vector<32x16xi32>
    %c16_i32_9 = arith.constant 16 : i32
    %44 = vector.broadcast %c16_i32_9 : i32 to vector<32x16xi32>
    %45 = arith.cmpi slt, %31, %44 : vector<32x16xi32>
    %46 = arith.andi %43, %45 : vector<32x16xi1>
    %47 = arith.andi %41, %46 : vector<32x16xi1>
    %48 = arith.ori %36, %47 : vector<32x16xi1>
    %cst = arith.constant 0.000000e+00 : f32
    %cst_10 = arith.constant -1.000000e+09 : f32
    %49 = vector.broadcast %cst : f32 to vector<32x16xf32>
    %50 = vector.broadcast %cst_10 : f32 to vector<32x16xf32>
    %51 = arith.select %48, %49, %50 : vector<32x16xi1>, vector<32x16xf32>
    %52 = vector.broadcast %29 : vector<1x16xf32> to vector<32x16xf32>
    %53 = arith.addf %51, %52 : vector<32x16xf32>
    %54 = tpu.iota {dimensions = array<i32: 0>} : vector<32x32xi32>
    %55 = tpu.iota {dimensions = array<i32: 1>} : vector<32x32xi32>
    %c16_i32_11 = arith.constant 16 : i32
    %56 = vector.broadcast %c16_i32_11 : i32 to vector<32x32xi32>
    %57 = arith.cmpi slt, %54, %56 : vector<32x32xi32>
    %c16_i32_12 = arith.constant 16 : i32
    %58 = vector.broadcast %c16_i32_12 : i32 to vector<32x32xi32>
    %59 = arith.cmpi slt, %55, %58 : vector<32x32xi32>
    %60 = arith.andi %57, %59 : vector<32x32xi1>
    %c16_i32_13 = arith.constant 16 : i32
    %61 = vector.broadcast %c16_i32_13 : i32 to vector<32x32xi32>
    %62 = arith.cmpi sge, %54, %61 : vector<32x32xi32>
    %c32_i32_14 = arith.constant 32 : i32
    %63 = vector.broadcast %c32_i32_14 : i32 to vector<32x32xi32>
    %64 = arith.cmpi slt, %54, %63 : vector<32x32xi32>
    %65 = arith.andi %62, %64 : vector<32x32xi1>
    %c16_i32_15 = arith.constant 16 : i32
    %66 = vector.broadcast %c16_i32_15 : i32 to vector<32x32xi32>
    %67 = arith.cmpi sge, %55, %66 : vector<32x32xi32>
    %c32_i32_16 = arith.constant 32 : i32
    %68 = vector.broadcast %c32_i32_16 : i32 to vector<32x32xi32>
    %69 = arith.cmpi slt, %55, %68 : vector<32x32xi32>
    %70 = arith.andi %67, %69 : vector<32x32xi1>
    %71 = arith.andi %65, %70 : vector<32x32xi1>
    %72 = arith.ori %60, %71 : vector<32x32xi1>
    %cst_17 = arith.constant 0.000000e+00 : f32
    %cst_18 = arith.constant -1.000000e+09 : f32
    %73 = vector.broadcast %cst_17 : f32 to vector<32x32xf32>
    %74 = vector.broadcast %cst_18 : f32 to vector<32x32xf32>
    %75 = arith.select %72, %73, %74 : vector<32x32xi1>, vector<32x32xf32>
    %c0_19 = arith.constant 0 : index
    %c0_20 = arith.constant 0 : index
    %76 = vector.load %arg0[%c0_19, %c0_20] : memref<16x32xf32, #tpu.memory_space<vmem>>, vector<16x32xf32>
    %c0_21 = arith.constant 0 : index
    %c0_22 = arith.constant 0 : index
    %77 = vector.load %arg3[%c0_21, %c0_22] : memref<32x32xf32, #tpu.memory_space<vmem>>, vector<32x32xf32>
    %c0_23 = arith.constant 0 : index
    %c0_24 = arith.constant 0 : index
    %78 = vector.load %arg2[%c0_23, %c0_24] : memref<32x32xf32, #tpu.memory_space<vmem>>, vector<32x32xf32>
    %c0_25 = arith.constant 0 : index
    %c0_26 = arith.constant 0 : index
    %c0_27 = arith.constant 0 : index
    %79 = vector.load %arg4[%c0_25, %c0_26, %c0_27] : memref<2x32x32xf32, #tpu.memory_space<vmem>>, vector<1x32x32xf32>
    %80 = vector.shape_cast %79 : vector<1x32x32xf32> to vector<32x32xf32>
    %c0_28 = arith.constant 0 : index
    %c0_29 = arith.constant 0 : index
    %c0_30 = arith.constant 0 : index
    %81 = vector.load %arg5[%c0_28, %c0_29, %c0_30] : memref<2x1x32xf32, #tpu.memory_space<vmem>>, vector<1x1x32xf32>
    %82 = vector.shape_cast %81 : vector<1x1x32xf32> to vector<1x32xf32>
    %cst_31 = arith.constant dense<0.000000e+00> : vector<16x32xf32>
    %83 = tpu.matmul %76, %80, %cst_31 {dimension_numbers = #tpu.dot_dimension_numbers<[1], [0], [0], [1], [0, 0, 1, 1], [], []>} : vector<16x32xf32>, vector<32x32xf32>, vector<16x32xf32> -> vector<16x32xf32>
    %84 = vector.broadcast %82 : vector<1x32xf32> to vector<16x32xf32>
    %85 = arith.addf %83, %84 : vector<16x32xf32>
    %86 = arith.mulf %85, %85 : vector<16x32xf32>
    %87 = arith.mulf %85, %86 : vector<16x32xf32>
    %cst_32 = arith.constant 4.471500e-02 : f32
    %88 = vector.broadcast %cst_32 : f32 to vector<16x32xf32>
    %89 = arith.mulf %88, %87 : vector<16x32xf32>
    %90 = arith.addf %85, %89 : vector<16x32xf32>
    %cst_33 = arith.constant 0.797884583 : f32
    %91 = vector.broadcast %cst_33 : f32 to vector<16x32xf32>
    %92 = arith.mulf %91, %90 : vector<16x32xf32>
    %93 = math.tanh %92 : vector<16x32xf32>
    %cst_34 = arith.constant 1.000000e+00 : f32
    %94 = vector.broadcast %cst_34 : f32 to vector<16x32xf32>
    %95 = arith.addf %94, %93 : vector<16x32xf32>
    %cst_35 = arith.constant 5.000000e-01 : f32
    %96 = vector.broadcast %cst_35 : f32 to vector<16x32xf32>
    %97 = arith.mulf %96, %95 : vector<16x32xf32>
    %98 = arith.mulf %85, %97 : vector<16x32xf32>
    %c0_36 = arith.constant 0 : index
    %c0_37 = arith.constant 0 : index
    %c0_38 = arith.constant 0 : index
    %99 = vector.load %arg6[%c0_36, %c0_37, %c0_38] : memref<2x32x32xf32, #tpu.memory_space<vmem>>, vector<1x32x32xf32>
    %100 = vector.shape_cast %99 : vector<1x32x32xf32> to vector<32x32xf32>
    %c0_39 = arith.constant 0 : index
    %c0_40 = arith.constant 0 : index
    %c0_41 = arith.constant 0 : index
    %101 = vector.load %arg7[%c0_39, %c0_40, %c0_41] : memref<2x1x32xf32, #tpu.memory_space<vmem>>, vector<1x1x32xf32>
    %102 = vector.shape_cast %101 : vector<1x1x32xf32> to vector<1x32xf32>
    %cst_42 = arith.constant dense<0.000000e+00> : vector<16x32xf32>
    %103 = tpu.matmul %98, %100, %cst_42 {dimension_numbers = #tpu.dot_dimension_numbers<[1], [0], [0], [1], [0, 0, 1, 1], [], []>} : vector<16x32xf32>, vector<32x32xf32>, vector<16x32xf32> -> vector<16x32xf32>
    %104 = vector.broadcast %102 : vector<1x32xf32> to vector<16x32xf32>
    %105 = arith.addf %103, %104 : vector<16x32xf32>
    %c0_43 = arith.constant 0 : index
    %c0_44 = arith.constant 0 : index
    %c0_45 = arith.constant 0 : index
    %106 = vector.load %arg8[%c0_43, %c0_44, %c0_45] : memref<2x1x32xf32, #tpu.memory_space<vmem>>, vector<1x1x32xf32>
    %107 = vector.shape_cast %106 : vector<1x1x32xf32> to vector<1x32xf32>
    %c0_46 = arith.constant 0 : index
    %c0_47 = arith.constant 0 : index
    %c0_48 = arith.constant 0 : index
    %108 = vector.load %arg9[%c0_46, %c0_47, %c0_48] : memref<2x1x32xf32, #tpu.memory_space<vmem>>, vector<1x1x32xf32>
    %109 = vector.shape_cast %108 : vector<1x1x32xf32> to vector<1x32xf32>
    %cst_49 = arith.constant dense<0.000000e+00> : vector<16xf32>
    %110 = vector.multi_reduction <add>, %105, %cst_49 [1] : vector<16x32xf32> to vector<16xf32>
    %111 = vector.shape_cast %110 : vector<16xf32> to vector<16x1xf32>
    %cst_50 = arith.constant 3.200000e+01 : f32
    %112 = vector.broadcast %cst_50 : f32 to vector<16x1xf32>
    %113 = arith.divf %111, %112 : vector<16x1xf32>
    %114 = vector.broadcast %113 : vector<16x1xf32> to vector<16x32xf32>
    %115 = arith.subf %105, %114 : vector<16x32xf32>
    %116 = arith.mulf %115, %115 : vector<16x32xf32>
    %cst_51 = arith.constant dense<0.000000e+00> : vector<16xf32>
    %117 = vector.multi_reduction <add>, %116, %cst_51 [1] : vector<16x32xf32> to vector<16xf32>
    %118 = vector.shape_cast %117 : vector<16xf32> to vector<16x1xf32>
    %cst_52 = arith.constant 3.200000e+01 : f32
    %119 = vector.broadcast %cst_52 : f32 to vector<16x1xf32>
    %120 = arith.divf %118, %119 : vector<16x1xf32>
    %121 = vector.broadcast %113 : vector<16x1xf32> to vector<16x32xf32>
    %122 = arith.subf %105, %121 : vector<16x32xf32>
    %cst_53 = arith.constant 9.99999974E-6 : f32
    %123 = vector.broadcast %cst_53 : f32 to vector<16x1xf32>
    %124 = arith.addf %120, %123 : vector<16x1xf32>
    %125 = math.rsqrt %124 : vector<16x1xf32>
    %126 = vector.broadcast %125 : vector<16x1xf32> to vector<16x32xf32>
    %127 = arith.mulf %122, %126 : vector<16x32xf32>
    %128 = vector.broadcast %107 : vector<1x32xf32> to vector<16x32xf32>
    %129 = arith.mulf %127, %128 : vector<16x32xf32>
    %130 = vector.broadcast %109 : vector<1x32xf32> to vector<16x32xf32>
    %131 = arith.addf %129, %130 : vector<16x32xf32>
    %132 = arith.addf %78, %77 : vector<32x32xf32>
    %c0_54 = arith.constant 0 : index
    %c0_55 = arith.constant 0 : index
    %c0_56 = arith.constant 0 : index
    %133 = vector.load %arg20[%c0_54, %c0_55, %c0_56] : memref<2x32x32xf32, #tpu.memory_space<vmem>>, vector<1x32x32xf32>
    %134 = vector.shape_cast %133 : vector<1x32x32xf32> to vector<32x32xf32>
    %c0_57 = arith.constant 0 : index
    %c0_58 = arith.constant 0 : index
    %c0_59 = arith.constant 0 : index
    %135 = vector.load %arg21[%c0_57, %c0_58, %c0_59] : memref<2x1x32xf32, #tpu.memory_space<vmem>>, vector<1x1x32xf32>
    %136 = vector.shape_cast %135 : vector<1x1x32xf32> to vector<1x32xf32>
    %c0_60 = arith.constant 0 : index
    %c0_61 = arith.constant 0 : index
    %c0_62 = arith.constant 0 : index
    %137 = vector.load %arg22[%c0_60, %c0_61, %c0_62] : memref<2x32x32xf32, #tpu.memory_space<vmem>>, vector<1x32x32xf32>
    %138 = vector.shape_cast %137 : vector<1x32x32xf32> to vector<32x32xf32>
    %c0_63 = arith.constant 0 : index
    %c0_64 = arith.constant 0 : index
    %c0_65 = arith.constant 0 : index
    %139 = vector.load %arg23[%c0_63, %c0_64, %c0_65] : memref<2x1x32xf32, #tpu.memory_space<vmem>>, vector<1x1x32xf32>
    %140 = vector.shape_cast %139 : vector<1x1x32xf32> to vector<1x32xf32>
    %c0_66 = arith.constant 0 : index
    %c0_67 = arith.constant 0 : index
    %c0_68 = arith.constant 0 : index
    %141 = vector.load %arg24[%c0_66, %c0_67, %c0_68] : memref<2x32x32xf32, #tpu.memory_space<vmem>>, vector<1x32x32xf32>
    %142 = vector.shape_cast %141 : vector<1x32x32xf32> to vector<32x32xf32>
    %c0_69 = arith.constant 0 : index
    %c0_70 = arith.constant 0 : index
    %c0_71 = arith.constant 0 : index
    %143 = vector.load %arg25[%c0_69, %c0_70, %c0_71] : memref<2x1x32xf32, #tpu.memory_space<vmem>>, vector<1x1x32xf32>
    %144 = vector.shape_cast %143 : vector<1x1x32xf32> to vector<1x32xf32>
    %c0_72 = arith.constant 0 : index
    %c0_73 = arith.constant 0 : index
    %c0_74 = arith.constant 0 : index
    %145 = vector.load %arg26[%c0_72, %c0_73, %c0_74] : memref<2x32x32xf32, #tpu.memory_space<vmem>>, vector<1x32x32xf32>
    %146 = vector.shape_cast %145 : vector<1x32x32xf32> to vector<32x32xf32>
    %c0_75 = arith.constant 0 : index
    %c0_76 = arith.constant 0 : index
    %c0_77 = arith.constant 0 : index
    %147 = vector.load %arg27[%c0_75, %c0_76, %c0_77] : memref<2x1x32xf32, #tpu.memory_space<vmem>>, vector<1x1x32xf32>
    %148 = vector.shape_cast %147 : vector<1x1x32xf32> to vector<1x32xf32>
    %cst_78 = arith.constant dense<0.000000e+00> : vector<32x32xf32>
    %149 = tpu.matmul %132, %134, %cst_78 {dimension_numbers = #tpu.dot_dimension_numbers<[1], [0], [0], [1], [0, 0, 1, 1], [], []>} : vector<32x32xf32>, vector<32x32xf32>, vector<32x32xf32> -> vector<32x32xf32>
    %150 = vector.broadcast %136 : vector<1x32xf32> to vector<32x32xf32>
    %151 = arith.addf %149, %150 : vector<32x32xf32>
    %cst_79 = arith.constant 0.353553385 : f32
    %152 = vector.broadcast %cst_79 : f32 to vector<32x32xf32>
    %153 = arith.mulf %151, %152 : vector<32x32xf32>
    %cst_80 = arith.constant dense<0.000000e+00> : vector<16x32xf32>
    %154 = tpu.matmul %131, %138, %cst_80 {dimension_numbers = #tpu.dot_dimension_numbers<[1], [0], [0], [1], [0, 0, 1, 1], [], []>} : vector<16x32xf32>, vector<32x32xf32>, vector<16x32xf32> -> vector<16x32xf32>
    %155 = vector.broadcast %140 : vector<1x32xf32> to vector<16x32xf32>
    %156 = arith.addf %154, %155 : vector<16x32xf32>
    %cst_81 = arith.constant dense<0.000000e+00> : vector<16x32xf32>
    %157 = tpu.matmul %131, %142, %cst_81 {dimension_numbers = #tpu.dot_dimension_numbers<[1], [0], [0], [1], [0, 0, 1, 1], [], []>} : vector<16x32xf32>, vector<32x32xf32>, vector<16x32xf32> -> vector<16x32xf32>
    %158 = vector.broadcast %144 : vector<1x32xf32> to vector<16x32xf32>
    %159 = arith.addf %157, %158 : vector<16x32xf32>
    %160 = vector.broadcast %7 : vector<1x32xf32> to vector<32x32xf32>
    %161 = arith.mulf %153, %160 : vector<32x32xf32>
    %cst_82 = arith.constant dense<0.000000e+00> : vector<32x16xf32>
    %162 = tpu.matmul %161, %156, %cst_82 {dimension_numbers = #tpu.dot_dimension_numbers<[1], [1], [0], [0], [0, 0, 1, 0], [], []>} : vector<32x32xf32>, vector<16x32xf32>, vector<32x16xf32> -> vector<32x16xf32>
    %163 = arith.addf %162, %53 : vector<32x16xf32>
    %cst_83 = arith.constant dense<0xFF800000> : vector<32xf32>
    %164 = vector.multi_reduction <maximumf>, %163, %cst_83 [1] : vector<32x16xf32> to vector<32xf32>
    %165 = vector.shape_cast %164 : vector<32xf32> to vector<32x1xf32>
    %166 = vector.broadcast %165 : vector<32x1xf32> to vector<32x16xf32>
    %167 = arith.subf %163, %166 : vector<32x16xf32>
    %168 = math.exp %167 : vector<32x16xf32>
    %cst_84 = arith.constant dense<0.000000e+00> : vector<32xf32>
    %169 = vector.multi_reduction <add>, %168, %cst_84 [1] : vector<32x16xf32> to vector<32xf32>
    %170 = vector.shape_cast %169 : vector<32xf32> to vector<32x1xf32>
    %171 = tpu.reciprocal %170 {approx = true} : vector<32x1xf32> -> vector<32x1xf32>
    %172 = vector.broadcast %171 : vector<32x1xf32> to vector<32x16xf32>
    %173 = arith.mulf %168, %172 : vector<32x16xf32>
    %174 = vector.broadcast %7 : vector<1x32xf32> to vector<16x32xf32>
    %175 = arith.mulf %159, %174 : vector<16x32xf32>
    %cst_85 = arith.constant dense<0.000000e+00> : vector<32x32xf32>
    %176 = tpu.matmul %173, %175, %cst_85 {dimension_numbers = #tpu.dot_dimension_numbers<[1], [0], [0], [1], [0, 0, 1, 1], [], []>} : vector<32x16xf32>, vector<16x32xf32>, vector<32x32xf32> -> vector<32x32xf32>
    %177 = vector.broadcast %14 : vector<1x32xf32> to vector<32x32xf32>
    %178 = arith.mulf %153, %177 : vector<32x32xf32>
    %cst_86 = arith.constant dense<0.000000e+00> : vector<32x16xf32>
    %179 = tpu.matmul %178, %156, %cst_86 {dimension_numbers = #tpu.dot_dimension_numbers<[1], [1], [0], [0], [0, 0, 1, 0], [], []>} : vector<32x32xf32>, vector<16x32xf32>, vector<32x16xf32> -> vector<32x16xf32>
    %180 = arith.addf %179, %53 : vector<32x16xf32>
    %cst_87 = arith.constant dense<0xFF800000> : vector<32xf32>
    %181 = vector.multi_reduction <maximumf>, %180, %cst_87 [1] : vector<32x16xf32> to vector<32xf32>
    %182 = vector.shape_cast %181 : vector<32xf32> to vector<32x1xf32>
    %183 = vector.broadcast %182 : vector<32x1xf32> to vector<32x16xf32>
    %184 = arith.subf %180, %183 : vector<32x16xf32>
    %185 = math.exp %184 : vector<32x16xf32>
    %cst_88 = arith.constant dense<0.000000e+00> : vector<32xf32>
    %186 = vector.multi_reduction <add>, %185, %cst_88 [1] : vector<32x16xf32> to vector<32xf32>
    %187 = vector.shape_cast %186 : vector<32xf32> to vector<32x1xf32>
    %188 = tpu.reciprocal %187 {approx = true} : vector<32x1xf32> -> vector<32x1xf32>
    %189 = vector.broadcast %188 : vector<32x1xf32> to vector<32x16xf32>
    %190 = arith.mulf %185, %189 : vector<32x16xf32>
    %191 = vector.broadcast %14 : vector<1x32xf32> to vector<16x32xf32>
    %192 = arith.mulf %159, %191 : vector<16x32xf32>
    %cst_89 = arith.constant dense<0.000000e+00> : vector<32x32xf32>
    %193 = tpu.matmul %190, %192, %cst_89 {dimension_numbers = #tpu.dot_dimension_numbers<[1], [0], [0], [1], [0, 0, 1, 1], [], []>} : vector<32x16xf32>, vector<16x32xf32>, vector<32x32xf32> -> vector<32x32xf32>
    %194 = arith.addf %176, %193 : vector<32x32xf32>
    %195 = vector.broadcast %21 : vector<1x32xf32> to vector<32x32xf32>
    %196 = arith.mulf %153, %195 : vector<32x32xf32>
    %cst_90 = arith.constant dense<0.000000e+00> : vector<32x16xf32>
    %197 = tpu.matmul %196, %156, %cst_90 {dimension_numbers = #tpu.dot_dimension_numbers<[1], [1], [0], [0], [0, 0, 1, 0], [], []>} : vector<32x32xf32>, vector<16x32xf32>, vector<32x16xf32> -> vector<32x16xf32>
    %198 = arith.addf %197, %53 : vector<32x16xf32>
    %cst_91 = arith.constant dense<0xFF800000> : vector<32xf32>
    %199 = vector.multi_reduction <maximumf>, %198, %cst_91 [1] : vector<32x16xf32> to vector<32xf32>
    %200 = vector.shape_cast %199 : vector<32xf32> to vector<32x1xf32>
    %201 = vector.broadcast %200 : vector<32x1xf32> to vector<32x16xf32>
    %202 = arith.subf %198, %201 : vector<32x16xf32>
    %203 = math.exp %202 : vector<32x16xf32>
    %cst_92 = arith.constant dense<0.000000e+00> : vector<32xf32>
    %204 = vector.multi_reduction <add>, %203, %cst_92 [1] : vector<32x16xf32> to vector<32xf32>
    %205 = vector.shape_cast %204 : vector<32xf32> to vector<32x1xf32>
    %206 = tpu.reciprocal %205 {approx = true} : vector<32x1xf32> -> vector<32x1xf32>
    %207 = vector.broadcast %206 : vector<32x1xf32> to vector<32x16xf32>
    %208 = arith.mulf %203, %207 : vector<32x16xf32>
    %209 = vector.broadcast %21 : vector<1x32xf32> to vector<16x32xf32>
    %210 = arith.mulf %159, %209 : vector<16x32xf32>
    %cst_93 = arith.constant dense<0.000000e+00> : vector<32x32xf32>
    %211 = tpu.matmul %208, %210, %cst_93 {dimension_numbers = #tpu.dot_dimension_numbers<[1], [0], [0], [1], [0, 0, 1, 1], [], []>} : vector<32x16xf32>, vector<16x32xf32>, vector<32x32xf32> -> vector<32x32xf32>
    %212 = arith.addf %194, %211 : vector<32x32xf32>
    %213 = vector.broadcast %28 : vector<1x32xf32> to vector<32x32xf32>
    %214 = arith.mulf %153, %213 : vector<32x32xf32>
    %cst_94 = arith.constant dense<0.000000e+00> : vector<32x16xf32>
    %215 = tpu.matmul %214, %156, %cst_94 {dimension_numbers = #tpu.dot_dimension_numbers<[1], [1], [0], [0], [0, 0, 1, 0], [], []>} : vector<32x32xf32>, vector<16x32xf32>, vector<32x16xf32> -> vector<32x16xf32>
    %216 = arith.addf %215, %53 : vector<32x16xf32>
    %cst_95 = arith.constant dense<0xFF800000> : vector<32xf32>
    %217 = vector.multi_reduction <maximumf>, %216, %cst_95 [1] : vector<32x16xf32> to vector<32xf32>
    %218 = vector.shape_cast %217 : vector<32xf32> to vector<32x1xf32>
    %219 = vector.broadcast %218 : vector<32x1xf32> to vector<32x16xf32>
    %220 = arith.subf %216, %219 : vector<32x16xf32>
    %221 = math.exp %220 : vector<32x16xf32>
    %cst_96 = arith.constant dense<0.000000e+00> : vector<32xf32>
    %222 = vector.multi_reduction <add>, %221, %cst_96 [1] : vector<32x16xf32> to vector<32xf32>
    %223 = vector.shape_cast %222 : vector<32xf32> to vector<32x1xf32>
    %224 = tpu.reciprocal %223 {approx = true} : vector<32x1xf32> -> vector<32x1xf32>
    %225 = vector.broadcast %224 : vector<32x1xf32> to vector<32x16xf32>
    %226 = arith.mulf %221, %225 : vector<32x16xf32>
    %227 = vector.broadcast %28 : vector<1x32xf32> to vector<16x32xf32>
    %228 = arith.mulf %159, %227 : vector<16x32xf32>
    %cst_97 = arith.constant dense<0.000000e+00> : vector<32x32xf32>
    %229 = tpu.matmul %226, %228, %cst_97 {dimension_numbers = #tpu.dot_dimension_numbers<[1], [0], [0], [1], [0, 0, 1, 1], [], []>} : vector<32x16xf32>, vector<16x32xf32>, vector<32x32xf32> -> vector<32x32xf32>
    %230 = arith.addf %212, %229 : vector<32x32xf32>
    %cst_98 = arith.constant dense<0.000000e+00> : vector<32x32xf32>
    %231 = tpu.matmul %230, %146, %cst_98 {dimension_numbers = #tpu.dot_dimension_numbers<[1], [0], [0], [1], [0, 0, 1, 1], [], []>} : vector<32x32xf32>, vector<32x32xf32>, vector<32x32xf32> -> vector<32x32xf32>
    %232 = vector.broadcast %148 : vector<1x32xf32> to vector<32x32xf32>
    %233 = arith.addf %231, %232 : vector<32x32xf32>
    %234 = arith.addf %78, %233 : vector<32x32xf32>
    %c0_99 = arith.constant 0 : index
    %c0_100 = arith.constant 0 : index
    %c0_101 = arith.constant 0 : index
    %235 = vector.load %arg28[%c0_99, %c0_100, %c0_101] : memref<2x1x32xf32, #tpu.memory_space<vmem>>, vector<1x1x32xf32>
    %236 = vector.shape_cast %235 : vector<1x1x32xf32> to vector<1x32xf32>
    %c0_102 = arith.constant 0 : index
    %c0_103 = arith.constant 0 : index
    %c0_104 = arith.constant 0 : index
    %237 = vector.load %arg29[%c0_102, %c0_103, %c0_104] : memref<2x1x32xf32, #tpu.memory_space<vmem>>, vector<1x1x32xf32>
    %238 = vector.shape_cast %237 : vector<1x1x32xf32> to vector<1x32xf32>
    %cst_105 = arith.constant dense<0.000000e+00> : vector<32xf32>
    %239 = vector.multi_reduction <add>, %234, %cst_105 [1] : vector<32x32xf32> to vector<32xf32>
    %240 = vector.shape_cast %239 : vector<32xf32> to vector<32x1xf32>
    %cst_106 = arith.constant 3.200000e+01 : f32
    %241 = vector.broadcast %cst_106 : f32 to vector<32x1xf32>
    %242 = arith.divf %240, %241 : vector<32x1xf32>
    %243 = vector.broadcast %242 : vector<32x1xf32> to vector<32x32xf32>
    %244 = arith.subf %234, %243 : vector<32x32xf32>
    %245 = arith.mulf %244, %244 : vector<32x32xf32>
    %cst_107 = arith.constant dense<0.000000e+00> : vector<32xf32>
    %246 = vector.multi_reduction <add>, %245, %cst_107 [1] : vector<32x32xf32> to vector<32xf32>
    %247 = vector.shape_cast %246 : vector<32xf32> to vector<32x1xf32>
    %cst_108 = arith.constant 3.200000e+01 : f32
    %248 = vector.broadcast %cst_108 : f32 to vector<32x1xf32>
    %249 = arith.divf %247, %248 : vector<32x1xf32>
    %250 = vector.broadcast %242 : vector<32x1xf32> to vector<32x32xf32>
    %251 = arith.subf %234, %250 : vector<32x32xf32>
    %cst_109 = arith.constant 9.99999974E-6 : f32
    %252 = vector.broadcast %cst_109 : f32 to vector<32x1xf32>
    %253 = arith.addf %249, %252 : vector<32x1xf32>
    %254 = math.rsqrt %253 : vector<32x1xf32>
    %255 = vector.broadcast %254 : vector<32x1xf32> to vector<32x32xf32>
    %256 = arith.mulf %251, %255 : vector<32x32xf32>
    %257 = vector.broadcast %236 : vector<1x32xf32> to vector<32x32xf32>
    %258 = arith.mulf %256, %257 : vector<32x32xf32>
    %259 = vector.broadcast %238 : vector<1x32xf32> to vector<32x32xf32>
    %260 = arith.addf %258, %259 : vector<32x32xf32>
    %c0_110 = arith.constant 0 : index
    %c0_111 = arith.constant 0 : index
    %c0_112 = arith.constant 0 : index
    %261 = vector.load %arg30[%c0_110, %c0_111, %c0_112] : memref<2x32x128xf32, #tpu.memory_space<vmem>>, vector<1x32x128xf32>
    %262 = vector.shape_cast %261 : vector<1x32x128xf32> to vector<32x128xf32>
    %c0_113 = arith.constant 0 : index
    %c0_114 = arith.constant 0 : index
    %c0_115 = arith.constant 0 : index
    %263 = vector.load %arg31[%c0_113, %c0_114, %c0_115] : memref<2x1x128xf32, #tpu.memory_space<vmem>>, vector<1x1x128xf32>
    %264 = vector.shape_cast %263 : vector<1x1x128xf32> to vector<1x128xf32>
    %cst_116 = arith.constant dense<0.000000e+00> : vector<32x128xf32>
    %265 = tpu.matmul %260, %262, %cst_116 {dimension_numbers = #tpu.dot_dimension_numbers<[1], [0], [0], [1], [0, 0, 1, 1], [], []>} : vector<32x32xf32>, vector<32x128xf32>, vector<32x128xf32> -> vector<32x128xf32>
    %266 = vector.broadcast %264 : vector<1x128xf32> to vector<32x128xf32>
    %267 = arith.addf %265, %266 : vector<32x128xf32>
    %268 = arith.mulf %267, %267 : vector<32x128xf32>
    %269 = arith.mulf %267, %268 : vector<32x128xf32>
    %cst_117 = arith.constant 4.471500e-02 : f32
    %270 = vector.broadcast %cst_117 : f32 to vector<32x128xf32>
    %271 = arith.mulf %270, %269 : vector<32x128xf32>
    %272 = arith.addf %267, %271 : vector<32x128xf32>
    %cst_118 = arith.constant 0.797884583 : f32
    %273 = vector.broadcast %cst_118 : f32 to vector<32x128xf32>
    %274 = arith.mulf %273, %272 : vector<32x128xf32>
    %275 = math.tanh %274 : vector<32x128xf32>
    %cst_119 = arith.constant 1.000000e+00 : f32
    %276 = vector.broadcast %cst_119 : f32 to vector<32x128xf32>
    %277 = arith.addf %276, %275 : vector<32x128xf32>
    %cst_120 = arith.constant 5.000000e-01 : f32
    %278 = vector.broadcast %cst_120 : f32 to vector<32x128xf32>
    %279 = arith.mulf %278, %277 : vector<32x128xf32>
    %280 = arith.mulf %267, %279 : vector<32x128xf32>
    %c0_121 = arith.constant 0 : index
    %c0_122 = arith.constant 0 : index
    %c0_123 = arith.constant 0 : index
    %281 = vector.load %arg32[%c0_121, %c0_122, %c0_123] : memref<2x128x32xf32, #tpu.memory_space<vmem>>, vector<1x128x32xf32>
    %282 = vector.shape_cast %281 : vector<1x128x32xf32> to vector<128x32xf32>
    %c0_124 = arith.constant 0 : index
    %c0_125 = arith.constant 0 : index
    %c0_126 = arith.constant 0 : index
    %283 = vector.load %arg33[%c0_124, %c0_125, %c0_126] : memref<2x1x32xf32, #tpu.memory_space<vmem>>, vector<1x1x32xf32>
    %284 = vector.shape_cast %283 : vector<1x1x32xf32> to vector<1x32xf32>
    %cst_127 = arith.constant dense<0.000000e+00> : vector<32x32xf32>
    %285 = tpu.matmul %280, %282, %cst_127 {dimension_numbers = #tpu.dot_dimension_numbers<[1], [0], [0], [1], [0, 0, 1, 1], [], []>} : vector<32x128xf32>, vector<128x32xf32>, vector<32x32xf32> -> vector<32x32xf32>
    %286 = vector.broadcast %284 : vector<1x32xf32> to vector<32x32xf32>
    %287 = arith.addf %285, %286 : vector<32x32xf32>
    %288 = arith.addf %260, %287 : vector<32x32xf32>
    %c0_128 = arith.constant 0 : index
    %c0_129 = arith.constant 0 : index
    %c0_130 = arith.constant 0 : index
    %289 = vector.load %arg34[%c0_128, %c0_129, %c0_130] : memref<2x1x32xf32, #tpu.memory_space<vmem>>, vector<1x1x32xf32>
    %290 = vector.shape_cast %289 : vector<1x1x32xf32> to vector<1x32xf32>
    %c0_131 = arith.constant 0 : index
    %c0_132 = arith.constant 0 : index
    %c0_133 = arith.constant 0 : index
    %291 = vector.load %arg35[%c0_131, %c0_132, %c0_133] : memref<2x1x32xf32, #tpu.memory_space<vmem>>, vector<1x1x32xf32>
    %292 = vector.shape_cast %291 : vector<1x1x32xf32> to vector<1x32xf32>
    %cst_134 = arith.constant dense<0.000000e+00> : vector<32xf32>
    %293 = vector.multi_reduction <add>, %288, %cst_134 [1] : vector<32x32xf32> to vector<32xf32>
    %294 = vector.shape_cast %293 : vector<32xf32> to vector<32x1xf32>
    %cst_135 = arith.constant 3.200000e+01 : f32
    %295 = vector.broadcast %cst_135 : f32 to vector<32x1xf32>
    %296 = arith.divf %294, %295 : vector<32x1xf32>
    %297 = vector.broadcast %296 : vector<32x1xf32> to vector<32x32xf32>
    %298 = arith.subf %288, %297 : vector<32x32xf32>
    %299 = arith.mulf %298, %298 : vector<32x32xf32>
    %cst_136 = arith.constant dense<0.000000e+00> : vector<32xf32>
    %300 = vector.multi_reduction <add>, %299, %cst_136 [1] : vector<32x32xf32> to vector<32xf32>
    %301 = vector.shape_cast %300 : vector<32xf32> to vector<32x1xf32>
    %cst_137 = arith.constant 3.200000e+01 : f32
    %302 = vector.broadcast %cst_137 : f32 to vector<32x1xf32>
    %303 = arith.divf %301, %302 : vector<32x1xf32>
    %304 = vector.broadcast %296 : vector<32x1xf32> to vector<32x32xf32>
    %305 = arith.subf %288, %304 : vector<32x32xf32>
    %cst_138 = arith.constant 9.99999974E-6 : f32
    %306 = vector.broadcast %cst_138 : f32 to vector<32x1xf32>
    %307 = arith.addf %303, %306 : vector<32x1xf32>
    %308 = math.rsqrt %307 : vector<32x1xf32>
    %309 = vector.broadcast %308 : vector<32x1xf32> to vector<32x32xf32>
    %310 = arith.mulf %305, %309 : vector<32x32xf32>
    %311 = vector.broadcast %290 : vector<1x32xf32> to vector<32x32xf32>
    %312 = arith.mulf %310, %311 : vector<32x32xf32>
    %313 = vector.broadcast %292 : vector<1x32xf32> to vector<32x32xf32>
    %314 = arith.addf %312, %313 : vector<32x32xf32>
    %c1 = arith.constant 1 : index
    %c0_139 = arith.constant 0 : index
    %c0_140 = arith.constant 0 : index
    %315 = vector.load %arg4[%c1, %c0_139, %c0_140] : memref<2x32x32xf32, #tpu.memory_space<vmem>>, vector<1x32x32xf32>
    %316 = vector.shape_cast %315 : vector<1x32x32xf32> to vector<32x32xf32>
    %c1_141 = arith.constant 1 : index
    %c0_142 = arith.constant 0 : index
    %c0_143 = arith.constant 0 : index
    %317 = vector.load %arg5[%c1_141, %c0_142, %c0_143] : memref<2x1x32xf32, #tpu.memory_space<vmem>>, vector<1x1x32xf32>
    %318 = vector.shape_cast %317 : vector<1x1x32xf32> to vector<1x32xf32>
    %cst_144 = arith.constant dense<0.000000e+00> : vector<16x32xf32>
    %319 = tpu.matmul %76, %316, %cst_144 {dimension_numbers = #tpu.dot_dimension_numbers<[1], [0], [0], [1], [0, 0, 1, 1], [], []>} : vector<16x32xf32>, vector<32x32xf32>, vector<16x32xf32> -> vector<16x32xf32>
    %320 = vector.broadcast %318 : vector<1x32xf32> to vector<16x32xf32>
    %321 = arith.addf %319, %320 : vector<16x32xf32>
    %322 = arith.mulf %321, %321 : vector<16x32xf32>
    %323 = arith.mulf %321, %322 : vector<16x32xf32>
    %cst_145 = arith.constant 4.471500e-02 : f32
    %324 = vector.broadcast %cst_145 : f32 to vector<16x32xf32>
    %325 = arith.mulf %324, %323 : vector<16x32xf32>
    %326 = arith.addf %321, %325 : vector<16x32xf32>
    %cst_146 = arith.constant 0.797884583 : f32
    %327 = vector.broadcast %cst_146 : f32 to vector<16x32xf32>
    %328 = arith.mulf %327, %326 : vector<16x32xf32>
    %329 = math.tanh %328 : vector<16x32xf32>
    %cst_147 = arith.constant 1.000000e+00 : f32
    %330 = vector.broadcast %cst_147 : f32 to vector<16x32xf32>
    %331 = arith.addf %330, %329 : vector<16x32xf32>
    %cst_148 = arith.constant 5.000000e-01 : f32
    %332 = vector.broadcast %cst_148 : f32 to vector<16x32xf32>
    %333 = arith.mulf %332, %331 : vector<16x32xf32>
    %334 = arith.mulf %321, %333 : vector<16x32xf32>
    %c1_149 = arith.constant 1 : index
    %c0_150 = arith.constant 0 : index
    %c0_151 = arith.constant 0 : index
    %335 = vector.load %arg6[%c1_149, %c0_150, %c0_151] : memref<2x32x32xf32, #tpu.memory_space<vmem>>, vector<1x32x32xf32>
    %336 = vector.shape_cast %335 : vector<1x32x32xf32> to vector<32x32xf32>
    %c1_152 = arith.constant 1 : index
    %c0_153 = arith.constant 0 : index
    %c0_154 = arith.constant 0 : index
    %337 = vector.load %arg7[%c1_152, %c0_153, %c0_154] : memref<2x1x32xf32, #tpu.memory_space<vmem>>, vector<1x1x32xf32>
    %338 = vector.shape_cast %337 : vector<1x1x32xf32> to vector<1x32xf32>
    %cst_155 = arith.constant dense<0.000000e+00> : vector<16x32xf32>
    %339 = tpu.matmul %334, %336, %cst_155 {dimension_numbers = #tpu.dot_dimension_numbers<[1], [0], [0], [1], [0, 0, 1, 1], [], []>} : vector<16x32xf32>, vector<32x32xf32>, vector<16x32xf32> -> vector<16x32xf32>
    %340 = vector.broadcast %338 : vector<1x32xf32> to vector<16x32xf32>
    %341 = arith.addf %339, %340 : vector<16x32xf32>
    %c1_156 = arith.constant 1 : index
    %c0_157 = arith.constant 0 : index
    %c0_158 = arith.constant 0 : index
    %342 = vector.load %arg8[%c1_156, %c0_157, %c0_158] : memref<2x1x32xf32, #tpu.memory_space<vmem>>, vector<1x1x32xf32>
    %343 = vector.shape_cast %342 : vector<1x1x32xf32> to vector<1x32xf32>
    %c1_159 = arith.constant 1 : index
    %c0_160 = arith.constant 0 : index
    %c0_161 = arith.constant 0 : index
    %344 = vector.load %arg9[%c1_159, %c0_160, %c0_161] : memref<2x1x32xf32, #tpu.memory_space<vmem>>, vector<1x1x32xf32>
    %345 = vector.shape_cast %344 : vector<1x1x32xf32> to vector<1x32xf32>
    %cst_162 = arith.constant dense<0.000000e+00> : vector<16xf32>
    %346 = vector.multi_reduction <add>, %341, %cst_162 [1] : vector<16x32xf32> to vector<16xf32>
    %347 = vector.shape_cast %346 : vector<16xf32> to vector<16x1xf32>
    %cst_163 = arith.constant 3.200000e+01 : f32
    %348 = vector.broadcast %cst_163 : f32 to vector<16x1xf32>
    %349 = arith.divf %347, %348 : vector<16x1xf32>
    %350 = vector.broadcast %349 : vector<16x1xf32> to vector<16x32xf32>
    %351 = arith.subf %341, %350 : vector<16x32xf32>
    %352 = arith.mulf %351, %351 : vector<16x32xf32>
    %cst_164 = arith.constant dense<0.000000e+00> : vector<16xf32>
    %353 = vector.multi_reduction <add>, %352, %cst_164 [1] : vector<16x32xf32> to vector<16xf32>
    %354 = vector.shape_cast %353 : vector<16xf32> to vector<16x1xf32>
    %cst_165 = arith.constant 3.200000e+01 : f32
    %355 = vector.broadcast %cst_165 : f32 to vector<16x1xf32>
    %356 = arith.divf %354, %355 : vector<16x1xf32>
    %357 = vector.broadcast %349 : vector<16x1xf32> to vector<16x32xf32>
    %358 = arith.subf %341, %357 : vector<16x32xf32>
    %cst_166 = arith.constant 9.99999974E-6 : f32
    %359 = vector.broadcast %cst_166 : f32 to vector<16x1xf32>
    %360 = arith.addf %356, %359 : vector<16x1xf32>
    %361 = math.rsqrt %360 : vector<16x1xf32>
    %362 = vector.broadcast %361 : vector<16x1xf32> to vector<16x32xf32>
    %363 = arith.mulf %358, %362 : vector<16x32xf32>
    %364 = vector.broadcast %343 : vector<1x32xf32> to vector<16x32xf32>
    %365 = arith.mulf %363, %364 : vector<16x32xf32>
    %366 = vector.broadcast %345 : vector<1x32xf32> to vector<16x32xf32>
    %367 = arith.addf %365, %366 : vector<16x32xf32>
    %368 = arith.addf %314, %77 : vector<32x32xf32>
    %c1_167 = arith.constant 1 : index
    %c0_168 = arith.constant 0 : index
    %c0_169 = arith.constant 0 : index
    %369 = vector.load %arg10[%c1_167, %c0_168, %c0_169] : memref<2x32x32xf32, #tpu.memory_space<vmem>>, vector<1x32x32xf32>
    %370 = vector.shape_cast %369 : vector<1x32x32xf32> to vector<32x32xf32>
    %c1_170 = arith.constant 1 : index
    %c0_171 = arith.constant 0 : index
    %c0_172 = arith.constant 0 : index
    %371 = vector.load %arg11[%c1_170, %c0_171, %c0_172] : memref<2x1x32xf32, #tpu.memory_space<vmem>>, vector<1x1x32xf32>
    %372 = vector.shape_cast %371 : vector<1x1x32xf32> to vector<1x32xf32>
    %c1_173 = arith.constant 1 : index
    %c0_174 = arith.constant 0 : index
    %c0_175 = arith.constant 0 : index
    %373 = vector.load %arg12[%c1_173, %c0_174, %c0_175] : memref<2x32x32xf32, #tpu.memory_space<vmem>>, vector<1x32x32xf32>
    %374 = vector.shape_cast %373 : vector<1x32x32xf32> to vector<32x32xf32>
    %c1_176 = arith.constant 1 : index
    %c0_177 = arith.constant 0 : index
    %c0_178 = arith.constant 0 : index
    %375 = vector.load %arg13[%c1_176, %c0_177, %c0_178] : memref<2x1x32xf32, #tpu.memory_space<vmem>>, vector<1x1x32xf32>
    %376 = vector.shape_cast %375 : vector<1x1x32xf32> to vector<1x32xf32>
    %c1_179 = arith.constant 1 : index
    %c0_180 = arith.constant 0 : index
    %c0_181 = arith.constant 0 : index
    %377 = vector.load %arg14[%c1_179, %c0_180, %c0_181] : memref<2x32x32xf32, #tpu.memory_space<vmem>>, vector<1x32x32xf32>
    %378 = vector.shape_cast %377 : vector<1x32x32xf32> to vector<32x32xf32>
    %c1_182 = arith.constant 1 : index
    %c0_183 = arith.constant 0 : index
    %c0_184 = arith.constant 0 : index
    %379 = vector.load %arg15[%c1_182, %c0_183, %c0_184] : memref<2x1x32xf32, #tpu.memory_space<vmem>>, vector<1x1x32xf32>
    %380 = vector.shape_cast %379 : vector<1x1x32xf32> to vector<1x32xf32>
    %c1_185 = arith.constant 1 : index
    %c0_186 = arith.constant 0 : index
    %c0_187 = arith.constant 0 : index
    %381 = vector.load %arg16[%c1_185, %c0_186, %c0_187] : memref<2x32x32xf32, #tpu.memory_space<vmem>>, vector<1x32x32xf32>
    %382 = vector.shape_cast %381 : vector<1x32x32xf32> to vector<32x32xf32>
    %c1_188 = arith.constant 1 : index
    %c0_189 = arith.constant 0 : index
    %c0_190 = arith.constant 0 : index
    %383 = vector.load %arg17[%c1_188, %c0_189, %c0_190] : memref<2x1x32xf32, #tpu.memory_space<vmem>>, vector<1x1x32xf32>
    %384 = vector.shape_cast %383 : vector<1x1x32xf32> to vector<1x32xf32>
    %cst_191 = arith.constant dense<0.000000e+00> : vector<32x32xf32>
    %385 = tpu.matmul %368, %370, %cst_191 {dimension_numbers = #tpu.dot_dimension_numbers<[1], [0], [0], [1], [0, 0, 1, 1], [], []>} : vector<32x32xf32>, vector<32x32xf32>, vector<32x32xf32> -> vector<32x32xf32>
    %386 = vector.broadcast %372 : vector<1x32xf32> to vector<32x32xf32>
    %387 = arith.addf %385, %386 : vector<32x32xf32>
    %cst_192 = arith.constant 0.353553385 : f32
    %388 = vector.broadcast %cst_192 : f32 to vector<32x32xf32>
    %389 = arith.mulf %387, %388 : vector<32x32xf32>
    %cst_193 = arith.constant dense<0.000000e+00> : vector<32x32xf32>
    %390 = tpu.matmul %368, %374, %cst_193 {dimension_numbers = #tpu.dot_dimension_numbers<[1], [0], [0], [1], [0, 0, 1, 1], [], []>} : vector<32x32xf32>, vector<32x32xf32>, vector<32x32xf32> -> vector<32x32xf32>
    %391 = vector.broadcast %376 : vector<1x32xf32> to vector<32x32xf32>
    %392 = arith.addf %390, %391 : vector<32x32xf32>
    %cst_194 = arith.constant dense<0.000000e+00> : vector<32x32xf32>
    %393 = tpu.matmul %314, %378, %cst_194 {dimension_numbers = #tpu.dot_dimension_numbers<[1], [0], [0], [1], [0, 0, 1, 1], [], []>} : vector<32x32xf32>, vector<32x32xf32>, vector<32x32xf32> -> vector<32x32xf32>
    %394 = vector.broadcast %380 : vector<1x32xf32> to vector<32x32xf32>
    %395 = arith.addf %393, %394 : vector<32x32xf32>
    %396 = vector.broadcast %7 : vector<1x32xf32> to vector<32x32xf32>
    %397 = arith.mulf %389, %396 : vector<32x32xf32>
    %cst_195 = arith.constant dense<0.000000e+00> : vector<32x32xf32>
    %398 = tpu.matmul %397, %392, %cst_195 {dimension_numbers = #tpu.dot_dimension_numbers<[1], [1], [0], [0], [0, 0, 1, 0], [], []>} : vector<32x32xf32>, vector<32x32xf32>, vector<32x32xf32> -> vector<32x32xf32>
    %399 = arith.addf %398, %75 : vector<32x32xf32>
    %cst_196 = arith.constant dense<0xFF800000> : vector<32xf32>
    %400 = vector.multi_reduction <maximumf>, %399, %cst_196 [1] : vector<32x32xf32> to vector<32xf32>
    %401 = vector.shape_cast %400 : vector<32xf32> to vector<32x1xf32>
    %402 = vector.broadcast %401 : vector<32x1xf32> to vector<32x32xf32>
    %403 = arith.subf %399, %402 : vector<32x32xf32>
    %404 = math.exp %403 : vector<32x32xf32>
    %cst_197 = arith.constant dense<0.000000e+00> : vector<32xf32>
    %405 = vector.multi_reduction <add>, %404, %cst_197 [1] : vector<32x32xf32> to vector<32xf32>
    %406 = vector.shape_cast %405 : vector<32xf32> to vector<32x1xf32>
    %407 = tpu.reciprocal %406 {approx = true} : vector<32x1xf32> -> vector<32x1xf32>
    %408 = vector.broadcast %407 : vector<32x1xf32> to vector<32x32xf32>
    %409 = arith.mulf %404, %408 : vector<32x32xf32>
    %410 = vector.broadcast %7 : vector<1x32xf32> to vector<32x32xf32>
    %411 = arith.mulf %395, %410 : vector<32x32xf32>
    %cst_198 = arith.constant dense<0.000000e+00> : vector<32x32xf32>
    %412 = tpu.matmul %409, %411, %cst_198 {dimension_numbers = #tpu.dot_dimension_numbers<[1], [0], [0], [1], [0, 0, 1, 1], [], []>} : vector<32x32xf32>, vector<32x32xf32>, vector<32x32xf32> -> vector<32x32xf32>
    %413 = vector.broadcast %14 : vector<1x32xf32> to vector<32x32xf32>
    %414 = arith.mulf %389, %413 : vector<32x32xf32>
    %cst_199 = arith.constant dense<0.000000e+00> : vector<32x32xf32>
    %415 = tpu.matmul %414, %392, %cst_199 {dimension_numbers = #tpu.dot_dimension_numbers<[1], [1], [0], [0], [0, 0, 1, 0], [], []>} : vector<32x32xf32>, vector<32x32xf32>, vector<32x32xf32> -> vector<32x32xf32>
    %416 = arith.addf %415, %75 : vector<32x32xf32>
    %cst_200 = arith.constant dense<0xFF800000> : vector<32xf32>
    %417 = vector.multi_reduction <maximumf>, %416, %cst_200 [1] : vector<32x32xf32> to vector<32xf32>
    %418 = vector.shape_cast %417 : vector<32xf32> to vector<32x1xf32>
    %419 = vector.broadcast %418 : vector<32x1xf32> to vector<32x32xf32>
    %420 = arith.subf %416, %419 : vector<32x32xf32>
    %421 = math.exp %420 : vector<32x32xf32>
    %cst_201 = arith.constant dense<0.000000e+00> : vector<32xf32>
    %422 = vector.multi_reduction <add>, %421, %cst_201 [1] : vector<32x32xf32> to vector<32xf32>
    %423 = vector.shape_cast %422 : vector<32xf32> to vector<32x1xf32>
    %424 = tpu.reciprocal %423 {approx = true} : vector<32x1xf32> -> vector<32x1xf32>
    %425 = vector.broadcast %424 : vector<32x1xf32> to vector<32x32xf32>
    %426 = arith.mulf %421, %425 : vector<32x32xf32>
    %427 = vector.broadcast %14 : vector<1x32xf32> to vector<32x32xf32>
    %428 = arith.mulf %395, %427 : vector<32x32xf32>
    %cst_202 = arith.constant dense<0.000000e+00> : vector<32x32xf32>
    %429 = tpu.matmul %426, %428, %cst_202 {dimension_numbers = #tpu.dot_dimension_numbers<[1], [0], [0], [1], [0, 0, 1, 1], [], []>} : vector<32x32xf32>, vector<32x32xf32>, vector<32x32xf32> -> vector<32x32xf32>
    %430 = arith.addf %412, %429 : vector<32x32xf32>
    %431 = vector.broadcast %21 : vector<1x32xf32> to vector<32x32xf32>
    %432 = arith.mulf %389, %431 : vector<32x32xf32>
    %cst_203 = arith.constant dense<0.000000e+00> : vector<32x32xf32>
    %433 = tpu.matmul %432, %392, %cst_203 {dimension_numbers = #tpu.dot_dimension_numbers<[1], [1], [0], [0], [0, 0, 1, 0], [], []>} : vector<32x32xf32>, vector<32x32xf32>, vector<32x32xf32> -> vector<32x32xf32>
    %434 = arith.addf %433, %75 : vector<32x32xf32>
    %cst_204 = arith.constant dense<0xFF800000> : vector<32xf32>
    %435 = vector.multi_reduction <maximumf>, %434, %cst_204 [1] : vector<32x32xf32> to vector<32xf32>
    %436 = vector.shape_cast %435 : vector<32xf32> to vector<32x1xf32>
    %437 = vector.broadcast %436 : vector<32x1xf32> to vector<32x32xf32>
    %438 = arith.subf %434, %437 : vector<32x32xf32>
    %439 = math.exp %438 : vector<32x32xf32>
    %cst_205 = arith.constant dense<0.000000e+00> : vector<32xf32>
    %440 = vector.multi_reduction <add>, %439, %cst_205 [1] : vector<32x32xf32> to vector<32xf32>
    %441 = vector.shape_cast %440 : vector<32xf32> to vector<32x1xf32>
    %442 = tpu.reciprocal %441 {approx = true} : vector<32x1xf32> -> vector<32x1xf32>
    %443 = vector.broadcast %442 : vector<32x1xf32> to vector<32x32xf32>
    %444 = arith.mulf %439, %443 : vector<32x32xf32>
    %445 = vector.broadcast %21 : vector<1x32xf32> to vector<32x32xf32>
    %446 = arith.mulf %395, %445 : vector<32x32xf32>
    %cst_206 = arith.constant dense<0.000000e+00> : vector<32x32xf32>
    %447 = tpu.matmul %444, %446, %cst_206 {dimension_numbers = #tpu.dot_dimension_numbers<[1], [0], [0], [1], [0, 0, 1, 1], [], []>} : vector<32x32xf32>, vector<32x32xf32>, vector<32x32xf32> -> vector<32x32xf32>
    %448 = arith.addf %430, %447 : vector<32x32xf32>
    %449 = vector.broadcast %28 : vector<1x32xf32> to vector<32x32xf32>
    %450 = arith.mulf %389, %449 : vector<32x32xf32>
    %cst_207 = arith.constant dense<0.000000e+00> : vector<32x32xf32>
    %451 = tpu.matmul %450, %392, %cst_207 {dimension_numbers = #tpu.dot_dimension_numbers<[1], [1], [0], [0], [0, 0, 1, 0], [], []>} : vector<32x32xf32>, vector<32x32xf32>, vector<32x32xf32> -> vector<32x32xf32>
    %452 = arith.addf %451, %75 : vector<32x32xf32>
    %cst_208 = arith.constant dense<0xFF800000> : vector<32xf32>
    %453 = vector.multi_reduction <maximumf>, %452, %cst_208 [1] : vector<32x32xf32> to vector<32xf32>
    %454 = vector.shape_cast %453 : vector<32xf32> to vector<32x1xf32>
    %455 = vector.broadcast %454 : vector<32x1xf32> to vector<32x32xf32>
    %456 = arith.subf %452, %455 : vector<32x32xf32>
    %457 = math.exp %456 : vector<32x32xf32>
    %cst_209 = arith.constant dense<0.000000e+00> : vector<32xf32>
    %458 = vector.multi_reduction <add>, %457, %cst_209 [1] : vector<32x32xf32> to vector<32xf32>
    %459 = vector.shape_cast %458 : vector<32xf32> to vector<32x1xf32>
    %460 = tpu.reciprocal %459 {approx = true} : vector<32x1xf32> -> vector<32x1xf32>
    %461 = vector.broadcast %460 : vector<32x1xf32> to vector<32x32xf32>
    %462 = arith.mulf %457, %461 : vector<32x32xf32>
    %463 = vector.broadcast %28 : vector<1x32xf32> to vector<32x32xf32>
    %464 = arith.mulf %395, %463 : vector<32x32xf32>
    %cst_210 = arith.constant dense<0.000000e+00> : vector<32x32xf32>
    %465 = tpu.matmul %462, %464, %cst_210 {dimension_numbers = #tpu.dot_dimension_numbers<[1], [0], [0], [1], [0, 0, 1, 1], [], []>} : vector<32x32xf32>, vector<32x32xf32>, vector<32x32xf32> -> vector<32x32xf32>
    %466 = arith.addf %448, %465 : vector<32x32xf32>
    %cst_211 = arith.constant dense<0.000000e+00> : vector<32x32xf32>
    %467 = tpu.matmul %466, %382, %cst_211 {dimension_numbers = #tpu.dot_dimension_numbers<[1], [0], [0], [1], [0, 0, 1, 1], [], []>} : vector<32x32xf32>, vector<32x32xf32>, vector<32x32xf32> -> vector<32x32xf32>
    %468 = vector.broadcast %384 : vector<1x32xf32> to vector<32x32xf32>
    %469 = arith.addf %467, %468 : vector<32x32xf32>
    %470 = arith.addf %314, %469 : vector<32x32xf32>
    %c1_212 = arith.constant 1 : index
    %c0_213 = arith.constant 0 : index
    %c0_214 = arith.constant 0 : index
    %471 = vector.load %arg18[%c1_212, %c0_213, %c0_214] : memref<2x1x32xf32, #tpu.memory_space<vmem>>, vector<1x1x32xf32>
    %472 = vector.shape_cast %471 : vector<1x1x32xf32> to vector<1x32xf32>
    %c1_215 = arith.constant 1 : index
    %c0_216 = arith.constant 0 : index
    %c0_217 = arith.constant 0 : index
    %473 = vector.load %arg19[%c1_215, %c0_216, %c0_217] : memref<2x1x32xf32, #tpu.memory_space<vmem>>, vector<1x1x32xf32>
    %474 = vector.shape_cast %473 : vector<1x1x32xf32> to vector<1x32xf32>
    %cst_218 = arith.constant dense<0.000000e+00> : vector<32xf32>
    %475 = vector.multi_reduction <add>, %470, %cst_218 [1] : vector<32x32xf32> to vector<32xf32>
    %476 = vector.shape_cast %475 : vector<32xf32> to vector<32x1xf32>
    %cst_219 = arith.constant 3.200000e+01 : f32
    %477 = vector.broadcast %cst_219 : f32 to vector<32x1xf32>
    %478 = arith.divf %476, %477 : vector<32x1xf32>
    %479 = vector.broadcast %478 : vector<32x1xf32> to vector<32x32xf32>
    %480 = arith.subf %470, %479 : vector<32x32xf32>
    %481 = arith.mulf %480, %480 : vector<32x32xf32>
    %cst_220 = arith.constant dense<0.000000e+00> : vector<32xf32>
    %482 = vector.multi_reduction <add>, %481, %cst_220 [1] : vector<32x32xf32> to vector<32xf32>
    %483 = vector.shape_cast %482 : vector<32xf32> to vector<32x1xf32>
    %cst_221 = arith.constant 3.200000e+01 : f32
    %484 = vector.broadcast %cst_221 : f32 to vector<32x1xf32>
    %485 = arith.divf %483, %484 : vector<32x1xf32>
    %486 = vector.broadcast %478 : vector<32x1xf32> to vector<32x32xf32>
    %487 = arith.subf %470, %486 : vector<32x32xf32>
    %cst_222 = arith.constant 9.99999974E-6 : f32
    %488 = vector.broadcast %cst_222 : f32 to vector<32x1xf32>
    %489 = arith.addf %485, %488 : vector<32x1xf32>
    %490 = math.rsqrt %489 : vector<32x1xf32>
    %491 = vector.broadcast %490 : vector<32x1xf32> to vector<32x32xf32>
    %492 = arith.mulf %487, %491 : vector<32x32xf32>
    %493 = vector.broadcast %472 : vector<1x32xf32> to vector<32x32xf32>
    %494 = arith.mulf %492, %493 : vector<32x32xf32>
    %495 = vector.broadcast %474 : vector<1x32xf32> to vector<32x32xf32>
    %496 = arith.addf %494, %495 : vector<32x32xf32>
    %497 = arith.addf %496, %77 : vector<32x32xf32>
    %c1_223 = arith.constant 1 : index
    %c0_224 = arith.constant 0 : index
    %c0_225 = arith.constant 0 : index
    %498 = vector.load %arg20[%c1_223, %c0_224, %c0_225] : memref<2x32x32xf32, #tpu.memory_space<vmem>>, vector<1x32x32xf32>
    %499 = vector.shape_cast %498 : vector<1x32x32xf32> to vector<32x32xf32>
    %c1_226 = arith.constant 1 : index
    %c0_227 = arith.constant 0 : index
    %c0_228 = arith.constant 0 : index
    %500 = vector.load %arg21[%c1_226, %c0_227, %c0_228] : memref<2x1x32xf32, #tpu.memory_space<vmem>>, vector<1x1x32xf32>
    %501 = vector.shape_cast %500 : vector<1x1x32xf32> to vector<1x32xf32>
    %c1_229 = arith.constant 1 : index
    %c0_230 = arith.constant 0 : index
    %c0_231 = arith.constant 0 : index
    %502 = vector.load %arg22[%c1_229, %c0_230, %c0_231] : memref<2x32x32xf32, #tpu.memory_space<vmem>>, vector<1x32x32xf32>
    %503 = vector.shape_cast %502 : vector<1x32x32xf32> to vector<32x32xf32>
    %c1_232 = arith.constant 1 : index
    %c0_233 = arith.constant 0 : index
    %c0_234 = arith.constant 0 : index
    %504 = vector.load %arg23[%c1_232, %c0_233, %c0_234] : memref<2x1x32xf32, #tpu.memory_space<vmem>>, vector<1x1x32xf32>
    %505 = vector.shape_cast %504 : vector<1x1x32xf32> to vector<1x32xf32>
    %c1_235 = arith.constant 1 : index
    %c0_236 = arith.constant 0 : index
    %c0_237 = arith.constant 0 : index
    %506 = vector.load %arg24[%c1_235, %c0_236, %c0_237] : memref<2x32x32xf32, #tpu.memory_space<vmem>>, vector<1x32x32xf32>
    %507 = vector.shape_cast %506 : vector<1x32x32xf32> to vector<32x32xf32>
    %c1_238 = arith.constant 1 : index
    %c0_239 = arith.constant 0 : index
    %c0_240 = arith.constant 0 : index
    %508 = vector.load %arg25[%c1_238, %c0_239, %c0_240] : memref<2x1x32xf32, #tpu.memory_space<vmem>>, vector<1x1x32xf32>
    %509 = vector.shape_cast %508 : vector<1x1x32xf32> to vector<1x32xf32>
    %c1_241 = arith.constant 1 : index
    %c0_242 = arith.constant 0 : index
    %c0_243 = arith.constant 0 : index
    %510 = vector.load %arg26[%c1_241, %c0_242, %c0_243] : memref<2x32x32xf32, #tpu.memory_space<vmem>>, vector<1x32x32xf32>
    %511 = vector.shape_cast %510 : vector<1x32x32xf32> to vector<32x32xf32>
    %c1_244 = arith.constant 1 : index
    %c0_245 = arith.constant 0 : index
    %c0_246 = arith.constant 0 : index
    %512 = vector.load %arg27[%c1_244, %c0_245, %c0_246] : memref<2x1x32xf32, #tpu.memory_space<vmem>>, vector<1x1x32xf32>
    %513 = vector.shape_cast %512 : vector<1x1x32xf32> to vector<1x32xf32>
    %cst_247 = arith.constant dense<0.000000e+00> : vector<32x32xf32>
    %514 = tpu.matmul %497, %499, %cst_247 {dimension_numbers = #tpu.dot_dimension_numbers<[1], [0], [0], [1], [0, 0, 1, 1], [], []>} : vector<32x32xf32>, vector<32x32xf32>, vector<32x32xf32> -> vector<32x32xf32>
    %515 = vector.broadcast %501 : vector<1x32xf32> to vector<32x32xf32>
    %516 = arith.addf %514, %515 : vector<32x32xf32>
    %cst_248 = arith.constant 0.353553385 : f32
    %517 = vector.broadcast %cst_248 : f32 to vector<32x32xf32>
    %518 = arith.mulf %516, %517 : vector<32x32xf32>
    %cst_249 = arith.constant dense<0.000000e+00> : vector<16x32xf32>
    %519 = tpu.matmul %367, %503, %cst_249 {dimension_numbers = #tpu.dot_dimension_numbers<[1], [0], [0], [1], [0, 0, 1, 1], [], []>} : vector<16x32xf32>, vector<32x32xf32>, vector<16x32xf32> -> vector<16x32xf32>
    %520 = vector.broadcast %505 : vector<1x32xf32> to vector<16x32xf32>
    %521 = arith.addf %519, %520 : vector<16x32xf32>
    %cst_250 = arith.constant dense<0.000000e+00> : vector<16x32xf32>
    %522 = tpu.matmul %367, %507, %cst_250 {dimension_numbers = #tpu.dot_dimension_numbers<[1], [0], [0], [1], [0, 0, 1, 1], [], []>} : vector<16x32xf32>, vector<32x32xf32>, vector<16x32xf32> -> vector<16x32xf32>
    %523 = vector.broadcast %509 : vector<1x32xf32> to vector<16x32xf32>
    %524 = arith.addf %522, %523 : vector<16x32xf32>
    %525 = vector.broadcast %7 : vector<1x32xf32> to vector<32x32xf32>
    %526 = arith.mulf %518, %525 : vector<32x32xf32>
    %cst_251 = arith.constant dense<0.000000e+00> : vector<32x16xf32>
    %527 = tpu.matmul %526, %521, %cst_251 {dimension_numbers = #tpu.dot_dimension_numbers<[1], [1], [0], [0], [0, 0, 1, 0], [], []>} : vector<32x32xf32>, vector<16x32xf32>, vector<32x16xf32> -> vector<32x16xf32>
    %528 = arith.addf %527, %53 : vector<32x16xf32>
    %cst_252 = arith.constant dense<0xFF800000> : vector<32xf32>
    %529 = vector.multi_reduction <maximumf>, %528, %cst_252 [1] : vector<32x16xf32> to vector<32xf32>
    %530 = vector.shape_cast %529 : vector<32xf32> to vector<32x1xf32>
    %531 = vector.broadcast %530 : vector<32x1xf32> to vector<32x16xf32>
    %532 = arith.subf %528, %531 : vector<32x16xf32>
    %533 = math.exp %532 : vector<32x16xf32>
    %cst_253 = arith.constant dense<0.000000e+00> : vector<32xf32>
    %534 = vector.multi_reduction <add>, %533, %cst_253 [1] : vector<32x16xf32> to vector<32xf32>
    %535 = vector.shape_cast %534 : vector<32xf32> to vector<32x1xf32>
    %536 = tpu.reciprocal %535 {approx = true} : vector<32x1xf32> -> vector<32x1xf32>
    %537 = vector.broadcast %536 : vector<32x1xf32> to vector<32x16xf32>
    %538 = arith.mulf %533, %537 : vector<32x16xf32>
    %539 = vector.broadcast %7 : vector<1x32xf32> to vector<16x32xf32>
    %540 = arith.mulf %524, %539 : vector<16x32xf32>
    %cst_254 = arith.constant dense<0.000000e+00> : vector<32x32xf32>
    %541 = tpu.matmul %538, %540, %cst_254 {dimension_numbers = #tpu.dot_dimension_numbers<[1], [0], [0], [1], [0, 0, 1, 1], [], []>} : vector<32x16xf32>, vector<16x32xf32>, vector<32x32xf32> -> vector<32x32xf32>
    %542 = vector.broadcast %14 : vector<1x32xf32> to vector<32x32xf32>
    %543 = arith.mulf %518, %542 : vector<32x32xf32>
    %cst_255 = arith.constant dense<0.000000e+00> : vector<32x16xf32>
    %544 = tpu.matmul %543, %521, %cst_255 {dimension_numbers = #tpu.dot_dimension_numbers<[1], [1], [0], [0], [0, 0, 1, 0], [], []>} : vector<32x32xf32>, vector<16x32xf32>, vector<32x16xf32> -> vector<32x16xf32>
    %545 = arith.addf %544, %53 : vector<32x16xf32>
    %cst_256 = arith.constant dense<0xFF800000> : vector<32xf32>
    %546 = vector.multi_reduction <maximumf>, %545, %cst_256 [1] : vector<32x16xf32> to vector<32xf32>
    %547 = vector.shape_cast %546 : vector<32xf32> to vector<32x1xf32>
    %548 = vector.broadcast %547 : vector<32x1xf32> to vector<32x16xf32>
    %549 = arith.subf %545, %548 : vector<32x16xf32>
    %550 = math.exp %549 : vector<32x16xf32>
    %cst_257 = arith.constant dense<0.000000e+00> : vector<32xf32>
    %551 = vector.multi_reduction <add>, %550, %cst_257 [1] : vector<32x16xf32> to vector<32xf32>
    %552 = vector.shape_cast %551 : vector<32xf32> to vector<32x1xf32>
    %553 = tpu.reciprocal %552 {approx = true} : vector<32x1xf32> -> vector<32x1xf32>
    %554 = vector.broadcast %553 : vector<32x1xf32> to vector<32x16xf32>
    %555 = arith.mulf %550, %554 : vector<32x16xf32>
    %556 = vector.broadcast %14 : vector<1x32xf32> to vector<16x32xf32>
    %557 = arith.mulf %524, %556 : vector<16x32xf32>
    %cst_258 = arith.constant dense<0.000000e+00> : vector<32x32xf32>
    %558 = tpu.matmul %555, %557, %cst_258 {dimension_numbers = #tpu.dot_dimension_numbers<[1], [0], [0], [1], [0, 0, 1, 1], [], []>} : vector<32x16xf32>, vector<16x32xf32>, vector<32x32xf32> -> vector<32x32xf32>
    %559 = arith.addf %541, %558 : vector<32x32xf32>
    %560 = vector.broadcast %21 : vector<1x32xf32> to vector<32x32xf32>
    %561 = arith.mulf %518, %560 : vector<32x32xf32>
    %cst_259 = arith.constant dense<0.000000e+00> : vector<32x16xf32>
    %562 = tpu.matmul %561, %521, %cst_259 {dimension_numbers = #tpu.dot_dimension_numbers<[1], [1], [0], [0], [0, 0, 1, 0], [], []>} : vector<32x32xf32>, vector<16x32xf32>, vector<32x16xf32> -> vector<32x16xf32>
    %563 = arith.addf %562, %53 : vector<32x16xf32>
    %cst_260 = arith.constant dense<0xFF800000> : vector<32xf32>
    %564 = vector.multi_reduction <maximumf>, %563, %cst_260 [1] : vector<32x16xf32> to vector<32xf32>
    %565 = vector.shape_cast %564 : vector<32xf32> to vector<32x1xf32>
    %566 = vector.broadcast %565 : vector<32x1xf32> to vector<32x16xf32>
    %567 = arith.subf %563, %566 : vector<32x16xf32>
    %568 = math.exp %567 : vector<32x16xf32>
    %cst_261 = arith.constant dense<0.000000e+00> : vector<32xf32>
    %569 = vector.multi_reduction <add>, %568, %cst_261 [1] : vector<32x16xf32> to vector<32xf32>
    %570 = vector.shape_cast %569 : vector<32xf32> to vector<32x1xf32>
    %571 = tpu.reciprocal %570 {approx = true} : vector<32x1xf32> -> vector<32x1xf32>
    %572 = vector.broadcast %571 : vector<32x1xf32> to vector<32x16xf32>
    %573 = arith.mulf %568, %572 : vector<32x16xf32>
    %574 = vector.broadcast %21 : vector<1x32xf32> to vector<16x32xf32>
    %575 = arith.mulf %524, %574 : vector<16x32xf32>
    %cst_262 = arith.constant dense<0.000000e+00> : vector<32x32xf32>
    %576 = tpu.matmul %573, %575, %cst_262 {dimension_numbers = #tpu.dot_dimension_numbers<[1], [0], [0], [1], [0, 0, 1, 1], [], []>} : vector<32x16xf32>, vector<16x32xf32>, vector<32x32xf32> -> vector<32x32xf32>
    %577 = arith.addf %559, %576 : vector<32x32xf32>
    %578 = vector.broadcast %28 : vector<1x32xf32> to vector<32x32xf32>
    %579 = arith.mulf %518, %578 : vector<32x32xf32>
    %cst_263 = arith.constant dense<0.000000e+00> : vector<32x16xf32>
    %580 = tpu.matmul %579, %521, %cst_263 {dimension_numbers = #tpu.dot_dimension_numbers<[1], [1], [0], [0], [0, 0, 1, 0], [], []>} : vector<32x32xf32>, vector<16x32xf32>, vector<32x16xf32> -> vector<32x16xf32>
    %581 = arith.addf %580, %53 : vector<32x16xf32>
    %cst_264 = arith.constant dense<0xFF800000> : vector<32xf32>
    %582 = vector.multi_reduction <maximumf>, %581, %cst_264 [1] : vector<32x16xf32> to vector<32xf32>
    %583 = vector.shape_cast %582 : vector<32xf32> to vector<32x1xf32>
    %584 = vector.broadcast %583 : vector<32x1xf32> to vector<32x16xf32>
    %585 = arith.subf %581, %584 : vector<32x16xf32>
    %586 = math.exp %585 : vector<32x16xf32>
    %cst_265 = arith.constant dense<0.000000e+00> : vector<32xf32>
    %587 = vector.multi_reduction <add>, %586, %cst_265 [1] : vector<32x16xf32> to vector<32xf32>
    %588 = vector.shape_cast %587 : vector<32xf32> to vector<32x1xf32>
    %589 = tpu.reciprocal %588 {approx = true} : vector<32x1xf32> -> vector<32x1xf32>
    %590 = vector.broadcast %589 : vector<32x1xf32> to vector<32x16xf32>
    %591 = arith.mulf %586, %590 : vector<32x16xf32>
    %592 = vector.broadcast %28 : vector<1x32xf32> to vector<16x32xf32>
    %593 = arith.mulf %524, %592 : vector<16x32xf32>
    %cst_266 = arith.constant dense<0.000000e+00> : vector<32x32xf32>
    %594 = tpu.matmul %591, %593, %cst_266 {dimension_numbers = #tpu.dot_dimension_numbers<[1], [0], [0], [1], [0, 0, 1, 1], [], []>} : vector<32x16xf32>, vector<16x32xf32>, vector<32x32xf32> -> vector<32x32xf32>
    %595 = arith.addf %577, %594 : vector<32x32xf32>
    %cst_267 = arith.constant dense<0.000000e+00> : vector<32x32xf32>
    %596 = tpu.matmul %595, %511, %cst_267 {dimension_numbers = #tpu.dot_dimension_numbers<[1], [0], [0], [1], [0, 0, 1, 1], [], []>} : vector<32x32xf32>, vector<32x32xf32>, vector<32x32xf32> -> vector<32x32xf32>
    %597 = vector.broadcast %513 : vector<1x32xf32> to vector<32x32xf32>
    %598 = arith.addf %596, %597 : vector<32x32xf32>
    %599 = arith.addf %496, %598 : vector<32x32xf32>
    %c1_268 = arith.constant 1 : index
    %c0_269 = arith.constant 0 : index
    %c0_270 = arith.constant 0 : index
    %600 = vector.load %arg28[%c1_268, %c0_269, %c0_270] : memref<2x1x32xf32, #tpu.memory_space<vmem>>, vector<1x1x32xf32>
    %601 = vector.shape_cast %600 : vector<1x1x32xf32> to vector<1x32xf32>
    %c1_271 = arith.constant 1 : index
    %c0_272 = arith.constant 0 : index
    %c0_273 = arith.constant 0 : index
    %602 = vector.load %arg29[%c1_271, %c0_272, %c0_273] : memref<2x1x32xf32, #tpu.memory_space<vmem>>, vector<1x1x32xf32>
    %603 = vector.shape_cast %602 : vector<1x1x32xf32> to vector<1x32xf32>
    %cst_274 = arith.constant dense<0.000000e+00> : vector<32xf32>
    %604 = vector.multi_reduction <add>, %599, %cst_274 [1] : vector<32x32xf32> to vector<32xf32>
    %605 = vector.shape_cast %604 : vector<32xf32> to vector<32x1xf32>
    %cst_275 = arith.constant 3.200000e+01 : f32
    %606 = vector.broadcast %cst_275 : f32 to vector<32x1xf32>
    %607 = arith.divf %605, %606 : vector<32x1xf32>
    %608 = vector.broadcast %607 : vector<32x1xf32> to vector<32x32xf32>
    %609 = arith.subf %599, %608 : vector<32x32xf32>
    %610 = arith.mulf %609, %609 : vector<32x32xf32>
    %cst_276 = arith.constant dense<0.000000e+00> : vector<32xf32>
    %611 = vector.multi_reduction <add>, %610, %cst_276 [1] : vector<32x32xf32> to vector<32xf32>
    %612 = vector.shape_cast %611 : vector<32xf32> to vector<32x1xf32>
    %cst_277 = arith.constant 3.200000e+01 : f32
    %613 = vector.broadcast %cst_277 : f32 to vector<32x1xf32>
    %614 = arith.divf %612, %613 : vector<32x1xf32>
    %615 = vector.broadcast %607 : vector<32x1xf32> to vector<32x32xf32>
    %616 = arith.subf %599, %615 : vector<32x32xf32>
    %cst_278 = arith.constant 9.99999974E-6 : f32
    %617 = vector.broadcast %cst_278 : f32 to vector<32x1xf32>
    %618 = arith.addf %614, %617 : vector<32x1xf32>
    %619 = math.rsqrt %618 : vector<32x1xf32>
    %620 = vector.broadcast %619 : vector<32x1xf32> to vector<32x32xf32>
    %621 = arith.mulf %616, %620 : vector<32x32xf32>
    %622 = vector.broadcast %601 : vector<1x32xf32> to vector<32x32xf32>
    %623 = arith.mulf %621, %622 : vector<32x32xf32>
    %624 = vector.broadcast %603 : vector<1x32xf32> to vector<32x32xf32>
    %625 = arith.addf %623, %624 : vector<32x32xf32>
    %c1_279 = arith.constant 1 : index
    %c0_280 = arith.constant 0 : index
    %c0_281 = arith.constant 0 : index
    %626 = vector.load %arg30[%c1_279, %c0_280, %c0_281] : memref<2x32x128xf32, #tpu.memory_space<vmem>>, vector<1x32x128xf32>
    %627 = vector.shape_cast %626 : vector<1x32x128xf32> to vector<32x128xf32>
    %c1_282 = arith.constant 1 : index
    %c0_283 = arith.constant 0 : index
    %c0_284 = arith.constant 0 : index
    %628 = vector.load %arg31[%c1_282, %c0_283, %c0_284] : memref<2x1x128xf32, #tpu.memory_space<vmem>>, vector<1x1x128xf32>
    %629 = vector.shape_cast %628 : vector<1x1x128xf32> to vector<1x128xf32>
    %cst_285 = arith.constant dense<0.000000e+00> : vector<32x128xf32>
    %630 = tpu.matmul %625, %627, %cst_285 {dimension_numbers = #tpu.dot_dimension_numbers<[1], [0], [0], [1], [0, 0, 1, 1], [], []>} : vector<32x32xf32>, vector<32x128xf32>, vector<32x128xf32> -> vector<32x128xf32>
    %631 = vector.broadcast %629 : vector<1x128xf32> to vector<32x128xf32>
    %632 = arith.addf %630, %631 : vector<32x128xf32>
    %633 = arith.mulf %632, %632 : vector<32x128xf32>
    %634 = arith.mulf %632, %633 : vector<32x128xf32>
    %cst_286 = arith.constant 4.471500e-02 : f32
    %635 = vector.broadcast %cst_286 : f32 to vector<32x128xf32>
    %636 = arith.mulf %635, %634 : vector<32x128xf32>
    %637 = arith.addf %632, %636 : vector<32x128xf32>
    %cst_287 = arith.constant 0.797884583 : f32
    %638 = vector.broadcast %cst_287 : f32 to vector<32x128xf32>
    %639 = arith.mulf %638, %637 : vector<32x128xf32>
    %640 = math.tanh %639 : vector<32x128xf32>
    %cst_288 = arith.constant 1.000000e+00 : f32
    %641 = vector.broadcast %cst_288 : f32 to vector<32x128xf32>
    %642 = arith.addf %641, %640 : vector<32x128xf32>
    %cst_289 = arith.constant 5.000000e-01 : f32
    %643 = vector.broadcast %cst_289 : f32 to vector<32x128xf32>
    %644 = arith.mulf %643, %642 : vector<32x128xf32>
    %645 = arith.mulf %632, %644 : vector<32x128xf32>
    %c1_290 = arith.constant 1 : index
    %c0_291 = arith.constant 0 : index
    %c0_292 = arith.constant 0 : index
    %646 = vector.load %arg32[%c1_290, %c0_291, %c0_292] : memref<2x128x32xf32, #tpu.memory_space<vmem>>, vector<1x128x32xf32>
    %647 = vector.shape_cast %646 : vector<1x128x32xf32> to vector<128x32xf32>
    %c1_293 = arith.constant 1 : index
    %c0_294 = arith.constant 0 : index
    %c0_295 = arith.constant 0 : index
    %648 = vector.load %arg33[%c1_293, %c0_294, %c0_295] : memref<2x1x32xf32, #tpu.memory_space<vmem>>, vector<1x1x32xf32>
    %649 = vector.shape_cast %648 : vector<1x1x32xf32> to vector<1x32xf32>
    %cst_296 = arith.constant dense<0.000000e+00> : vector<32x32xf32>
    %650 = tpu.matmul %645, %647, %cst_296 {dimension_numbers = #tpu.dot_dimension_numbers<[1], [0], [0], [1], [0, 0, 1, 1], [], []>} : vector<32x128xf32>, vector<128x32xf32>, vector<32x32xf32> -> vector<32x32xf32>
    %651 = vector.broadcast %649 : vector<1x32xf32> to vector<32x32xf32>
    %652 = arith.addf %650, %651 : vector<32x32xf32>
    %653 = arith.addf %625, %652 : vector<32x32xf32>
    %c1_297 = arith.constant 1 : index
    %c0_298 = arith.constant 0 : index
    %c0_299 = arith.constant 0 : index
    %654 = vector.load %arg34[%c1_297, %c0_298, %c0_299] : memref<2x1x32xf32, #tpu.memory_space<vmem>>, vector<1x1x32xf32>
    %655 = vector.shape_cast %654 : vector<1x1x32xf32> to vector<1x32xf32>
    %c1_300 = arith.constant 1 : index
    %c0_301 = arith.constant 0 : index
    %c0_302 = arith.constant 0 : index
    %656 = vector.load %arg35[%c1_300, %c0_301, %c0_302] : memref<2x1x32xf32, #tpu.memory_space<vmem>>, vector<1x1x32xf32>
    %657 = vector.shape_cast %656 : vector<1x1x32xf32> to vector<1x32xf32>
    %cst_303 = arith.constant dense<0.000000e+00> : vector<32xf32>
    %658 = vector.multi_reduction <add>, %653, %cst_303 [1] : vector<32x32xf32> to vector<32xf32>
    %659 = vector.shape_cast %658 : vector<32xf32> to vector<32x1xf32>
    %cst_304 = arith.constant 3.200000e+01 : f32
    %660 = vector.broadcast %cst_304 : f32 to vector<32x1xf32>
    %661 = arith.divf %659, %660 : vector<32x1xf32>
    %662 = vector.broadcast %661 : vector<32x1xf32> to vector<32x32xf32>
    %663 = arith.subf %653, %662 : vector<32x32xf32>
    %664 = arith.mulf %663, %663 : vector<32x32xf32>
    %cst_305 = arith.constant dense<0.000000e+00> : vector<32xf32>
    %665 = vector.multi_reduction <add>, %664, %cst_305 [1] : vector<32x32xf32> to vector<32xf32>
    %666 = vector.shape_cast %665 : vector<32xf32> to vector<32x1xf32>
    %cst_306 = arith.constant 3.200000e+01 : f32
    %667 = vector.broadcast %cst_306 : f32 to vector<32x1xf32>
    %668 = arith.divf %666, %667 : vector<32x1xf32>
    %669 = vector.broadcast %661 : vector<32x1xf32> to vector<32x32xf32>
    %670 = arith.subf %653, %669 : vector<32x32xf32>
    %cst_307 = arith.constant 9.99999974E-6 : f32
    %671 = vector.broadcast %cst_307 : f32 to vector<32x1xf32>
    %672 = arith.addf %668, %671 : vector<32x1xf32>
    %673 = math.rsqrt %672 : vector<32x1xf32>
    %674 = vector.broadcast %673 : vector<32x1xf32> to vector<32x32xf32>
    %675 = arith.mulf %670, %674 : vector<32x32xf32>
    %676 = vector.broadcast %655 : vector<1x32xf32> to vector<32x32xf32>
    %677 = arith.mulf %675, %676 : vector<32x32xf32>
    %678 = vector.broadcast %657 : vector<1x32xf32> to vector<32x32xf32>
    %679 = arith.addf %677, %678 : vector<32x32xf32>
    %c0_308 = arith.constant 0 : index
    %c0_309 = arith.constant 0 : index
    %680 = vector.load %arg36[%c0_308, %c0_309] : memref<32x48xf32, #tpu.memory_space<vmem>>, vector<32x48xf32>
    %c0_310 = arith.constant 0 : index
    %c0_311 = arith.constant 0 : index
    %681 = vector.load %arg37[%c0_310, %c0_311] : memref<1x48xf32, #tpu.memory_space<vmem>>, vector<1x48xf32>
    %cst_312 = arith.constant dense<0.000000e+00> : vector<32x48xf32>
    %682 = tpu.matmul %679, %680, %cst_312 {dimension_numbers = #tpu.dot_dimension_numbers<[1], [0], [0], [1], [0, 0, 1, 1], [], []>} : vector<32x32xf32>, vector<32x48xf32>, vector<32x48xf32> -> vector<32x48xf32>
    %683 = vector.broadcast %681 : vector<1x48xf32> to vector<32x48xf32>
    %684 = arith.addf %682, %683 : vector<32x48xf32>
    %c0_313 = arith.constant 0 : index
    %c0_314 = arith.constant 0 : index
    %685 = vector.load %arg38[%c0_313, %c0_314] : memref<32x48xf32, #tpu.memory_space<vmem>>, vector<32x48xf32>
    tpu.vector_store %arg38[%c0_313, %c0_314], %684 {strides = array<i32>} : memref<32x48xf32, #tpu.memory_space<vmem>>, vector<32x48xf32>,
    return
  }
}

</mosaic_0001>

<llo_original>
// kernel: reader_decoder_forward.1
$region0: #{reader_decoder_forward.1}
  #allocation0 [shape = 'u32[]', space=smem, size = 0x4, offset = 0x4, fixed_abs, tag = 'smem constant byte address 0x4 - core index']
  #allocation1 [shape = 'u32[144,128]{1,0:T(1,128)}', space=vmem, size = 0x12000, scoped, tag = 'internal scratch']
  %s0 = inlined_call_operand.smem [shape: u32[39], index: -1, kind: input, shape index: {}]
  %s1 = sld [smem:[%s0]]
  %s2 = scalar_lea.smem %s0, 1
  %s3 = sld [smem:[%s2]]
  %s4 = scalar_lea.smem %s0, 2
  %s5 = sld [smem:[%s4]]
  %s6 = scalar_lea.smem %s0, 3
  %s7 = sld [smem:[%s6]]
  %s8 = scalar_lea.smem %s0, 4
  %s9 = sld [smem:[%s8]]
  %s10 = scalar_lea.smem %s0, 5
  %s11 = sld [smem:[%s10]]
  %s12 = scalar_lea.smem %s0, 6
  %s13 = sld [smem:[%s12]]
  %s14 = scalar_lea.smem %s0, 7
  %s15 = sld [smem:[%s14]]
  %s16 = scalar_lea.smem %s0, 8
  %s17 = sld [smem:[%s16]]
  %s18 = scalar_lea.smem %s0, 9
  %s19 = sld [smem:[%s18]]
  %s20 = scalar_lea.smem %s0, 10
  %s21 = sld [smem:[%s20]]
  %s22 = scalar_lea.smem %s0, 11
  %s23 = sld [smem:[%s22]]
  %s24 = scalar_lea.smem %s0, 12
  %s25 = sld [smem:[%s24]]
  %s26 = scalar_lea.smem %s0, 13
  %s27 = sld [smem:[%s26]]
  %s28 = scalar_lea.smem %s0, 14
  %s29 = sld [smem:[%s28]]
  %s30 = scalar_lea.smem %s0, 15
  %s31 = sld [smem:[%s30]]
  %s32 = scalar_lea.smem %s0, 16
  %s33 = sld [smem:[%s32]]
  %s34 = scalar_lea.smem %s0, 17
  %s35 = sld [smem:[%s34]]
  %s36 = scalar_lea.smem %s0, 18
  %s37 = sld [smem:[%s36]]
  %s38 = scalar_lea.smem %s0, 19
  %s39 = sld [smem:[%s38]]
  %s40 = scalar_lea.smem %s0, 20
  %s41 = sld [smem:[%s40]]
  %s42 = scalar_lea.smem %s0, 21
  %s43 = sld [smem:[%s42]]
  %s44 = scalar_lea.smem %s0, 22
  %s45 = sld [smem:[%s44]]
  %s46 = scalar_lea.smem %s0, 23
  %s47 = sld [smem:[%s46]]
  %s48 = scalar_lea.smem %s0, 24
  %s49 = sld [smem:[%s48]]
  %s50 = scalar_lea.smem %s0, 25
  %s51 = sld [smem:[%s50]]
  %s52 = scalar_lea.smem %s0, 26
  %s53 = sld [smem:[%s52]]
  %s54 = scalar_lea.smem %s0, 27
  %s55 = sld [smem:[%s54]]
  %s56 = scalar_lea.smem %s0, 28
  %s57 = sld [smem:[%s56]]
  %s58 = scalar_lea.smem %s0, 29
  %s59 = sld [smem:[%s58]]
  %s60 = scalar_lea.smem %s0, 30
  %s61 = sld [smem:[%s60]]
  %s62 = scalar_lea.smem %s0, 31
  %s63 = sld [smem:[%s62]]
  %s64 = scalar_lea.smem %s0, 32
  %s65 = sld [smem:[%s64]]
  %s66 = scalar_lea.smem %s0, 33
  %s67 = sld [smem:[%s66]]
  %s68 = scalar_lea.smem %s0, 34
  %s69 = sld [smem:[%s68]]
  %s70 = scalar_lea.smem %s0, 35
  %s71 = sld [smem:[%s70]]
  %s72 = scalar_lea.smem %s0, 36
  %s73 = sld [smem:[%s72]]
  %s74 = scalar_lea.smem %s0, 37
  %s75 = sld [smem:[%s74]]
  %s76 = scalar_lea.smem %s0, 38
  %s77 = sld [smem:[%s76]]
  %s78 = sld [smem:[#allocation0]]
  $region258: #{reader_decoder_forward.1} parent=0
    _
  %s80 = ssub.s32 1, %s78
  %s81 = scalar_select 0, %s80, %s78
  $region1: #{reader_decoder_forward.1} parent=0
    #allocation2 [shape = 'u8[1024]{0}', space=vmem, size = 0x400, scoped, tag = 'input window, operand 5, single buffered']
    #allocation3 [shape = 's32[1]{0}', space=sflag, size = 0x4, scoped, tag = 'scoped memory for reader_decoder_forward.1']
    #allocation4 [shape = 'u8[1024]{0}', space=vmem, size = 0x400, scoped, tag = 'input window, operand 7, single buffered']
    #allocation5 [shape = 's32[1]{0}', space=sflag, size = 0x4, scoped, tag = 'scoped memory for reader_decoder_forward.1']
    #allocation6 [shape = 'u8[1024]{0}', space=vmem, size = 0x400, scoped, tag = 'input window, operand 8, single buffered']
    #allocation7 [shape = 'u8[1024]{0}', space=vmem, size = 0x400, scoped, tag = 'input window, operand 9, single buffered']
    #allocation8 [shape = 's32[1]{0}', space=sflag, size = 0x4, scoped, tag = 'scoped memory for reader_decoder_forward.1']
    #allocation9 [shape = 'u8[1024]{0}', space=vmem, size = 0x400, scoped, tag = 'input window, operand 11, single buffered']
    #allocation10 [shape = 'u8[1024]{0}', space=vmem, size = 0x400, scoped, tag = 'input window, operand 13, single buffered']
    #allocation11 [shape = 's32[1]{0}', space=sflag, size = 0x4, scoped, tag = 'scoped memory for reader_decoder_forward.1']
    #allocation12 [shape = 'u8[1024]{0}', space=vmem, size = 0x400, scoped, tag = 'input window, operand 17, single buffered']
    #allocation13 [shape = 'u8[1024]{0}', space=vmem, size = 0x400, scoped, tag = 'input window, operand 18, single buffered']
    #allocation14 [shape = 's32[1]{0}', space=sflag, size = 0x4, scoped, tag = 'scoped memory for reader_decoder_forward.1']
    #allocation15 [shape = 'u8[1024]{0}', space=vmem, size = 0x400, scoped, tag = 'input window, operand 19, single buffered']
    #allocation16 [shape = 'u8[32768]{0}', space=vmem, size = 0x8000, scoped, tag = 'input window, operand 20, single buffered']
    #allocation17 [shape = 's32[1]{0}', space=sflag, size = 0x4, scoped, tag = 'scoped memory for reader_decoder_forward.1']
    #allocation18 [shape = 'u8[1024]{0}', space=vmem, size = 0x400, scoped, tag = 'input window, operand 21, single buffered']
    #allocation19 [shape = 'u8[32768]{0}', space=vmem, size = 0x8000, scoped, tag = 'input window, operand 22, single buffered']
    #allocation20 [shape = 's32[1]{0}', space=sflag, size = 0x4, scoped, tag = 'scoped memory for reader_decoder_forward.1']
    #allocation21 [shape = 'u8[1024]{0}', space=vmem, size = 0x400, scoped, tag = 'input window, operand 23, single buffered']
    #allocation22 [shape = 'u8[32768]{0}', space=vmem, size = 0x8000, scoped, tag = 'input window, operand 24, single buffered']
    #allocation23 [shape = 's32[1]{0}', space=sflag, size = 0x4, scoped, tag = 'scoped memory for reader_decoder_forward.1']
    #allocation24 [shape = 'u8[1024]{0}', space=vmem, size = 0x400, scoped, tag = 'input window, operand 25, single buffered']
    #allocation25 [shape = 'u8[32768]{0}', space=vmem, size = 0x8000, scoped, tag = 'input window, operand 26, single buffered']
    #allocation26 [shape = 's32[1]{0}', space=sflag, size = 0x4, scoped, tag = 'scoped memory for reader_decoder_forward.1']
    #allocation27 [shape = 'u8[1024]{0}', space=vmem, size = 0x400, scoped, tag = 'input window, operand 27, single buffered']
    #allocation28 [shape = 'u8[1024]{0}', space=vmem, size = 0x400, scoped, tag = 'input window, operand 28, single buffered']
    #allocation29 [shape = 's32[1]{0}', space=sflag, size = 0x4, scoped, tag = 'scoped memory for reader_decoder_forward.1']
    #allocation30 [shape = 'u8[1024]{0}', space=vmem, size = 0x400, scoped, tag = 'input window, operand 29, single buffered']
    #allocation31 [shape = 'u8[32768]{0}', space=vmem, size = 0x8000, scoped, tag = 'input window, operand 30, single buffered']
    #allocation32 [shape = 's32[1]{0}', space=sflag, size = 0x4, scoped, tag = 'scoped memory for reader_decoder_forward.1']
    #allocation33 [shape = 'u8[1024]{0}', space=vmem, size = 0x400, scoped, tag = 'input window, operand 31, single buffered']
    #allocation34 [shape = 'u8[1024]{0}', space=vmem, size = 0x400, scoped, tag = 'input window, operand 33, single buffered']
    #allocation35 [shape = 's32[1]{0}', space=sflag, size = 0x4, scoped, tag = 'scoped memory for reader_decoder_forward.1']
    #allocation36 [shape = 'u8[1024]{0}', space=vmem, size = 0x400, scoped, tag = 'input window, operand 34, single buffered']
    #allocation37 [shape = 'u8[1024]{0}', space=vmem, size = 0x400, scoped, tag = 'input window, operand 35, single buffered']
    #allocation38 [shape = 's32[1]{0}', space=sflag, size = 0x4, scoped, tag = 'scoped memory for reader_decoder_forward.1']
    %82 = vsyncpa [#allocation3], 0
    %83 = vsyncpa [#allocation5], 0
    %84 = vsyncpa [#allocation8], 0
    %85 = vsyncpa [#allocation11], 0
    %86 = vsyncpa [#allocation14], 0
    %87 = vsyncpa [#allocation17], 0
    %88 = vsyncpa [#allocation20], 0
    %89 = vsyncpa [#allocation23], 0
    %90 = vsyncpa [#allocation26], 0
    %91 = vsyncpa [#allocation29], 0
    %92 = vsyncpa [#allocation32], 0
    %93 = vsyncpa [#allocation35], 0
    %94 = vsyncpa [#allocation38], 0
    // Predicated region
    $region2: #{reader_decoder_forward.1} parent=1 // pred_check
      _
    $region3: #{reader_decoder_forward.1} parent=1 // pred_check_branch
      %96 = sbr.rel (0) target = $region5
    $region4: #{reader_decoder_forward.1} parent=1 // pred_region
      _
    $region5: #{reader_decoder_forward.1} parent=1 // pred_fallthru
      _
    // Predicated region
    $region6: #{reader_decoder_forward.1} parent=1 // pred_check
      _
    $region7: #{reader_decoder_forward.1} parent=1 // pred_check_branch
      %98 = sbr.rel (0) target = $region9
    $region8: #{reader_decoder_forward.1} parent=1 // pred_region
      _
    $region9: #{reader_decoder_forward.1} parent=1 // pred_fallthru
      _
    // Predicated region
    $region10: #{reader_decoder_forward.1} parent=1 // pred_check
      _
    $region11: #{reader_decoder_forward.1} parent=1 // pred_check_branch
      %100 = sbr.rel (0) target = $region13
    $region12: #{reader_decoder_forward.1} parent=1 // pred_region
      _
    $region13: #{reader_decoder_forward.1} parent=1 // pred_fallthru
      _
    // Predicated region
    $region14: #{reader_decoder_forward.1} parent=1 // pred_check
      _
    $region15: #{reader_decoder_forward.1} parent=1 // pred_check_branch
      %102 = sbr.rel (0) target = $region17
    $region16: #{reader_decoder_forward.1} parent=1 // pred_region
      _
    $region17: #{reader_decoder_forward.1} parent=1 // pred_fallthru
      _
    // Predicated region
    $region18: #{reader_decoder_forward.1} parent=1 // pred_check
      _
    $region19: #{reader_decoder_forward.1} parent=1 // pred_check_branch
      %104 = sbr.rel (0) target = $region21
    $region20: #{reader_decoder_forward.1} parent=1 // pred_region
      _
    $region21: #{reader_decoder_forward.1} parent=1 // pred_fallthru
      _
    // Predicated region
    $region22: #{reader_decoder_forward.1} parent=1 // pred_check
      _
    $region23: #{reader_decoder_forward.1} parent=1 // pred_check_branch
      %106 = sbr.rel (0) target = $region25
    $region24: #{reader_decoder_forward.1} parent=1 // pred_region
      %s108 = ssub.s32 32, 32
      %109 = vsyncadd [#allocation3], %s108
      %s110 = sshll.u32 [#allocation2], 4
      %s111 = int_to_ptr.vmem [resolvable:$true] %s110
      %116 = dma.hbm_to_vmem [thread:$0]  %s11, 32, %s111, [#allocation3], 16, 16, 1
    $region25: #{reader_decoder_forward.1} parent=1 // pred_fallthru
      _
    // Predicated region
    $region26: #{reader_decoder_forward.1} parent=1 // pred_check
      _
    $region27: #{reader_decoder_forward.1} parent=1 // pred_check_branch
      %118 = sbr.rel (0) target = $region29
    $region28: #{reader_decoder_forward.1} parent=1 // pred_region
      _
    $region29: #{reader_decoder_forward.1} parent=1 // pred_fallthru
      _
    // Predicated region
    $region30: #{reader_decoder_forward.1} parent=1 // pred_check
      _
    $region31: #{reader_decoder_forward.1} parent=1 // pred_check_branch
      %120 = sbr.rel (0) target = $region33
    $region32: #{reader_decoder_forward.1} parent=1 // pred_region
      %s122 = ssub.s32 32, 32
      %123 = vsyncadd [#allocation5], %s122
      %s124 = sshll.u32 [#allocation4], 4
      %s125 = int_to_ptr.vmem [resolvable:$true] %s124
      %130 = dma.hbm_to_vmem [thread:$0]  %s15, 32, %s125, [#allocation5], 16, 16, 1
    $region33: #{reader_decoder_forward.1} parent=1 // pred_fallthru
      _
    // Predicated region
    $region34: #{reader_decoder_forward.1} parent=1 // pred_check
      _
    $region35: #{reader_decoder_forward.1} parent=1 // pred_check_branch
      %132 = sbr.rel (0) target = $region37
    $region36: #{reader_decoder_forward.1} parent=1 // pred_region
      %s134 = ssub.s32 32, 32
      %135 = vsyncadd [#allocation5], %s134
      %s136 = sshll.u32 [#allocation6], 4
      %s137 = int_to_ptr.vmem [resolvable:$true] %s136
      %142 = dma.hbm_to_vmem [thread:$0]  %s17, 32, %s137, [#allocation5], 16, 16, 1
    $region37: #{reader_decoder_forward.1} parent=1 // pred_fallthru
      _
    // Predicated region
    $region38: #{reader_decoder_forward.1} parent=1 // pred_check
      _
    $region39: #{reader_decoder_forward.1} parent=1 // pred_check_branch
      %144 = sbr.rel (0) target = $region41
    $region40: #{reader_decoder_forward.1} parent=1 // pred_region
      %s146 = ssub.s32 32, 32
      %147 = vsyncadd [#allocation8], %s146
      %s148 = sshll.u32 [#allocation7], 4
      %s149 = int_to_ptr.vmem [resolvable:$true] %s148
      %154 = dma.hbm_to_vmem [thread:$0]  %s19, 32, %s149, [#allocation8], 16, 16, 1
    $region41: #{reader_decoder_forward.1} parent=1 // pred_fallthru
      _
    // Predicated region
    $region42: #{reader_decoder_forward.1} parent=1 // pred_check
      _
    $region43: #{reader_decoder_forward.1} parent=1 // pred_check_branch
      %156 = sbr.rel (0) target = $region45
    $region44: #{reader_decoder_forward.1} parent=1 // pred_region
      _
    $region45: #{reader_decoder_forward.1} parent=1 // pred_fallthru
      _
    // Predicated region
    $region46: #{reader_decoder_forward.1} parent=1 // pred_check
      _
    $region47: #{reader_decoder_forward.1} parent=1 // pred_check_branch
      %158 = sbr.rel (0) target = $region49
    $region48: #{reader_decoder_forward.1} parent=1 // pred_region
      %s160 = ssub.s32 32, 32
      %161 = vsyncadd [#allocation8], %s160
      %s162 = sshll.u32 [#allocation9], 4
      %s163 = int_to_ptr.vmem [resolvable:$true] %s162
      %168 = dma.hbm_to_vmem [thread:$0]  %s23, 32, %s163, [#allocation8], 16, 16, 1
    $region49: #{reader_decoder_forward.1} parent=1 // pred_fallthru
      _
    // Predicated region
    $region50: #{reader_decoder_forward.1} parent=1 // pred_check
      _
    $region51: #{reader_decoder_forward.1} parent=1 // pred_check_branch
      %170 = sbr.rel (0) target = $region53
    $region52: #{reader_decoder_forward.1} parent=1 // pred_region
      _
    $region53: #{reader_decoder_forward.1} parent=1 // pred_fallthru
      _
    // Predicated region
    $region54: #{reader_decoder_forward.1} parent=1 // pred_check
      _
    $region55: #{reader_decoder_forward.1} parent=1 // pred_check_branch
      %172 = sbr.rel (0) target = $region57
    $region56: #{reader_decoder_forward.1} parent=1 // pred_region
      %s174 = ssub.s32 32, 32
      %175 = vsyncadd [#allocation11], %s174
      %s176 = sshll.u32 [#allocation10], 4
      %s177 = int_to_ptr.vmem [resolvable:$true] %s176
      %182 = dma.hbm_to_vmem [thread:$0]  %s27, 32, %s177, [#allocation11], 16, 16, 1
    $region57: #{reader_decoder_forward.1} parent=1 // pred_fallthru
      _
    // Predicated region
    $region58: #{reader_decoder_forward.1} parent=1 // pred_check
      _
    $region59: #{reader_decoder_forward.1} parent=1 // pred_check_branch
      %184 = sbr.rel (0) target = $region61
    $region60: #{reader_decoder_forward.1} parent=1 // pred_region
      _
    $region61: #{reader_decoder_forward.1} parent=1 // pred_fallthru
      _
    // Predicated region
    $region62: #{reader_decoder_forward.1} parent=1 // pred_check
      _
    $region63: #{reader_decoder_forward.1} parent=1 // pred_check_branch
      %186 = sbr.rel (0) target = $region65
    $region64: #{reader_decoder_forward.1} parent=1 // pred_region
      _
    $region65: #{reader_decoder_forward.1} parent=1 // pred_fallthru
      _
    // Predicated region
    $region66: #{reader_decoder_forward.1} parent=1 // pred_check
      _
    $region67: #{reader_decoder_forward.1} parent=1 // pred_check_branch
      %188 = sbr.rel (0) target = $region69
    $region68: #{reader_decoder_forward.1} parent=1 // pred_region
      _
    $region69: #{reader_decoder_forward.1} parent=1 // pred_fallthru
      _
    // Predicated region
    $region70: #{reader_decoder_forward.1} parent=1 // pred_check
      _
    $region71: #{reader_decoder_forward.1} parent=1 // pred_check_branch
      %190 = sbr.rel (0) target = $region73
    $region72: #{reader_decoder_forward.1} parent=1 // pred_region
      %s192 = ssub.s32 32, 32
      %193 = vsyncadd [#allocation11], %s192
      %s194 = sshll.u32 [#allocation12], 4
      %s195 = int_to_ptr.vmem [resolvable:$true] %s194
      %200 = dma.hbm_to_vmem [thread:$0]  %s35, 32, %s195, [#allocation11], 16, 16, 1
    $region73: #{reader_decoder_forward.1} parent=1 // pred_fallthru
      _
    // Predicated region
    $region74: #{reader_decoder_forward.1} parent=1 // pred_check
      _
    $region75: #{reader_decoder_forward.1} parent=1 // pred_check_branch
      %202 = sbr.rel (0) target = $region77
    $region76: #{reader_decoder_forward.1} parent=1 // pred_region
      %s204 = ssub.s32 32, 32
      %205 = vsyncadd [#allocation14], %s204
      %s206 = sshll.u32 [#allocation13], 4
      %s207 = int_to_ptr.vmem [resolvable:$true] %s206
      %212 = dma.hbm_to_vmem [thread:$0]  %s37, 32, %s207, [#allocation14], 16, 16, 1
    $region77: #{reader_decoder_forward.1} parent=1 // pred_fallthru
      _
    // Predicated region
    $region78: #{reader_decoder_forward.1} parent=1 // pred_check
      _
    $region79: #{reader_decoder_forward.1} parent=1 // pred_check_branch
      %214 = sbr.rel (0) target = $region81
    $region80: #{reader_decoder_forward.1} parent=1 // pred_region
      %s216 = ssub.s32 32, 32
      %217 = vsyncadd [#allocation14], %s216
      %s218 = sshll.u32 [#allocation15], 4
      %s219 = int_to_ptr.vmem [resolvable:$true] %s218
      %224 = dma.hbm_to_vmem [thread:$0]  %s39, 32, %s219, [#allocation14], 16, 16, 1
    $region81: #{reader_decoder_forward.1} parent=1 // pred_fallthru
      _
    // Predicated region
    $region82: #{reader_decoder_forward.1} parent=1 // pred_check
      _
    $region83: #{reader_decoder_forward.1} parent=1 // pred_check_branch
      %226 = sbr.rel (0) target = $region85
    $region84: #{reader_decoder_forward.1} parent=1 // pred_region
      %s228 = ssub.s32 1024, 1024
      %229 = vsyncadd [#allocation17], %s228
      %s230 = sshll.u32 [#allocation16], 4
      %s231 = int_to_ptr.vmem [resolvable:$true] %s230
      %236 = dma.hbm_to_vmem [thread:$0]  %s41, 1024, %s231, [#allocation17], 128, 128, 8
    $region85: #{reader_decoder_forward.1} parent=1 // pred_fallthru
      _
    // Predicated region
    $region86: #{reader_decoder_forward.1} parent=1 // pred_check
      _
    $region87: #{reader_decoder_forward.1} parent=1 // pred_check_branch
      %238 = sbr.rel (0) target = $region89
    $region88: #{reader_decoder_forward.1} parent=1 // pred_region
      %s240 = ssub.s32 32, 32
      %241 = vsyncadd [#allocation17], %s240
      %s242 = sshll.u32 [#allocation18], 4
      %s243 = int_to_ptr.vmem [resolvable:$true] %s242
      %248 = dma.hbm_to_vmem [thread:$0]  %s43, 32, %s243, [#allocation17], 16, 16, 1
    $region89: #{reader_decoder_forward.1} parent=1 // pred_fallthru
      _
    // Predicated region
    $region90: #{reader_decoder_forward.1} parent=1 // pred_check
      _
    $region91: #{reader_decoder_forward.1} parent=1 // pred_check_branch
      %250 = sbr.rel (0) target = $region93
    $region92: #{reader_decoder_forward.1} parent=1 // pred_region
      %s252 = ssub.s32 1024, 1024
      %253 = vsyncadd [#allocation20], %s252
      %s254 = sshll.u32 [#allocation19], 4
      %s255 = int_to_ptr.vmem [resolvable:$true] %s254
      %260 = dma.hbm_to_vmem [thread:$0]  %s45, 1024, %s255, [#allocation20], 128, 128, 8
    $region93: #{reader_decoder_forward.1} parent=1 // pred_fallthru
      _
    // Predicated region
    $region94: #{reader_decoder_forward.1} parent=1 // pred_check
      _
    $region95: #{reader_decoder_forward.1} parent=1 // pred_check_branch
      %262 = sbr.rel (0) target = $region97
    $region96: #{reader_decoder_forward.1} parent=1 // pred_region
      %s264 = ssub.s32 32, 32
      %265 = vsyncadd [#allocation20], %s264
      %s266 = sshll.u32 [#allocation21], 4
      %s267 = int_to_ptr.vmem [resolvable:$true] %s266
      %272 = dma.hbm_to_vmem [thread:$0]  %s47, 32, %s267, [#allocation20], 16, 16, 1
    $region97: #{reader_decoder_forward.1} parent=1 // pred_fallthru
      _
    // Predicated region
    $region98: #{reader_decoder_forward.1} parent=1 // pred_check
      _
    $region99: #{reader_decoder_forward.1} parent=1 // pred_check_branch
      %274 = sbr.rel (0) target = $region101
    $region100: #{reader_decoder_forward.1} parent=1 // pred_region
      %s276 = ssub.s32 1024, 1024
      %277 = vsyncadd [#allocation23], %s276
      %s278 = sshll.u32 [#allocation22], 4
      %s279 = int_to_ptr.vmem [resolvable:$true] %s278
      %284 = dma.hbm_to_vmem [thread:$0]  %s49, 1024, %s279, [#allocation23], 128, 128, 8
    $region101: #{reader_decoder_forward.1} parent=1 // pred_fallthru
      _
    // Predicated region
    $region102: #{reader_decoder_forward.1} parent=1 // pred_check
      _
    $region103: #{reader_decoder_forward.1} parent=1 // pred_check_branch
      %286 = sbr.rel (0) target = $region105
    $region104: #{reader_decoder_forward.1} parent=1 // pred_region
      %s288 = ssub.s32 32, 32
      %289 = vsyncadd [#allocation23], %s288
      %s290 = sshll.u32 [#allocation24], 4
      %s291 = int_to_ptr.vmem [resolvable:$true] %s290
      %296 = dma.hbm_to_vmem [thread:$0]  %s51, 32, %s291, [#allocation23], 16, 16, 1
    $region105: #{reader_decoder_forward.1} parent=1 // pred_fallthru
      _
    // Predicated region
    $region106: #{reader_decoder_forward.1} parent=1 // pred_check
      _
    $region107: #{reader_decoder_forward.1} parent=1 // pred_check_branch
      %298 = sbr.rel (0) target = $region109
    $region108: #{reader_decoder_forward.1} parent=1 // pred_region
      %s300 = ssub.s32 1024, 1024
      %301 = vsyncadd [#allocation26], %s300
      %s302 = sshll.u32 [#allocation25], 4
      %s303 = int_to_ptr.vmem [resolvable:$true] %s302
      %308 = dma.hbm_to_vmem [thread:$0]  %s53, 1024, %s303, [#allocation26], 128, 128, 8
    $region109: #{reader_decoder_forward.1} parent=1 // pred_fallthru
      _
    // Predicated region
    $region110: #{reader_decoder_forward.1} parent=1 // pred_check
      _
    $region111: #{reader_decoder_forward.1} parent=1 // pred_check_branch
      %310 = sbr.rel (0) target = $region113
    $region112: #{reader_decoder_forward.1} parent=1 // pred_region
      %s312 = ssub.s32 32, 32
      %313 = vsyncadd [#allocation26], %s312
      %s314 = sshll.u32 [#allocation27], 4
      %s315 = int_to_ptr.vmem [resolvable:$true] %s314
      %320 = dma.hbm_to_vmem [thread:$0]  %s55, 32, %s315, [#allocation26], 16, 16, 1
    $region113: #{reader_decoder_forward.1} parent=1 // pred_fallthru
      _
    // Predicated region
    $region114: #{reader_decoder_forward.1} parent=1 // pred_check
      _
    $region115: #{reader_decoder_forward.1} parent=1 // pred_check_branch
      %322 = sbr.rel (0) target = $region117
    $region116: #{reader_decoder_forward.1} parent=1 // pred_region
      %s324 = ssub.s32 32, 32
      %325 = vsyncadd [#allocation29], %s324
      %s326 = sshll.u32 [#allocation28], 4
      %s327 = int_to_ptr.vmem [resolvable:$true] %s326
      %332 = dma.hbm_to_vmem [thread:$0]  %s57, 32, %s327, [#allocation29], 16, 16, 1
    $region117: #{reader_decoder_forward.1} parent=1 // pred_fallthru
      _
    // Predicated region
    $region118: #{reader_decoder_forward.1} parent=1 // pred_check
      _
    $region119: #{reader_decoder_forward.1} parent=1 // pred_check_branch
      %334 = sbr.rel (0) target = $region121
    $region120: #{reader_decoder_forward.1} parent=1 // pred_region
      %s336 = ssub.s32 32, 32
      %337 = vsyncadd [#allocation29], %s336
      %s338 = sshll.u32 [#allocation30], 4
      %s339 = int_to_ptr.vmem [resolvable:$true] %s338
      %344 = dma.hbm_to_vmem [thread:$0]  %s59, 32, %s339, [#allocation29], 16, 16, 1
    $region121: #{reader_decoder_forward.1} parent=1 // pred_fallthru
      _
    // Predicated region
    $region122: #{reader_decoder_forward.1} parent=1 // pred_check
      _
    $region123: #{reader_decoder_forward.1} parent=1 // pred_check_branch
      %346 = sbr.rel (0) target = $region125
    $region124: #{reader_decoder_forward.1} parent=1 // pred_region
      %s348 = ssub.s32 1024, 1024
      %349 = vsyncadd [#allocation32], %s348
      %s350 = sshll.u32 [#allocation31], 4
      %s351 = int_to_ptr.vmem [resolvable:$true] %s350
      %356 = dma.hbm_to_vmem [thread:$0]  %s61, 1024, %s351, [#allocation32], 128, 128, 8
    $region125: #{reader_decoder_forward.1} parent=1 // pred_fallthru
      _
    // Predicated region
    $region126: #{reader_decoder_forward.1} parent=1 // pred_check
      _
    $region127: #{reader_decoder_forward.1} parent=1 // pred_check_branch
      %358 = sbr.rel (0) target = $region129
    $region128: #{reader_decoder_forward.1} parent=1 // pred_region
      %s360 = ssub.s32 32, 32
      %361 = vsyncadd [#allocation32], %s360
      %s362 = sshll.u32 [#allocation33], 4
      %s363 = int_to_ptr.vmem [resolvable:$true] %s362
      %368 = dma.hbm_to_vmem [thread:$0]  %s63, 32, %s363, [#allocation32], 16, 16, 1
    $region129: #{reader_decoder_forward.1} parent=1 // pred_fallthru
      _
    // Predicated region
    $region130: #{reader_decoder_forward.1} parent=1 // pred_check
      _
    $region131: #{reader_decoder_forward.1} parent=1 // pred_check_branch
      %370 = sbr.rel (0) target = $region133
    $region132: #{reader_decoder_forward.1} parent=1 // pred_region
      _
    $region133: #{reader_decoder_forward.1} parent=1 // pred_fallthru
      _
    // Predicated region
    $region134: #{reader_decoder_forward.1} parent=1 // pred_check
      _
    $region135: #{reader_decoder_forward.1} parent=1 // pred_check_branch
      %372 = sbr.rel (0) target = $region137
    $region136: #{reader_decoder_forward.1} parent=1 // pred_region
      %s374 = ssub.s32 32, 32
      %375 = vsyncadd [#allocation35], %s374
      %s376 = sshll.u32 [#allocation34], 4
      %s377 = int_to_ptr.vmem [resolvable:$true] %s376
      %382 = dma.hbm_to_vmem [thread:$0]  %s67, 32, %s377, [#allocation35], 16, 16, 1
    $region137: #{reader_decoder_forward.1} parent=1 // pred_fallthru
      _
    // Predicated region
    $region138: #{reader_decoder_forward.1} parent=1 // pred_check
      _
    $region139: #{reader_decoder_forward.1} parent=1 // pred_check_branch
      %384 = sbr.rel (0) target = $region141
    $region140: #{reader_decoder_forward.1} parent=1 // pred_region
      %s386 = ssub.s32 32, 32
      %387 = vsyncadd [#allocation35], %s386
      %s388 = sshll.u32 [#allocation36], 4
      %s389 = int_to_ptr.vmem [resolvable:$true] %s388
      %394 = dma.hbm_to_vmem [thread:$0]  %s69, 32, %s389, [#allocation35], 16, 16, 1
    $region141: #{reader_decoder_forward.1} parent=1 // pred_fallthru
      _
    // Predicated region
    $region142: #{reader_decoder_forward.1} parent=1 // pred_check
      _
    $region143: #{reader_decoder_forward.1} parent=1 // pred_check_branch
      %396 = sbr.rel (0) target = $region145
    $region144: #{reader_decoder_forward.1} parent=1 // pred_region
      %s398 = ssub.s32 32, 32
      %399 = vsyncadd [#allocation38], %s398
      %s400 = sshll.u32 [#allocation37], 4
      %s401 = int_to_ptr.vmem [resolvable:$true] %s400
      %406 = dma.hbm_to_vmem [thread:$0]  %s71, 32, %s401, [#allocation38], 16, 16, 1
    $region145: #{reader_decoder_forward.1} parent=1 // pred_fallthru
      _
    // Predicated region
    $region146: #{reader_decoder_forward.1} parent=1 // pred_check
      _
    $region147: #{reader_decoder_forward.1} parent=1 // pred_check_branch
      %408 = sbr.rel (0) target = $region149
    $region148: #{reader_decoder_forward.1} parent=1 // pred_region
      _
    $region149: #{reader_decoder_forward.1} parent=1 // pred_fallthru
      _
    // Predicated region
    $region150: #{reader_decoder_forward.1} parent=1 // pred_check
      _
    $region151: #{reader_decoder_forward.1} parent=1 // pred_check_branch
      %410 = sbr.rel (0) target = $region153
    $region152: #{reader_decoder_forward.1} parent=1 // pred_region
      _
    $region153: #{reader_decoder_forward.1} parent=1 // pred_fallthru
      _
    // Predicated region
    $region154: #{reader_decoder_forward.1} parent=1 // pred_check
      _
    $region155: #{reader_decoder_forward.1} parent=1 // pred_check_branch
      %412 = sbr.rel (0) target = $region157
    $region156: #{reader_decoder_forward.1} parent=1 // pred_region
      %413 = dma.done [#allocation3], 32
    $region157: #{reader_decoder_forward.1} parent=1 // pred_fallthru
      _
    // Predicated region
    $region158: #{reader_decoder_forward.1} parent=1 // pred_check
      _
    $region159: #{reader_decoder_forward.1} parent=1 // pred_check_branch
      %415 = sbr.rel (0) target = $region161
    $region160: #{reader_decoder_forward.1} parent=1 // pred_region
      %416 = dma.done [#allocation5], 32
    $region161: #{reader_decoder_forward.1} parent=1 // pred_fallthru
      _
    // Predicated region
    $region162: #{reader_decoder_forward.1} parent=1 // pred_check
      _
    $region163: #{reader_decoder_forward.1} parent=1 // pred_check_branch
      %418 = sbr.rel (0) target = $region165
    $region164: #{reader_decoder_forward.1} parent=1 // pred_region
      %419 = dma.done [#allocation5], 32
    $region165: #{reader_decoder_forward.1} parent=1 // pred_fallthru
      _
    // Predicated region
    $region166: #{reader_decoder_forward.1} parent=1 // pred_check
      _
    $region167: #{reader_decoder_forward.1} parent=1 // pred_check_branch
      %421 = sbr.rel (0) target = $region169
    $region168: #{reader_decoder_forward.1} parent=1 // pred_region
      %422 = dma.done [#allocation8], 32
    $region169: #{reader_decoder_forward.1} parent=1 // pred_fallthru
      _
    // Predicated region
    $region170: #{reader_decoder_forward.1} parent=1 // pred_check
      _
    $region171: #{reader_decoder_forward.1} parent=1 // pred_check_branch
      %424 = sbr.rel (0) target = $region173
    $region172: #{reader_decoder_forward.1} parent=1 // pred_region
      %425 = dma.done [#allocation8], 32
    $region173: #{reader_decoder_forward.1} parent=1 // pred_fallthru
      _
    // Predicated region
    $region174: #{reader_decoder_forward.1} parent=1 // pred_check
      _
    $region175: #{reader_decoder_forward.1} parent=1 // pred_check_branch
      %427 = sbr.rel (0) target = $region177
    $region176: #{reader_decoder_forward.1} parent=1 // pred_region
      %428 = dma.done [#allocation11], 32
    $region177: #{reader_decoder_forward.1} parent=1 // pred_fallthru
      _
    // Predicated region
    $region178: #{reader_decoder_forward.1} parent=1 // pred_check
      _
    $region179: #{reader_decoder_forward.1} parent=1 // pred_check_branch
      %430 = sbr.rel (0) target = $region181
    $region180: #{reader_decoder_forward.1} parent=1 // pred_region
      %431 = dma.done [#allocation11], 32
    $region181: #{reader_decoder_forward.1} parent=1 // pred_fallthru
      _
    // Predicated region
    $region182: #{reader_decoder_forward.1} parent=1 // pred_check
      _
    $region183: #{reader_decoder_forward.1} parent=1 // pred_check_branch
      %433 = sbr.rel (0) target = $region185
    $region184: #{reader_decoder_forward.1} parent=1 // pred_region
      %434 = dma.done [#allocation14], 32
    $region185: #{reader_decoder_forward.1} parent=1 // pred_fallthru
      _
    // Predicated region
    $region186: #{reader_decoder_forward.1} parent=1 // pred_check
      _
    $region187: #{reader_decoder_forward.1} parent=1 // pred_check_branch
      %436 = sbr.rel (0) target = $region189
    $region188: #{reader_decoder_forward.1} parent=1 // pred_region
      %437 = dma.done [#allocation14], 32
    $region189: #{reader_decoder_forward.1} parent=1 // pred_fallthru
      _
    // Predicated region
    $region190: #{reader_decoder_forward.1} parent=1 // pred_check
      _
    $region191: #{reader_decoder_forward.1} parent=1 // pred_check_branch
      %439 = sbr.rel (0) target = $region193
    $region192: #{reader_decoder_forward.1} parent=1 // pred_region
      %440 = dma.done [#allocation17], 1024
    $region193: #{reader_decoder_forward.1} parent=1 // pred_fallthru
      _
    // Predicated region
    $region194: #{reader_decoder_forward.1} parent=1 // pred_check
      _
    $region195: #{reader_decoder_forward.1} parent=1 // pred_check_branch
      %442 = sbr.rel (0) target = $region197
    $region196: #{reader_decoder_forward.1} parent=1 // pred_region
      %443 = dma.done [#allocation17], 32
    $region197: #{reader_decoder_forward.1} parent=1 // pred_fallthru
      _
    // Predicated region
    $region198: #{reader_decoder_forward.1} parent=1 // pred_check
      _
    $region199: #{reader_decoder_forward.1} parent=1 // pred_check_branch
      %445 = sbr.rel (0) target = $region201
    $region200: #{reader_decoder_forward.1} parent=1 // pred_region
      %446 = dma.done [#allocation20], 1024
    $region201: #{reader_decoder_forward.1} parent=1 // pred_fallthru
      _
    // Predicated region
    $region202: #{reader_decoder_forward.1} parent=1 // pred_check
      _
    $region203: #{reader_decoder_forward.1} parent=1 // pred_check_branch
      %448 = sbr.rel (0) target = $region205
    $region204: #{reader_decoder_forward.1} parent=1 // pred_region
      %449 = dma.done [#allocation20], 32
    $region205: #{reader_decoder_forward.1} parent=1 // pred_fallthru
      _
    // Predicated region
    $region206: #{reader_decoder_forward.1} parent=1 // pred_check
      _
    $region207: #{reader_decoder_forward.1} parent=1 // pred_check_branch
      %451 = sbr.rel (0) target = $region209
    $region208: #{reader_decoder_forward.1} parent=1 // pred_region
      %452 = dma.done [#allocation23], 1024
    $region209: #{reader_decoder_forward.1} parent=1 // pred_fallthru
      _
    // Predicated region
    $region210: #{reader_decoder_forward.1} parent=1 // pred_check
      _
    $region211: #{reader_decoder_forward.1} parent=1 // pred_check_branch
      %454 = sbr.rel (0) target = $region213
    $region212: #{reader_decoder_forward.1} parent=1 // pred_region
      %455 = dma.done [#allocation23], 32
    $region213: #{reader_decoder_forward.1} parent=1 // pred_fallthru
      _
    // Predicated region
    $region214: #{reader_decoder_forward.1} parent=1 // pred_check
      _
    $region215: #{reader_decoder_forward.1} parent=1 // pred_check_branch
      %457 = sbr.rel (0) target = $region217
    $region216: #{reader_decoder_forward.1} parent=1 // pred_region
      %458 = dma.done [#allocation26], 1024
    $region217: #{reader_decoder_forward.1} parent=1 // pred_fallthru
      _
    // Predicated region
    $region218: #{reader_decoder_forward.1} parent=1 // pred_check
      _
    $region219: #{reader_decoder_forward.1} parent=1 // pred_check_branch
      %460 = sbr.rel (0) target = $region221
    $region220: #{reader_decoder_forward.1} parent=1 // pred_region
      %461 = dma.done [#allocation26], 32
    $region221: #{reader_decoder_forward.1} parent=1 // pred_fallthru
      _
    // Predicated region
    $region222: #{reader_decoder_forward.1} parent=1 // pred_check
      _
    $region223: #{reader_decoder_forward.1} parent=1 // pred_check_branch
      %463 = sbr.rel (0) target = $region225
    $region224: #{reader_decoder_forward.1} parent=1 // pred_region
      %464 = dma.done [#allocation29], 32
    $region225: #{reader_decoder_forward.1} parent=1 // pred_fallthru
      _
    // Predicated region
    $region226: #{reader_decoder_forward.1} parent=1 // pred_check
      _
    $region227: #{reader_decoder_forward.1} parent=1 // pred_check_branch
      %466 = sbr.rel (0) target = $region229
    $region228: #{reader_decoder_forward.1} parent=1 // pred_region
      %467 = dma.done [#allocation29], 32
    $region229: #{reader_decoder_forward.1} parent=1 // pred_fallthru
      _
    // Predicated region
    $region230: #{reader_decoder_forward.1} parent=1 // pred_check
      _
    $region231: #{reader_decoder_forward.1} parent=1 // pred_check_branch
      %469 = sbr.rel (0) target = $region233
    $region232: #{reader_decoder_forward.1} parent=1 // pred_region
      %470 = dma.done [#allocation32], 1024
    $region233: #{reader_decoder_forward.1} parent=1 // pred_fallthru
      _
    // Predicated region
    $region234: #{reader_decoder_forward.1} parent=1 // pred_check
      _
    $region235: #{reader_decoder_forward.1} parent=1 // pred_check_branch
      %472 = sbr.rel (0) target = $region237
    $region236: #{reader_decoder_forward.1} parent=1 // pred_region
      %473 = dma.done [#allocation32], 32
    $region237: #{reader_decoder_forward.1} parent=1 // pred_fallthru
      _
    // Predicated region
    $region238: #{reader_decoder_forward.1} parent=1 // pred_check
      _
    $region239: #{reader_decoder_forward.1} parent=1 // pred_check_branch
      %475 = sbr.rel (0) target = $region241
    $region240: #{reader_decoder_forward.1} parent=1 // pred_region
      %476 = dma.done [#allocation35], 32
    $region241: #{reader_decoder_forward.1} parent=1 // pred_fallthru
      _
    // Predicated region
    $region242: #{reader_decoder_forward.1} parent=1 // pred_check
      _
    $region243: #{reader_decoder_forward.1} parent=1 // pred_check_branch
      %478 = sbr.rel (0) target = $region245
    $region244: #{reader_decoder_forward.1} parent=1 // pred_region
      %479 = dma.done [#allocation35], 32
    $region245: #{reader_decoder_forward.1} parent=1 // pred_fallthru
      _
    // Predicated region
    $region246: #{reader_decoder_forward.1} parent=1 // pred_check
      _
    $region247: #{reader_decoder_forward.1} parent=1 // pred_check_branch
      %481 = sbr.rel (0) target = $region249
    $region248: #{reader_decoder_forward.1} parent=1 // pred_region
      %482 = dma.done [#allocation38], 32
    $region249: #{reader_decoder_forward.1} parent=1 // pred_fallthru
      _
    %v483 = vlaneseq
    %v484 = vand.u32 %v483, 127
    %vm485 = vcmp.ge.s32.totalorder %v484, 0
    %vm486 = vcmp.lt.s32.totalorder %v484, 8
    %vm487 = vmand %vm485, %vm486
    %v488 = vsel %vm487, 1, 0
    %v489 = vcvt.s32.f32 %v488
    %vm490 = vcmp.ge.s32.totalorder %v484, 8
    %vm491 = vcmp.lt.s32.totalorder %v484, 16
    %vm492 = vmand %vm490, %vm491
    %v493 = vsel %vm492, 1, 0
    %v494 = vcvt.s32.f32 %v493
    %vm495 = vcmp.ge.s32.totalorder %v484, 16
    %vm496 = vcmp.lt.s32.totalorder %v484, 24
    %vm497 = vmand %vm495, %vm496
    %v498 = vsel %vm497, 1, 0
    %v499 = vcvt.s32.f32 %v498
    %vm500 = vcmp.ge.s32.totalorder %v484, 24
    %vm501 = vcmp.lt.s32.totalorder %v484, 32
    %vm502 = vmand %vm500, %vm501
    %v503 = vsel %vm502, 1, 0
    %v504 = vcvt.s32.f32 %v503
    %v505 = vld [vmem:[%s3] sm:$0x1]
    %v506 = vlaneseq
    %v507 = vshrl.u32 %v506, 7
    %v508 = vadd.s32 %v507, 8
    %v509 = vadd.s32 %v507, 16
    %v510 = vadd.s32 %v507, 24
    %vm511 = vcmp.lt.s32.totalorder %v507, 16
    %vm512 = vcmp.lt.s32.totalorder %v508, 16
    %vm513 = vcmp.lt.s32.totalorder %v509, 16
    %vm514 = vcmp.lt.s32.totalorder %v510, 16
    %vm515 = vmand %vm511, %vm486
    %vm516 = vmand %vm512, %vm486
    %vm517 = vmand %vm513, %vm486
    %vm518 = vmand %vm514, %vm486
    %vm519 = vcmp.ge.s32.totalorder %v507, 16
    %vm520 = vcmp.ge.s32.totalorder %v508, 16
    %vm521 = vcmp.ge.s32.totalorder %v509, 16
    %vm522 = vcmp.ge.s32.totalorder %v510, 16
    %vm523 = vcmp.lt.s32.totalorder %v507, 32
    %vm524 = vcmp.lt.s32.totalorder %v508, 32
    %vm525 = vcmp.lt.s32.totalorder %v509, 32
    %vm526 = vcmp.lt.s32.totalorder %v510, 32
    %vm527 = vmand %vm519, %vm523
    %vm528 = vmand %vm520, %vm524
    %vm529 = vmand %vm521, %vm525
    %vm530 = vmand %vm522, %vm526
    %vm531 = vmand %vm527, %vm492
    %vm532 = vmand %vm528, %vm492
    %vm533 = vmand %vm529, %vm492
    %vm534 = vmand %vm530, %vm492
    %vm535 = vmor %vm515, %vm531
    %vm536 = vmor %vm516, %vm532
    %vm537 = vmor %vm517, %vm533
    %vm538 = vmor %vm518, %vm534
    %v539 = vsel %vm535, 0.0, -1e+09
    %v540 = vsel %vm536, 0.0, -1e+09
    %v541 = vsel %vm537, 0.0, -1e+09
    %v542 = vsel %vm538, 0.0, -1e+09
    %v544 = vlaneseq
    %v545 = vshrl.u32 %v544, 7
    %v546 = vsub.s32 0, %v545
    %v547 = vrot.slane %v505, %v546
    %v549 = vadd.f32 %v539, %v547
    %v550 = vadd.f32 %v540, %v547
    %v551 = vadd.f32 %v541, %v547
    %v552 = vadd.f32 %v542, %v547
    %vm553 = vmand %vm511, %vm491
    %vm554 = vmand %vm512, %vm491
    %vm555 = vmand %vm513, %vm491
    %vm556 = vmand %vm514, %vm491
    %vm557 = vmand %vm495, %vm501
    %vm558 = vmand %vm527, %vm557
    %vm559 = vmand %vm528, %vm557
    %vm560 = vmand %vm529, %vm557
    %vm561 = vmand %vm530, %vm557
    %vm562 = vmor %vm553, %vm558
    %vm563 = vmor %vm554, %vm559
    %vm564 = vmor %vm555, %vm560
    %vm565 = vmor %vm556, %vm561
    %v566 = vsel %vm562, 0.0, -1e+09
    %v567 = vsel %vm563, 0.0, -1e+09
    %v568 = vsel %vm564, 0.0, -1e+09
    %v569 = vsel %vm565, 0.0, -1e+09
    %v570 = vld [vmem:[%s1] sm:$0xff]
    %v571 = vld [vmem:[%s1 + $0x8] sm:$0xff]
    %v572 = vld [vmem:[%s7] sm:$0xff]
    %v573 = vld [vmem:[%s7 + $0x8] sm:$0xff]
    %v574 = vld [vmem:[%s7 + $0x10] sm:$0xff]
    %v575 = vld [vmem:[%s7 + $0x18] sm:$0xff]
    %v576 = vld [vmem:[%s5] sm:$0xff]
    %v577 = vld [vmem:[%s5 + $0x8] sm:$0xff]
    %v578 = vld [vmem:[%s5 + $0x10] sm:$0xff]
    %v579 = vld [vmem:[%s5 + $0x18] sm:$0xff]
    %v580 = vld [vmem:[%s9] sm:$0xff]
    %v581 = vld [vmem:[%s9 + $0x8] sm:$0xff]
    %v582 = vld [vmem:[%s9 + $0x10] sm:$0xff]
    %v583 = vld [vmem:[%s9 + $0x18] sm:$0xff]
    %v584 = vld [vmem:[#allocation2] sm:$0x1]
    %v586 = vlaneseq
    %v587 = vshrl.u32 %v586, 7
    %v588 = vsub.s32 0, %v587
    %v589 = vrot.slane %v584, %v588
    %vm591 = vcmask 261120
    %v593 = vsel %vm591, %v570, 0
    %v596 = vsel %vm591, %v571, 0
    %598 = vmatprep.subr.mxu0 0.0
    %599 = vmatpush1.msra.mxu0 %v580
    %600 = vmatprep.subr.mxu0 0.0
    %601 = vmatpush1.msra.mxu0 %v581
    %602 = vmatprep.subr.mxu0 0.0
    %603 = vmatpush1.msra.mxu0 %v582
    %604 = vmatprep.subr.mxu0 0.0
    %605 = vmatpush1.msra.mxu0 %v583
    %606 = vmatprep.subr.mxu0 0.0
    %607 = vmatpush1.msra.mxu0 0.0
    %608 = vmatprep.subr.mxu0 0.0
    %609 = vmatpush1.msra.mxu0 0.0
    %610 = vmatprep.subr.mxu0 0.0
    %611 = vmatpush1.msra.mxu0 0.0
    %612 = vmatprep.subr.mxu0 0.0
    %613 = vmatpush1.msra.mxu0 0.0
    %614 = vmatprep.subr.mxu0 0.0
    %615 = vmatpush1.msra.mxu0 0.0
    %616 = vmatprep.subr.mxu0 0.0
    %617 = vmatpush1.msra.mxu0 0.0
    %618 = vmatprep.subr.mxu0 0.0
    %619 = vmatpush1.msra.mxu0 0.0
    %620 = vmatprep.subr.mxu0 0.0
    %621 = vmatpush1.msra.mxu0 0.0
    %622 = vmatprep.subr.mxu0 0.0
    %623 = vmatpush1.msra.mxu0 0.0
    %624 = vmatprep.subr.mxu0 0.0
    %625 = vmatpush1.msra.mxu0 0.0
    %626 = vmatprep.subr.mxu0 0.0
    %627 = vmatpush1.msra.mxu0 0.0
    %628 = vmatprep.subr.mxu0 0.0
    %629 = vmatpush1.msra.mxu0 0.0
    %630 = vmatprep.subr.mxu0 0.0
    %631 = vmatpush1.msra.mxu0 0.0
    %632 = vmatprep.subr.mxu0 0.0
    %633 = vmatpush1.msra.mxu0 0.0
    %634 = vmatprep.subr.mxu0 0.0
    %635 = vmatpush1.msra.mxu0 0.0
    %636 = vmatprep.subr.mxu0 0.0
    %637 = vmatpush1.msra.mxu0 0.0
    %638 = vmatprep.subr.mxu0 0.0
    %639 = vmatpush1.msra.mxu0 0.0
    %640 = vmatprep.subr.mxu0 0.0
    %641 = vmatpush1.msra.mxu0 0.0
    %642 = vmatprep.subr.mxu0 0.0
    %643 = vmatpush1.msra.mxu0 0.0
    %644 = vmatprep.subr.mxu0 0.0
    %645 = vmatpush1.msra.mxu0 0.0
    %646 = vmatprep.subr.mxu0 0.0
    %647 = vmatpush1.msra.mxu0 0.0
    %648 = vmatprep.subr.mxu0 0.0
    %649 = vmatpush1.msra.mxu0 0.0
    %650 = vmatprep.subr.mxu0 0.0
    %651 = vmatpush1.msra.mxu0 0.0
    %652 = vmatprep.subr.mxu0 0.0
    %653 = vmatpush1.msra.mxu0 0.0
    %654 = vmatprep.subr.mxu0 0.0
    %655 = vmatpush1.msra.mxu0 0.0
    %656 = vmatprep.subr.mxu0 0.0
    %657 = vmatpush1.msra.mxu0 0.0
    %658 = vmatprep.subr.mxu0 0.0
    %659 = vmatpush1.msra.mxu0 0.0
    %660 = vmatprep.subr.mxu0 0.0
    %661 = vmatpush1.msra.mxu0 0.0
    %662 = vmatprep.mubr.f32.mxu0 0.0
    %663 = vmatmul.mubr.f32.gmra.mrb[0].mxu0 %v593
    %v664 = vpop.f32.mrb[0].mxu0
    %v665 = vadd.f32 %v589, %v664
    %v666 = vpop.f32.mrb[0].mxu0
    %667 = vmatprep.mubr.f32.mxu0 0.0
    %668 = vmatmul.mubr.f32.gmra.mrb[0].mxu0 %v596
    %v669 = vpop.f32.mrb[0].mxu0
    %v670 = vadd.f32 %v589, %v669
    %v671 = vpop.f32.mrb[0].mxu0
    %672 = vdwg.mxu0
    %v673 = vmul.f32 %v665, %v665
    %v674 = vmul.f32 %v670, %v670
    %v675 = vmul.f32 %v665, %v673
    %v676 = vmul.f32 %v670, %v674
    %v677 = vmul.f32 %v675, 0.044715
    %v678 = vmul.f32 %v676, 0.044715
    %v679 = vadd.f32 %v665, %v677
    %v680 = vadd.f32 %v670, %v678
    %v681 = vmul.f32 %v679, 0.7978846
    %v682 = vmul.f32 %v680, 0.7978846
    %v683 = vtanh.pop %v681
    %v684 = vtanh.pop %v682
    %v685 = vadd.f32 %v683, 1.0
    %v686 = vadd.f32 %v684, 1.0
    %v687 = vmul.f32 %v685, 0.5
    %v688 = vmul.f32 %v686, 0.5
    %v689 = vmul.f32 %v665, %v687
    %v690 = vmul.f32 %v670, %v688
    %v691 = vld [vmem:[%s13] sm:$0xff]
    %v692 = vld [vmem:[%s13 + $0x8] sm:$0xff]
    %v693 = vld [vmem:[%s13 + $0x10] sm:$0xff]
    %v694 = vld [vmem:[%s13 + $0x18] sm:$0xff]
    %v695 = vld [vmem:[#allocation4] sm:$0x1]
    %v697 = vlaneseq
    %v698 = vshrl.u32 %v697, 7
    %v699 = vsub.s32 0, %v698
    %v700 = vrot.slane %v695, %v699
    %v703 = vsel %vm591, %v689, 0
    %v706 = vsel %vm591, %v690, 0
    %708 = vmatprep.subr.mxu0 0.0
    %709 = vmatpush1.msra.mxu0 %v691
    %710 = vmatprep.subr.mxu0 0.0
    %711 = vmatpush1.msra.mxu0 %v692
    %712 = vmatprep.subr.mxu0 0.0
    %713 = vmatpush1.msra.mxu0 %v693
    %714 = vmatprep.subr.mxu0 0.0
    %715 = vmatpush1.msra.mxu0 %v694
    %716 = vmatprep.subr.mxu0 0.0
    %717 = vmatpush1.msra.mxu0 0.0
    %718 = vmatprep.subr.mxu0 0.0
    %719 = vmatpush1.msra.mxu0 0.0
    %720 = vmatprep.subr.mxu0 0.0
    %721 = vmatpush1.msra.mxu0 0.0
    %722 = vmatprep.subr.mxu0 0.0
    %723 = vmatpush1.msra.mxu0 0.0
    %724 = vmatprep.subr.mxu0 0.0
    %725 = vmatpush1.msra.mxu0 0.0
    %726 = vmatprep.subr.mxu0 0.0
    %727 = vmatpush1.msra.mxu0 0.0
    %728 = vmatprep.subr.mxu0 0.0
    %729 = vmatpush1.msra.mxu0 0.0
    %730 = vmatprep.subr.mxu0 0.0
    %731 = vmatpush1.msra.mxu0 0.0
    %732 = vmatprep.subr.mxu0 0.0
    %733 = vmatpush1.msra.mxu0 0.0
    %734 = vmatprep.subr.mxu0 0.0
    %735 = vmatpush1.msra.mxu0 0.0
    %736 = vmatprep.subr.mxu0 0.0
    %737 = vmatpush1.msra.mxu0 0.0
    %738 = vmatprep.subr.mxu0 0.0
    %739 = vmatpush1.msra.mxu0 0.0
    %740 = vmatprep.subr.mxu0 0.0
    %741 = vmatpush1.msra.mxu0 0.0
    %742 = vmatprep.subr.mxu0 0.0
    %743 = vmatpush1.msra.mxu0 0.0
    %744 = vmatprep.subr.mxu0 0.0
    %745 = vmatpush1.msra.mxu0 0.0
    %746 = vmatprep.subr.mxu0 0.0
    %747 = vmatpush1.msra.mxu0 0.0
    %748 = vmatprep.subr.mxu0 0.0
    %749 = vmatpush1.msra.mxu0 0.0
    %750 = vmatprep.subr.mxu0 0.0
    %751 = vmatpush1.msra.mxu0 0.0
    %752 = vmatprep.subr.mxu0 0.0
    %753 = vmatpush1.msra.mxu0 0.0
    %754 = vmatprep.subr.mxu0 0.0
    %755 = vmatpush1.msra.mxu0 0.0
    %756 = vmatprep.subr.mxu0 0.0
    %757 = vmatpush1.msra.mxu0 0.0
    %758 = vmatprep.subr.mxu0 0.0
    %759 = vmatpush1.msra.mxu0 0.0
    %760 = vmatprep.subr.mxu0 0.0
    %761 = vmatpush1.msra.mxu0 0.0
    %762 = vmatprep.subr.mxu0 0.0
    %763 = vmatpush1.msra.mxu0 0.0
    %764 = vmatprep.subr.mxu0 0.0
    %765 = vmatpush1.msra.mxu0 0.0
    %766 = vmatprep.subr.mxu0 0.0
    %767 = vmatpush1.msra.mxu0 0.0
    %768 = vmatprep.subr.mxu0 0.0
    %769 = vmatpush1.msra.mxu0 0.0
    %770 = vmatprep.subr.mxu0 0.0
    %771 = vmatpush1.msra.mxu0 0.0
    %772 = vmatprep.mubr.f32.mxu0 0.0
    %773 = vmatmul.mubr.f32.gmra.mrb[0].mxu0 %v703
    %v774 = vpop.f32.mrb[0].mxu0
    %v775 = vadd.f32 %v700, %v774
    %v776 = vpop.f32.mrb[0].mxu0
    %777 = vmatprep.mubr.f32.mxu0 0.0
    %778 = vmatmul.mubr.f32.gmra.mrb[0].mxu0 %v706
    %v779 = vpop.f32.mrb[0].mxu0
    %v780 = vadd.f32 %v700, %v779
    %v781 = vpop.f32.mrb[0].mxu0
    %782 = vdwg.mxu0
    %v783 = vld [vmem:[#allocation6] sm:$0x1]
    %v784 = vld [vmem:[#allocation7] sm:$0x1]
    %v785 = vsel %vm591, %v775, 0.0
    %786 = vadd.xlane.f32.xlu0 %v785
    %v787 = vpop.xlane.xlu0 %786
    %v788 = vsel %vm591, %v780, 0.0
    %789 = vadd.xlane.f32.xlu0 %v788
    %v790 = vpop.xlane.xlu0 %789
    %v791 = vrcp.pop 32.0
    %v792 = vmul.f32 %v787, %v791
    %v793 = vmul.f32 %v790, %v791
    %v794 = vsub.f32 %v775, %v792
    %v795 = vsub.f32 %v780, %v793
    %v796 = vmul.f32 %v794, %v794
    %v797 = vmul.f32 %v795, %v795
    %v798 = vsel %vm591, %v796, 0.0
    %799 = vadd.xlane.f32.xlu0 %v798
    %v800 = vpop.xlane.xlu0 %799
    %v801 = vsel %vm591, %v797, 0.0
    %802 = vadd.xlane.f32.xlu0 %v801
    %v803 = vpop.xlane.xlu0 %802
    %v804 = vmul.f32 %v800, %v791
    %v805 = vmul.f32 %v803, %v791
    %v806 = vadd.f32 %v804, 1e-05
    %v807 = vadd.f32 %v805, 1e-05
    %v808 = vrsqrt.pop %v806
    %v809 = vrsqrt.pop %v807
    %v810 = vmul.f32 %v794, %v808
    %v811 = vmul.f32 %v795, %v809
    %v813 = vlaneseq
    %v814 = vshrl.u32 %v813, 7
    %v815 = vsub.s32 0, %v814
    %v816 = vrot.slane %v783, %v815
    %v818 = vmul.f32 %v810, %v816
    %v819 = vmul.f32 %v811, %v816
    %v821 = vlaneseq
    %v822 = vshrl.u32 %v821, 7
    %v823 = vsub.s32 0, %v822
    %v824 = vrot.slane %v784, %v823
    %v826 = vadd.f32 %v818, %v824
    %v827 = vadd.f32 %v819, %v824
    %v828 = vadd.f32 %v576, %v572
    %v829 = vadd.f32 %v577, %v573
    %v830 = vadd.f32 %v578, %v574
    %v831 = vadd.f32 %v579, %v575
    %v832 = vld [vmem:[#allocation16] sm:$0xff]
    %v833 = vld [vmem:[#allocation16 + $0x8] sm:$0xff]
    %v834 = vld [vmem:[#allocation16 + $0x10] sm:$0xff]
    %v835 = vld [vmem:[#allocation16 + $0x18] sm:$0xff]
    %v836 = vld [vmem:[#allocation18] sm:$0x1]
    %v837 = vld [vmem:[#allocation19] sm:$0xff]
    %v838 = vld [vmem:[#allocation19 + $0x8] sm:$0xff]
    %v839 = vld [vmem:[#allocation19 + $0x10] sm:$0xff]
    %v840 = vld [vmem:[#allocation19 + $0x18] sm:$0xff]
    %v841 = vld [vmem:[#allocation21] sm:$0x1]
    %v842 = vld [vmem:[#allocation22] sm:$0xff]
    %v843 = vld [vmem:[#allocation22 + $0x8] sm:$0xff]
    %v844 = vld [vmem:[#allocation22 + $0x10] sm:$0xff]
    %v845 = vld [vmem:[#allocation22 + $0x18] sm:$0xff]
    %v846 = vld [vmem:[#allocation24] sm:$0x1]
    %v847 = vld [vmem:[#allocation25] sm:$0xff]
    %v848 = vld [vmem:[#allocation25 + $0x8] sm:$0xff]
    %v849 = vld [vmem:[#allocation25 + $0x10] sm:$0xff]
    %v850 = vld [vmem:[#allocation25 + $0x18] sm:$0xff]
    %v851 = vld [vmem:[#allocation27] sm:$0x1]
    %v853 = vlaneseq
    %v854 = vshrl.u32 %v853, 7
    %v855 = vsub.s32 0, %v854
    %v856 = vrot.slane %v836, %v855
    %v859 = vsel %vm591, %v828, 0
    %v862 = vsel %vm591, %v829, 0
    %v865 = vsel %vm591, %v830, 0
    %v868 = vsel %vm591, %v831, 0
    %870 = vmatprep.subr.mxu0 0.0
    %871 = vmatpush1.msra.mxu0 %v832
    %872 = vmatprep.subr.mxu0 0.0
    %873 = vmatpush1.msra.mxu0 %v833
    %874 = vmatprep.subr.mxu0 0.0
    %875 = vmatpush1.msra.mxu0 %v834
    %876 = vmatprep.subr.mxu0 0.0
    %877 = vmatpush1.msra.mxu0 %v835
    %878 = vmatprep.subr.mxu0 0.0
    %879 = vmatpush1.msra.mxu0 0.0
    %880 = vmatprep.subr.mxu0 0.0
    %881 = vmatpush1.msra.mxu0 0.0
    %882 = vmatprep.subr.mxu0 0.0
    %883 = vmatpush1.msra.mxu0 0.0
    %884 = vmatprep.subr.mxu0 0.0
    %885 = vmatpush1.msra.mxu0 0.0
    %886 = vmatprep.subr.mxu0 0.0
    %887 = vmatpush1.msra.mxu0 0.0
    %888 = vmatprep.subr.mxu0 0.0
    %889 = vmatpush1.msra.mxu0 0.0
    %890 = vmatprep.subr.mxu0 0.0
    %891 = vmatpush1.msra.mxu0 0.0
    %892 = vmatprep.subr.mxu0 0.0
    %893 = vmatpush1.msra.mxu0 0.0
    %894 = vmatprep.subr.mxu0 0.0
    %895 = vmatpush1.msra.mxu0 0.0
    %896 = vmatprep.subr.mxu0 0.0
    %897 = vmatpush1.msra.mxu0 0.0
    %898 = vmatprep.subr.mxu0 0.0
    %899 = vmatpush1.msra.mxu0 0.0
    %900 = vmatprep.subr.mxu0 0.0
    %901 = vmatpush1.msra.mxu0 0.0
    %902 = vmatprep.subr.mxu0 0.0
    %903 = vmatpush1.msra.mxu0 0.0
    %904 = vmatprep.subr.mxu0 0.0
    %905 = vmatpush1.msra.mxu0 0.0
    %906 = vmatprep.subr.mxu0 0.0
    %907 = vmatpush1.msra.mxu0 0.0
    %908 = vmatprep.subr.mxu0 0.0
    %909 = vmatpush1.msra.mxu0 0.0
    %910 = vmatprep.subr.mxu0 0.0
    %911 = vmatpush1.msra.mxu0 0.0
    %912 = vmatprep.subr.mxu0 0.0
    %913 = vmatpush1.msra.mxu0 0.0
    %914 = vmatprep.subr.mxu0 0.0
    %915 = vmatpush1.msra.mxu0 0.0
    %916 = vmatprep.subr.mxu0 0.0
    %917 = vmatpush1.msra.mxu0 0.0
    %918 = vmatprep.subr.mxu0 0.0
    %919 = vmatpush1.msra.mxu0 0.0
    %920 = vmatprep.subr.mxu0 0.0
    %921 = vmatpush1.msra.mxu0 0.0
    %922 = vmatprep.subr.mxu0 0.0
    %923 = vmatpush1.msra.mxu0 0.0
    %924 = vmatprep.subr.mxu0 0.0
    %925 = vmatpush1.msra.mxu0 0.0
    %926 = vmatprep.subr.mxu0 0.0
    %927 = vmatpush1.msra.mxu0 0.0
    %928 = vmatprep.subr.mxu0 0.0
    %929 = vmatpush1.msra.mxu0 0.0
    %930 = vmatprep.subr.mxu0 0.0
    %931 = vmatpush1.msra.mxu0 0.0
    %932 = vmatprep.subr.mxu0 0.0
    %933 = vmatpush1.msra.mxu0 0.0
    %934 = vmatprep.mubr.f32.mxu0 0.0
    %935 = vmatmul.mubr.f32.gmra.mrb[0].mxu0 %v859
    %v936 = vpop.f32.mrb[0].mxu0
    %v937 = vadd.f32 %v856, %v936
    %v938 = vpop.f32.mrb[0].mxu0
    %939 = vmatprep.mubr.f32.mxu0 0.0
    %940 = vmatmul.mubr.f32.gmra.mrb[0].mxu0 %v862
    %v941 = vpop.f32.mrb[0].mxu0
    %v942 = vadd.f32 %v856, %v941
    %v943 = vpop.f32.mrb[0].mxu0
    %944 = vmatprep.mubr.f32.mxu0 0.0
    %945 = vmatmul.mubr.f32.gmra.mrb[0].mxu0 %v865
    %v946 = vpop.f32.mrb[0].mxu0
    %v947 = vadd.f32 %v856, %v946
    %v948 = vpop.f32.mrb[0].mxu0
    %949 = vmatprep.mubr.f32.mxu0 0.0
    %950 = vmatmul.mubr.f32.gmra.mrb[0].mxu0 %v868
    %v951 = vpop.f32.mrb[0].mxu0
    %v952 = vadd.f32 %v856, %v951
    %v953 = vpop.f32.mrb[0].mxu0
    %954 = vdwg.mxu0
    %v955 = vmul.f32 %v937, 0.35355338
    %v956 = vmul.f32 %v942, 0.35355338
    %v957 = vmul.f32 %v947, 0.35355338
    %v958 = vmul.f32 %v952, 0.35355338
    %v960 = vlaneseq
    %v961 = vshrl.u32 %v960, 7
    %v962 = vsub.s32 0, %v961
    %v963 = vrot.slane %v841, %v962
    %v966 = vsel %vm591, %v826, 0
    %v969 = vsel %vm591, %v827, 0
    %971 = vmatprep.subr.mxu0 0.0
    %972 = vmatpush1.msra.mxu0 %v837
    %973 = vmatprep.subr.mxu0 0.0
    %974 = vmatpush1.msra.mxu0 %v838
    %975 = vmatprep.subr.mxu0 0.0
    %976 = vmatpush1.msra.mxu0 %v839
    %977 = vmatprep.subr.mxu0 0.0
    %978 = vmatpush1.msra.mxu0 %v840
    %979 = vmatprep.subr.mxu0 0.0
    %980 = vmatpush1.msra.mxu0 0.0
    %981 = vmatprep.subr.mxu0 0.0
    %982 = vmatpush1.msra.mxu0 0.0
    %983 = vmatprep.subr.mxu0 0.0
    %984 = vmatpush1.msra.mxu0 0.0
    %985 = vmatprep.subr.mxu0 0.0
    %986 = vmatpush1.msra.mxu0 0.0
    %987 = vmatprep.subr.mxu0 0.0
    %988 = vmatpush1.msra.mxu0 0.0
    %989 = vmatprep.subr.mxu0 0.0
    %990 = vmatpush1.msra.mxu0 0.0
    %991 = vmatprep.subr.mxu0 0.0
    %992 = vmatpush1.msra.mxu0 0.0
    %993 = vmatprep.subr.mxu0 0.0
    %994 = vmatpush1.msra.mxu0 0.0
    %995 = vmatprep.subr.mxu0 0.0
    %996 = vmatpush1.msra.mxu0 0.0
    %997 = vmatprep.subr.mxu0 0.0
    %998 = vmatpush1.msra.mxu0 0.0
    %999 = vmatprep.subr.mxu0 0.0
    %1000 = vmatpush1.msra.mxu0 0.0
    %1001 = vmatprep.subr.mxu0 0.0
    %1002 = vmatpush1.msra.mxu0 0.0
    %1003 = vmatprep.subr.mxu0 0.0
    %1004 = vmatpush1.msra.mxu0 0.0
    %1005 = vmatprep.subr.mxu0 0.0
    %1006 = vmatpush1.msra.mxu0 0.0
    %1007 = vmatprep.subr.mxu0 0.0
    %1008 = vmatpush1.msra.mxu0 0.0
    %1009 = vmatprep.subr.mxu0 0.0
    %1010 = vmatpush1.msra.mxu0 0.0
    %1011 = vmatprep.subr.mxu0 0.0
    %1012 = vmatpush1.msra.mxu0 0.0
    %1013 = vmatprep.subr.mxu0 0.0
    %1014 = vmatpush1.msra.mxu0 0.0
    %1015 = vmatprep.subr.mxu0 0.0
    %1016 = vmatpush1.msra.mxu0 0.0
    %1017 = vmatprep.subr.mxu0 0.0
    %1018 = vmatpush1.msra.mxu0 0.0
    %1019 = vmatprep.subr.mxu0 0.0
    %1020 = vmatpush1.msra.mxu0 0.0
    %1021 = vmatprep.subr.mxu0 0.0
    %1022 = vmatpush1.msra.mxu0 0.0
    %1023 = vmatprep.subr.mxu0 0.0
    %1024 = vmatpush1.msra.mxu0 0.0
    %1025 = vmatprep.subr.mxu0 0.0
    %1026 = vmatpush1.msra.mxu0 0.0
    %1027 = vmatprep.subr.mxu0 0.0
    %1028 = vmatpush1.msra.mxu0 0.0
    %1029 = vmatprep.subr.mxu0 0.0
    %1030 = vmatpush1.msra.mxu0 0.0
    %1031 = vmatprep.subr.mxu0 0.0
    %1032 = vmatpush1.msra.mxu0 0.0
    %1033 = vmatprep.subr.mxu0 0.0
    %1034 = vmatpush1.msra.mxu0 0.0
    %1035 = vmatprep.mubr.f32.mxu0 0.0
    %1036 = vmatmul.mubr.f32.gmra.mrb[0].mxu0 %v966
    %v1037 = vpop.f32.mrb[0].mxu0
    %v1038 = vadd.f32 %v963, %v1037
    %v1039 = vpop.f32.mrb[0].mxu0
    %1040 = vmatprep.mubr.f32.mxu0 0.0
    %1041 = vmatmul.mubr.f32.gmra.mrb[0].mxu0 %v969
    %v1042 = vpop.f32.mrb[0].mxu0
    %v1043 = vadd.f32 %v963, %v1042
    %v1044 = vpop.f32.mrb[0].mxu0
    %1045 = vdwg.mxu0
    %v1047 = vlaneseq
    %v1048 = vshrl.u32 %v1047, 7
    %v1049 = vsub.s32 0, %v1048
    %v1050 = vrot.slane %v846, %v1049
    %1052 = vmatprep.subr.mxu0 0.0
    %1053 = vmatpush1.msra.mxu0 %v842
    %1054 = vmatprep.subr.mxu0 0.0
    %1055 = vmatpush1.msra.mxu0 %v843
    %1056 = vmatprep.subr.mxu0 0.0
    %1057 = vmatpush1.msra.mxu0 %v844
    %1058 = vmatprep.subr.mxu0 0.0
    %1059 = vmatpush1.msra.mxu0 %v845
    %1060 = vmatprep.subr.mxu0 0.0
    %1061 = vmatpush1.msra.mxu0 0.0
    %1062 = vmatprep.subr.mxu0 0.0
    %1063 = vmatpush1.msra.mxu0 0.0
    %1064 = vmatprep.subr.mxu0 0.0
    %1065 = vmatpush1.msra.mxu0 0.0
    %1066 = vmatprep.subr.mxu0 0.0
    %1067 = vmatpush1.msra.mxu0 0.0
    %1068 = vmatprep.subr.mxu0 0.0
    %1069 = vmatpush1.msra.mxu0 0.0
    %1070 = vmatprep.subr.mxu0 0.0
    %1071 = vmatpush1.msra.mxu0 0.0
    %1072 = vmatprep.subr.mxu0 0.0
    %1073 = vmatpush1.msra.mxu0 0.0
    %1074 = vmatprep.subr.mxu0 0.0
    %1075 = vmatpush1.msra.mxu0 0.0
    %1076 = vmatprep.subr.mxu0 0.0
    %1077 = vmatpush1.msra.mxu0 0.0
    %1078 = vmatprep.subr.mxu0 0.0
    %1079 = vmatpush1.msra.mxu0 0.0
    %1080 = vmatprep.subr.mxu0 0.0
    %1081 = vmatpush1.msra.mxu0 0.0
    %1082 = vmatprep.subr.mxu0 0.0
    %1083 = vmatpush1.msra.mxu0 0.0
    %1084 = vmatprep.subr.mxu0 0.0
    %1085 = vmatpush1.msra.mxu0 0.0
    %1086 = vmatprep.subr.mxu0 0.0
    %1087 = vmatpush1.msra.mxu0 0.0
    %1088 = vmatprep.subr.mxu0 0.0
    %1089 = vmatpush1.msra.mxu0 0.0
    %1090 = vmatprep.subr.mxu0 0.0
    %1091 = vmatpush1.msra.mxu0 0.0
    %1092 = vmatprep.subr.mxu0 0.0
    %1093 = vmatpush1.msra.mxu0 0.0
    %1094 = vmatprep.subr.mxu0 0.0
    %1095 = vmatpush1.msra.mxu0 0.0
    %1096 = vmatprep.subr.mxu0 0.0
    %1097 = vmatpush1.msra.mxu0 0.0
    %1098 = vmatprep.subr.mxu0 0.0
    %1099 = vmatpush1.msra.mxu0 0.0
    %1100 = vmatprep.subr.mxu0 0.0
    %1101 = vmatpush1.msra.mxu0 0.0
    %1102 = vmatprep.subr.mxu0 0.0
    %1103 = vmatpush1.msra.mxu0 0.0
    %1104 = vmatprep.subr.mxu0 0.0
    %1105 = vmatpush1.msra.mxu0 0.0
    %1106 = vmatprep.subr.mxu0 0.0
    %1107 = vmatpush1.msra.mxu0 0.0
    %1108 = vmatprep.subr.mxu0 0.0
    %1109 = vmatpush1.msra.mxu0 0.0
    %1110 = vmatprep.subr.mxu0 0.0
    %1111 = vmatpush1.msra.mxu0 0.0
    %1112 = vmatprep.subr.mxu0 0.0
    %1113 = vmatpush1.msra.mxu0 0.0
    %1114 = vmatprep.subr.mxu0 0.0
    %1115 = vmatpush1.msra.mxu0 0.0
    %1116 = vmatprep.mubr.f32.mxu0 0.0
    %1117 = vmatmul.mubr.f32.gmra.mrb[0].mxu0 %v966
    %v1118 = vpop.f32.mrb[0].mxu0
    %v1119 = vadd.f32 %v1050, %v1118
    %v1120 = vpop.f32.mrb[0].mxu0
    %1121 = vmatprep.mubr.f32.mxu0 0.0
    %1122 = vmatmul.mubr.f32.gmra.mrb[0].mxu0 %v969
    %v1123 = vpop.f32.mrb[0].mxu0
    %v1124 = vadd.f32 %v1050, %v1123
    %v1125 = vpop.f32.mrb[0].mxu0
    %1126 = vdwg.mxu0
    %v1127 = vmul.f32 %v955, %v489
    %v1128 = vmul.f32 %v956, %v489
    %v1129 = vmul.f32 %v957, %v489
    %v1130 = vmul.f32 %v958, %v489
    %v1132 = vsel %vm591, %v1127, 0
    %v1135 = vsel %vm591, %v1128, 0
    %v1138 = vsel %vm591, %v1129, 0
    %v1141 = vsel %vm591, %v1130, 0
    %v1144 = vsel %vm591, %v1038, 0
    %v1147 = vsel %vm591, %v1043, 0
    %1149 = vmatprep.subr.mxu0 0.0
    %1150 = vmatpush1.xpose.msra.mxu0 %v1144
    %1151 = vmatprep.subr.mxu0 0.0
    %1152 = vmatpush1.xpose.msra.mxu0 %v1147
    %1153 = vmatprep.subr.mxu0 0.0
    %1154 = vmatpush1.xpose.msra.mxu0 0.0
    %1155 = vmatprep.subr.mxu0 0.0
    %1156 = vmatpush1.xpose.msra.mxu0 0.0
    %1157 = vmatprep.subr.mxu0 0.0
    %1158 = vmatpush1.xpose.msra.mxu0 0.0
    %1159 = vmatprep.subr.mxu0 0.0
    %1160 = vmatpush1.xpose.msra.mxu0 0.0
    %1161 = vmatprep.subr.mxu0 0.0
    %1162 = vmatpush1.xpose.msra.mxu0 0.0
    %1163 = vmatprep.subr.mxu0 0.0
    %1164 = vmatpush1.xpose.msra.mxu0 0.0
    %1165 = vmatprep.subr.mxu0 0.0
    %1166 = vmatpush1.xpose.msra.mxu0 0.0
    %1167 = vmatprep.subr.mxu0 0.0
    %1168 = vmatpush1.xpose.msra.mxu0 0.0
    %1169 = vmatprep.subr.mxu0 0.0
    %1170 = vmatpush1.xpose.msra.mxu0 0.0
    %1171 = vmatprep.subr.mxu0 0.0
    %1172 = vmatpush1.xpose.msra.mxu0 0.0
    %1173 = vmatprep.subr.mxu0 0.0
    %1174 = vmatpush1.xpose.msra.mxu0 0.0
    %1175 = vmatprep.subr.mxu0 0.0
    %1176 = vmatpush1.xpose.msra.mxu0 0.0
    %1177 = vmatprep.subr.mxu0 0.0
    %1178 = vmatpush1.xpose.msra.mxu0 0.0
    %1179 = vmatprep.subr.mxu0 0.0
    %1180 = vmatpush1.xpose.msra.mxu0 0.0
    %1181 = vmatprep.subr.mxu0 0.0
    %1182 = vmatpush1.xpose.msra.mxu0 0.0
    %1183 = vmatprep.subr.mxu0 0.0
    %1184 = vmatpush1.xpose.msra.mxu0 0.0
    %1185 = vmatprep.subr.mxu0 0.0
    %1186 = vmatpush1.xpose.msra.mxu0 0.0
    %1187 = vmatprep.subr.mxu0 0.0
    %1188 = vmatpush1.xpose.msra.mxu0 0.0
    %1189 = vmatprep.subr.mxu0 0.0
    %1190 = vmatpush1.xpose.msra.mxu0 0.0
    %1191 = vmatprep.subr.mxu0 0.0
    %1192 = vmatpush1.xpose.msra.mxu0 0.0
    %1193 = vmatprep.subr.mxu0 0.0
    %1194 = vmatpush1.xpose.msra.mxu0 0.0
    %1195 = vmatprep.subr.mxu0 0.0
    %1196 = vmatpush1.xpose.msra.mxu0 0.0
    %1197 = vmatprep.subr.mxu0 0.0
    %1198 = vmatpush1.xpose.msra.mxu0 0.0
    %1199 = vmatprep.subr.mxu0 0.0
    %1200 = vmatpush1.xpose.msra.mxu0 0.0
    %1201 = vmatprep.subr.mxu0 0.0
    %1202 = vmatpush1.xpose.msra.mxu0 0.0
    %1203 = vmatprep.subr.mxu0 0.0
    %1204 = vmatpush1.xpose.msra.mxu0 0.0
    %1205 = vmatprep.subr.mxu0 0.0
    %1206 = vmatpush1.xpose.msra.mxu0 0.0
    %1207 = vmatprep.subr.mxu0 0.0
    %1208 = vmatpush1.xpose.msra.mxu0 0.0
    %1209 = vmatprep.subr.mxu0 0.0
    %1210 = vmatpush1.xpose.msra.mxu0 0.0
    %1211 = vmatprep.subr.mxu0 0.0
    %1212 = vmatpush1.xpose.msra.mxu0 0.0
    %1213 = vmatprep.mubr.f32.mxu0 0.0
    %1214 = vmatmul.mubr.f32.gmra.mrb[0].mxu0 %v1132
    %v1215 = vpop.f32.mrb[0].mxu0
    %v1216 = vadd.f32 %v549, %v1215
    %v1217 = vpop.f32.mrb[0].mxu0
    %1218 = vmatprep.mubr.f32.mxu0 0.0
    %1219 = vmatmul.mubr.f32.gmra.mrb[0].mxu0 %v1135
    %v1220 = vpop.f32.mrb[0].mxu0
    %v1221 = vadd.f32 %v550, %v1220
    %v1222 = vpop.f32.mrb[0].mxu0
    %1223 = vmatprep.mubr.f32.mxu0 0.0
    %1224 = vmatmul.mubr.f32.gmra.mrb[0].mxu0 %v1138
    %v1225 = vpop.f32.mrb[0].mxu0
    %v1226 = vadd.f32 %v551, %v1225
    %v1227 = vpop.f32.mrb[0].mxu0
    %1228 = vmatprep.mubr.f32.mxu0 0.0
    %1229 = vmatmul.mubr.f32.gmra.mrb[0].mxu0 %v1141
    %v1230 = vpop.f32.mrb[0].mxu0
    %v1231 = vadd.f32 %v552, %v1230
    %v1232 = vpop.f32.mrb[0].mxu0
    %1233 = vdwg.mxu0
    %vm1234 = vcmask 130048
    %v1235 = vsel %vm1234, %v1216, -inf
    %1236 = vmax.xlane.f32.xlu0 %v1235
    %v1237 = vpop.xlane.xlu0 %1236
    %v1238 = vsel %vm1234, %v1221, -inf
    %1239 = vmax.xlane.f32.xlu0 %v1238
    %v1240 = vpop.xlane.xlu0 %1239
    %v1241 = vsel %vm1234, %v1226, -inf
    %1242 = vmax.xlane.f32.xlu0 %v1241
    %v1243 = vpop.xlane.xlu0 %1242
    %v1244 = vsel %vm1234, %v1231, -inf
    %1245 = vmax.xlane.f32.xlu0 %v1244
    %v1246 = vpop.xlane.xlu0 %1245
    %v1247 = vsub.f32 %v1216, %v1237
    %v1248 = vsub.f32 %v1221, %v1240
    %v1249 = vsub.f32 %v1226, %v1243
    %v1250 = vsub.f32 %v1231, %v1246
    %v1251 = vmul.f32 %v1247, 1.442695
    %v1252 = vpow.pop %v1251
    %v1253 = vmul.f32 %v1248, 1.442695
    %v1254 = vpow.pop %v1253
    %v1255 = vmul.f32 %v1249, 1.442695
    %v1256 = vpow.pop %v1255
    %v1257 = vmul.f32 %v1250, 1.442695
    %v1258 = vpow.pop %v1257
    %v1259 = vsel %vm1234, %v1252, 0.0
    %1260 = vadd.xlane.f32.xlu0 %v1259
    %v1261 = vpop.xlane.xlu0 %1260
    %v1262 = vsel %vm1234, %v1254, 0.0
    %1263 = vadd.xlane.f32.xlu0 %v1262
    %v1264 = vpop.xlane.xlu0 %1263
    %v1265 = vsel %vm1234, %v1256, 0.0
    %1266 = vadd.xlane.f32.xlu0 %v1265
    %v1267 = vpop.xlane.xlu0 %1266
    %v1268 = vsel %vm1234, %v1258, 0.0
    %1269 = vadd.xlane.f32.xlu0 %v1268
    %v1270 = vpop.xlane.xlu0 %1269
    %v1271 = vrcp.pop %v1261
    %v1272 = vrcp.pop %v1264
    %v1273 = vrcp.pop %v1267
    %v1274 = vrcp.pop %v1270
    %v1275 = vmul.f32 %v1252, %v1271
    %v1276 = vmul.f32 %v1254, %v1272
    %v1277 = vmul.f32 %v1256, %v1273
    %v1278 = vmul.f32 %v1258, %v1274
    %v1279 = vmul.f32 %v1119, %v489
    %v1280 = vmul.f32 %v1124, %v489
    %v1281 = vmul.f32 %v955, %v494
    %v1282 = vmul.f32 %v956, %v494
    %v1283 = vmul.f32 %v957, %v494
    %v1284 = vmul.f32 %v958, %v494
    %v1286 = vsel %vm591, %v1281, 0
    %v1289 = vsel %vm591, %v1282, 0
    %v1292 = vsel %vm591, %v1283, 0
    %v1295 = vsel %vm591, %v1284, 0
    %1297 = vmatprep.subr.mxu0 0.0
    %1298 = vmatpush1.xpose.msra.mxu0 %v1144
    %1299 = vmatprep.subr.mxu0 0.0
    %1300 = vmatpush1.xpose.msra.mxu0 %v1147
    %1301 = vmatprep.subr.mxu0 0.0
    %1302 = vmatpush1.xpose.msra.mxu0 0.0
    %1303 = vmatprep.subr.mxu0 0.0
    %1304 = vmatpush1.xpose.msra.mxu0 0.0
    %1305 = vmatprep.subr.mxu0 0.0
    %1306 = vmatpush1.xpose.msra.mxu0 0.0
    %1307 = vmatprep.subr.mxu0 0.0
    %1308 = vmatpush1.xpose.msra.mxu0 0.0
    %1309 = vmatprep.subr.mxu0 0.0
    %1310 = vmatpush1.xpose.msra.mxu0 0.0
    %1311 = vmatprep.subr.mxu0 0.0
    %1312 = vmatpush1.xpose.msra.mxu0 0.0
    %1313 = vmatprep.subr.mxu0 0.0
    %1314 = vmatpush1.xpose.msra.mxu0 0.0
    %1315 = vmatprep.subr.mxu0 0.0
    %1316 = vmatpush1.xpose.msra.mxu0 0.0
    %1317 = vmatprep.subr.mxu0 0.0
    %1318 = vmatpush1.xpose.msra.mxu0 0.0
    %1319 = vmatprep.subr.mxu0 0.0
    %1320 = vmatpush1.xpose.msra.mxu0 0.0
    %1321 = vmatprep.subr.mxu0 0.0
    %1322 = vmatpush1.xpose.msra.mxu0 0.0
    %1323 = vmatprep.subr.mxu0 0.0
    %1324 = vmatpush1.xpose.msra.mxu0 0.0
    %1325 = vmatprep.subr.mxu0 0.0
    %1326 = vmatpush1.xpose.msra.mxu0 0.0
    %1327 = vmatprep.subr.mxu0 0.0
    %1328 = vmatpush1.xpose.msra.mxu0 0.0
    %1329 = vmatprep.subr.mxu0 0.0
    %1330 = vmatpush1.xpose.msra.mxu0 0.0
    %1331 = vmatprep.subr.mxu0 0.0
    %1332 = vmatpush1.xpose.msra.mxu0 0.0
    %1333 = vmatprep.subr.mxu0 0.0
    %1334 = vmatpush1.xpose.msra.mxu0 0.0
    %1335 = vmatprep.subr.mxu0 0.0
    %1336 = vmatpush1.xpose.msra.mxu0 0.0
    %1337 = vmatprep.subr.mxu0 0.0
    %1338 = vmatpush1.xpose.msra.mxu0 0.0
    %1339 = vmatprep.subr.mxu0 0.0
    %1340 = vmatpush1.xpose.msra.mxu0 0.0
    %1341 = vmatprep.subr.mxu0 0.0
    %1342 = vmatpush1.xpose.msra.mxu0 0.0
    %1343 = vmatprep.subr.mxu0 0.0
    %1344 = vmatpush1.xpose.msra.mxu0 0.0
    %1345 = vmatprep.subr.mxu0 0.0
    %1346 = vmatpush1.xpose.msra.mxu0 0.0
    %1347 = vmatprep.subr.mxu0 0.0
    %1348 = vmatpush1.xpose.msra.mxu0 0.0
    %1349 = vmatprep.subr.mxu0 0.0
    %1350 = vmatpush1.xpose.msra.mxu0 0.0
    %1351 = vmatprep.subr.mxu0 0.0
    %1352 = vmatpush1.xpose.msra.mxu0 0.0
    %1353 = vmatprep.subr.mxu0 0.0
    %1354 = vmatpush1.xpose.msra.mxu0 0.0
    %1355 = vmatprep.subr.mxu0 0.0
    %1356 = vmatpush1.xpose.msra.mxu0 0.0
    %1357 = vmatprep.subr.mxu0 0.0
    %1358 = vmatpush1.xpose.msra.mxu0 0.0
    %1359 = vmatprep.subr.mxu0 0.0
    %1360 = vmatpush1.xpose.msra.mxu0 0.0
    %1361 = vmatprep.mubr.f32.mxu0 0.0
    %1362 = vmatmul.mubr.f32.gmra.mrb[0].mxu0 %v1286
    %v1363 = vpop.f32.mrb[0].mxu0
    %v1364 = vadd.f32 %v549, %v1363
    %v1365 = vpop.f32.mrb[0].mxu0
    %1366 = vmatprep.mubr.f32.mxu0 0.0
    %1367 = vmatmul.mubr.f32.gmra.mrb[0].mxu0 %v1289
    %v1368 = vpop.f32.mrb[0].mxu0
    %v1369 = vadd.f32 %v550, %v1368
    %v1370 = vpop.f32.mrb[0].mxu0
    %1371 = vmatprep.mubr.f32.mxu0 0.0
    %1372 = vmatmul.mubr.f32.gmra.mrb[0].mxu0 %v1292
    %v1373 = vpop.f32.mrb[0].mxu0
    %v1374 = vadd.f32 %v551, %v1373
    %v1375 = vpop.f32.mrb[0].mxu0
    %1376 = vmatprep.mubr.f32.mxu0 0.0
    %1377 = vmatmul.mubr.f32.gmra.mrb[0].mxu0 %v1295
    %v1378 = vpop.f32.mrb[0].mxu0
    %v1379 = vadd.f32 %v552, %v1378
    %v1380 = vpop.f32.mrb[0].mxu0
    %1381 = vdwg.mxu0
    %v1382 = vsel %vm1234, %v1364, -inf
    %1383 = vmax.xlane.f32.xlu0 %v1382
    %v1384 = vpop.xlane.xlu0 %1383
    %v1385 = vsel %vm1234, %v1369, -inf
    %1386 = vmax.xlane.f32.xlu0 %v1385
    %v1387 = vpop.xlane.xlu0 %1386
    %v1388 = vsel %vm1234, %v1374, -inf
    %1389 = vmax.xlane.f32.xlu0 %v1388
    %v1390 = vpop.xlane.xlu0 %1389
    %v1391 = vsel %vm1234, %v1379, -inf
    %1392 = vmax.xlane.f32.xlu0 %v1391
    %v1393 = vpop.xlane.xlu0 %1392
    %v1394 = vsub.f32 %v1364, %v1384
    %v1395 = vsub.f32 %v1369, %v1387
    %v1396 = vsub.f32 %v1374, %v1390
    %v1397 = vsub.f32 %v1379, %v1393
    %v1398 = vmul.f32 %v1394, 1.442695
    %v1399 = vpow.pop %v1398
    %v1400 = vmul.f32 %v1395, 1.442695
    %v1401 = vpow.pop %v1400
    %v1402 = vmul.f32 %v1396, 1.442695
    %v1403 = vpow.pop %v1402
    %v1404 = vmul.f32 %v1397, 1.442695
    %v1405 = vpow.pop %v1404
    %v1406 = vsel %vm1234, %v1399, 0.0
    %1407 = vadd.xlane.f32.xlu0 %v1406
    %v1408 = vpop.xlane.xlu0 %1407
    %v1409 = vsel %vm1234, %v1401, 0.0
    %1410 = vadd.xlane.f32.xlu0 %v1409
    %v1411 = vpop.xlane.xlu0 %1410
    %v1412 = vsel %vm1234, %v1403, 0.0
    %1413 = vadd.xlane.f32.xlu0 %v1412
    %v1414 = vpop.xlane.xlu0 %1413
    %v1415 = vsel %vm1234, %v1405, 0.0
    %1416 = vadd.xlane.f32.xlu0 %v1415
    %v1417 = vpop.xlane.xlu0 %1416
    %v1418 = vrcp.pop %v1408
    %v1419 = vrcp.pop %v1411
    %v1420 = vrcp.pop %v1414
    %v1421 = vrcp.pop %v1417
    %v1422 = vmul.f32 %v1399, %v1418
    %v1423 = vmul.f32 %v1401, %v1419
    %v1424 = vmul.f32 %v1403, %v1420
    %v1425 = vmul.f32 %v1405, %v1421
    %v1426 = vmul.f32 %v1119, %v494
    %v1427 = vmul.f32 %v1124, %v494
    %v1429 = vsel %vm1234, %v1422, 0
    %v1432 = vsel %vm1234, %v1423, 0
    %v1435 = vsel %vm1234, %v1424, 0
    %v1438 = vsel %vm1234, %v1425, 0
    %1440 = vmatprep.subr.mxu0 0.0
    %1441 = vmatpush1.msra.mxu0 %v1426
    %1442 = vmatprep.subr.mxu0 0.0
    %1443 = vmatpush1.msra.mxu0 %v1427
    %1444 = vmatprep.subr.mxu0 0.0
    %1445 = vmatpush1.msra.mxu0 0.0
    %1446 = vmatprep.subr.mxu0 0.0
    %1447 = vmatpush1.msra.mxu0 0.0
    %1448 = vmatprep.subr.mxu0 0.0
    %1449 = vmatpush1.msra.mxu0 0.0
    %1450 = vmatprep.subr.mxu0 0.0
    %1451 = vmatpush1.msra.mxu0 0.0
    %1452 = vmatprep.subr.mxu0 0.0
    %1453 = vmatpush1.msra.mxu0 0.0
    %1454 = vmatprep.subr.mxu0 0.0
    %1455 = vmatpush1.msra.mxu0 0.0
    %1456 = vmatprep.subr.mxu0 0.0
    %1457 = vmatpush1.msra.mxu0 0.0
    %1458 = vmatprep.subr.mxu0 0.0
    %1459 = vmatpush1.msra.mxu0 0.0
    %1460 = vmatprep.subr.mxu0 0.0
    %1461 = vmatpush1.msra.mxu0 0.0
    %1462 = vmatprep.subr.mxu0 0.0
    %1463 = vmatpush1.msra.mxu0 0.0
    %1464 = vmatprep.subr.mxu0 0.0
    %1465 = vmatpush1.msra.mxu0 0.0
    %1466 = vmatprep.subr.mxu0 0.0
    %1467 = vmatpush1.msra.mxu0 0.0
    %1468 = vmatprep.subr.mxu0 0.0
    %1469 = vmatpush1.msra.mxu0 0.0
    %1470 = vmatprep.subr.mxu0 0.0
    %1471 = vmatpush1.msra.mxu0 0.0
    %1472 = vmatprep.subr.mxu0 0.0
    %1473 = vmatpush1.msra.mxu0 0.0
    %1474 = vmatprep.subr.mxu0 0.0
    %1475 = vmatpush1.msra.mxu0 0.0
    %1476 = vmatprep.subr.mxu0 0.0
    %1477 = vmatpush1.msra.mxu0 0.0
    %1478 = vmatprep.subr.mxu0 0.0
    %1479 = vmatpush1.msra.mxu0 0.0
    %1480 = vmatprep.subr.mxu0 0.0
    %1481 = vmatpush1.msra.mxu0 0.0
    %1482 = vmatprep.subr.mxu0 0.0
    %1483 = vmatpush1.msra.mxu0 0.0
    %1484 = vmatprep.subr.mxu0 0.0
    %1485 = vmatpush1.msra.mxu0 0.0
    %1486 = vmatprep.subr.mxu0 0.0
    %1487 = vmatpush1.msra.mxu0 0.0
    %1488 = vmatprep.subr.mxu0 0.0
    %1489 = vmatpush1.msra.mxu0 0.0
    %1490 = vmatprep.subr.mxu0 0.0
    %1491 = vmatpush1.msra.mxu0 0.0
    %1492 = vmatprep.subr.mxu0 0.0
    %1493 = vmatpush1.msra.mxu0 0.0
    %1494 = vmatprep.subr.mxu0 0.0
    %1495 = vmatpush1.msra.mxu0 0.0
    %1496 = vmatprep.subr.mxu0 0.0
    %1497 = vmatpush1.msra.mxu0 0.0
    %1498 = vmatprep.subr.mxu0 0.0
    %1499 = vmatpush1.msra.mxu0 0.0
    %1500 = vmatprep.subr.mxu0 0.0
    %1501 = vmatpush1.msra.mxu0 0.0
    %1502 = vmatprep.subr.mxu0 0.0
    %1503 = vmatpush1.msra.mxu0 0.0
    %1504 = vmatprep.mubr.f32.mxu0 0.0
    %1505 = vmatmul.mubr.f32.gmra.mrb[0].mxu0 %v1429
    %v1506 = vpop.f32.mrb[0].mxu0
    %v1507 = vadd.f32 0.0, %v1506
    %v1508 = vpop.f32.mrb[0].mxu0
    %1509 = vmatprep.mubr.f32.mxu0 0.0
    %1510 = vmatmul.mubr.f32.gmra.mrb[0].mxu0 %v1432
    %v1511 = vpop.f32.mrb[0].mxu0
    %v1512 = vadd.f32 0.0, %v1511
    %v1513 = vpop.f32.mrb[0].mxu0
    %1514 = vmatprep.mubr.f32.mxu0 0.0
    %1515 = vmatmul.mubr.f32.gmra.mrb[0].mxu0 %v1435
    %v1516 = vpop.f32.mrb[0].mxu0
    %v1517 = vadd.f32 0.0, %v1516
    %v1518 = vpop.f32.mrb[0].mxu0
    %1519 = vmatprep.mubr.f32.mxu0 0.0
    %1520 = vmatmul.mubr.f32.gmra.mrb[0].mxu0 %v1438
    %v1521 = vpop.f32.mrb[0].mxu0
    %v1522 = vadd.f32 0.0, %v1521
    %v1523 = vpop.f32.mrb[0].mxu0
    %1524 = vdwg.mxu0
    %v1526 = vsel %vm1234, %v1275, 0
    %v1529 = vsel %vm1234, %v1276, 0
    %v1532 = vsel %vm1234, %v1277, 0
    %v1535 = vsel %vm1234, %v1278, 0
    %1537 = vmatprep.subr.mxu0 0.0
    %1538 = vmatpush1.msra.mxu0 %v1279
    %1539 = vmatprep.subr.mxu0 0.0
    %1540 = vmatpush1.msra.mxu0 %v1280
    %1541 = vmatprep.subr.mxu0 0.0
    %1542 = vmatpush1.msra.mxu0 0.0
    %1543 = vmatprep.subr.mxu0 0.0
    %1544 = vmatpush1.msra.mxu0 0.0
    %1545 = vmatprep.subr.mxu0 0.0
    %1546 = vmatpush1.msra.mxu0 0.0
    %1547 = vmatprep.subr.mxu0 0.0
    %1548 = vmatpush1.msra.mxu0 0.0
    %1549 = vmatprep.subr.mxu0 0.0
    %1550 = vmatpush1.msra.mxu0 0.0
    %1551 = vmatprep.subr.mxu0 0.0
    %1552 = vmatpush1.msra.mxu0 0.0
    %1553 = vmatprep.subr.mxu0 0.0
    %1554 = vmatpush1.msra.mxu0 0.0
    %1555 = vmatprep.subr.mxu0 0.0
    %1556 = vmatpush1.msra.mxu0 0.0
    %1557 = vmatprep.subr.mxu0 0.0
    %1558 = vmatpush1.msra.mxu0 0.0
    %1559 = vmatprep.subr.mxu0 0.0
    %1560 = vmatpush1.msra.mxu0 0.0
    %1561 = vmatprep.subr.mxu0 0.0
    %1562 = vmatpush1.msra.mxu0 0.0
    %1563 = vmatprep.subr.mxu0 0.0
    %1564 = vmatpush1.msra.mxu0 0.0
    %1565 = vmatprep.subr.mxu0 0.0
    %1566 = vmatpush1.msra.mxu0 0.0
    %1567 = vmatprep.subr.mxu0 0.0
    %1568 = vmatpush1.msra.mxu0 0.0
    %1569 = vmatprep.subr.mxu0 0.0
    %1570 = vmatpush1.msra.mxu0 0.0
    %1571 = vmatprep.subr.mxu0 0.0
    %1572 = vmatpush1.msra.mxu0 0.0
    %1573 = vmatprep.subr.mxu0 0.0
    %1574 = vmatpush1.msra.mxu0 0.0
    %1575 = vmatprep.subr.mxu0 0.0
    %1576 = vmatpush1.msra.mxu0 0.0
    %1577 = vmatprep.subr.mxu0 0.0
    %1578 = vmatpush1.msra.mxu0 0.0
    %1579 = vmatprep.subr.mxu0 0.0
    %1580 = vmatpush1.msra.mxu0 0.0
    %1581 = vmatprep.subr.mxu0 0.0
    %1582 = vmatpush1.msra.mxu0 0.0
    %1583 = vmatprep.subr.mxu0 0.0
    %1584 = vmatpush1.msra.mxu0 0.0
    %1585 = vmatprep.subr.mxu0 0.0
    %1586 = vmatpush1.msra.mxu0 0.0
    %1587 = vmatprep.subr.mxu0 0.0
    %1588 = vmatpush1.msra.mxu0 0.0
    %1589 = vmatprep.subr.mxu0 0.0
    %1590 = vmatpush1.msra.mxu0 0.0
    %1591 = vmatprep.subr.mxu0 0.0
    %1592 = vmatpush1.msra.mxu0 0.0
    %1593 = vmatprep.subr.mxu0 0.0
    %1594 = vmatpush1.msra.mxu0 0.0
    %1595 = vmatprep.subr.mxu0 0.0
    %1596 = vmatpush1.msra.mxu0 0.0
    %1597 = vmatprep.subr.mxu0 0.0
    %1598 = vmatpush1.msra.mxu0 0.0
    %1599 = vmatprep.subr.mxu0 0.0
    %1600 = vmatpush1.msra.mxu0 0.0
    %1601 = vmatprep.mubr.f32.mxu0 0.0
    %1602 = vmatmul.mubr.f32.gmra.mrb[0].mxu0 %v1526
    %v1603 = vpop.f32.mrb[0].mxu0
    %v1604 = vadd.f32 %v1507, %v1603
    %v1605 = vpop.f32.mrb[0].mxu0
    %1606 = vmatprep.mubr.f32.mxu0 0.0
    %1607 = vmatmul.mubr.f32.gmra.mrb[0].mxu0 %v1529
    %v1608 = vpop.f32.mrb[0].mxu0
    %v1609 = vadd.f32 %v1512, %v1608
    %v1610 = vpop.f32.mrb[0].mxu0
    %1611 = vmatprep.mubr.f32.mxu0 0.0
    %1612 = vmatmul.mubr.f32.gmra.mrb[0].mxu0 %v1532
    %v1613 = vpop.f32.mrb[0].mxu0
    %v1614 = vadd.f32 %v1517, %v1613
    %v1615 = vpop.f32.mrb[0].mxu0
    %1616 = vmatprep.mubr.f32.mxu0 0.0
    %1617 = vmatmul.mubr.f32.gmra.mrb[0].mxu0 %v1535
    %v1618 = vpop.f32.mrb[0].mxu0
    %v1619 = vadd.f32 %v1522, %v1618
    %v1620 = vpop.f32.mrb[0].mxu0
    %1621 = vdwg.mxu0
    %v1622 = vmul.f32 %v955, %v499
    %v1623 = vmul.f32 %v956, %v499
    %v1624 = vmul.f32 %v957, %v499
    %v1625 = vmul.f32 %v958, %v499
    %v1627 = vsel %vm591, %v1622, 0
    %v1630 = vsel %vm591, %v1623, 0
    %v1633 = vsel %vm591, %v1624, 0
    %v1636 = vsel %vm591, %v1625, 0
    %1638 = vmatprep.subr.mxu0 0.0
    %1639 = vmatpush1.xpose.msra.mxu0 %v1144
    %1640 = vmatprep.subr.mxu0 0.0
    %1641 = vmatpush1.xpose.msra.mxu0 %v1147
    %1642 = vmatprep.subr.mxu0 0.0
    %1643 = vmatpush1.xpose.msra.mxu0 0.0
    %1644 = vmatprep.subr.mxu0 0.0
    %1645 = vmatpush1.xpose.msra.mxu0 0.0
    %1646 = vmatprep.subr.mxu0 0.0
    %1647 = vmatpush1.xpose.msra.mxu0 0.0
    %1648 = vmatprep.subr.mxu0 0.0
    %1649 = vmatpush1.xpose.msra.mxu0 0.0
    %1650 = vmatprep.subr.mxu0 0.0
    %1651 = vmatpush1.xpose.msra.mxu0 0.0
    %1652 = vmatprep.subr.mxu0 0.0
    %1653 = vmatpush1.xpose.msra.mxu0 0.0
    %1654 = vmatprep.subr.mxu0 0.0
    %1655 = vmatpush1.xpose.msra.mxu0 0.0
    %1656 = vmatprep.subr.mxu0 0.0
    %1657 = vmatpush1.xpose.msra.mxu0 0.0
    %1658 = vmatprep.subr.mxu0 0.0
    %1659 = vmatpush1.xpose.msra.mxu0 0.0
    %1660 = vmatprep.subr.mxu0 0.0
    %1661 = vmatpush1.xpose.msra.mxu0 0.0
    %1662 = vmatprep.subr.mxu0 0.0
    %1663 = vmatpush1.xpose.msra.mxu0 0.0
    %1664 = vmatprep.subr.mxu0 0.0
    %1665 = vmatpush1.xpose.msra.mxu0 0.0
    %1666 = vmatprep.subr.mxu0 0.0
    %1667 = vmatpush1.xpose.msra.mxu0 0.0
    %1668 = vmatprep.subr.mxu0 0.0
    %1669 = vmatpush1.xpose.msra.mxu0 0.0
    %1670 = vmatprep.subr.mxu0 0.0
    %1671 = vmatpush1.xpose.msra.mxu0 0.0
    %1672 = vmatprep.subr.mxu0 0.0
    %1673 = vmatpush1.xpose.msra.mxu0 0.0
    %1674 = vmatprep.subr.mxu0 0.0
    %1675 = vmatpush1.xpose.msra.mxu0 0.0
    %1676 = vmatprep.subr.mxu0 0.0
    %1677 = vmatpush1.xpose.msra.mxu0 0.0
    %1678 = vmatprep.subr.mxu0 0.0
    %1679 = vmatpush1.xpose.msra.mxu0 0.0
    %1680 = vmatprep.subr.mxu0 0.0
    %1681 = vmatpush1.xpose.msra.mxu0 0.0
    %1682 = vmatprep.subr.mxu0 0.0
    %1683 = vmatpush1.xpose.msra.mxu0 0.0
    %1684 = vmatprep.subr.mxu0 0.0
    %1685 = vmatpush1.xpose.msra.mxu0 0.0
    %1686 = vmatprep.subr.mxu0 0.0
    %1687 = vmatpush1.xpose.msra.mxu0 0.0
    %1688 = vmatprep.subr.mxu0 0.0
    %1689 = vmatpush1.xpose.msra.mxu0 0.0
    %1690 = vmatprep.subr.mxu0 0.0
    %1691 = vmatpush1.xpose.msra.mxu0 0.0
    %1692 = vmatprep.subr.mxu0 0.0
    %1693 = vmatpush1.xpose.msra.mxu0 0.0
    %1694 = vmatprep.subr.mxu0 0.0
    %1695 = vmatpush1.xpose.msra.mxu0 0.0
    %1696 = vmatprep.subr.mxu0 0.0
    %1697 = vmatpush1.xpose.msra.mxu0 0.0
    %1698 = vmatprep.subr.mxu0 0.0
    %1699 = vmatpush1.xpose.msra.mxu0 0.0
    %1700 = vmatprep.subr.mxu0 0.0
    %1701 = vmatpush1.xpose.msra.mxu0 0.0
    %1702 = vmatprep.mubr.f32.mxu0 0.0
    %1703 = vmatmul.mubr.f32.gmra.mrb[0].mxu0 %v1627
    %v1704 = vpop.f32.mrb[0].mxu0
    %v1705 = vadd.f32 %v549, %v1704
    %v1706 = vpop.f32.mrb[0].mxu0
    %1707 = vmatprep.mubr.f32.mxu0 0.0
    %1708 = vmatmul.mubr.f32.gmra.mrb[0].mxu0 %v1630
    %v1709 = vpop.f32.mrb[0].mxu0
    %v1710 = vadd.f32 %v550, %v1709
    %v1711 = vpop.f32.mrb[0].mxu0
    %1712 = vmatprep.mubr.f32.mxu0 0.0
    %1713 = vmatmul.mubr.f32.gmra.mrb[0].mxu0 %v1633
    %v1714 = vpop.f32.mrb[0].mxu0
    %v1715 = vadd.f32 %v551, %v1714
    %v1716 = vpop.f32.mrb[0].mxu0
    %1717 = vmatprep.mubr.f32.mxu0 0.0
    %1718 = vmatmul.mubr.f32.gmra.mrb[0].mxu0 %v1636
    %v1719 = vpop.f32.mrb[0].mxu0
    %v1720 = vadd.f32 %v552, %v1719
    %v1721 = vpop.f32.mrb[0].mxu0
    %1722 = vdwg.mxu0
    %v1723 = vsel %vm1234, %v1705, -inf
    %1724 = vmax.xlane.f32.xlu0 %v1723
    %v1725 = vpop.xlane.xlu0 %1724
    %v1726 = vsel %vm1234, %v1710, -inf
    %1727 = vmax.xlane.f32.xlu0 %v1726
    %v1728 = vpop.xlane.xlu0 %1727
    %v1729 = vsel %vm1234, %v1715, -inf
    %1730 = vmax.xlane.f32.xlu0 %v1729
    %v1731 = vpop.xlane.xlu0 %1730
    %v1732 = vsel %vm1234, %v1720, -inf
    %1733 = vmax.xlane.f32.xlu0 %v1732
    %v1734 = vpop.xlane.xlu0 %1733
    %v1735 = vsub.f32 %v1705, %v1725
    %v1736 = vsub.f32 %v1710, %v1728
    %v1737 = vsub.f32 %v1715, %v1731
    %v1738 = vsub.f32 %v1720, %v1734
    %v1739 = vmul.f32 %v1735, 1.442695
    %v1740 = vpow.pop %v1739
    %v1741 = vmul.f32 %v1736, 1.442695
    %v1742 = vpow.pop %v1741
    %v1743 = vmul.f32 %v1737, 1.442695
    %v1744 = vpow.pop %v1743
    %v1745 = vmul.f32 %v1738, 1.442695
    %v1746 = vpow.pop %v1745
    %v1747 = vsel %vm1234, %v1740, 0.0
    %1748 = vadd.xlane.f32.xlu0 %v1747
    %v1749 = vpop.xlane.xlu0 %1748
    %v1750 = vsel %vm1234, %v1742, 0.0
    %1751 = vadd.xlane.f32.xlu0 %v1750
    %v1752 = vpop.xlane.xlu0 %1751
    %v1753 = vsel %vm1234, %v1744, 0.0
    %1754 = vadd.xlane.f32.xlu0 %v1753
    %v1755 = vpop.xlane.xlu0 %1754
    %v1756 = vsel %vm1234, %v1746, 0.0
    %1757 = vadd.xlane.f32.xlu0 %v1756
    %v1758 = vpop.xlane.xlu0 %1757
    %v1759 = vrcp.pop %v1749
    %v1760 = vrcp.pop %v1752
    %v1761 = vrcp.pop %v1755
    %v1762 = vrcp.pop %v1758
    %v1763 = vmul.f32 %v1740, %v1759
    %v1764 = vmul.f32 %v1742, %v1760
    %v1765 = vmul.f32 %v1744, %v1761
    %v1766 = vmul.f32 %v1746, %v1762
    %v1767 = vmul.f32 %v1119, %v499
    %v1768 = vmul.f32 %v1124, %v499
    %v1770 = vsel %vm1234, %v1763, 0
    %v1773 = vsel %vm1234, %v1764, 0
    %v1776 = vsel %vm1234, %v1765, 0
    %v1779 = vsel %vm1234, %v1766, 0
    %1781 = vmatprep.subr.mxu0 0.0
    %1782 = vmatpush1.msra.mxu0 %v1767
    %1783 = vmatprep.subr.mxu0 0.0
    %1784 = vmatpush1.msra.mxu0 %v1768
    %1785 = vmatprep.subr.mxu0 0.0
    %1786 = vmatpush1.msra.mxu0 0.0
    %1787 = vmatprep.subr.mxu0 0.0
    %1788 = vmatpush1.msra.mxu0 0.0
    %1789 = vmatprep.subr.mxu0 0.0
    %1790 = vmatpush1.msra.mxu0 0.0
    %1791 = vmatprep.subr.mxu0 0.0
    %1792 = vmatpush1.msra.mxu0 0.0
    %1793 = vmatprep.subr.mxu0 0.0
    %1794 = vmatpush1.msra.mxu0 0.0
    %1795 = vmatprep.subr.mxu0 0.0
    %1796 = vmatpush1.msra.mxu0 0.0
    %1797 = vmatprep.subr.mxu0 0.0
    %1798 = vmatpush1.msra.mxu0 0.0
    %1799 = vmatprep.subr.mxu0 0.0
    %1800 = vmatpush1.msra.mxu0 0.0
    %1801 = vmatprep.subr.mxu0 0.0
    %1802 = vmatpush1.msra.mxu0 0.0
    %1803 = vmatprep.subr.mxu0 0.0
    %1804 = vmatpush1.msra.mxu0 0.0
    %1805 = vmatprep.subr.mxu0 0.0
    %1806 = vmatpush1.msra.mxu0 0.0
    %1807 = vmatprep.subr.mxu0 0.0
    %1808 = vmatpush1.msra.mxu0 0.0
    %1809 = vmatprep.subr.mxu0 0.0
    %1810 = vmatpush1.msra.mxu0 0.0
    %1811 = vmatprep.subr.mxu0 0.0
    %1812 = vmatpush1.msra.mxu0 0.0
    %1813 = vmatprep.subr.mxu0 0.0
    %1814 = vmatpush1.msra.mxu0 0.0
    %1815 = vmatprep.subr.mxu0 0.0
    %1816 = vmatpush1.msra.mxu0 0.0
    %1817 = vmatprep.subr.mxu0 0.0
    %1818 = vmatpush1.msra.mxu0 0.0
    %1819 = vmatprep.subr.mxu0 0.0
    %1820 = vmatpush1.msra.mxu0 0.0
    %1821 = vmatprep.subr.mxu0 0.0
    %1822 = vmatpush1.msra.mxu0 0.0
    %1823 = vmatprep.subr.mxu0 0.0
    %1824 = vmatpush1.msra.mxu0 0.0
    %1825 = vmatprep.subr.mxu0 0.0
    %1826 = vmatpush1.msra.mxu0 0.0
    %1827 = vmatprep.subr.mxu0 0.0
    %1828 = vmatpush1.msra.mxu0 0.0
    %1829 = vmatprep.subr.mxu0 0.0
    %1830 = vmatpush1.msra.mxu0 0.0
    %1831 = vmatprep.subr.mxu0 0.0
    %1832 = vmatpush1.msra.mxu0 0.0
    %1833 = vmatprep.subr.mxu0 0.0
    %1834 = vmatpush1.msra.mxu0 0.0
    %1835 = vmatprep.subr.mxu0 0.0
    %1836 = vmatpush1.msra.mxu0 0.0
    %1837 = vmatprep.subr.mxu0 0.0
    %1838 = vmatpush1.msra.mxu0 0.0
    %1839 = vmatprep.subr.mxu0 0.0
    %1840 = vmatpush1.msra.mxu0 0.0
    %1841 = vmatprep.subr.mxu0 0.0
    %1842 = vmatpush1.msra.mxu0 0.0
    %1843 = vmatprep.subr.mxu0 0.0
    %1844 = vmatpush1.msra.mxu0 0.0
    %1845 = vmatprep.mubr.f32.mxu0 0.0
    %1846 = vmatmul.mubr.f32.gmra.mrb[0].mxu0 %v1770
    %v1847 = vpop.f32.mrb[0].mxu0
    %v1848 = vadd.f32 0.0, %v1847
    %v1849 = vpop.f32.mrb[0].mxu0
    %1850 = vmatprep.mubr.f32.mxu0 0.0
    %1851 = vmatmul.mubr.f32.gmra.mrb[0].mxu0 %v1773
    %v1852 = vpop.f32.mrb[0].mxu0
    %v1853 = vadd.f32 0.0, %v1852
    %v1854 = vpop.f32.mrb[0].mxu0
    %1855 = vmatprep.mubr.f32.mxu0 0.0
    %1856 = vmatmul.mubr.f32.gmra.mrb[0].mxu0 %v1776
    %v1857 = vpop.f32.mrb[0].mxu0
    %v1858 = vadd.f32 0.0, %v1857
    %v1859 = vpop.f32.mrb[0].mxu0
    %1860 = vmatprep.mubr.f32.mxu0 0.0
    %1861 = vmatmul.mubr.f32.gmra.mrb[0].mxu0 %v1779
    %v1862 = vpop.f32.mrb[0].mxu0
    %v1863 = vadd.f32 0.0, %v1862
    %v1864 = vpop.f32.mrb[0].mxu0
    %1865 = vdwg.mxu0
    %v1866 = vadd.f32 %v1604, %v1848
    %v1867 = vadd.f32 %v1609, %v1853
    %v1868 = vadd.f32 %v1614, %v1858
    %v1869 = vadd.f32 %v1619, %v1863
    %v1870 = vmul.f32 %v955, %v504
    %v1871 = vmul.f32 %v956, %v504
    %v1872 = vmul.f32 %v957, %v504
    %v1873 = vmul.f32 %v958, %v504
    %v1875 = vsel %vm591, %v1870, 0
    %v1878 = vsel %vm591, %v1871, 0
    %v1881 = vsel %vm591, %v1872, 0
    %v1884 = vsel %vm591, %v1873, 0
    %1886 = vmatprep.subr.mxu0 0.0
    %1887 = vmatpush1.xpose.msra.mxu0 %v1144
    %1888 = vmatprep.subr.mxu0 0.0
    %1889 = vmatpush1.xpose.msra.mxu0 %v1147
    %1890 = vmatprep.subr.mxu0 0.0
    %1891 = vmatpush1.xpose.msra.mxu0 0.0
    %1892 = vmatprep.subr.mxu0 0.0
    %1893 = vmatpush1.xpose.msra.mxu0 0.0
    %1894 = vmatprep.subr.mxu0 0.0
    %1895 = vmatpush1.xpose.msra.mxu0 0.0
    %1896 = vmatprep.subr.mxu0 0.0
    %1897 = vmatpush1.xpose.msra.mxu0 0.0
    %1898 = vmatprep.subr.mxu0 0.0
    %1899 = vmatpush1.xpose.msra.mxu0 0.0
    %1900 = vmatprep.subr.mxu0 0.0
    %1901 = vmatpush1.xpose.msra.mxu0 0.0
    %1902 = vmatprep.subr.mxu0 0.0
    %1903 = vmatpush1.xpose.msra.mxu0 0.0
    %1904 = vmatprep.subr.mxu0 0.0
    %1905 = vmatpush1.xpose.msra.mxu0 0.0
    %1906 = vmatprep.subr.mxu0 0.0
    %1907 = vmatpush1.xpose.msra.mxu0 0.0
    %1908 = vmatprep.subr.mxu0 0.0
    %1909 = vmatpush1.xpose.msra.mxu0 0.0
    %1910 = vmatprep.subr.mxu0 0.0
    %1911 = vmatpush1.xpose.msra.mxu0 0.0
    %1912 = vmatprep.subr.mxu0 0.0
    %1913 = vmatpush1.xpose.msra.mxu0 0.0
    %1914 = vmatprep.subr.mxu0 0.0
    %1915 = vmatpush1.xpose.msra.mxu0 0.0
    %1916 = vmatprep.subr.mxu0 0.0
    %1917 = vmatpush1.xpose.msra.mxu0 0.0
    %1918 = vmatprep.subr.mxu0 0.0
    %1919 = vmatpush1.xpose.msra.mxu0 0.0
    %1920 = vmatprep.subr.mxu0 0.0
    %1921 = vmatpush1.xpose.msra.mxu0 0.0
    %1922 = vmatprep.subr.mxu0 0.0
    %1923 = vmatpush1.xpose.msra.mxu0 0.0
    %1924 = vmatprep.subr.mxu0 0.0
    %1925 = vmatpush1.xpose.msra.mxu0 0.0
    %1926 = vmatprep.subr.mxu0 0.0
    %1927 = vmatpush1.xpose.msra.mxu0 0.0
    %1928 = vmatprep.subr.mxu0 0.0
    %1929 = vmatpush1.xpose.msra.mxu0 0.0
    %1930 = vmatprep.subr.mxu0 0.0
    %1931 = vmatpush1.xpose.msra.mxu0 0.0
    %1932 = vmatprep.subr.mxu0 0.0
    %1933 = vmatpush1.xpose.msra.mxu0 0.0
    %1934 = vmatprep.subr.mxu0 0.0
    %1935 = vmatpush1.xpose.msra.mxu0 0.0
    %1936 = vmatprep.subr.mxu0 0.0
    %1937 = vmatpush1.xpose.msra.mxu0 0.0
    %1938 = vmatprep.subr.mxu0 0.0
    %1939 = vmatpush1.xpose.msra.mxu0 0.0
    %1940 = vmatprep.subr.mxu0 0.0
    %1941 = vmatpush1.xpose.msra.mxu0 0.0
    %1942 = vmatprep.subr.mxu0 0.0
    %1943 = vmatpush1.xpose.msra.mxu0 0.0
    %1944 = vmatprep.subr.mxu0 0.0
    %1945 = vmatpush1.xpose.msra.mxu0 0.0
    %1946 = vmatprep.subr.mxu0 0.0
    %1947 = vmatpush1.xpose.msra.mxu0 0.0
    %1948 = vmatprep.subr.mxu0 0.0
    %1949 = vmatpush1.xpose.msra.mxu0 0.0
    %1950 = vmatprep.mubr.f32.mxu0 0.0
    %1951 = vmatmul.mubr.f32.gmra.mrb[0].mxu0 %v1875
    %v1952 = vpop.f32.mrb[0].mxu0
    %v1953 = vadd.f32 %v549, %v1952
    %v1954 = vpop.f32.mrb[0].mxu0
    %1955 = vmatprep.mubr.f32.mxu0 0.0
    %1956 = vmatmul.mubr.f32.gmra.mrb[0].mxu0 %v1878
    %v1957 = vpop.f32.mrb[0].mxu0
    %v1958 = vadd.f32 %v550, %v1957
    %v1959 = vpop.f32.mrb[0].mxu0
    %1960 = vmatprep.mubr.f32.mxu0 0.0
    %1961 = vmatmul.mubr.f32.gmra.mrb[0].mxu0 %v1881
    %v1962 = vpop.f32.mrb[0].mxu0
    %v1963 = vadd.f32 %v551, %v1962
    %v1964 = vpop.f32.mrb[0].mxu0
    %1965 = vmatprep.mubr.f32.mxu0 0.0
    %1966 = vmatmul.mubr.f32.gmra.mrb[0].mxu0 %v1884
    %v1967 = vpop.f32.mrb[0].mxu0
    %v1968 = vadd.f32 %v552, %v1967
    %v1969 = vpop.f32.mrb[0].mxu0
    %1970 = vdwg.mxu0
    %v1971 = vsel %vm1234, %v1953, -inf
    %1972 = vmax.xlane.f32.xlu0 %v1971
    %v1973 = vpop.xlane.xlu0 %1972
    %v1974 = vsel %vm1234, %v1958, -inf
    %1975 = vmax.xlane.f32.xlu0 %v1974
    %v1976 = vpop.xlane.xlu0 %1975
    %v1977 = vsel %vm1234, %v1963, -inf
    %1978 = vmax.xlane.f32.xlu0 %v1977
    %v1979 = vpop.xlane.xlu0 %1978
    %v1980 = vsel %vm1234, %v1968, -inf
    %1981 = vmax.xlane.f32.xlu0 %v1980
    %v1982 = vpop.xlane.xlu0 %1981
    %v1983 = vsub.f32 %v1953, %v1973
    %v1984 = vsub.f32 %v1958, %v1976
    %v1985 = vsub.f32 %v1963, %v1979
    %v1986 = vsub.f32 %v1968, %v1982
    %v1987 = vmul.f32 %v1983, 1.442695
    %v1988 = vpow.pop %v1987
    %v1989 = vmul.f32 %v1984, 1.442695
    %v1990 = vpow.pop %v1989
    %v1991 = vmul.f32 %v1985, 1.442695
    %v1992 = vpow.pop %v1991
    %v1993 = vmul.f32 %v1986, 1.442695
    %v1994 = vpow.pop %v1993
    %v1995 = vsel %vm1234, %v1988, 0.0
    %1996 = vadd.xlane.f32.xlu0 %v1995
    %v1997 = vpop.xlane.xlu0 %1996
    %v1998 = vsel %vm1234, %v1990, 0.0
    %1999 = vadd.xlane.f32.xlu0 %v1998
    %v2000 = vpop.xlane.xlu0 %1999
    %v2001 = vsel %vm1234, %v1992, 0.0
    %2002 = vadd.xlane.f32.xlu0 %v2001
    %v2003 = vpop.xlane.xlu0 %2002
    %v2004 = vsel %vm1234, %v1994, 0.0
    %2005 = vadd.xlane.f32.xlu0 %v2004
    %v2006 = vpop.xlane.xlu0 %2005
    %v2007 = vrcp.pop %v1997
    %v2008 = vrcp.pop %v2000
    %v2009 = vrcp.pop %v2003
    %v2010 = vrcp.pop %v2006
    %v2011 = vmul.f32 %v1988, %v2007
    %v2012 = vmul.f32 %v1990, %v2008
    %v2013 = vmul.f32 %v1992, %v2009
    %v2014 = vmul.f32 %v1994, %v2010
    %v2015 = vmul.f32 %v1119, %v504
    %v2016 = vmul.f32 %v1124, %v504
    %v2018 = vsel %vm1234, %v2011, 0
    %v2021 = vsel %vm1234, %v2012, 0
    %v2024 = vsel %vm1234, %v2013, 0
    %v2027 = vsel %vm1234, %v2014, 0
    %2029 = vmatprep.subr.mxu0 0.0
    %2030 = vmatpush1.msra.mxu0 %v2015
    %2031 = vmatprep.subr.mxu0 0.0
    %2032 = vmatpush1.msra.mxu0 %v2016
    %2033 = vmatprep.subr.mxu0 0.0
    %2034 = vmatpush1.msra.mxu0 0.0
    %2035 = vmatprep.subr.mxu0 0.0
    %2036 = vmatpush1.msra.mxu0 0.0
    %2037 = vmatprep.subr.mxu0 0.0
    %2038 = vmatpush1.msra.mxu0 0.0
    %2039 = vmatprep.subr.mxu0 0.0
    %2040 = vmatpush1.msra.mxu0 0.0
    %2041 = vmatprep.subr.mxu0 0.0
    %2042 = vmatpush1.msra.mxu0 0.0
    %2043 = vmatprep.subr.mxu0 0.0
    %2044 = vmatpush1.msra.mxu0 0.0
    %2045 = vmatprep.subr.mxu0 0.0
    %2046 = vmatpush1.msra.mxu0 0.0
    %2047 = vmatprep.subr.mxu0 0.0
    %2048 = vmatpush1.msra.mxu0 0.0
    %2049 = vmatprep.subr.mxu0 0.0
    %2050 = vmatpush1.msra.mxu0 0.0
    %2051 = vmatprep.subr.mxu0 0.0
    %2052 = vmatpush1.msra.mxu0 0.0
    %2053 = vmatprep.subr.mxu0 0.0
    %2054 = vmatpush1.msra.mxu0 0.0
    %2055 = vmatprep.subr.mxu0 0.0
    %2056 = vmatpush1.msra.mxu0 0.0
    %2057 = vmatprep.subr.mxu0 0.0
    %2058 = vmatpush1.msra.mxu0 0.0
    %2059 = vmatprep.subr.mxu0 0.0
    %2060 = vmatpush1.msra.mxu0 0.0
    %2061 = vmatprep.subr.mxu0 0.0
    %2062 = vmatpush1.msra.mxu0 0.0
    %2063 = vmatprep.subr.mxu0 0.0
    %2064 = vmatpush1.msra.mxu0 0.0
    %2065 = vmatprep.subr.mxu0 0.0
    %2066 = vmatpush1.msra.mxu0 0.0
    %2067 = vmatprep.subr.mxu0 0.0
    %2068 = vmatpush1.msra.mxu0 0.0
    %2069 = vmatprep.subr.mxu0 0.0
    %2070 = vmatpush1.msra.mxu0 0.0
    %2071 = vmatprep.subr.mxu0 0.0
    %2072 = vmatpush1.msra.mxu0 0.0
    %2073 = vmatprep.subr.mxu0 0.0
    %2074 = vmatpush1.msra.mxu0 0.0
    %2075 = vmatprep.subr.mxu0 0.0
    %2076 = vmatpush1.msra.mxu0 0.0
    %2077 = vmatprep.subr.mxu0 0.0
    %2078 = vmatpush1.msra.mxu0 0.0
    %2079 = vmatprep.subr.mxu0 0.0
    %2080 = vmatpush1.msra.mxu0 0.0
    %2081 = vmatprep.subr.mxu0 0.0
    %2082 = vmatpush1.msra.mxu0 0.0
    %2083 = vmatprep.subr.mxu0 0.0
    %2084 = vmatpush1.msra.mxu0 0.0
    %2085 = vmatprep.subr.mxu0 0.0
    %2086 = vmatpush1.msra.mxu0 0.0
    %2087 = vmatprep.subr.mxu0 0.0
    %2088 = vmatpush1.msra.mxu0 0.0
    %2089 = vmatprep.subr.mxu0 0.0
    %2090 = vmatpush1.msra.mxu0 0.0
    %2091 = vmatprep.subr.mxu0 0.0
    %2092 = vmatpush1.msra.mxu0 0.0
    %2093 = vmatprep.mubr.f32.mxu0 0.0
    %2094 = vmatmul.mubr.f32.gmra.mrb[0].mxu0 %v2018
    %v2095 = vpop.f32.mrb[0].mxu0
    %v2096 = vadd.f32 0.0, %v2095
    %v2097 = vpop.f32.mrb[0].mxu0
    %2098 = vmatprep.mubr.f32.mxu0 0.0
    %2099 = vmatmul.mubr.f32.gmra.mrb[0].mxu0 %v2021
    %v2100 = vpop.f32.mrb[0].mxu0
    %v2101 = vadd.f32 0.0, %v2100
    %v2102 = vpop.f32.mrb[0].mxu0
    %2103 = vmatprep.mubr.f32.mxu0 0.0
    %2104 = vmatmul.mubr.f32.gmra.mrb[0].mxu0 %v2024
    %v2105 = vpop.f32.mrb[0].mxu0
    %v2106 = vadd.f32 0.0, %v2105
    %v2107 = vpop.f32.mrb[0].mxu0
    %2108 = vmatprep.mubr.f32.mxu0 0.0
    %2109 = vmatmul.mubr.f32.gmra.mrb[0].mxu0 %v2027
    %v2110 = vpop.f32.mrb[0].mxu0
    %v2111 = vadd.f32 0.0, %v2110
    %v2112 = vpop.f32.mrb[0].mxu0
    %2113 = vdwg.mxu0
    %v2114 = vadd.f32 %v1866, %v2096
    %v2115 = vadd.f32 %v1867, %v2101
    %v2116 = vadd.f32 %v1868, %v2106
    %v2117 = vadd.f32 %v1869, %v2111
    %v2119 = vlaneseq
    %v2120 = vshrl.u32 %v2119, 7
    %v2121 = vsub.s32 0, %v2120
    %v2122 = vrot.slane %v851, %v2121
    %v2125 = vsel %vm591, %v2114, 0
    %v2128 = vsel %vm591, %v2115, 0
    %v2131 = vsel %vm591, %v2116, 0
    %v2134 = vsel %vm591, %v2117, 0
    %2136 = vmatprep.subr.mxu0 0.0
    %2137 = vmatpush1.msra.mxu0 %v847
    %2138 = vmatprep.subr.mxu0 0.0
    %2139 = vmatpush1.msra.mxu0 %v848
    %2140 = vmatprep.subr.mxu0 0.0
    %2141 = vmatpush1.msra.mxu0 %v849
    %2142 = vmatprep.subr.mxu0 0.0
    %2143 = vmatpush1.msra.mxu0 %v850
    %2144 = vmatprep.subr.mxu0 0.0
    %2145 = vmatpush1.msra.mxu0 0.0
    %2146 = vmatprep.subr.mxu0 0.0
    %2147 = vmatpush1.msra.mxu0 0.0
    %2148 = vmatprep.subr.mxu0 0.0
    %2149 = vmatpush1.msra.mxu0 0.0
    %2150 = vmatprep.subr.mxu0 0.0
    %2151 = vmatpush1.msra.mxu0 0.0
    %2152 = vmatprep.subr.mxu0 0.0
    %2153 = vmatpush1.msra.mxu0 0.0
    %2154 = vmatprep.subr.mxu0 0.0
    %2155 = vmatpush1.msra.mxu0 0.0
    %2156 = vmatprep.subr.mxu0 0.0
    %2157 = vmatpush1.msra.mxu0 0.0
    %2158 = vmatprep.subr.mxu0 0.0
    %2159 = vmatpush1.msra.mxu0 0.0
    %2160 = vmatprep.subr.mxu0 0.0
    %2161 = vmatpush1.msra.mxu0 0.0
    %2162 = vmatprep.subr.mxu0 0.0
    %2163 = vmatpush1.msra.mxu0 0.0
    %2164 = vmatprep.subr.mxu0 0.0
    %2165 = vmatpush1.msra.mxu0 0.0
    %2166 = vmatprep.subr.mxu0 0.0
    %2167 = vmatpush1.msra.mxu0 0.0
    %2168 = vmatprep.subr.mxu0 0.0
    %2169 = vmatpush1.msra.mxu0 0.0
    %2170 = vmatprep.subr.mxu0 0.0
    %2171 = vmatpush1.msra.mxu0 0.0
    %2172 = vmatprep.subr.mxu0 0.0
    %2173 = vmatpush1.msra.mxu0 0.0
    %2174 = vmatprep.subr.mxu0 0.0
    %2175 = vmatpush1.msra.mxu0 0.0
    %2176 = vmatprep.subr.mxu0 0.0
    %2177 = vmatpush1.msra.mxu0 0.0
    %2178 = vmatprep.subr.mxu0 0.0
    %2179 = vmatpush1.msra.mxu0 0.0
    %2180 = vmatprep.subr.mxu0 0.0
    %2181 = vmatpush1.msra.mxu0 0.0
    %2182 = vmatprep.subr.mxu0 0.0
    %2183 = vmatpush1.msra.mxu0 0.0
    %2184 = vmatprep.subr.mxu0 0.0
    %2185 = vmatpush1.msra.mxu0 0.0
    %2186 = vmatprep.subr.mxu0 0.0
    %2187 = vmatpush1.msra.mxu0 0.0
    %2188 = vmatprep.subr.mxu0 0.0
    %2189 = vmatpush1.msra.mxu0 0.0
    %2190 = vmatprep.subr.mxu0 0.0
    %2191 = vmatpush1.msra.mxu0 0.0
    %2192 = vmatprep.subr.mxu0 0.0
    %2193 = vmatpush1.msra.mxu0 0.0
    %2194 = vmatprep.subr.mxu0 0.0
    %2195 = vmatpush1.msra.mxu0 0.0
    %2196 = vmatprep.subr.mxu0 0.0
    %2197 = vmatpush1.msra.mxu0 0.0
    %2198 = vmatprep.subr.mxu0 0.0
    %2199 = vmatpush1.msra.mxu0 0.0
    %2200 = vmatprep.mubr.f32.mxu0 0.0
    %2201 = vmatmul.mubr.f32.gmra.mrb[0].mxu0 %v2125
    %v2202 = vpop.f32.mrb[0].mxu0
    %v2203 = vadd.f32 %v2122, %v2202
    %v2204 = vpop.f32.mrb[0].mxu0
    %2205 = vmatprep.mubr.f32.mxu0 0.0
    %2206 = vmatmul.mubr.f32.gmra.mrb[0].mxu0 %v2128
    %v2207 = vpop.f32.mrb[0].mxu0
    %v2208 = vadd.f32 %v2122, %v2207
    %v2209 = vpop.f32.mrb[0].mxu0
    %2210 = vmatprep.mubr.f32.mxu0 0.0
    %2211 = vmatmul.mubr.f32.gmra.mrb[0].mxu0 %v2131
    %v2212 = vpop.f32.mrb[0].mxu0
    %v2213 = vadd.f32 %v2122, %v2212
    %v2214 = vpop.f32.mrb[0].mxu0
    %2215 = vmatprep.mubr.f32.mxu0 0.0
    %2216 = vmatmul.mubr.f32.gmra.mrb[0].mxu0 %v2134
    %v2217 = vpop.f32.mrb[0].mxu0
    %v2218 = vadd.f32 %v2122, %v2217
    %v2219 = vpop.f32.mrb[0].mxu0
    %2220 = vdwg.mxu0
    %v2221 = vadd.f32 %v576, %v2203
    %v2222 = vadd.f32 %v577, %v2208
    %v2223 = vadd.f32 %v578, %v2213
    %v2224 = vadd.f32 %v579, %v2218
    %v2225 = vld [vmem:[#allocation28] sm:$0x1]
    %v2226 = vld [vmem:[#allocation30] sm:$0x1]
    %v2227 = vsel %vm591, %v2221, 0.0
    %2228 = vadd.xlane.f32.xlu0 %v2227
    %v2229 = vpop.xlane.xlu0 %2228
    %v2230 = vsel %vm591, %v2222, 0.0
    %2231 = vadd.xlane.f32.xlu0 %v2230
    %v2232 = vpop.xlane.xlu0 %2231
    %v2233 = vsel %vm591, %v2223, 0.0
    %2234 = vadd.xlane.f32.xlu0 %v2233
    %v2235 = vpop.xlane.xlu0 %2234
    %v2236 = vsel %vm591, %v2224, 0.0
    %2237 = vadd.xlane.f32.xlu0 %v2236
    %v2238 = vpop.xlane.xlu0 %2237
    %v2239 = vmul.f32 %v2229, %v791
    %v2240 = vmul.f32 %v2232, %v791
    %v2241 = vmul.f32 %v2235, %v791
    %v2242 = vmul.f32 %v2238, %v791
    %v2243 = vsub.f32 %v2221, %v2239
    %v2244 = vsub.f32 %v2222, %v2240
    %v2245 = vsub.f32 %v2223, %v2241
    %v2246 = vsub.f32 %v2224, %v2242
    %v2247 = vmul.f32 %v2243, %v2243
    %v2248 = vmul.f32 %v2244, %v2244
    %v2249 = vmul.f32 %v2245, %v2245
    %v2250 = vmul.f32 %v2246, %v2246
    %v2251 = vsel %vm591, %v2247, 0.0
    %2252 = vadd.xlane.f32.xlu0 %v2251
    %v2253 = vpop.xlane.xlu0 %2252
    %v2254 = vsel %vm591, %v2248, 0.0
    %2255 = vadd.xlane.f32.xlu0 %v2254
    %v2256 = vpop.xlane.xlu0 %2255
    %v2257 = vsel %vm591, %v2249, 0.0
    %2258 = vadd.xlane.f32.xlu0 %v2257
    %v2259 = vpop.xlane.xlu0 %2258
    %v2260 = vsel %vm591, %v2250, 0.0
    %2261 = vadd.xlane.f32.xlu0 %v2260
    %v2262 = vpop.xlane.xlu0 %2261
    %v2263 = vmul.f32 %v2253, %v791
    %v2264 = vmul.f32 %v2256, %v791
    %v2265 = vmul.f32 %v2259, %v791
    %v2266 = vmul.f32 %v2262, %v791
    %v2267 = vadd.f32 %v2263, 1e-05
    %v2268 = vadd.f32 %v2264, 1e-05
    %v2269 = vadd.f32 %v2265, 1e-05
    %v2270 = vadd.f32 %v2266, 1e-05
    %v2271 = vrsqrt.pop %v2267
    %v2272 = vrsqrt.pop %v2268
    %v2273 = vrsqrt.pop %v2269
    %v2274 = vrsqrt.pop %v2270
    %v2275 = vmul.f32 %v2243, %v2271
    %v2276 = vmul.f32 %v2244, %v2272
    %v2277 = vmul.f32 %v2245, %v2273
    %v2278 = vmul.f32 %v2246, %v2274
    %v2280 = vlaneseq
    %v2281 = vshrl.u32 %v2280, 7
    %v2282 = vsub.s32 0, %v2281
    %v2283 = vrot.slane %v2225, %v2282
    %v2285 = vmul.f32 %v2275, %v2283
    %v2286 = vmul.f32 %v2276, %v2283
    %v2287 = vmul.f32 %v2277, %v2283
    %v2288 = vmul.f32 %v2278, %v2283
    %v2290 = vlaneseq
    %v2291 = vshrl.u32 %v2290, 7
    %v2292 = vsub.s32 0, %v2291
    %v2293 = vrot.slane %v2226, %v2292
    %v2295 = vadd.f32 %v2285, %v2293
    %v2296 = vadd.f32 %v2286, %v2293
    %v2297 = vadd.f32 %v2287, %v2293
    %v2298 = vadd.f32 %v2288, %v2293
    %v2299 = vld [vmem:[#allocation31] sm:$0xff]
    %v2300 = vld [vmem:[#allocation31 + $0x8] sm:$0xff]
    %v2301 = vld [vmem:[#allocation31 + $0x10] sm:$0xff]
    %v2302 = vld [vmem:[#allocation31 + $0x18] sm:$0xff]
    %v2303 = vld [vmem:[#allocation33] sm:$0x1]
    %v2305 = vlaneseq
    %v2306 = vshrl.u32 %v2305, 7
    %v2307 = vsub.s32 0, %v2306
    %v2308 = vrot.slane %v2303, %v2307
    %v2311 = vsel %vm591, %v2295, 0
    %v2314 = vsel %vm591, %v2296, 0
    %v2317 = vsel %vm591, %v2297, 0
    %v2320 = vsel %vm591, %v2298, 0
    %2322 = vmatprep.subr.mxu0 0.0
    %2323 = vmatpush1.msra.mxu0 %v2299
    %2324 = vmatprep.subr.mxu0 0.0
    %2325 = vmatpush1.msra.mxu0 %v2300
    %2326 = vmatprep.subr.mxu0 0.0
    %2327 = vmatpush1.msra.mxu0 %v2301
    %2328 = vmatprep.subr.mxu0 0.0
    %2329 = vmatpush1.msra.mxu0 %v2302
    %2330 = vmatprep.subr.mxu0 0.0
    %2331 = vmatpush1.msra.mxu0 0.0
    %2332 = vmatprep.subr.mxu0 0.0
    %2333 = vmatpush1.msra.mxu0 0.0
    %2334 = vmatprep.subr.mxu0 0.0
    %2335 = vmatpush1.msra.mxu0 0.0
    %2336 = vmatprep.subr.mxu0 0.0
    %2337 = vmatpush1.msra.mxu0 0.0
    %2338 = vmatprep.subr.mxu0 0.0
    %2339 = vmatpush1.msra.mxu0 0.0
    %2340 = vmatprep.subr.mxu0 0.0
    %2341 = vmatpush1.msra.mxu0 0.0
    %2342 = vmatprep.subr.mxu0 0.0
    %2343 = vmatpush1.msra.mxu0 0.0
    %2344 = vmatprep.subr.mxu0 0.0
    %2345 = vmatpush1.msra.mxu0 0.0
    %2346 = vmatprep.subr.mxu0 0.0
    %2347 = vmatpush1.msra.mxu0 0.0
    %2348 = vmatprep.subr.mxu0 0.0
    %2349 = vmatpush1.msra.mxu0 0.0
    %2350 = vmatprep.subr.mxu0 0.0
    %2351 = vmatpush1.msra.mxu0 0.0
    %2352 = vmatprep.subr.mxu0 0.0
    %2353 = vmatpush1.msra.mxu0 0.0
    %2354 = vmatprep.subr.mxu0 0.0
    %2355 = vmatpush1.msra.mxu0 0.0
    %2356 = vmatprep.subr.mxu0 0.0
    %2357 = vmatpush1.msra.mxu0 0.0
    %2358 = vmatprep.subr.mxu0 0.0
    %2359 = vmatpush1.msra.mxu0 0.0
    %2360 = vmatprep.subr.mxu0 0.0
    %2361 = vmatpush1.msra.mxu0 0.0
    %2362 = vmatprep.subr.mxu0 0.0
    %2363 = vmatpush1.msra.mxu0 0.0
    %2364 = vmatprep.subr.mxu0 0.0
    %2365 = vmatpush1.msra.mxu0 0.0
    %2366 = vmatprep.subr.mxu0 0.0
    %2367 = vmatpush1.msra.mxu0 0.0
    %2368 = vmatprep.subr.mxu0 0.0
    %2369 = vmatpush1.msra.mxu0 0.0
    %2370 = vmatprep.subr.mxu0 0.0
    %2371 = vmatpush1.msra.mxu0 0.0
    %2372 = vmatprep.subr.mxu0 0.0
    %2373 = vmatpush1.msra.mxu0 0.0
    %2374 = vmatprep.subr.mxu0 0.0
    %2375 = vmatpush1.msra.mxu0 0.0
    %2376 = vmatprep.subr.mxu0 0.0
    %2377 = vmatpush1.msra.mxu0 0.0
    %2378 = vmatprep.subr.mxu0 0.0
    %2379 = vmatpush1.msra.mxu0 0.0
    %2380 = vmatprep.subr.mxu0 0.0
    %2381 = vmatpush1.msra.mxu0 0.0
    %2382 = vmatprep.subr.mxu0 0.0
    %2383 = vmatpush1.msra.mxu0 0.0
    %2384 = vmatprep.subr.mxu0 0.0
    %2385 = vmatpush1.msra.mxu0 0.0
    %2386 = vmatprep.mubr.f32.mxu0 0.0
    %2387 = vmatmul.mubr.f32.gmra.mrb[0].mxu0 %v2311
    %v2388 = vpop.f32.mrb[0].mxu0
    %v2389 = vadd.f32 %v2308, %v2388
    %v2390 = vpop.f32.mrb[0].mxu0
    %2391 = vmatprep.mubr.f32.mxu0 0.0
    %2392 = vmatmul.mubr.f32.gmra.mrb[0].mxu0 %v2314
    %v2393 = vpop.f32.mrb[0].mxu0
    %v2394 = vadd.f32 %v2308, %v2393
    %v2395 = vpop.f32.mrb[0].mxu0
    %2396 = vmatprep.mubr.f32.mxu0 0.0
    %2397 = vmatmul.mubr.f32.gmra.mrb[0].mxu0 %v2317
    %v2398 = vpop.f32.mrb[0].mxu0
    %v2399 = vadd.f32 %v2308, %v2398
    %v2400 = vpop.f32.mrb[0].mxu0
    %2401 = vmatprep.mubr.f32.mxu0 0.0
    %2402 = vmatmul.mubr.f32.gmra.mrb[0].mxu0 %v2320
    %v2403 = vpop.f32.mrb[0].mxu0
    %v2404 = vadd.f32 %v2308, %v2403
    %v2405 = vpop.f32.mrb[0].mxu0
    %2406 = vdwg.mxu0
    %v2407 = vmul.f32 %v2389, %v2389
    %v2408 = vmul.f32 %v2394, %v2394
    %v2409 = vmul.f32 %v2399, %v2399
    %v2410 = vmul.f32 %v2404, %v2404
    %v2411 = vmul.f32 %v2389, %v2407
    %v2412 = vmul.f32 %v2394, %v2408
    %v2413 = vmul.f32 %v2399, %v2409
    %v2414 = vmul.f32 %v2404, %v2410
    %v2415 = vmul.f32 %v2411, 0.044715
    %v2416 = vmul.f32 %v2412, 0.044715
    %v2417 = vmul.f32 %v2413, 0.044715
    %v2418 = vmul.f32 %v2414, 0.044715
    %v2419 = vadd.f32 %v2389, %v2415
    %v2420 = vadd.f32 %v2394, %v2416
    %v2421 = vadd.f32 %v2399, %v2417
    %v2422 = vadd.f32 %v2404, %v2418
    %v2423 = vmul.f32 %v2419, 0.7978846
    %v2424 = vmul.f32 %v2420, 0.7978846
    %v2425 = vmul.f32 %v2421, 0.7978846
    %v2426 = vmul.f32 %v2422, 0.7978846
    %v2427 = vtanh.pop %v2423
    %v2428 = vtanh.pop %v2424
    %v2429 = vtanh.pop %v2425
    %v2430 = vtanh.pop %v2426
    %v2431 = vadd.f32 %v2427, 1.0
    %v2432 = vadd.f32 %v2428, 1.0
    %v2433 = vadd.f32 %v2429, 1.0
    %v2434 = vadd.f32 %v2430, 1.0
    %v2435 = vmul.f32 %v2431, 0.5
    %v2436 = vmul.f32 %v2432, 0.5
    %v2437 = vmul.f32 %v2433, 0.5
    %v2438 = vmul.f32 %v2434, 0.5
    %v2439 = vmul.f32 %v2389, %v2435
    %v2440 = vmul.f32 %v2394, %v2436
    %v2441 = vmul.f32 %v2399, %v2437
    %v2442 = vmul.f32 %v2404, %v2438
    %v2443 = vld [vmem:[%s65] sm:$0xff]
    %v2444 = vld [vmem:[%s65 + $0x8] sm:$0xff]
    %v2445 = vld [vmem:[%s65 + $0x10] sm:$0xff]
    %v2446 = vld [vmem:[%s65 + $0x18] sm:$0xff]
    %v2447 = vld [vmem:[%s65 + $0x20] sm:$0xff]
    %v2448 = vld [vmem:[%s65 + $0x28] sm:$0xff]
    %v2449 = vld [vmem:[%s65 + $0x30] sm:$0xff]
    %v2450 = vld [vmem:[%s65 + $0x38] sm:$0xff]
    %v2451 = vld [vmem:[%s65 + $0x40] sm:$0xff]
    %v2452 = vld [vmem:[%s65 + $0x48] sm:$0xff]
    %v2453 = vld [vmem:[%s65 + $0x50] sm:$0xff]
    %v2454 = vld [vmem:[%s65 + $0x58] sm:$0xff]
    %v2455 = vld [vmem:[%s65 + $0x60] sm:$0xff]
    %v2456 = vld [vmem:[%s65 + $0x68] sm:$0xff]
    %v2457 = vld [vmem:[%s65 + $0x70] sm:$0xff]
    %v2458 = vld [vmem:[%s65 + $0x78] sm:$0xff]
    %v2459 = vld [vmem:[#allocation34] sm:$0x1]
    %v2461 = vlaneseq
    %v2462 = vshrl.u32 %v2461, 7
    %v2463 = vsub.s32 0, %v2462
    %v2464 = vrot.slane %v2459, %v2463
    %2466 = vmatprep.subr.mxu0 0.0
    %2467 = vmatpush1.msra.mxu0 %v2443
    %2468 = vmatprep.subr.mxu0 0.0
    %2469 = vmatpush1.msra.mxu0 %v2444
    %2470 = vmatprep.subr.mxu0 0.0
    %2471 = vmatpush1.msra.mxu0 %v2445
    %2472 = vmatprep.subr.mxu0 0.0
    %2473 = vmatpush1.msra.mxu0 %v2446
    %2474 = vmatprep.subr.mxu0 0.0
    %2475 = vmatpush1.msra.mxu0 %v2447
    %2476 = vmatprep.subr.mxu0 0.0
    %2477 = vmatpush1.msra.mxu0 %v2448
    %2478 = vmatprep.subr.mxu0 0.0
    %2479 = vmatpush1.msra.mxu0 %v2449
    %2480 = vmatprep.subr.mxu0 0.0
    %2481 = vmatpush1.msra.mxu0 %v2450
    %2482 = vmatprep.subr.mxu0 0.0
    %2483 = vmatpush1.msra.mxu0 %v2451
    %2484 = vmatprep.subr.mxu0 0.0
    %2485 = vmatpush1.msra.mxu0 %v2452
    %2486 = vmatprep.subr.mxu0 0.0
    %2487 = vmatpush1.msra.mxu0 %v2453
    %2488 = vmatprep.subr.mxu0 0.0
    %2489 = vmatpush1.msra.mxu0 %v2454
    %2490 = vmatprep.subr.mxu0 0.0
    %2491 = vmatpush1.msra.mxu0 %v2455
    %2492 = vmatprep.subr.mxu0 0.0
    %2493 = vmatpush1.msra.mxu0 %v2456
    %2494 = vmatprep.subr.mxu0 0.0
    %2495 = vmatpush1.msra.mxu0 %v2457
    %2496 = vmatprep.subr.mxu0 0.0
    %2497 = vmatpush1.msra.mxu0 %v2458
    %2498 = vmatprep.subr.mxu0 0.0
    %2499 = vmatpush1.msra.mxu0 0.0
    %2500 = vmatprep.subr.mxu0 0.0
    %2501 = vmatpush1.msra.mxu0 0.0
    %2502 = vmatprep.subr.mxu0 0.0
    %2503 = vmatpush1.msra.mxu0 0.0
    %2504 = vmatprep.subr.mxu0 0.0
    %2505 = vmatpush1.msra.mxu0 0.0
    %2506 = vmatprep.subr.mxu0 0.0
    %2507 = vmatpush1.msra.mxu0 0.0
    %2508 = vmatprep.subr.mxu0 0.0
    %2509 = vmatpush1.msra.mxu0 0.0
    %2510 = vmatprep.subr.mxu0 0.0
    %2511 = vmatpush1.msra.mxu0 0.0
    %2512 = vmatprep.subr.mxu0 0.0
    %2513 = vmatpush1.msra.mxu0 0.0
    %2514 = vmatprep.subr.mxu0 0.0
    %2515 = vmatpush1.msra.mxu0 0.0
    %2516 = vmatprep.subr.mxu0 0.0
    %2517 = vmatpush1.msra.mxu0 0.0
    %2518 = vmatprep.subr.mxu0 0.0
    %2519 = vmatpush1.msra.mxu0 0.0
    %2520 = vmatprep.subr.mxu0 0.0
    %2521 = vmatpush1.msra.mxu0 0.0
    %2522 = vmatprep.subr.mxu0 0.0
    %2523 = vmatpush1.msra.mxu0 0.0
    %2524 = vmatprep.subr.mxu0 0.0
    %2525 = vmatpush1.msra.mxu0 0.0
    %2526 = vmatprep.subr.mxu0 0.0
    %2527 = vmatpush1.msra.mxu0 0.0
    %2528 = vmatprep.subr.mxu0 0.0
    %2529 = vmatpush1.msra.mxu0 0.0
    %2530 = vmatprep.mubr.f32.mxu0 0.0
    %2531 = vmatmul.mubr.f32.gmra.mrb[0].mxu0 %v2439
    %v2532 = vpop.f32.mrb[0].mxu0
    %v2533 = vadd.f32 %v2464, %v2532
    %v2534 = vpop.f32.mrb[0].mxu0
    %2535 = vmatprep.mubr.f32.mxu0 0.0
    %2536 = vmatmul.mubr.f32.gmra.mrb[0].mxu0 %v2440
    %v2537 = vpop.f32.mrb[0].mxu0
    %v2538 = vadd.f32 %v2464, %v2537
    %v2539 = vpop.f32.mrb[0].mxu0
    %2540 = vmatprep.mubr.f32.mxu0 0.0
    %2541 = vmatmul.mubr.f32.gmra.mrb[0].mxu0 %v2441
    %v2542 = vpop.f32.mrb[0].mxu0
    %v2543 = vadd.f32 %v2464, %v2542
    %v2544 = vpop.f32.mrb[0].mxu0
    %2545 = vmatprep.mubr.f32.mxu0 0.0
    %2546 = vmatmul.mubr.f32.gmra.mrb[0].mxu0 %v2442
    %v2547 = vpop.f32.mrb[0].mxu0
    %v2548 = vadd.f32 %v2464, %v2547
    %v2549 = vpop.f32.mrb[0].mxu0
    %2550 = vdwg.mxu0
    %v2551 = vadd.f32 %v2295, %v2533
    %v2552 = vadd.f32 %v2296, %v2538
    %v2553 = vadd.f32 %v2297, %v2543
    %v2554 = vadd.f32 %v2298, %v2548
    %v2555 = vld [vmem:[#allocation36] sm:$0x1]
    %v2556 = vld [vmem:[#allocation37] sm:$0x1]
    %v2557 = vsel %vm591, %v2551, 0.0
    %2558 = vadd.xlane.f32.xlu0 %v2557
    %v2559 = vpop.xlane.xlu0 %2558
    %v2560 = vsel %vm591, %v2552, 0.0
    %2561 = vadd.xlane.f32.xlu0 %v2560
    %v2562 = vpop.xlane.xlu0 %2561
    %v2563 = vsel %vm591, %v2553, 0.0
    %2564 = vadd.xlane.f32.xlu0 %v2563
    %v2565 = vpop.xlane.xlu0 %2564
    %v2566 = vsel %vm591, %v2554, 0.0
    %2567 = vadd.xlane.f32.xlu0 %v2566
    %v2568 = vpop.xlane.xlu0 %2567
    %v2569 = vmul.f32 %v2559, %v791
    %v2570 = vmul.f32 %v2562, %v791
    %v2571 = vmul.f32 %v2565, %v791
    %v2572 = vmul.f32 %v2568, %v791
    %v2573 = vsub.f32 %v2551, %v2569
    %v2574 = vsub.f32 %v2552, %v2570
    %v2575 = vsub.f32 %v2553, %v2571
    %v2576 = vsub.f32 %v2554, %v2572
    %v2577 = vmul.f32 %v2573, %v2573
    %v2578 = vmul.f32 %v2574, %v2574
    %v2579 = vmul.f32 %v2575, %v2575
    %v2580 = vmul.f32 %v2576, %v2576
    %v2581 = vsel %vm591, %v2577, 0.0
    %2582 = vadd.xlane.f32.xlu0 %v2581
    %v2583 = vpop.xlane.xlu0 %2582
    %v2584 = vsel %vm591, %v2578, 0.0
    %2585 = vadd.xlane.f32.xlu0 %v2584
    %v2586 = vpop.xlane.xlu0 %2585
    %v2587 = vsel %vm591, %v2579, 0.0
    %2588 = vadd.xlane.f32.xlu0 %v2587
    %v2589 = vpop.xlane.xlu0 %2588
    %v2590 = vsel %vm591, %v2580, 0.0
    %2591 = vadd.xlane.f32.xlu0 %v2590
    %v2592 = vpop.xlane.xlu0 %2591
    %v2593 = vmul.f32 %v2583, %v791
    %v2594 = vmul.f32 %v2586, %v791
    %v2595 = vmul.f32 %v2589, %v791
    %v2596 = vmul.f32 %v2592, %v791
    %v2597 = vadd.f32 %v2593, 1e-05
    %v2598 = vadd.f32 %v2594, 1e-05
    %v2599 = vadd.f32 %v2595, 1e-05
    %v2600 = vadd.f32 %v2596, 1e-05
    %v2601 = vrsqrt.pop %v2597
    %v2602 = vrsqrt.pop %v2598
    %v2603 = vrsqrt.pop %v2599
    %v2604 = vrsqrt.pop %v2600
    %v2605 = vmul.f32 %v2573, %v2601
    %v2606 = vmul.f32 %v2574, %v2602
    %v2607 = vmul.f32 %v2575, %v2603
    %v2608 = vmul.f32 %v2576, %v2604
    %v2610 = vlaneseq
    %v2611 = vshrl.u32 %v2610, 7
    %v2612 = vsub.s32 0, %v2611
    %v2613 = vrot.slane %v2555, %v2612
    %v2615 = vmul.f32 %v2605, %v2613
    %v2616 = vmul.f32 %v2606, %v2613
    %v2617 = vmul.f32 %v2607, %v2613
    %v2618 = vmul.f32 %v2608, %v2613
    %v2620 = vlaneseq
    %v2621 = vshrl.u32 %v2620, 7
    %v2622 = vsub.s32 0, %v2621
    %v2623 = vrot.slane %v2556, %v2622
    %v2625 = vadd.f32 %v2615, %v2623
    %v2626 = vadd.f32 %v2616, %v2623
    %v2627 = vadd.f32 %v2617, %v2623
    %v2628 = vadd.f32 %v2618, %v2623
    %s2629 = scalar_lea.vmem %s9, 32
    %v2630 = vld [vmem:[%s2629] sm:$0xff]
    %v2631 = vld [vmem:[%s2629 + $0x8] sm:$0xff]
    %v2632 = vld [vmem:[%s2629 + $0x10] sm:$0xff]
    %v2633 = vld [vmem:[%s2629 + $0x18] sm:$0xff]
    %s2634 = scalar_lea.vmem [#allocation2], 1
    %v2635 = vld [vmem:[%s2634] sm:$0x1]
    %v2637 = vlaneseq
    %v2638 = vshrl.u32 %v2637, 7
    %v2639 = vsub.s32 0, %v2638
    %v2640 = vrot.slane %v2635, %v2639
    %2642 = vmatprep.subr.mxu0 0.0
    %2643 = vmatpush1.msra.mxu0 %v2630
    %2644 = vmatprep.subr.mxu0 0.0
    %2645 = vmatpush1.msra.mxu0 %v2631
    %2646 = vmatprep.subr.mxu0 0.0
    %2647 = vmatpush1.msra.mxu0 %v2632
    %2648 = vmatprep.subr.mxu0 0.0
    %2649 = vmatpush1.msra.mxu0 %v2633
    %2650 = vmatprep.subr.mxu0 0.0
    %2651 = vmatpush1.msra.mxu0 0.0
    %2652 = vmatprep.subr.mxu0 0.0
    %2653 = vmatpush1.msra.mxu0 0.0
    %2654 = vmatprep.subr.mxu0 0.0
    %2655 = vmatpush1.msra.mxu0 0.0
    %2656 = vmatprep.subr.mxu0 0.0
    %2657 = vmatpush1.msra.mxu0 0.0
    %2658 = vmatprep.subr.mxu0 0.0
    %2659 = vmatpush1.msra.mxu0 0.0
    %2660 = vmatprep.subr.mxu0 0.0
    %2661 = vmatpush1.msra.mxu0 0.0
    %2662 = vmatprep.subr.mxu0 0.0
    %2663 = vmatpush1.msra.mxu0 0.0
    %2664 = vmatprep.subr.mxu0 0.0
    %2665 = vmatpush1.msra.mxu0 0.0
    %2666 = vmatprep.subr.mxu0 0.0
    %2667 = vmatpush1.msra.mxu0 0.0
    %2668 = vmatprep.subr.mxu0 0.0
    %2669 = vmatpush1.msra.mxu0 0.0
    %2670 = vmatprep.subr.mxu0 0.0
    %2671 = vmatpush1.msra.mxu0 0.0
    %2672 = vmatprep.subr.mxu0 0.0
    %2673 = vmatpush1.msra.mxu0 0.0
    %2674 = vmatprep.subr.mxu0 0.0
    %2675 = vmatpush1.msra.mxu0 0.0
    %2676 = vmatprep.subr.mxu0 0.0
    %2677 = vmatpush1.msra.mxu0 0.0
    %2678 = vmatprep.subr.mxu0 0.0
    %2679 = vmatpush1.msra.mxu0 0.0
    %2680 = vmatprep.subr.mxu0 0.0
    %2681 = vmatpush1.msra.mxu0 0.0
    %2682 = vmatprep.subr.mxu0 0.0
    %2683 = vmatpush1.msra.mxu0 0.0
    %2684 = vmatprep.subr.mxu0 0.0
    %2685 = vmatpush1.msra.mxu0 0.0
    %2686 = vmatprep.subr.mxu0 0.0
    %2687 = vmatpush1.msra.mxu0 0.0
    %2688 = vmatprep.subr.mxu0 0.0
    %2689 = vmatpush1.msra.mxu0 0.0
    %2690 = vmatprep.subr.mxu0 0.0
    %2691 = vmatpush1.msra.mxu0 0.0
    %2692 = vmatprep.subr.mxu0 0.0
    %2693 = vmatpush1.msra.mxu0 0.0
    %2694 = vmatprep.subr.mxu0 0.0
    %2695 = vmatpush1.msra.mxu0 0.0
    %2696 = vmatprep.subr.mxu0 0.0
    %2697 = vmatpush1.msra.mxu0 0.0
    %2698 = vmatprep.subr.mxu0 0.0
    %2699 = vmatpush1.msra.mxu0 0.0
    %2700 = vmatprep.subr.mxu0 0.0
    %2701 = vmatpush1.msra.mxu0 0.0
    %2702 = vmatprep.subr.mxu0 0.0
    %2703 = vmatpush1.msra.mxu0 0.0
    %2704 = vmatprep.subr.mxu0 0.0
    %2705 = vmatpush1.msra.mxu0 0.0
    %2706 = vmatprep.mubr.f32.mxu0 0.0
    %2707 = vmatmul.mubr.f32.gmra.mrb[0].mxu0 %v593
    %v2708 = vpop.f32.mrb[0].mxu0
    %v2709 = vadd.f32 %v2640, %v2708
    %v2710 = vpop.f32.mrb[0].mxu0
    %2711 = vmatprep.mubr.f32.mxu0 0.0
    %2712 = vmatmul.mubr.f32.gmra.mrb[0].mxu0 %v596
    %v2713 = vpop.f32.mrb[0].mxu0
    %v2714 = vadd.f32 %v2640, %v2713
    %v2715 = vpop.f32.mrb[0].mxu0
    %2716 = vdwg.mxu0
    %v2717 = vmul.f32 %v2709, %v2709
    %v2718 = vmul.f32 %v2714, %v2714
    %v2719 = vmul.f32 %v2709, %v2717
    %v2720 = vmul.f32 %v2714, %v2718
    %v2721 = vmul.f32 %v2719, 0.044715
    %v2722 = vmul.f32 %v2720, 0.044715
    %v2723 = vadd.f32 %v2709, %v2721
    %v2724 = vadd.f32 %v2714, %v2722
    %v2725 = vmul.f32 %v2723, 0.7978846
    %v2726 = vmul.f32 %v2724, 0.7978846
    %v2727 = vtanh.pop %v2725
    %v2728 = vtanh.pop %v2726
    %v2729 = vadd.f32 %v2727, 1.0
    %v2730 = vadd.f32 %v2728, 1.0
    %v2731 = vmul.f32 %v2729, 0.5
    %v2732 = vmul.f32 %v2730, 0.5
    %v2733 = vmul.f32 %v2709, %v2731
    %v2734 = vmul.f32 %v2714, %v2732
    %s2735 = scalar_lea.vmem %s13, 32
    %v2736 = vld [vmem:[%s2735] sm:$0xff]
    %v2737 = vld [vmem:[%s2735 + $0x8] sm:$0xff]
    %v2738 = vld [vmem:[%s2735 + $0x10] sm:$0xff]
    %v2739 = vld [vmem:[%s2735 + $0x18] sm:$0xff]
    %s2740 = scalar_lea.vmem [#allocation4], 1
    %v2741 = vld [vmem:[%s2740] sm:$0x1]
    %v2743 = vlaneseq
    %v2744 = vshrl.u32 %v2743, 7
    %v2745 = vsub.s32 0, %v2744
    %v2746 = vrot.slane %v2741, %v2745
    %v2749 = vsel %vm591, %v2733, 0
    %v2752 = vsel %vm591, %v2734, 0
    %2754 = vmatprep.subr.mxu0 0.0
    %2755 = vmatpush1.msra.mxu0 %v2736
    %2756 = vmatprep.subr.mxu0 0.0
    %2757 = vmatpush1.msra.mxu0 %v2737
    %2758 = vmatprep.subr.mxu0 0.0
    %2759 = vmatpush1.msra.mxu0 %v2738
    %2760 = vmatprep.subr.mxu0 0.0
    %2761 = vmatpush1.msra.mxu0 %v2739
    %2762 = vmatprep.subr.mxu0 0.0
    %2763 = vmatpush1.msra.mxu0 0.0
    %2764 = vmatprep.subr.mxu0 0.0
    %2765 = vmatpush1.msra.mxu0 0.0
    %2766 = vmatprep.subr.mxu0 0.0
    %2767 = vmatpush1.msra.mxu0 0.0
    %2768 = vmatprep.subr.mxu0 0.0
    %2769 = vmatpush1.msra.mxu0 0.0
    %2770 = vmatprep.subr.mxu0 0.0
    %2771 = vmatpush1.msra.mxu0 0.0
    %2772 = vmatprep.subr.mxu0 0.0
    %2773 = vmatpush1.msra.mxu0 0.0
    %2774 = vmatprep.subr.mxu0 0.0
    %2775 = vmatpush1.msra.mxu0 0.0
    %2776 = vmatprep.subr.mxu0 0.0
    %2777 = vmatpush1.msra.mxu0 0.0
    %2778 = vmatprep.subr.mxu0 0.0
    %2779 = vmatpush1.msra.mxu0 0.0
    %2780 = vmatprep.subr.mxu0 0.0
    %2781 = vmatpush1.msra.mxu0 0.0
    %2782 = vmatprep.subr.mxu0 0.0
    %2783 = vmatpush1.msra.mxu0 0.0
    %2784 = vmatprep.subr.mxu0 0.0
    %2785 = vmatpush1.msra.mxu0 0.0
    %2786 = vmatprep.subr.mxu0 0.0
    %2787 = vmatpush1.msra.mxu0 0.0
    %2788 = vmatprep.subr.mxu0 0.0
    %2789 = vmatpush1.msra.mxu0 0.0
    %2790 = vmatprep.subr.mxu0 0.0
    %2791 = vmatpush1.msra.mxu0 0.0
    %2792 = vmatprep.subr.mxu0 0.0
    %2793 = vmatpush1.msra.mxu0 0.0
    %2794 = vmatprep.subr.mxu0 0.0
    %2795 = vmatpush1.msra.mxu0 0.0
    %2796 = vmatprep.subr.mxu0 0.0
    %2797 = vmatpush1.msra.mxu0 0.0
    %2798 = vmatprep.subr.mxu0 0.0
    %2799 = vmatpush1.msra.mxu0 0.0
    %2800 = vmatprep.subr.mxu0 0.0
    %2801 = vmatpush1.msra.mxu0 0.0
    %2802 = vmatprep.subr.mxu0 0.0
    %2803 = vmatpush1.msra.mxu0 0.0
    %2804 = vmatprep.subr.mxu0 0.0
    %2805 = vmatpush1.msra.mxu0 0.0
    %2806 = vmatprep.subr.mxu0 0.0
    %2807 = vmatpush1.msra.mxu0 0.0
    %2808 = vmatprep.subr.mxu0 0.0
    %2809 = vmatpush1.msra.mxu0 0.0
    %2810 = vmatprep.subr.mxu0 0.0
    %2811 = vmatpush1.msra.mxu0 0.0
    %2812 = vmatprep.subr.mxu0 0.0
    %2813 = vmatpush1.msra.mxu0 0.0
    %2814 = vmatprep.subr.mxu0 0.0
    %2815 = vmatpush1.msra.mxu0 0.0
    %2816 = vmatprep.subr.mxu0 0.0
    %2817 = vmatpush1.msra.mxu0 0.0
    %2818 = vmatprep.mubr.f32.mxu0 0.0
    %2819 = vmatmul.mubr.f32.gmra.mrb[0].mxu0 %v2749
    %v2820 = vpop.f32.mrb[0].mxu0
    %v2821 = vadd.f32 %v2746, %v2820
    %v2822 = vpop.f32.mrb[0].mxu0
    %2823 = vmatprep.mubr.f32.mxu0 0.0
    %2824 = vmatmul.mubr.f32.gmra.mrb[0].mxu0 %v2752
    %v2825 = vpop.f32.mrb[0].mxu0
    %v2826 = vadd.f32 %v2746, %v2825
    %v2827 = vpop.f32.mrb[0].mxu0
    %2828 = vdwg.mxu0
    %s2829 = scalar_lea.vmem [#allocation6], 1
    %v2830 = vld [vmem:[%s2829] sm:$0x1]
    %s2831 = scalar_lea.vmem [#allocation7], 1
    %v2832 = vld [vmem:[%s2831] sm:$0x1]
    %v2833 = vsel %vm591, %v2821, 0.0
    %2834 = vadd.xlane.f32.xlu0 %v2833
    %v2835 = vpop.xlane.xlu0 %2834
    %v2836 = vsel %vm591, %v2826, 0.0
    %2837 = vadd.xlane.f32.xlu0 %v2836
    %v2838 = vpop.xlane.xlu0 %2837
    %v2839 = vmul.f32 %v2835, %v791
    %v2840 = vmul.f32 %v2838, %v791
    %v2841 = vsub.f32 %v2821, %v2839
    %v2842 = vsub.f32 %v2826, %v2840
    %v2843 = vmul.f32 %v2841, %v2841
    %v2844 = vmul.f32 %v2842, %v2842
    %v2845 = vsel %vm591, %v2843, 0.0
    %2846 = vadd.xlane.f32.xlu0 %v2845
    %v2847 = vpop.xlane.xlu0 %2846
    %v2848 = vsel %vm591, %v2844, 0.0
    %2849 = vadd.xlane.f32.xlu0 %v2848
    %v2850 = vpop.xlane.xlu0 %2849
    %v2851 = vmul.f32 %v2847, %v791
    %v2852 = vmul.f32 %v2850, %v791
    %v2853 = vadd.f32 %v2851, 1e-05
    %v2854 = vadd.f32 %v2852, 1e-05
    %v2855 = vrsqrt.pop %v2853
    %v2856 = vrsqrt.pop %v2854
    %v2857 = vmul.f32 %v2841, %v2855
    %v2858 = vmul.f32 %v2842, %v2856
    %v2860 = vlaneseq
    %v2861 = vshrl.u32 %v2860, 7
    %v2862 = vsub.s32 0, %v2861
    %v2863 = vrot.slane %v2830, %v2862
    %v2865 = vmul.f32 %v2857, %v2863
    %v2866 = vmul.f32 %v2858, %v2863
    %v2868 = vlaneseq
    %v2869 = vshrl.u32 %v2868, 7
    %v2870 = vsub.s32 0, %v2869
    %v2871 = vrot.slane %v2832, %v2870
    %v2873 = vadd.f32 %v2865, %v2871
    %v2874 = vadd.f32 %v2866, %v2871
    %v2875 = vadd.f32 %v2625, %v572
    %v2876 = vadd.f32 %v2626, %v573
    %v2877 = vadd.f32 %v2627, %v574
    %v2878 = vadd.f32 %v2628, %v575
    %s2879 = scalar_lea.vmem %s21, 32
    %v2880 = vld [vmem:[%s2879] sm:$0xff]
    %v2881 = vld [vmem:[%s2879 + $0x8] sm:$0xff]
    %v2882 = vld [vmem:[%s2879 + $0x10] sm:$0xff]
    %v2883 = vld [vmem:[%s2879 + $0x18] sm:$0xff]
    %s2884 = scalar_lea.vmem [#allocation9], 1
    %v2885 = vld [vmem:[%s2884] sm:$0x1]
    %s2886 = scalar_lea.vmem %s25, 32
    %v2887 = vld [vmem:[%s2886] sm:$0xff]
    %v2888 = vld [vmem:[%s2886 + $0x8] sm:$0xff]
    %v2889 = vld [vmem:[%s2886 + $0x10] sm:$0xff]
    %v2890 = vld [vmem:[%s2886 + $0x18] sm:$0xff]
    %s2891 = scalar_lea.vmem [#allocation10], 1
    %v2892 = vld [vmem:[%s2891] sm:$0x1]
    %s2893 = scalar_lea.vmem %s29, 32
    %v2894 = vld [vmem:[%s2893] sm:$0xff]
    %v2895 = vld [vmem:[%s2893 + $0x8] sm:$0xff]
    %v2896 = vld [vmem:[%s2893 + $0x10] sm:$0xff]
    %v2897 = vld [vmem:[%s2893 + $0x18] sm:$0xff]
    %s2898 = scalar_lea.vmem %s31, 1
    %v2899 = vld [vmem:[%s2898] sm:$0x1]
    %s2900 = scalar_lea.vmem %s33, 32
    %v2901 = vld [vmem:[%s2900] sm:$0xff]
    %v2902 = vld [vmem:[%s2900 + $0x8] sm:$0xff]
    %v2903 = vld [vmem:[%s2900 + $0x10] sm:$0xff]
    %v2904 = vld [vmem:[%s2900 + $0x18] sm:$0xff]
    %s2905 = scalar_lea.vmem [#allocation12], 1
    %v2906 = vld [vmem:[%s2905] sm:$0x1]
    %v2908 = vlaneseq
    %v2909 = vshrl.u32 %v2908, 7
    %v2910 = vsub.s32 0, %v2909
    %v2911 = vrot.slane %v2885, %v2910
    %v2914 = vsel %vm591, %v2875, 0
    %v2917 = vsel %vm591, %v2876, 0
    %v2920 = vsel %vm591, %v2877, 0
    %v2923 = vsel %vm591, %v2878, 0
    %2925 = vmatprep.subr.mxu0 0.0
    %2926 = vmatpush1.msra.mxu0 %v2880
    %2927 = vmatprep.subr.mxu0 0.0
    %2928 = vmatpush1.msra.mxu0 %v2881
    %2929 = vmatprep.subr.mxu0 0.0
    %2930 = vmatpush1.msra.mxu0 %v2882
    %2931 = vmatprep.subr.mxu0 0.0
    %2932 = vmatpush1.msra.mxu0 %v2883
    %2933 = vmatprep.subr.mxu0 0.0
    %2934 = vmatpush1.msra.mxu0 0.0
    %2935 = vmatprep.subr.mxu0 0.0
    %2936 = vmatpush1.msra.mxu0 0.0
    %2937 = vmatprep.subr.mxu0 0.0
    %2938 = vmatpush1.msra.mxu0 0.0
    %2939 = vmatprep.subr.mxu0 0.0
    %2940 = vmatpush1.msra.mxu0 0.0
    %2941 = vmatprep.subr.mxu0 0.0
    %2942 = vmatpush1.msra.mxu0 0.0
    %2943 = vmatprep.subr.mxu0 0.0
    %2944 = vmatpush1.msra.mxu0 0.0
    %2945 = vmatprep.subr.mxu0 0.0
    %2946 = vmatpush1.msra.mxu0 0.0
    %2947 = vmatprep.subr.mxu0 0.0
    %2948 = vmatpush1.msra.mxu0 0.0
    %2949 = vmatprep.subr.mxu0 0.0
    %2950 = vmatpush1.msra.mxu0 0.0
    %2951 = vmatprep.subr.mxu0 0.0
    %2952 = vmatpush1.msra.mxu0 0.0
    %2953 = vmatprep.subr.mxu0 0.0
    %2954 = vmatpush1.msra.mxu0 0.0
    %2955 = vmatprep.subr.mxu0 0.0
    %2956 = vmatpush1.msra.mxu0 0.0
    %2957 = vmatprep.subr.mxu0 0.0
    %2958 = vmatpush1.msra.mxu0 0.0
    %2959 = vmatprep.subr.mxu0 0.0
    %2960 = vmatpush1.msra.mxu0 0.0
    %2961 = vmatprep.subr.mxu0 0.0
    %2962 = vmatpush1.msra.mxu0 0.0
    %2963 = vmatprep.subr.mxu0 0.0
    %2964 = vmatpush1.msra.mxu0 0.0
    %2965 = vmatprep.subr.mxu0 0.0
    %2966 = vmatpush1.msra.mxu0 0.0
    %2967 = vmatprep.subr.mxu0 0.0
    %2968 = vmatpush1.msra.mxu0 0.0
    %2969 = vmatprep.subr.mxu0 0.0
    %2970 = vmatpush1.msra.mxu0 0.0
    %2971 = vmatprep.subr.mxu0 0.0
    %2972 = vmatpush1.msra.mxu0 0.0
    %2973 = vmatprep.subr.mxu0 0.0
    %2974 = vmatpush1.msra.mxu0 0.0
    %2975 = vmatprep.subr.mxu0 0.0
    %2976 = vmatpush1.msra.mxu0 0.0
    %2977 = vmatprep.subr.mxu0 0.0
    %2978 = vmatpush1.msra.mxu0 0.0
    %2979 = vmatprep.subr.mxu0 0.0
    %2980 = vmatpush1.msra.mxu0 0.0
    %2981 = vmatprep.subr.mxu0 0.0
    %2982 = vmatpush1.msra.mxu0 0.0
    %2983 = vmatprep.subr.mxu0 0.0
    %2984 = vmatpush1.msra.mxu0 0.0
    %2985 = vmatprep.subr.mxu0 0.0
    %2986 = vmatpush1.msra.mxu0 0.0
    %2987 = vmatprep.subr.mxu0 0.0
    %2988 = vmatpush1.msra.mxu0 0.0
    %2989 = vmatprep.mubr.f32.mxu0 0.0
    %2990 = vmatmul.mubr.f32.gmra.mrb[0].mxu0 %v2914
    %v2991 = vpop.f32.mrb[0].mxu0
    %v2992 = vadd.f32 %v2911, %v2991
    %v2993 = vpop.f32.mrb[0].mxu0
    %2994 = vmatprep.mubr.f32.mxu0 0.0
    %2995 = vmatmul.mubr.f32.gmra.mrb[0].mxu0 %v2917
    %v2996 = vpop.f32.mrb[0].mxu0
    %v2997 = vadd.f32 %v2911, %v2996
    %v2998 = vpop.f32.mrb[0].mxu0
    %2999 = vmatprep.mubr.f32.mxu0 0.0
    %3000 = vmatmul.mubr.f32.gmra.mrb[0].mxu0 %v2920
    %v3001 = vpop.f32.mrb[0].mxu0
    %v3002 = vadd.f32 %v2911, %v3001
    %v3003 = vpop.f32.mrb[0].mxu0
    %3004 = vmatprep.mubr.f32.mxu0 0.0
    %3005 = vmatmul.mubr.f32.gmra.mrb[0].mxu0 %v2923
    %v3006 = vpop.f32.mrb[0].mxu0
    %v3007 = vadd.f32 %v2911, %v3006
    %v3008 = vpop.f32.mrb[0].mxu0
    %3009 = vdwg.mxu0
    %v3010 = vmul.f32 %v2992, 0.35355338
    %v3011 = vmul.f32 %v2997, 0.35355338
    %v3012 = vmul.f32 %v3002, 0.35355338
    %v3013 = vmul.f32 %v3007, 0.35355338
    %v3015 = vlaneseq
    %v3016 = vshrl.u32 %v3015, 7
    %v3017 = vsub.s32 0, %v3016
    %v3018 = vrot.slane %v2892, %v3017
    %3020 = vmatprep.subr.mxu0 0.0
    %3021 = vmatpush1.msra.mxu0 %v2887
    %3022 = vmatprep.subr.mxu0 0.0
    %3023 = vmatpush1.msra.mxu0 %v2888
    %3024 = vmatprep.subr.mxu0 0.0
    %3025 = vmatpush1.msra.mxu0 %v2889
    %3026 = vmatprep.subr.mxu0 0.0
    %3027 = vmatpush1.msra.mxu0 %v2890
    %3028 = vmatprep.subr.mxu0 0.0
    %3029 = vmatpush1.msra.mxu0 0.0
    %3030 = vmatprep.subr.mxu0 0.0
    %3031 = vmatpush1.msra.mxu0 0.0
    %3032 = vmatprep.subr.mxu0 0.0
    %3033 = vmatpush1.msra.mxu0 0.0
    %3034 = vmatprep.subr.mxu0 0.0
    %3035 = vmatpush1.msra.mxu0 0.0
    %3036 = vmatprep.subr.mxu0 0.0
    %3037 = vmatpush1.msra.mxu0 0.0
    %3038 = vmatprep.subr.mxu0 0.0
    %3039 = vmatpush1.msra.mxu0 0.0
    %3040 = vmatprep.subr.mxu0 0.0
    %3041 = vmatpush1.msra.mxu0 0.0
    %3042 = vmatprep.subr.mxu0 0.0
    %3043 = vmatpush1.msra.mxu0 0.0
    %3044 = vmatprep.subr.mxu0 0.0
    %3045 = vmatpush1.msra.mxu0 0.0
    %3046 = vmatprep.subr.mxu0 0.0
    %3047 = vmatpush1.msra.mxu0 0.0
    %3048 = vmatprep.subr.mxu0 0.0
    %3049 = vmatpush1.msra.mxu0 0.0
    %3050 = vmatprep.subr.mxu0 0.0
    %3051 = vmatpush1.msra.mxu0 0.0
    %3052 = vmatprep.subr.mxu0 0.0
    %3053 = vmatpush1.msra.mxu0 0.0
    %3054 = vmatprep.subr.mxu0 0.0
    %3055 = vmatpush1.msra.mxu0 0.0
    %3056 = vmatprep.subr.mxu0 0.0
    %3057 = vmatpush1.msra.mxu0 0.0
    %3058 = vmatprep.subr.mxu0 0.0
    %3059 = vmatpush1.msra.mxu0 0.0
    %3060 = vmatprep.subr.mxu0 0.0
    %3061 = vmatpush1.msra.mxu0 0.0
    %3062 = vmatprep.subr.mxu0 0.0
    %3063 = vmatpush1.msra.mxu0 0.0
    %3064 = vmatprep.subr.mxu0 0.0
    %3065 = vmatpush1.msra.mxu0 0.0
    %3066 = vmatprep.subr.mxu0 0.0
    %3067 = vmatpush1.msra.mxu0 0.0
    %3068 = vmatprep.subr.mxu0 0.0
    %3069 = vmatpush1.msra.mxu0 0.0
    %3070 = vmatprep.subr.mxu0 0.0
    %3071 = vmatpush1.msra.mxu0 0.0
    %3072 = vmatprep.subr.mxu0 0.0
    %3073 = vmatpush1.msra.mxu0 0.0
    %3074 = vmatprep.subr.mxu0 0.0
    %3075 = vmatpush1.msra.mxu0 0.0
    %3076 = vmatprep.subr.mxu0 0.0
    %3077 = vmatpush1.msra.mxu0 0.0
    %3078 = vmatprep.subr.mxu0 0.0
    %3079 = vmatpush1.msra.mxu0 0.0
    %3080 = vmatprep.subr.mxu0 0.0
    %3081 = vmatpush1.msra.mxu0 0.0
    %3082 = vmatprep.subr.mxu0 0.0
    %3083 = vmatpush1.msra.mxu0 0.0
    %3084 = vmatprep.mubr.f32.mxu0 0.0
    %3085 = vmatmul.mubr.f32.gmra.mrb[0].mxu0 %v2914
    %v3086 = vpop.f32.mrb[0].mxu0
    %v3087 = vadd.f32 %v3018, %v3086
    %v3088 = vpop.f32.mrb[0].mxu0
    %3089 = vmatprep.mubr.f32.mxu0 0.0
    %3090 = vmatmul.mubr.f32.gmra.mrb[0].mxu0 %v2917
    %v3091 = vpop.f32.mrb[0].mxu0
    %v3092 = vadd.f32 %v3018, %v3091
    %v3093 = vpop.f32.mrb[0].mxu0
    %3094 = vmatprep.mubr.f32.mxu0 0.0
    %3095 = vmatmul.mubr.f32.gmra.mrb[0].mxu0 %v2920
    %v3096 = vpop.f32.mrb[0].mxu0
    %v3097 = vadd.f32 %v3018, %v3096
    %v3098 = vpop.f32.mrb[0].mxu0
    %3099 = vmatprep.mubr.f32.mxu0 0.0
    %3100 = vmatmul.mubr.f32.gmra.mrb[0].mxu0 %v2923
    %v3101 = vpop.f32.mrb[0].mxu0
    %v3102 = vadd.f32 %v3018, %v3101
    %v3103 = vpop.f32.mrb[0].mxu0
    %3104 = vdwg.mxu0
    %v3106 = vlaneseq
    %v3107 = vshrl.u32 %v3106, 7
    %v3108 = vsub.s32 0, %v3107
    %v3109 = vrot.slane %v2899, %v3108
    %v3112 = vsel %vm591, %v2625, 0
    %v3115 = vsel %vm591, %v2626, 0
    %v3118 = vsel %vm591, %v2627, 0
    %v3121 = vsel %vm591, %v2628, 0
    %3123 = vmatprep.subr.mxu0 0.0
    %3124 = vmatpush1.msra.mxu0 %v2894
    %3125 = vmatprep.subr.mxu0 0.0
    %3126 = vmatpush1.msra.mxu0 %v2895
    %3127 = vmatprep.subr.mxu0 0.0
    %3128 = vmatpush1.msra.mxu0 %v2896
    %3129 = vmatprep.subr.mxu0 0.0
    %3130 = vmatpush1.msra.mxu0 %v2897
    %3131 = vmatprep.subr.mxu0 0.0
    %3132 = vmatpush1.msra.mxu0 0.0
    %3133 = vmatprep.subr.mxu0 0.0
    %3134 = vmatpush1.msra.mxu0 0.0
    %3135 = vmatprep.subr.mxu0 0.0
    %3136 = vmatpush1.msra.mxu0 0.0
    %3137 = vmatprep.subr.mxu0 0.0
    %3138 = vmatpush1.msra.mxu0 0.0
    %3139 = vmatprep.subr.mxu0 0.0
    %3140 = vmatpush1.msra.mxu0 0.0
    %3141 = vmatprep.subr.mxu0 0.0
    %3142 = vmatpush1.msra.mxu0 0.0
    %3143 = vmatprep.subr.mxu0 0.0
    %3144 = vmatpush1.msra.mxu0 0.0
    %3145 = vmatprep.subr.mxu0 0.0
    %3146 = vmatpush1.msra.mxu0 0.0
    %3147 = vmatprep.subr.mxu0 0.0
    %3148 = vmatpush1.msra.mxu0 0.0
    %3149 = vmatprep.subr.mxu0 0.0
    %3150 = vmatpush1.msra.mxu0 0.0
    %3151 = vmatprep.subr.mxu0 0.0
    %3152 = vmatpush1.msra.mxu0 0.0
    %3153 = vmatprep.subr.mxu0 0.0
    %3154 = vmatpush1.msra.mxu0 0.0
    %3155 = vmatprep.subr.mxu0 0.0
    %3156 = vmatpush1.msra.mxu0 0.0
    %3157 = vmatprep.subr.mxu0 0.0
    %3158 = vmatpush1.msra.mxu0 0.0
    %3159 = vmatprep.subr.mxu0 0.0
    %3160 = vmatpush1.msra.mxu0 0.0
    %3161 = vmatprep.subr.mxu0 0.0
    %3162 = vmatpush1.msra.mxu0 0.0
    %3163 = vmatprep.subr.mxu0 0.0
    %3164 = vmatpush1.msra.mxu0 0.0
    %3165 = vmatprep.subr.mxu0 0.0
    %3166 = vmatpush1.msra.mxu0 0.0
    %3167 = vmatprep.subr.mxu0 0.0
    %3168 = vmatpush1.msra.mxu0 0.0
    %3169 = vmatprep.subr.mxu0 0.0
    %3170 = vmatpush1.msra.mxu0 0.0
    %3171 = vmatprep.subr.mxu0 0.0
    %3172 = vmatpush1.msra.mxu0 0.0
    %3173 = vmatprep.subr.mxu0 0.0
    %3174 = vmatpush1.msra.mxu0 0.0
    %3175 = vmatprep.subr.mxu0 0.0
    %3176 = vmatpush1.msra.mxu0 0.0
    %3177 = vmatprep.subr.mxu0 0.0
    %3178 = vmatpush1.msra.mxu0 0.0
    %3179 = vmatprep.subr.mxu0 0.0
    %3180 = vmatpush1.msra.mxu0 0.0
    %3181 = vmatprep.subr.mxu0 0.0
    %3182 = vmatpush1.msra.mxu0 0.0
    %3183 = vmatprep.subr.mxu0 0.0
    %3184 = vmatpush1.msra.mxu0 0.0
    %3185 = vmatprep.subr.mxu0 0.0
    %3186 = vmatpush1.msra.mxu0 0.0
    %3187 = vmatprep.mubr.f32.mxu0 0.0
    %3188 = vmatmul.mubr.f32.gmra.mrb[0].mxu0 %v3112
    %v3189 = vpop.f32.mrb[0].mxu0
    %v3190 = vadd.f32 %v3109, %v3189
    %v3191 = vpop.f32.mrb[0].mxu0
    %3192 = vmatprep.mubr.f32.mxu0 0.0
    %3193 = vmatmul.mubr.f32.gmra.mrb[0].mxu0 %v3115
    %v3194 = vpop.f32.mrb[0].mxu0
    %v3195 = vadd.f32 %v3109, %v3194
    %v3196 = vpop.f32.mrb[0].mxu0
    %3197 = vmatprep.mubr.f32.mxu0 0.0
    %3198 = vmatmul.mubr.f32.gmra.mrb[0].mxu0 %v3118
    %v3199 = vpop.f32.mrb[0].mxu0
    %v3200 = vadd.f32 %v3109, %v3199
    %v3201 = vpop.f32.mrb[0].mxu0
    %3202 = vmatprep.mubr.f32.mxu0 0.0
    %3203 = vmatmul.mubr.f32.gmra.mrb[0].mxu0 %v3121
    %v3204 = vpop.f32.mrb[0].mxu0
    %v3205 = vadd.f32 %v3109, %v3204
    %v3206 = vpop.f32.mrb[0].mxu0
    %3207 = vdwg.mxu0
    %v3208 = vmul.f32 %v3010, %v489
    %v3209 = vmul.f32 %v3011, %v489
    %v3210 = vmul.f32 %v3012, %v489
    %v3211 = vmul.f32 %v3013, %v489
    %v3213 = vsel %vm591, %v3208, 0
    %v3216 = vsel %vm591, %v3209, 0
    %v3219 = vsel %vm591, %v3210, 0
    %v3222 = vsel %vm591, %v3211, 0
    %v3225 = vsel %vm591, %v3087, 0
    %v3228 = vsel %vm591, %v3092, 0
    %v3231 = vsel %vm591, %v3097, 0
    %v3234 = vsel %vm591, %v3102, 0
    %3236 = vmatprep.subr.mxu0 0.0
    %3237 = vmatpush1.xpose.msra.mxu0 %v3225
    %3238 = vmatprep.subr.mxu0 0.0
    %3239 = vmatpush1.xpose.msra.mxu0 %v3228
    %3240 = vmatprep.subr.mxu0 0.0
    %3241 = vmatpush1.xpose.msra.mxu0 %v3231
    %3242 = vmatprep.subr.mxu0 0.0
    %3243 = vmatpush1.xpose.msra.mxu0 %v3234
    %3244 = vmatprep.subr.mxu0 0.0
    %3245 = vmatpush1.xpose.msra.mxu0 0.0
    %3246 = vmatprep.subr.mxu0 0.0
    %3247 = vmatpush1.xpose.msra.mxu0 0.0
    %3248 = vmatprep.subr.mxu0 0.0
    %3249 = vmatpush1.xpose.msra.mxu0 0.0
    %3250 = vmatprep.subr.mxu0 0.0
    %3251 = vmatpush1.xpose.msra.mxu0 0.0
    %3252 = vmatprep.subr.mxu0 0.0
    %3253 = vmatpush1.xpose.msra.mxu0 0.0
    %3254 = vmatprep.subr.mxu0 0.0
    %3255 = vmatpush1.xpose.msra.mxu0 0.0
    %3256 = vmatprep.subr.mxu0 0.0
    %3257 = vmatpush1.xpose.msra.mxu0 0.0
    %3258 = vmatprep.subr.mxu0 0.0
    %3259 = vmatpush1.xpose.msra.mxu0 0.0
    %3260 = vmatprep.subr.mxu0 0.0
    %3261 = vmatpush1.xpose.msra.mxu0 0.0
    %3262 = vmatprep.subr.mxu0 0.0
    %3263 = vmatpush1.xpose.msra.mxu0 0.0
    %3264 = vmatprep.subr.mxu0 0.0
    %3265 = vmatpush1.xpose.msra.mxu0 0.0
    %3266 = vmatprep.subr.mxu0 0.0
    %3267 = vmatpush1.xpose.msra.mxu0 0.0
    %3268 = vmatprep.subr.mxu0 0.0
    %3269 = vmatpush1.xpose.msra.mxu0 0.0
    %3270 = vmatprep.subr.mxu0 0.0
    %3271 = vmatpush1.xpose.msra.mxu0 0.0
    %3272 = vmatprep.subr.mxu0 0.0
    %3273 = vmatpush1.xpose.msra.mxu0 0.0
    %3274 = vmatprep.subr.mxu0 0.0
    %3275 = vmatpush1.xpose.msra.mxu0 0.0
    %3276 = vmatprep.subr.mxu0 0.0
    %3277 = vmatpush1.xpose.msra.mxu0 0.0
    %3278 = vmatprep.subr.mxu0 0.0
    %3279 = vmatpush1.xpose.msra.mxu0 0.0
    %3280 = vmatprep.subr.mxu0 0.0
    %3281 = vmatpush1.xpose.msra.mxu0 0.0
    %3282 = vmatprep.subr.mxu0 0.0
    %3283 = vmatpush1.xpose.msra.mxu0 0.0
    %3284 = vmatprep.subr.mxu0 0.0
    %3285 = vmatpush1.xpose.msra.mxu0 0.0
    %3286 = vmatprep.subr.mxu0 0.0
    %3287 = vmatpush1.xpose.msra.mxu0 0.0
    %3288 = vmatprep.subr.mxu0 0.0
    %3289 = vmatpush1.xpose.msra.mxu0 0.0
    %3290 = vmatprep.subr.mxu0 0.0
    %3291 = vmatpush1.xpose.msra.mxu0 0.0
    %3292 = vmatprep.subr.mxu0 0.0
    %3293 = vmatpush1.xpose.msra.mxu0 0.0
    %3294 = vmatprep.subr.mxu0 0.0
    %3295 = vmatpush1.xpose.msra.mxu0 0.0
    %3296 = vmatprep.subr.mxu0 0.0
    %3297 = vmatpush1.xpose.msra.mxu0 0.0
    %3298 = vmatprep.subr.mxu0 0.0
    %3299 = vmatpush1.xpose.msra.mxu0 0.0
    %3300 = vmatprep.mubr.f32.mxu0 0.0
    %3301 = vmatmul.mubr.f32.gmra.mrb[0].mxu0 %v3213
    %v3302 = vpop.f32.mrb[0].mxu0
    %v3303 = vadd.f32 %v566, %v3302
    %v3304 = vpop.f32.mrb[0].mxu0
    %3305 = vmatprep.mubr.f32.mxu0 0.0
    %3306 = vmatmul.mubr.f32.gmra.mrb[0].mxu0 %v3216
    %v3307 = vpop.f32.mrb[0].mxu0
    %v3308 = vadd.f32 %v567, %v3307
    %v3309 = vpop.f32.mrb[0].mxu0
    %3310 = vmatprep.mubr.f32.mxu0 0.0
    %3311 = vmatmul.mubr.f32.gmra.mrb[0].mxu0 %v3219
    %v3312 = vpop.f32.mrb[0].mxu0
    %v3313 = vadd.f32 %v568, %v3312
    %v3314 = vpop.f32.mrb[0].mxu0
    %3315 = vmatprep.mubr.f32.mxu0 0.0
    %3316 = vmatmul.mubr.f32.gmra.mrb[0].mxu0 %v3222
    %v3317 = vpop.f32.mrb[0].mxu0
    %v3318 = vadd.f32 %v569, %v3317
    %v3319 = vpop.f32.mrb[0].mxu0
    %3320 = vdwg.mxu0
    %v3321 = vsel %vm591, %v3303, -inf
    %3322 = vmax.xlane.f32.xlu0 %v3321
    %v3323 = vpop.xlane.xlu0 %3322
    %v3324 = vsel %vm591, %v3308, -inf
    %3325 = vmax.xlane.f32.xlu0 %v3324
    %v3326 = vpop.xlane.xlu0 %3325
    %v3327 = vsel %vm591, %v3313, -inf
    %3328 = vmax.xlane.f32.xlu0 %v3327
    %v3329 = vpop.xlane.xlu0 %3328
    %v3330 = vsel %vm591, %v3318, -inf
    %3331 = vmax.xlane.f32.xlu0 %v3330
    %v3332 = vpop.xlane.xlu0 %3331
    %v3333 = vsub.f32 %v3303, %v3323
    %v3334 = vsub.f32 %v3308, %v3326
    %v3335 = vsub.f32 %v3313, %v3329
    %v3336 = vsub.f32 %v3318, %v3332
    %v3337 = vmul.f32 %v3333, 1.442695
    %v3338 = vpow.pop %v3337
    %v3339 = vmul.f32 %v3334, 1.442695
    %v3340 = vpow.pop %v3339
    %v3341 = vmul.f32 %v3335, 1.442695
    %v3342 = vpow.pop %v3341
    %v3343 = vmul.f32 %v3336, 1.442695
    %v3344 = vpow.pop %v3343
    %v3345 = vsel %vm591, %v3338, 0.0
    %3346 = vadd.xlane.f32.xlu0 %v3345
    %v3347 = vpop.xlane.xlu0 %3346
    %v3348 = vsel %vm591, %v3340, 0.0
    %3349 = vadd.xlane.f32.xlu0 %v3348
    %v3350 = vpop.xlane.xlu0 %3349
    %v3351 = vsel %vm591, %v3342, 0.0
    %3352 = vadd.xlane.f32.xlu0 %v3351
    %v3353 = vpop.xlane.xlu0 %3352
    %v3354 = vsel %vm591, %v3344, 0.0
    %3355 = vadd.xlane.f32.xlu0 %v3354
    %v3356 = vpop.xlane.xlu0 %3355
    %v3357 = vrcp.pop %v3347
    %v3358 = vrcp.pop %v3350
    %v3359 = vrcp.pop %v3353
    %v3360 = vrcp.pop %v3356
    %v3361 = vmul.f32 %v3338, %v3357
    %v3362 = vmul.f32 %v3340, %v3358
    %v3363 = vmul.f32 %v3342, %v3359
    %v3364 = vmul.f32 %v3344, %v3360
    %v3365 = vmul.f32 %v3190, %v489
    %v3366 = vmul.f32 %v3195, %v489
    %v3367 = vmul.f32 %v3200, %v489
    %v3368 = vmul.f32 %v3205, %v489
    %v3369 = vmul.f32 %v3010, %v494
    %v3370 = vmul.f32 %v3011, %v494
    %v3371 = vmul.f32 %v3012, %v494
    %v3372 = vmul.f32 %v3013, %v494
    %v3374 = vsel %vm591, %v3369, 0
    %v3377 = vsel %vm591, %v3370, 0
    %v3380 = vsel %vm591, %v3371, 0
    %v3383 = vsel %vm591, %v3372, 0
    %3385 = vmatprep.subr.mxu0 0.0
    %3386 = vmatpush1.xpose.msra.mxu0 %v3225
    %3387 = vmatprep.subr.mxu0 0.0
    %3388 = vmatpush1.xpose.msra.mxu0 %v3228
    %3389 = vmatprep.subr.mxu0 0.0
    %3390 = vmatpush1.xpose.msra.mxu0 %v3231
    %3391 = vmatprep.subr.mxu0 0.0
    %3392 = vmatpush1.xpose.msra.mxu0 %v3234
    %3393 = vmatprep.subr.mxu0 0.0
    %3394 = vmatpush1.xpose.msra.mxu0 0.0
    %3395 = vmatprep.subr.mxu0 0.0
    %3396 = vmatpush1.xpose.msra.mxu0 0.0
    %3397 = vmatprep.subr.mxu0 0.0
    %3398 = vmatpush1.xpose.msra.mxu0 0.0
    %3399 = vmatprep.subr.mxu0 0.0
    %3400 = vmatpush1.xpose.msra.mxu0 0.0
    %3401 = vmatprep.subr.mxu0 0.0
    %3402 = vmatpush1.xpose.msra.mxu0 0.0
    %3403 = vmatprep.subr.mxu0 0.0
    %3404 = vmatpush1.xpose.msra.mxu0 0.0
    %3405 = vmatprep.subr.mxu0 0.0
    %3406 = vmatpush1.xpose.msra.mxu0 0.0
    %3407 = vmatprep.subr.mxu0 0.0
    %3408 = vmatpush1.xpose.msra.mxu0 0.0
    %3409 = vmatprep.subr.mxu0 0.0
    %3410 = vmatpush1.xpose.msra.mxu0 0.0
    %3411 = vmatprep.subr.mxu0 0.0
    %3412 = vmatpush1.xpose.msra.mxu0 0.0
    %3413 = vmatprep.subr.mxu0 0.0
    %3414 = vmatpush1.xpose.msra.mxu0 0.0
    %3415 = vmatprep.subr.mxu0 0.0
    %3416 = vmatpush1.xpose.msra.mxu0 0.0
    %3417 = vmatprep.subr.mxu0 0.0
    %3418 = vmatpush1.xpose.msra.mxu0 0.0
    %3419 = vmatprep.subr.mxu0 0.0
    %3420 = vmatpush1.xpose.msra.mxu0 0.0
    %3421 = vmatprep.subr.mxu0 0.0
    %3422 = vmatpush1.xpose.msra.mxu0 0.0
    %3423 = vmatprep.subr.mxu0 0.0
    %3424 = vmatpush1.xpose.msra.mxu0 0.0
    %3425 = vmatprep.subr.mxu0 0.0
    %3426 = vmatpush1.xpose.msra.mxu0 0.0
    %3427 = vmatprep.subr.mxu0 0.0
    %3428 = vmatpush1.xpose.msra.mxu0 0.0
    %3429 = vmatprep.subr.mxu0 0.0
    %3430 = vmatpush1.xpose.msra.mxu0 0.0
    %3431 = vmatprep.subr.mxu0 0.0
    %3432 = vmatpush1.xpose.msra.mxu0 0.0
    %3433 = vmatprep.subr.mxu0 0.0
    %3434 = vmatpush1.xpose.msra.mxu0 0.0
    %3435 = vmatprep.subr.mxu0 0.0
    %3436 = vmatpush1.xpose.msra.mxu0 0.0
    %3437 = vmatprep.subr.mxu0 0.0
    %3438 = vmatpush1.xpose.msra.mxu0 0.0
    %3439 = vmatprep.subr.mxu0 0.0
    %3440 = vmatpush1.xpose.msra.mxu0 0.0
    %3441 = vmatprep.subr.mxu0 0.0
    %3442 = vmatpush1.xpose.msra.mxu0 0.0
    %3443 = vmatprep.subr.mxu0 0.0
    %3444 = vmatpush1.xpose.msra.mxu0 0.0
    %3445 = vmatprep.subr.mxu0 0.0
    %3446 = vmatpush1.xpose.msra.mxu0 0.0
    %3447 = vmatprep.subr.mxu0 0.0
    %3448 = vmatpush1.xpose.msra.mxu0 0.0
    %3449 = vmatprep.mubr.f32.mxu0 0.0
    %3450 = vmatmul.mubr.f32.gmra.mrb[0].mxu0 %v3374
    %v3451 = vpop.f32.mrb[0].mxu0
    %v3452 = vadd.f32 %v566, %v3451
    %v3453 = vpop.f32.mrb[0].mxu0
    %3454 = vmatprep.mubr.f32.mxu0 0.0
    %3455 = vmatmul.mubr.f32.gmra.mrb[0].mxu0 %v3377
    %v3456 = vpop.f32.mrb[0].mxu0
    %v3457 = vadd.f32 %v567, %v3456
    %v3458 = vpop.f32.mrb[0].mxu0
    %3459 = vmatprep.mubr.f32.mxu0 0.0
    %3460 = vmatmul.mubr.f32.gmra.mrb[0].mxu0 %v3380
    %v3461 = vpop.f32.mrb[0].mxu0
    %v3462 = vadd.f32 %v568, %v3461
    %v3463 = vpop.f32.mrb[0].mxu0
    %3464 = vmatprep.mubr.f32.mxu0 0.0
    %3465 = vmatmul.mubr.f32.gmra.mrb[0].mxu0 %v3383
    %v3466 = vpop.f32.mrb[0].mxu0
    %v3467 = vadd.f32 %v569, %v3466
    %v3468 = vpop.f32.mrb[0].mxu0
    %3469 = vdwg.mxu0
    %v3470 = vsel %vm591, %v3452, -inf
    %3471 = vmax.xlane.f32.xlu0 %v3470
    %v3472 = vpop.xlane.xlu0 %3471
    %v3473 = vsel %vm591, %v3457, -inf
    %3474 = vmax.xlane.f32.xlu0 %v3473
    %v3475 = vpop.xlane.xlu0 %3474
    %v3476 = vsel %vm591, %v3462, -inf
    %3477 = vmax.xlane.f32.xlu0 %v3476
    %v3478 = vpop.xlane.xlu0 %3477
    %v3479 = vsel %vm591, %v3467, -inf
    %3480 = vmax.xlane.f32.xlu0 %v3479
    %v3481 = vpop.xlane.xlu0 %3480
    %v3482 = vsub.f32 %v3452, %v3472
    %v3483 = vsub.f32 %v3457, %v3475
    %v3484 = vsub.f32 %v3462, %v3478
    %v3485 = vsub.f32 %v3467, %v3481
    %v3486 = vmul.f32 %v3482, 1.442695
    %v3487 = vpow.pop %v3486
    %v3488 = vmul.f32 %v3483, 1.442695
    %v3489 = vpow.pop %v3488
    %v3490 = vmul.f32 %v3484, 1.442695
    %v3491 = vpow.pop %v3490
    %v3492 = vmul.f32 %v3485, 1.442695
    %v3493 = vpow.pop %v3492
    %v3494 = vsel %vm591, %v3487, 0.0
    %3495 = vadd.xlane.f32.xlu0 %v3494
    %v3496 = vpop.xlane.xlu0 %3495
    %v3497 = vsel %vm591, %v3489, 0.0
    %3498 = vadd.xlane.f32.xlu0 %v3497
    %v3499 = vpop.xlane.xlu0 %3498
    %v3500 = vsel %vm591, %v3491, 0.0
    %3501 = vadd.xlane.f32.xlu0 %v3500
    %v3502 = vpop.xlane.xlu0 %3501
    %v3503 = vsel %vm591, %v3493, 0.0
    %3504 = vadd.xlane.f32.xlu0 %v3503
    %v3505 = vpop.xlane.xlu0 %3504
    %v3506 = vrcp.pop %v3496
    %v3507 = vrcp.pop %v3499
    %v3508 = vrcp.pop %v3502
    %v3509 = vrcp.pop %v3505
    %v3510 = vmul.f32 %v3487, %v3506
    %v3511 = vmul.f32 %v3489, %v3507
    %v3512 = vmul.f32 %v3491, %v3508
    %v3513 = vmul.f32 %v3493, %v3509
    %v3514 = vmul.f32 %v3190, %v494
    %v3515 = vmul.f32 %v3195, %v494
    %v3516 = vmul.f32 %v3200, %v494
    %v3517 = vmul.f32 %v3205, %v494
    %v3519 = vsel %vm591, %v3510, 0
    %v3522 = vsel %vm591, %v3511, 0
    %v3525 = vsel %vm591, %v3512, 0
    %v3528 = vsel %vm591, %v3513, 0
    %3530 = vmatprep.subr.mxu0 0.0
    %3531 = vmatpush1.msra.mxu0 %v3514
    %3532 = vmatprep.subr.mxu0 0.0
    %3533 = vmatpush1.msra.mxu0 %v3515
    %3534 = vmatprep.subr.mxu0 0.0
    %3535 = vmatpush1.msra.mxu0 %v3516
    %3536 = vmatprep.subr.mxu0 0.0
    %3537 = vmatpush1.msra.mxu0 %v3517
    %3538 = vmatprep.subr.mxu0 0.0
    %3539 = vmatpush1.msra.mxu0 0.0
    %3540 = vmatprep.subr.mxu0 0.0
    %3541 = vmatpush1.msra.mxu0 0.0
    %3542 = vmatprep.subr.mxu0 0.0
    %3543 = vmatpush1.msra.mxu0 0.0
    %3544 = vmatprep.subr.mxu0 0.0
    %3545 = vmatpush1.msra.mxu0 0.0
    %3546 = vmatprep.subr.mxu0 0.0
    %3547 = vmatpush1.msra.mxu0 0.0
    %3548 = vmatprep.subr.mxu0 0.0
    %3549 = vmatpush1.msra.mxu0 0.0
    %3550 = vmatprep.subr.mxu0 0.0
    %3551 = vmatpush1.msra.mxu0 0.0
    %3552 = vmatprep.subr.mxu0 0.0
    %3553 = vmatpush1.msra.mxu0 0.0
    %3554 = vmatprep.subr.mxu0 0.0
    %3555 = vmatpush1.msra.mxu0 0.0
    %3556 = vmatprep.subr.mxu0 0.0
    %3557 = vmatpush1.msra.mxu0 0.0
    %3558 = vmatprep.subr.mxu0 0.0
    %3559 = vmatpush1.msra.mxu0 0.0
    %3560 = vmatprep.subr.mxu0 0.0
    %3561 = vmatpush1.msra.mxu0 0.0
    %3562 = vmatprep.subr.mxu0 0.0
    %3563 = vmatpush1.msra.mxu0 0.0
    %3564 = vmatprep.subr.mxu0 0.0
    %3565 = vmatpush1.msra.mxu0 0.0
    %3566 = vmatprep.subr.mxu0 0.0
    %3567 = vmatpush1.msra.mxu0 0.0
    %3568 = vmatprep.subr.mxu0 0.0
    %3569 = vmatpush1.msra.mxu0 0.0
    %3570 = vmatprep.subr.mxu0 0.0
    %3571 = vmatpush1.msra.mxu0 0.0
    %3572 = vmatprep.subr.mxu0 0.0
    %3573 = vmatpush1.msra.mxu0 0.0
    %3574 = vmatprep.subr.mxu0 0.0
    %3575 = vmatpush1.msra.mxu0 0.0
    %3576 = vmatprep.subr.mxu0 0.0
    %3577 = vmatpush1.msra.mxu0 0.0
    %3578 = vmatprep.subr.mxu0 0.0
    %3579 = vmatpush1.msra.mxu0 0.0
    %3580 = vmatprep.subr.mxu0 0.0
    %3581 = vmatpush1.msra.mxu0 0.0
    %3582 = vmatprep.subr.mxu0 0.0
    %3583 = vmatpush1.msra.mxu0 0.0
    %3584 = vmatprep.subr.mxu0 0.0
    %3585 = vmatpush1.msra.mxu0 0.0
    %3586 = vmatprep.subr.mxu0 0.0
    %3587 = vmatpush1.msra.mxu0 0.0
    %3588 = vmatprep.subr.mxu0 0.0
    %3589 = vmatpush1.msra.mxu0 0.0
    %3590 = vmatprep.subr.mxu0 0.0
    %3591 = vmatpush1.msra.mxu0 0.0
    %3592 = vmatprep.subr.mxu0 0.0
    %3593 = vmatpush1.msra.mxu0 0.0
    %3594 = vmatprep.mubr.f32.mxu0 0.0
    %3595 = vmatmul.mubr.f32.gmra.mrb[0].mxu0 %v3519
    %v3596 = vpop.f32.mrb[0].mxu0
    %v3597 = vadd.f32 0.0, %v3596
    %v3598 = vpop.f32.mrb[0].mxu0
    %3599 = vmatprep.mubr.f32.mxu0 0.0
    %3600 = vmatmul.mubr.f32.gmra.mrb[0].mxu0 %v3522
    %v3601 = vpop.f32.mrb[0].mxu0
    %v3602 = vadd.f32 0.0, %v3601
    %v3603 = vpop.f32.mrb[0].mxu0
    %3604 = vmatprep.mubr.f32.mxu0 0.0
    %3605 = vmatmul.mubr.f32.gmra.mrb[0].mxu0 %v3525
    %v3606 = vpop.f32.mrb[0].mxu0
    %v3607 = vadd.f32 0.0, %v3606
    %v3608 = vpop.f32.mrb[0].mxu0
    %3609 = vmatprep.mubr.f32.mxu0 0.0
    %3610 = vmatmul.mubr.f32.gmra.mrb[0].mxu0 %v3528
    %v3611 = vpop.f32.mrb[0].mxu0
    %v3612 = vadd.f32 0.0, %v3611
    %v3613 = vpop.f32.mrb[0].mxu0
    %3614 = vdwg.mxu0
    %v3616 = vsel %vm591, %v3361, 0
    %v3619 = vsel %vm591, %v3362, 0
    %v3622 = vsel %vm591, %v3363, 0
    %v3625 = vsel %vm591, %v3364, 0
    %3627 = vmatprep.subr.mxu0 0.0
    %3628 = vmatpush1.msra.mxu0 %v3365
    %3629 = vmatprep.subr.mxu0 0.0
    %3630 = vmatpush1.msra.mxu0 %v3366
    %3631 = vmatprep.subr.mxu0 0.0
    %3632 = vmatpush1.msra.mxu0 %v3367
    %3633 = vmatprep.subr.mxu0 0.0
    %3634 = vmatpush1.msra.mxu0 %v3368
    %3635 = vmatprep.subr.mxu0 0.0
    %3636 = vmatpush1.msra.mxu0 0.0
    %3637 = vmatprep.subr.mxu0 0.0
    %3638 = vmatpush1.msra.mxu0 0.0
    %3639 = vmatprep.subr.mxu0 0.0
    %3640 = vmatpush1.msra.mxu0 0.0
    %3641 = vmatprep.subr.mxu0 0.0
    %3642 = vmatpush1.msra.mxu0 0.0
    %3643 = vmatprep.subr.mxu0 0.0
    %3644 = vmatpush1.msra.mxu0 0.0
    %3645 = vmatprep.subr.mxu0 0.0
    %3646 = vmatpush1.msra.mxu0 0.0
    %3647 = vmatprep.subr.mxu0 0.0
    %3648 = vmatpush1.msra.mxu0 0.0
    %3649 = vmatprep.subr.mxu0 0.0
    %3650 = vmatpush1.msra.mxu0 0.0
    %3651 = vmatprep.subr.mxu0 0.0
    %3652 = vmatpush1.msra.mxu0 0.0
    %3653 = vmatprep.subr.mxu0 0.0
    %3654 = vmatpush1.msra.mxu0 0.0
    %3655 = vmatprep.subr.mxu0 0.0
    %3656 = vmatpush1.msra.mxu0 0.0
    %3657 = vmatprep.subr.mxu0 0.0
    %3658 = vmatpush1.msra.mxu0 0.0
    %3659 = vmatprep.subr.mxu0 0.0
    %3660 = vmatpush1.msra.mxu0 0.0
    %3661 = vmatprep.subr.mxu0 0.0
    %3662 = vmatpush1.msra.mxu0 0.0
    %3663 = vmatprep.subr.mxu0 0.0
    %3664 = vmatpush1.msra.mxu0 0.0
    %3665 = vmatprep.subr.mxu0 0.0
    %3666 = vmatpush1.msra.mxu0 0.0
    %3667 = vmatprep.subr.mxu0 0.0
    %3668 = vmatpush1.msra.mxu0 0.0
    %3669 = vmatprep.subr.mxu0 0.0
    %3670 = vmatpush1.msra.mxu0 0.0
    %3671 = vmatprep.subr.mxu0 0.0
    %3672 = vmatpush1.msra.mxu0 0.0
    %3673 = vmatprep.subr.mxu0 0.0
    %3674 = vmatpush1.msra.mxu0 0.0
    %3675 = vmatprep.subr.mxu0 0.0
    %3676 = vmatpush1.msra.mxu0 0.0
    %3677 = vmatprep.subr.mxu0 0.0
    %3678 = vmatpush1.msra.mxu0 0.0
    %3679 = vmatprep.subr.mxu0 0.0
    %3680 = vmatpush1.msra.mxu0 0.0
    %3681 = vmatprep.subr.mxu0 0.0
    %3682 = vmatpush1.msra.mxu0 0.0
    %3683 = vmatprep.subr.mxu0 0.0
    %3684 = vmatpush1.msra.mxu0 0.0
    %3685 = vmatprep.subr.mxu0 0.0
    %3686 = vmatpush1.msra.mxu0 0.0
    %3687 = vmatprep.subr.mxu0 0.0
    %3688 = vmatpush1.msra.mxu0 0.0
    %3689 = vmatprep.subr.mxu0 0.0
    %3690 = vmatpush1.msra.mxu0 0.0
    %3691 = vmatprep.mubr.f32.mxu0 0.0
    %3692 = vmatmul.mubr.f32.gmra.mrb[0].mxu0 %v3616
    %v3693 = vpop.f32.mrb[0].mxu0
    %v3694 = vadd.f32 %v3597, %v3693
    %v3695 = vpop.f32.mrb[0].mxu0
    %3696 = vmatprep.mubr.f32.mxu0 0.0
    %3697 = vmatmul.mubr.f32.gmra.mrb[0].mxu0 %v3619
    %v3698 = vpop.f32.mrb[0].mxu0
    %v3699 = vadd.f32 %v3602, %v3698
    %v3700 = vpop.f32.mrb[0].mxu0
    %3701 = vmatprep.mubr.f32.mxu0 0.0
    %3702 = vmatmul.mubr.f32.gmra.mrb[0].mxu0 %v3622
    %v3703 = vpop.f32.mrb[0].mxu0
    %v3704 = vadd.f32 %v3607, %v3703
    %v3705 = vpop.f32.mrb[0].mxu0
    %3706 = vmatprep.mubr.f32.mxu0 0.0
    %3707 = vmatmul.mubr.f32.gmra.mrb[0].mxu0 %v3625
    %v3708 = vpop.f32.mrb[0].mxu0
    %v3709 = vadd.f32 %v3612, %v3708
    %v3710 = vpop.f32.mrb[0].mxu0
    %3711 = vdwg.mxu0
    %v3712 = vmul.f32 %v3010, %v499
    %v3713 = vmul.f32 %v3011, %v499
    %v3714 = vmul.f32 %v3012, %v499
    %v3715 = vmul.f32 %v3013, %v499
    %v3717 = vsel %vm591, %v3712, 0
    %v3720 = vsel %vm591, %v3713, 0
    %v3723 = vsel %vm591, %v3714, 0
    %v3726 = vsel %vm591, %v3715, 0
    %3728 = vmatprep.subr.mxu0 0.0
    %3729 = vmatpush1.xpose.msra.mxu0 %v3225
    %3730 = vmatprep.subr.mxu0 0.0
    %3731 = vmatpush1.xpose.msra.mxu0 %v3228
    %3732 = vmatprep.subr.mxu0 0.0
    %3733 = vmatpush1.xpose.msra.mxu0 %v3231
    %3734 = vmatprep.subr.mxu0 0.0
    %3735 = vmatpush1.xpose.msra.mxu0 %v3234
    %3736 = vmatprep.subr.mxu0 0.0
    %3737 = vmatpush1.xpose.msra.mxu0 0.0
    %3738 = vmatprep.subr.mxu0 0.0
    %3739 = vmatpush1.xpose.msra.mxu0 0.0
    %3740 = vmatprep.subr.mxu0 0.0
    %3741 = vmatpush1.xpose.msra.mxu0 0.0
    %3742 = vmatprep.subr.mxu0 0.0
    %3743 = vmatpush1.xpose.msra.mxu0 0.0
    %3744 = vmatprep.subr.mxu0 0.0
    %3745 = vmatpush1.xpose.msra.mxu0 0.0
    %3746 = vmatprep.subr.mxu0 0.0
    %3747 = vmatpush1.xpose.msra.mxu0 0.0
    %3748 = vmatprep.subr.mxu0 0.0
    %3749 = vmatpush1.xpose.msra.mxu0 0.0
    %3750 = vmatprep.subr.mxu0 0.0
    %3751 = vmatpush1.xpose.msra.mxu0 0.0
    %3752 = vmatprep.subr.mxu0 0.0
    %3753 = vmatpush1.xpose.msra.mxu0 0.0
    %3754 = vmatprep.subr.mxu0 0.0
    %3755 = vmatpush1.xpose.msra.mxu0 0.0
    %3756 = vmatprep.subr.mxu0 0.0
    %3757 = vmatpush1.xpose.msra.mxu0 0.0
    %3758 = vmatprep.subr.mxu0 0.0
    %3759 = vmatpush1.xpose.msra.mxu0 0.0
    %3760 = vmatprep.subr.mxu0 0.0
    %3761 = vmatpush1.xpose.msra.mxu0 0.0
    %3762 = vmatprep.subr.mxu0 0.0
    %3763 = vmatpush1.xpose.msra.mxu0 0.0
    %3764 = vmatprep.subr.mxu0 0.0
    %3765 = vmatpush1.xpose.msra.mxu0 0.0
    %3766 = vmatprep.subr.mxu0 0.0
    %3767 = vmatpush1.xpose.msra.mxu0 0.0
    %3768 = vmatprep.subr.mxu0 0.0
    %3769 = vmatpush1.xpose.msra.mxu0 0.0
    %3770 = vmatprep.subr.mxu0 0.0
    %3771 = vmatpush1.xpose.msra.mxu0 0.0
    %3772 = vmatprep.subr.mxu0 0.0
    %3773 = vmatpush1.xpose.msra.mxu0 0.0
    %3774 = vmatprep.subr.mxu0 0.0
    %3775 = vmatpush1.xpose.msra.mxu0 0.0
    %3776 = vmatprep.subr.mxu0 0.0
    %3777 = vmatpush1.xpose.msra.mxu0 0.0
    %3778 = vmatprep.subr.mxu0 0.0
    %3779 = vmatpush1.xpose.msra.mxu0 0.0
    %3780 = vmatprep.subr.mxu0 0.0
    %3781 = vmatpush1.xpose.msra.mxu0 0.0
    %3782 = vmatprep.subr.mxu0 0.0
    %3783 = vmatpush1.xpose.msra.mxu0 0.0
    %3784 = vmatprep.subr.mxu0 0.0
    %3785 = vmatpush1.xpose.msra.mxu0 0.0
    %3786 = vmatprep.subr.mxu0 0.0
    %3787 = vmatpush1.xpose.msra.mxu0 0.0
    %3788 = vmatprep.subr.mxu0 0.0
    %3789 = vmatpush1.xpose.msra.mxu0 0.0
    %3790 = vmatprep.subr.mxu0 0.0
    %3791 = vmatpush1.xpose.msra.mxu0 0.0
    %3792 = vmatprep.mubr.f32.mxu0 0.0
    %3793 = vmatmul.mubr.f32.gmra.mrb[0].mxu0 %v3717
    %v3794 = vpop.f32.mrb[0].mxu0
    %v3795 = vadd.f32 %v566, %v3794
    %v3796 = vpop.f32.mrb[0].mxu0
    %3797 = vmatprep.mubr.f32.mxu0 0.0
    %3798 = vmatmul.mubr.f32.gmra.mrb[0].mxu0 %v3720
    %v3799 = vpop.f32.mrb[0].mxu0
    %v3800 = vadd.f32 %v567, %v3799
    %v3801 = vpop.f32.mrb[0].mxu0
    %3802 = vmatprep.mubr.f32.mxu0 0.0
    %3803 = vmatmul.mubr.f32.gmra.mrb[0].mxu0 %v3723
    %v3804 = vpop.f32.mrb[0].mxu0
    %v3805 = vadd.f32 %v568, %v3804
    %v3806 = vpop.f32.mrb[0].mxu0
    %3807 = vmatprep.mubr.f32.mxu0 0.0
    %3808 = vmatmul.mubr.f32.gmra.mrb[0].mxu0 %v3726
    %v3809 = vpop.f32.mrb[0].mxu0
    %v3810 = vadd.f32 %v569, %v3809
    %v3811 = vpop.f32.mrb[0].mxu0
    %3812 = vdwg.mxu0
    %v3813 = vsel %vm591, %v3795, -inf
    %3814 = vmax.xlane.f32.xlu0 %v3813
    %v3815 = vpop.xlane.xlu0 %3814
    %v3816 = vsel %vm591, %v3800, -inf
    %3817 = vmax.xlane.f32.xlu0 %v3816
    %v3818 = vpop.xlane.xlu0 %3817
    %v3819 = vsel %vm591, %v3805, -inf
    %3820 = vmax.xlane.f32.xlu0 %v3819
    %v3821 = vpop.xlane.xlu0 %3820
    %v3822 = vsel %vm591, %v3810, -inf
    %3823 = vmax.xlane.f32.xlu0 %v3822
    %v3824 = vpop.xlane.xlu0 %3823
    %v3825 = vsub.f32 %v3795, %v3815
    %v3826 = vsub.f32 %v3800, %v3818
    %v3827 = vsub.f32 %v3805, %v3821
    %v3828 = vsub.f32 %v3810, %v3824
    %v3829 = vmul.f32 %v3825, 1.442695
    %v3830 = vpow.pop %v3829
    %v3831 = vmul.f32 %v3826, 1.442695
    %v3832 = vpow.pop %v3831
    %v3833 = vmul.f32 %v3827, 1.442695
    %v3834 = vpow.pop %v3833
    %v3835 = vmul.f32 %v3828, 1.442695
    %v3836 = vpow.pop %v3835
    %v3837 = vsel %vm591, %v3830, 0.0
    %3838 = vadd.xlane.f32.xlu0 %v3837
    %v3839 = vpop.xlane.xlu0 %3838
    %v3840 = vsel %vm591, %v3832, 0.0
    %3841 = vadd.xlane.f32.xlu0 %v3840
    %v3842 = vpop.xlane.xlu0 %3841
    %v3843 = vsel %vm591, %v3834, 0.0
    %3844 = vadd.xlane.f32.xlu0 %v3843
    %v3845 = vpop.xlane.xlu0 %3844
    %v3846 = vsel %vm591, %v3836, 0.0
    %3847 = vadd.xlane.f32.xlu0 %v3846
    %v3848 = vpop.xlane.xlu0 %3847
    %v3849 = vrcp.pop %v3839
    %v3850 = vrcp.pop %v3842
    %v3851 = vrcp.pop %v3845
    %v3852 = vrcp.pop %v3848
    %v3853 = vmul.f32 %v3830, %v3849
    %v3854 = vmul.f32 %v3832, %v3850
    %v3855 = vmul.f32 %v3834, %v3851
    %v3856 = vmul.f32 %v3836, %v3852
    %v3857 = vmul.f32 %v3190, %v499
    %v3858 = vmul.f32 %v3195, %v499
    %v3859 = vmul.f32 %v3200, %v499
    %v3860 = vmul.f32 %v3205, %v499
    %v3862 = vsel %vm591, %v3853, 0
    %v3865 = vsel %vm591, %v3854, 0
    %v3868 = vsel %vm591, %v3855, 0
    %v3871 = vsel %vm591, %v3856, 0
    %3873 = vmatprep.subr.mxu0 0.0
    %3874 = vmatpush1.msra.mxu0 %v3857
    %3875 = vmatprep.subr.mxu0 0.0
    %3876 = vmatpush1.msra.mxu0 %v3858
    %3877 = vmatprep.subr.mxu0 0.0
    %3878 = vmatpush1.msra.mxu0 %v3859
    %3879 = vmatprep.subr.mxu0 0.0
    %3880 = vmatpush1.msra.mxu0 %v3860
    %3881 = vmatprep.subr.mxu0 0.0
    %3882 = vmatpush1.msra.mxu0 0.0
    %3883 = vmatprep.subr.mxu0 0.0
    %3884 = vmatpush1.msra.mxu0 0.0
    %3885 = vmatprep.subr.mxu0 0.0
    %3886 = vmatpush1.msra.mxu0 0.0
    %3887 = vmatprep.subr.mxu0 0.0
    %3888 = vmatpush1.msra.mxu0 0.0
    %3889 = vmatprep.subr.mxu0 0.0
    %3890 = vmatpush1.msra.mxu0 0.0
    %3891 = vmatprep.subr.mxu0 0.0
    %3892 = vmatpush1.msra.mxu0 0.0
    %3893 = vmatprep.subr.mxu0 0.0
    %3894 = vmatpush1.msra.mxu0 0.0
    %3895 = vmatprep.subr.mxu0 0.0
    %3896 = vmatpush1.msra.mxu0 0.0
    %3897 = vmatprep.subr.mxu0 0.0
    %3898 = vmatpush1.msra.mxu0 0.0
    %3899 = vmatprep.subr.mxu0 0.0
    %3900 = vmatpush1.msra.mxu0 0.0
    %3901 = vmatprep.subr.mxu0 0.0
    %3902 = vmatpush1.msra.mxu0 0.0
    %3903 = vmatprep.subr.mxu0 0.0
    %3904 = vmatpush1.msra.mxu0 0.0
    %3905 = vmatprep.subr.mxu0 0.0
    %3906 = vmatpush1.msra.mxu0 0.0
    %3907 = vmatprep.subr.mxu0 0.0
    %3908 = vmatpush1.msra.mxu0 0.0
    %3909 = vmatprep.subr.mxu0 0.0
    %3910 = vmatpush1.msra.mxu0 0.0
    %3911 = vmatprep.subr.mxu0 0.0
    %3912 = vmatpush1.msra.mxu0 0.0
    %3913 = vmatprep.subr.mxu0 0.0
    %3914 = vmatpush1.msra.mxu0 0.0
    %3915 = vmatprep.subr.mxu0 0.0
    %3916 = vmatpush1.msra.mxu0 0.0
    %3917 = vmatprep.subr.mxu0 0.0
    %3918 = vmatpush1.msra.mxu0 0.0
    %3919 = vmatprep.subr.mxu0 0.0
    %3920 = vmatpush1.msra.mxu0 0.0
    %3921 = vmatprep.subr.mxu0 0.0
    %3922 = vmatpush1.msra.mxu0 0.0
    %3923 = vmatprep.subr.mxu0 0.0
    %3924 = vmatpush1.msra.mxu0 0.0
    %3925 = vmatprep.subr.mxu0 0.0
    %3926 = vmatpush1.msra.mxu0 0.0
    %3927 = vmatprep.subr.mxu0 0.0
    %3928 = vmatpush1.msra.mxu0 0.0
    %3929 = vmatprep.subr.mxu0 0.0
    %3930 = vmatpush1.msra.mxu0 0.0
    %3931 = vmatprep.subr.mxu0 0.0
    %3932 = vmatpush1.msra.mxu0 0.0
    %3933 = vmatprep.subr.mxu0 0.0
    %3934 = vmatpush1.msra.mxu0 0.0
    %3935 = vmatprep.subr.mxu0 0.0
    %3936 = vmatpush1.msra.mxu0 0.0
    %3937 = vmatprep.mubr.f32.mxu0 0.0
    %3938 = vmatmul.mubr.f32.gmra.mrb[0].mxu0 %v3862
    %v3939 = vpop.f32.mrb[0].mxu0
    %v3940 = vadd.f32 0.0, %v3939
    %v3941 = vpop.f32.mrb[0].mxu0
    %3942 = vmatprep.mubr.f32.mxu0 0.0
    %3943 = vmatmul.mubr.f32.gmra.mrb[0].mxu0 %v3865
    %v3944 = vpop.f32.mrb[0].mxu0
    %v3945 = vadd.f32 0.0, %v3944
    %v3946 = vpop.f32.mrb[0].mxu0
    %3947 = vmatprep.mubr.f32.mxu0 0.0
    %3948 = vmatmul.mubr.f32.gmra.mrb[0].mxu0 %v3868
    %v3949 = vpop.f32.mrb[0].mxu0
    %v3950 = vadd.f32 0.0, %v3949
    %v3951 = vpop.f32.mrb[0].mxu0
    %3952 = vmatprep.mubr.f32.mxu0 0.0
    %3953 = vmatmul.mubr.f32.gmra.mrb[0].mxu0 %v3871
    %v3954 = vpop.f32.mrb[0].mxu0
    %v3955 = vadd.f32 0.0, %v3954
    %v3956 = vpop.f32.mrb[0].mxu0
    %3957 = vdwg.mxu0
    %v3958 = vadd.f32 %v3694, %v3940
    %v3959 = vadd.f32 %v3699, %v3945
    %v3960 = vadd.f32 %v3704, %v3950
    %v3961 = vadd.f32 %v3709, %v3955
    %v3962 = vmul.f32 %v3010, %v504
    %v3963 = vmul.f32 %v3011, %v504
    %v3964 = vmul.f32 %v3012, %v504
    %v3965 = vmul.f32 %v3013, %v504
    %v3967 = vsel %vm591, %v3962, 0
    %v3970 = vsel %vm591, %v3963, 0
    %v3973 = vsel %vm591, %v3964, 0
    %v3976 = vsel %vm591, %v3965, 0
    %3978 = vmatprep.subr.mxu0 0.0
    %3979 = vmatpush1.xpose.msra.mxu0 %v3225
    %3980 = vmatprep.subr.mxu0 0.0
    %3981 = vmatpush1.xpose.msra.mxu0 %v3228
    %3982 = vmatprep.subr.mxu0 0.0
    %3983 = vmatpush1.xpose.msra.mxu0 %v3231
    %3984 = vmatprep.subr.mxu0 0.0
    %3985 = vmatpush1.xpose.msra.mxu0 %v3234
    %3986 = vmatprep.subr.mxu0 0.0
    %3987 = vmatpush1.xpose.msra.mxu0 0.0
    %3988 = vmatprep.subr.mxu0 0.0
    %3989 = vmatpush1.xpose.msra.mxu0 0.0
    %3990 = vmatprep.subr.mxu0 0.0
    %3991 = vmatpush1.xpose.msra.mxu0 0.0
    %3992 = vmatprep.subr.mxu0 0.0
    %3993 = vmatpush1.xpose.msra.mxu0 0.0
    %3994 = vmatprep.subr.mxu0 0.0
    %3995 = vmatpush1.xpose.msra.mxu0 0.0
    %3996 = vmatprep.subr.mxu0 0.0
    %3997 = vmatpush1.xpose.msra.mxu0 0.0
    %3998 = vmatprep.subr.mxu0 0.0
    %3999 = vmatpush1.xpose.msra.mxu0 0.0
    %4000 = vmatprep.subr.mxu0 0.0
    %4001 = vmatpush1.xpose.msra.mxu0 0.0
    %4002 = vmatprep.subr.mxu0 0.0
    %4003 = vmatpush1.xpose.msra.mxu0 0.0
    %4004 = vmatprep.subr.mxu0 0.0
    %4005 = vmatpush1.xpose.msra.mxu0 0.0
    %4006 = vmatprep.subr.mxu0 0.0
    %4007 = vmatpush1.xpose.msra.mxu0 0.0
    %4008 = vmatprep.subr.mxu0 0.0
    %4009 = vmatpush1.xpose.msra.mxu0 0.0
    %4010 = vmatprep.subr.mxu0 0.0
    %4011 = vmatpush1.xpose.msra.mxu0 0.0
    %4012 = vmatprep.subr.mxu0 0.0
    %4013 = vmatpush1.xpose.msra.mxu0 0.0
    %4014 = vmatprep.subr.mxu0 0.0
    %4015 = vmatpush1.xpose.msra.mxu0 0.0
    %4016 = vmatprep.subr.mxu0 0.0
    %4017 = vmatpush1.xpose.msra.mxu0 0.0
    %4018 = vmatprep.subr.mxu0 0.0
    %4019 = vmatpush1.xpose.msra.mxu0 0.0
    %4020 = vmatprep.subr.mxu0 0.0
    %4021 = vmatpush1.xpose.msra.mxu0 0.0
    %4022 = vmatprep.subr.mxu0 0.0
    %4023 = vmatpush1.xpose.msra.mxu0 0.0
    %4024 = vmatprep.subr.mxu0 0.0
    %4025 = vmatpush1.xpose.msra.mxu0 0.0
    %4026 = vmatprep.subr.mxu0 0.0
    %4027 = vmatpush1.xpose.msra.mxu0 0.0
    %4028 = vmatprep.subr.mxu0 0.0
    %4029 = vmatpush1.xpose.msra.mxu0 0.0
    %4030 = vmatprep.subr.mxu0 0.0
    %4031 = vmatpush1.xpose.msra.mxu0 0.0
    %4032 = vmatprep.subr.mxu0 0.0
    %4033 = vmatpush1.xpose.msra.mxu0 0.0
    %4034 = vmatprep.subr.mxu0 0.0
    %4035 = vmatpush1.xpose.msra.mxu0 0.0
    %4036 = vmatprep.subr.mxu0 0.0
    %4037 = vmatpush1.xpose.msra.mxu0 0.0
    %4038 = vmatprep.subr.mxu0 0.0
    %4039 = vmatpush1.xpose.msra.mxu0 0.0
    %4040 = vmatprep.subr.mxu0 0.0
    %4041 = vmatpush1.xpose.msra.mxu0 0.0
    %4042 = vmatprep.mubr.f32.mxu0 0.0
    %4043 = vmatmul.mubr.f32.gmra.mrb[0].mxu0 %v3967
    %v4044 = vpop.f32.mrb[0].mxu0
    %v4045 = vadd.f32 %v566, %v4044
    %v4046 = vpop.f32.mrb[0].mxu0
    %4047 = vmatprep.mubr.f32.mxu0 0.0
    %4048 = vmatmul.mubr.f32.gmra.mrb[0].mxu0 %v3970
    %v4049 = vpop.f32.mrb[0].mxu0
    %v4050 = vadd.f32 %v567, %v4049
    %v4051 = vpop.f32.mrb[0].mxu0
    %4052 = vmatprep.mubr.f32.mxu0 0.0
    %4053 = vmatmul.mubr.f32.gmra.mrb[0].mxu0 %v3973
    %v4054 = vpop.f32.mrb[0].mxu0
    %v4055 = vadd.f32 %v568, %v4054
    %v4056 = vpop.f32.mrb[0].mxu0
    %4057 = vmatprep.mubr.f32.mxu0 0.0
    %4058 = vmatmul.mubr.f32.gmra.mrb[0].mxu0 %v3976
    %v4059 = vpop.f32.mrb[0].mxu0
    %v4060 = vadd.f32 %v569, %v4059
    %v4061 = vpop.f32.mrb[0].mxu0
    %4062 = vdwg.mxu0
    %v4063 = vsel %vm591, %v4045, -inf
    %4064 = vmax.xlane.f32.xlu0 %v4063
    %v4065 = vpop.xlane.xlu0 %4064
    %v4066 = vsel %vm591, %v4050, -inf
    %4067 = vmax.xlane.f32.xlu0 %v4066
    %v4068 = vpop.xlane.xlu0 %4067
    %v4069 = vsel %vm591, %v4055, -inf
    %4070 = vmax.xlane.f32.xlu0 %v4069
    %v4071 = vpop.xlane.xlu0 %4070
    %v4072 = vsel %vm591, %v4060, -inf
    %4073 = vmax.xlane.f32.xlu0 %v4072
    %v4074 = vpop.xlane.xlu0 %4073
    %v4075 = vsub.f32 %v4045, %v4065
    %v4076 = vsub.f32 %v4050, %v4068
    %v4077 = vsub.f32 %v4055, %v4071
    %v4078 = vsub.f32 %v4060, %v4074
    %v4079 = vmul.f32 %v4075, 1.442695
    %v4080 = vpow.pop %v4079
    %v4081 = vmul.f32 %v4076, 1.442695
    %v4082 = vpow.pop %v4081
    %v4083 = vmul.f32 %v4077, 1.442695
    %v4084 = vpow.pop %v4083
    %v4085 = vmul.f32 %v4078, 1.442695
    %v4086 = vpow.pop %v4085
    %v4087 = vsel %vm591, %v4080, 0.0
    %4088 = vadd.xlane.f32.xlu0 %v4087
    %v4089 = vpop.xlane.xlu0 %4088
    %v4090 = vsel %vm591, %v4082, 0.0
    %4091 = vadd.xlane.f32.xlu0 %v4090
    %v4092 = vpop.xlane.xlu0 %4091
    %v4093 = vsel %vm591, %v4084, 0.0
    %4094 = vadd.xlane.f32.xlu0 %v4093
    %v4095 = vpop.xlane.xlu0 %4094
    %v4096 = vsel %vm591, %v4086, 0.0
    %4097 = vadd.xlane.f32.xlu0 %v4096
    %v4098 = vpop.xlane.xlu0 %4097
    %v4099 = vrcp.pop %v4089
    %v4100 = vrcp.pop %v4092
    %v4101 = vrcp.pop %v4095
    %v4102 = vrcp.pop %v4098
    %v4103 = vmul.f32 %v4080, %v4099
    %v4104 = vmul.f32 %v4082, %v4100
    %v4105 = vmul.f32 %v4084, %v4101
    %v4106 = vmul.f32 %v4086, %v4102
    %v4107 = vmul.f32 %v3190, %v504
    %v4108 = vmul.f32 %v3195, %v504
    %v4109 = vmul.f32 %v3200, %v504
    %v4110 = vmul.f32 %v3205, %v504
    %v4112 = vsel %vm591, %v4103, 0
    %v4115 = vsel %vm591, %v4104, 0
    %v4118 = vsel %vm591, %v4105, 0
    %v4121 = vsel %vm591, %v4106, 0
    %4123 = vmatprep.subr.mxu0 0.0
    %4124 = vmatpush1.msra.mxu0 %v4107
    %4125 = vmatprep.subr.mxu0 0.0
    %4126 = vmatpush1.msra.mxu0 %v4108
    %4127 = vmatprep.subr.mxu0 0.0
    %4128 = vmatpush1.msra.mxu0 %v4109
    %4129 = vmatprep.subr.mxu0 0.0
    %4130 = vmatpush1.msra.mxu0 %v4110
    %4131 = vmatprep.subr.mxu0 0.0
    %4132 = vmatpush1.msra.mxu0 0.0
    %4133 = vmatprep.subr.mxu0 0.0
    %4134 = vmatpush1.msra.mxu0 0.0
    %4135 = vmatprep.subr.mxu0 0.0
    %4136 = vmatpush1.msra.mxu0 0.0
    %4137 = vmatprep.subr.mxu0 0.0
    %4138 = vmatpush1.msra.mxu0 0.0
    %4139 = vmatprep.subr.mxu0 0.0
    %4140 = vmatpush1.msra.mxu0 0.0
    %4141 = vmatprep.subr.mxu0 0.0
    %4142 = vmatpush1.msra.mxu0 0.0
    %4143 = vmatprep.subr.mxu0 0.0
    %4144 = vmatpush1.msra.mxu0 0.0
    %4145 = vmatprep.subr.mxu0 0.0
    %4146 = vmatpush1.msra.mxu0 0.0
    %4147 = vmatprep.subr.mxu0 0.0
    %4148 = vmatpush1.msra.mxu0 0.0
    %4149 = vmatprep.subr.mxu0 0.0
    %4150 = vmatpush1.msra.mxu0 0.0
    %4151 = vmatprep.subr.mxu0 0.0
    %4152 = vmatpush1.msra.mxu0 0.0
    %4153 = vmatprep.subr.mxu0 0.0
    %4154 = vmatpush1.msra.mxu0 0.0
    %4155 = vmatprep.subr.mxu0 0.0
    %4156 = vmatpush1.msra.mxu0 0.0
    %4157 = vmatprep.subr.mxu0 0.0
    %4158 = vmatpush1.msra.mxu0 0.0
    %4159 = vmatprep.subr.mxu0 0.0
    %4160 = vmatpush1.msra.mxu0 0.0
    %4161 = vmatprep.subr.mxu0 0.0
    %4162 = vmatpush1.msra.mxu0 0.0
    %4163 = vmatprep.subr.mxu0 0.0
    %4164 = vmatpush1.msra.mxu0 0.0
    %4165 = vmatprep.subr.mxu0 0.0
    %4166 = vmatpush1.msra.mxu0 0.0
    %4167 = vmatprep.subr.mxu0 0.0
    %4168 = vmatpush1.msra.mxu0 0.0
    %4169 = vmatprep.subr.mxu0 0.0
    %4170 = vmatpush1.msra.mxu0 0.0
    %4171 = vmatprep.subr.mxu0 0.0
    %4172 = vmatpush1.msra.mxu0 0.0
    %4173 = vmatprep.subr.mxu0 0.0
    %4174 = vmatpush1.msra.mxu0 0.0
    %4175 = vmatprep.subr.mxu0 0.0
    %4176 = vmatpush1.msra.mxu0 0.0
    %4177 = vmatprep.subr.mxu0 0.0
    %4178 = vmatpush1.msra.mxu0 0.0
    %4179 = vmatprep.subr.mxu0 0.0
    %4180 = vmatpush1.msra.mxu0 0.0
    %4181 = vmatprep.subr.mxu0 0.0
    %4182 = vmatpush1.msra.mxu0 0.0
    %4183 = vmatprep.subr.mxu0 0.0
    %4184 = vmatpush1.msra.mxu0 0.0
    %4185 = vmatprep.subr.mxu0 0.0
    %4186 = vmatpush1.msra.mxu0 0.0
    %4187 = vmatprep.mubr.f32.mxu0 0.0
    %4188 = vmatmul.mubr.f32.gmra.mrb[0].mxu0 %v4112
    %v4189 = vpop.f32.mrb[0].mxu0
    %v4190 = vadd.f32 0.0, %v4189
    %v4191 = vpop.f32.mrb[0].mxu0
    %4192 = vmatprep.mubr.f32.mxu0 0.0
    %4193 = vmatmul.mubr.f32.gmra.mrb[0].mxu0 %v4115
    %v4194 = vpop.f32.mrb[0].mxu0
    %v4195 = vadd.f32 0.0, %v4194
    %v4196 = vpop.f32.mrb[0].mxu0
    %4197 = vmatprep.mubr.f32.mxu0 0.0
    %4198 = vmatmul.mubr.f32.gmra.mrb[0].mxu0 %v4118
    %v4199 = vpop.f32.mrb[0].mxu0
    %v4200 = vadd.f32 0.0, %v4199
    %v4201 = vpop.f32.mrb[0].mxu0
    %4202 = vmatprep.mubr.f32.mxu0 0.0
    %4203 = vmatmul.mubr.f32.gmra.mrb[0].mxu0 %v4121
    %v4204 = vpop.f32.mrb[0].mxu0
    %v4205 = vadd.f32 0.0, %v4204
    %v4206 = vpop.f32.mrb[0].mxu0
    %4207 = vdwg.mxu0
    %v4208 = vadd.f32 %v3958, %v4190
    %v4209 = vadd.f32 %v3959, %v4195
    %v4210 = vadd.f32 %v3960, %v4200
    %v4211 = vadd.f32 %v3961, %v4205
    %v4213 = vlaneseq
    %v4214 = vshrl.u32 %v4213, 7
    %v4215 = vsub.s32 0, %v4214
    %v4216 = vrot.slane %v2906, %v4215
    %v4219 = vsel %vm591, %v4208, 0
    %v4222 = vsel %vm591, %v4209, 0
    %v4225 = vsel %vm591, %v4210, 0
    %v4228 = vsel %vm591, %v4211, 0
    %4230 = vmatprep.subr.mxu0 0.0
    %4231 = vmatpush1.msra.mxu0 %v2901
    %4232 = vmatprep.subr.mxu0 0.0
    %4233 = vmatpush1.msra.mxu0 %v2902
    %4234 = vmatprep.subr.mxu0 0.0
    %4235 = vmatpush1.msra.mxu0 %v2903
    %4236 = vmatprep.subr.mxu0 0.0
    %4237 = vmatpush1.msra.mxu0 %v2904
    %4238 = vmatprep.subr.mxu0 0.0
    %4239 = vmatpush1.msra.mxu0 0.0
    %4240 = vmatprep.subr.mxu0 0.0
    %4241 = vmatpush1.msra.mxu0 0.0
    %4242 = vmatprep.subr.mxu0 0.0
    %4243 = vmatpush1.msra.mxu0 0.0
    %4244 = vmatprep.subr.mxu0 0.0
    %4245 = vmatpush1.msra.mxu0 0.0
    %4246 = vmatprep.subr.mxu0 0.0
    %4247 = vmatpush1.msra.mxu0 0.0
    %4248 = vmatprep.subr.mxu0 0.0
    %4249 = vmatpush1.msra.mxu0 0.0
    %4250 = vmatprep.subr.mxu0 0.0
    %4251 = vmatpush1.msra.mxu0 0.0
    %4252 = vmatprep.subr.mxu0 0.0
    %4253 = vmatpush1.msra.mxu0 0.0
    %4254 = vmatprep.subr.mxu0 0.0
    %4255 = vmatpush1.msra.mxu0 0.0
    %4256 = vmatprep.subr.mxu0 0.0
    %4257 = vmatpush1.msra.mxu0 0.0
    %4258 = vmatprep.subr.mxu0 0.0
    %4259 = vmatpush1.msra.mxu0 0.0
    %4260 = vmatprep.subr.mxu0 0.0
    %4261 = vmatpush1.msra.mxu0 0.0
    %4262 = vmatprep.subr.mxu0 0.0
    %4263 = vmatpush1.msra.mxu0 0.0
    %4264 = vmatprep.subr.mxu0 0.0
    %4265 = vmatpush1.msra.mxu0 0.0
    %4266 = vmatprep.subr.mxu0 0.0
    %4267 = vmatpush1.msra.mxu0 0.0
    %4268 = vmatprep.subr.mxu0 0.0
    %4269 = vmatpush1.msra.mxu0 0.0
    %4270 = vmatprep.subr.mxu0 0.0
    %4271 = vmatpush1.msra.mxu0 0.0
    %4272 = vmatprep.subr.mxu0 0.0
    %4273 = vmatpush1.msra.mxu0 0.0
    %4274 = vmatprep.subr.mxu0 0.0
    %4275 = vmatpush1.msra.mxu0 0.0
    %4276 = vmatprep.subr.mxu0 0.0
    %4277 = vmatpush1.msra.mxu0 0.0
    %4278 = vmatprep.subr.mxu0 0.0
    %4279 = vmatpush1.msra.mxu0 0.0
    %4280 = vmatprep.subr.mxu0 0.0
    %4281 = vmatpush1.msra.mxu0 0.0
    %4282 = vmatprep.subr.mxu0 0.0
    %4283 = vmatpush1.msra.mxu0 0.0
    %4284 = vmatprep.subr.mxu0 0.0
    %4285 = vmatpush1.msra.mxu0 0.0
    %4286 = vmatprep.subr.mxu0 0.0
    %4287 = vmatpush1.msra.mxu0 0.0
    %4288 = vmatprep.subr.mxu0 0.0
    %4289 = vmatpush1.msra.mxu0 0.0
    %4290 = vmatprep.subr.mxu0 0.0
    %4291 = vmatpush1.msra.mxu0 0.0
    %4292 = vmatprep.subr.mxu0 0.0
    %4293 = vmatpush1.msra.mxu0 0.0
    %4294 = vmatprep.mubr.f32.mxu0 0.0
    %4295 = vmatmul.mubr.f32.gmra.mrb[0].mxu0 %v4219
    %v4296 = vpop.f32.mrb[0].mxu0
    %v4297 = vadd.f32 %v4216, %v4296
    %v4298 = vpop.f32.mrb[0].mxu0
    %4299 = vmatprep.mubr.f32.mxu0 0.0
    %4300 = vmatmul.mubr.f32.gmra.mrb[0].mxu0 %v4222
    %v4301 = vpop.f32.mrb[0].mxu0
    %v4302 = vadd.f32 %v4216, %v4301
    %v4303 = vpop.f32.mrb[0].mxu0
    %4304 = vmatprep.mubr.f32.mxu0 0.0
    %4305 = vmatmul.mubr.f32.gmra.mrb[0].mxu0 %v4225
    %v4306 = vpop.f32.mrb[0].mxu0
    %v4307 = vadd.f32 %v4216, %v4306
    %v4308 = vpop.f32.mrb[0].mxu0
    %4309 = vmatprep.mubr.f32.mxu0 0.0
    %4310 = vmatmul.mubr.f32.gmra.mrb[0].mxu0 %v4228
    %v4311 = vpop.f32.mrb[0].mxu0
    %v4312 = vadd.f32 %v4216, %v4311
    %v4313 = vpop.f32.mrb[0].mxu0
    %4314 = vdwg.mxu0
    %v4315 = vadd.f32 %v2625, %v4297
    %v4316 = vadd.f32 %v2626, %v4302
    %v4317 = vadd.f32 %v2627, %v4307
    %v4318 = vadd.f32 %v2628, %v4312
    %s4319 = scalar_lea.vmem [#allocation13], 1
    %v4320 = vld [vmem:[%s4319] sm:$0x1]
    %s4321 = scalar_lea.vmem [#allocation15], 1
    %v4322 = vld [vmem:[%s4321] sm:$0x1]
    %v4323 = vsel %vm591, %v4315, 0.0
    %4324 = vadd.xlane.f32.xlu0 %v4323
    %v4325 = vpop.xlane.xlu0 %4324
    %v4326 = vsel %vm591, %v4316, 0.0
    %4327 = vadd.xlane.f32.xlu0 %v4326
    %v4328 = vpop.xlane.xlu0 %4327
    %v4329 = vsel %vm591, %v4317, 0.0
    %4330 = vadd.xlane.f32.xlu0 %v4329
    %v4331 = vpop.xlane.xlu0 %4330
    %v4332 = vsel %vm591, %v4318, 0.0
    %4333 = vadd.xlane.f32.xlu0 %v4332
    %v4334 = vpop.xlane.xlu0 %4333
    %v4335 = vmul.f32 %v4325, %v791
    %v4336 = vmul.f32 %v4328, %v791
    %v4337 = vmul.f32 %v4331, %v791
    %v4338 = vmul.f32 %v4334, %v791
    %v4339 = vsub.f32 %v4315, %v4335
    %v4340 = vsub.f32 %v4316, %v4336
    %v4341 = vsub.f32 %v4317, %v4337
    %v4342 = vsub.f32 %v4318, %v4338
    %v4343 = vmul.f32 %v4339, %v4339
    %v4344 = vmul.f32 %v4340, %v4340
    %v4345 = vmul.f32 %v4341, %v4341
    %v4346 = vmul.f32 %v4342, %v4342
    %v4347 = vsel %vm591, %v4343, 0.0
    %4348 = vadd.xlane.f32.xlu0 %v4347
    %v4349 = vpop.xlane.xlu0 %4348
    %v4350 = vsel %vm591, %v4344, 0.0
    %4351 = vadd.xlane.f32.xlu0 %v4350
    %v4352 = vpop.xlane.xlu0 %4351
    %v4353 = vsel %vm591, %v4345, 0.0
    %4354 = vadd.xlane.f32.xlu0 %v4353
    %v4355 = vpop.xlane.xlu0 %4354
    %v4356 = vsel %vm591, %v4346, 0.0
    %4357 = vadd.xlane.f32.xlu0 %v4356
    %v4358 = vpop.xlane.xlu0 %4357
    %v4359 = vmul.f32 %v4349, %v791
    %v4360 = vmul.f32 %v4352, %v791
    %v4361 = vmul.f32 %v4355, %v791
    %v4362 = vmul.f32 %v4358, %v791
    %v4363 = vadd.f32 %v4359, 1e-05
    %v4364 = vadd.f32 %v4360, 1e-05
    %v4365 = vadd.f32 %v4361, 1e-05
    %v4366 = vadd.f32 %v4362, 1e-05
    %v4367 = vrsqrt.pop %v4363
    %v4368 = vrsqrt.pop %v4364
    %v4369 = vrsqrt.pop %v4365
    %v4370 = vrsqrt.pop %v4366
    %v4371 = vmul.f32 %v4339, %v4367
    %v4372 = vmul.f32 %v4340, %v4368
    %v4373 = vmul.f32 %v4341, %v4369
    %v4374 = vmul.f32 %v4342, %v4370
    %v4376 = vlaneseq
    %v4377 = vshrl.u32 %v4376, 7
    %v4378 = vsub.s32 0, %v4377
    %v4379 = vrot.slane %v4320, %v4378
    %v4381 = vmul.f32 %v4371, %v4379
    %v4382 = vmul.f32 %v4372, %v4379
    %v4383 = vmul.f32 %v4373, %v4379
    %v4384 = vmul.f32 %v4374, %v4379
    %v4386 = vlaneseq
    %v4387 = vshrl.u32 %v4386, 7
    %v4388 = vsub.s32 0, %v4387
    %v4389 = vrot.slane %v4322, %v4388
    %v4391 = vadd.f32 %v4381, %v4389
    %v4392 = vadd.f32 %v4382, %v4389
    %v4393 = vadd.f32 %v4383, %v4389
    %v4394 = vadd.f32 %v4384, %v4389
    %v4395 = vadd.f32 %v4391, %v572
    %v4396 = vadd.f32 %v4392, %v573
    %v4397 = vadd.f32 %v4393, %v574
    %v4398 = vadd.f32 %v4394, %v575
    %s4399 = scalar_lea.vmem [#allocation16], 32
    %v4400 = vld [vmem:[%s4399] sm:$0xff]
    %v4401 = vld [vmem:[%s4399 + $0x8] sm:$0xff]
    %v4402 = vld [vmem:[%s4399 + $0x10] sm:$0xff]
    %v4403 = vld [vmem:[%s4399 + $0x18] sm:$0xff]
    %s4404 = scalar_lea.vmem [#allocation18], 1
    %v4405 = vld [vmem:[%s4404] sm:$0x1]
    %s4406 = scalar_lea.vmem [#allocation19], 32
    %v4407 = vld [vmem:[%s4406] sm:$0xff]
    %v4408 = vld [vmem:[%s4406 + $0x8] sm:$0xff]
    %v4409 = vld [vmem:[%s4406 + $0x10] sm:$0xff]
    %v4410 = vld [vmem:[%s4406 + $0x18] sm:$0xff]
    %s4411 = scalar_lea.vmem [#allocation21], 1
    %v4412 = vld [vmem:[%s4411] sm:$0x1]
    %s4413 = scalar_lea.vmem [#allocation22], 32
    %v4414 = vld [vmem:[%s4413] sm:$0xff]
    %v4415 = vld [vmem:[%s4413 + $0x8] sm:$0xff]
    %v4416 = vld [vmem:[%s4413 + $0x10] sm:$0xff]
    %v4417 = vld [vmem:[%s4413 + $0x18] sm:$0xff]
    %s4418 = scalar_lea.vmem [#allocation24], 1
    %v4419 = vld [vmem:[%s4418] sm:$0x1]
    %s4420 = scalar_lea.vmem [#allocation25], 32
    %v4421 = vld [vmem:[%s4420] sm:$0xff]
    %v4422 = vld [vmem:[%s4420 + $0x8] sm:$0xff]
    %v4423 = vld [vmem:[%s4420 + $0x10] sm:$0xff]
    %v4424 = vld [vmem:[%s4420 + $0x18] sm:$0xff]
    %s4425 = scalar_lea.vmem [#allocation27], 1
    %v4426 = vld [vmem:[%s4425] sm:$0x1]
    %v4428 = vlaneseq
    %v4429 = vshrl.u32 %v4428, 7
    %v4430 = vsub.s32 0, %v4429
    %v4431 = vrot.slane %v4405, %v4430
    %v4434 = vsel %vm591, %v4395, 0
    %v4437 = vsel %vm591, %v4396, 0
    %v4440 = vsel %vm591, %v4397, 0
    %v4443 = vsel %vm591, %v4398, 0
    %4445 = vmatprep.subr.mxu0 0.0
    %4446 = vmatpush1.msra.mxu0 %v4400
    %4447 = vmatprep.subr.mxu0 0.0
    %4448 = vmatpush1.msra.mxu0 %v4401
    %4449 = vmatprep.subr.mxu0 0.0
    %4450 = vmatpush1.msra.mxu0 %v4402
    %4451 = vmatprep.subr.mxu0 0.0
    %4452 = vmatpush1.msra.mxu0 %v4403
    %4453 = vmatprep.subr.mxu0 0.0
    %4454 = vmatpush1.msra.mxu0 0.0
    %4455 = vmatprep.subr.mxu0 0.0
    %4456 = vmatpush1.msra.mxu0 0.0
    %4457 = vmatprep.subr.mxu0 0.0
    %4458 = vmatpush1.msra.mxu0 0.0
    %4459 = vmatprep.subr.mxu0 0.0
    %4460 = vmatpush1.msra.mxu0 0.0
    %4461 = vmatprep.subr.mxu0 0.0
    %4462 = vmatpush1.msra.mxu0 0.0
    %4463 = vmatprep.subr.mxu0 0.0
    %4464 = vmatpush1.msra.mxu0 0.0
    %4465 = vmatprep.subr.mxu0 0.0
    %4466 = vmatpush1.msra.mxu0 0.0
    %4467 = vmatprep.subr.mxu0 0.0
    %4468 = vmatpush1.msra.mxu0 0.0
    %4469 = vmatprep.subr.mxu0 0.0
    %4470 = vmatpush1.msra.mxu0 0.0
    %4471 = vmatprep.subr.mxu0 0.0
    %4472 = vmatpush1.msra.mxu0 0.0
    %4473 = vmatprep.subr.mxu0 0.0
    %4474 = vmatpush1.msra.mxu0 0.0
    %4475 = vmatprep.subr.mxu0 0.0
    %4476 = vmatpush1.msra.mxu0 0.0
    %4477 = vmatprep.subr.mxu0 0.0
    %4478 = vmatpush1.msra.mxu0 0.0
    %4479 = vmatprep.subr.mxu0 0.0
    %4480 = vmatpush1.msra.mxu0 0.0
    %4481 = vmatprep.subr.mxu0 0.0
    %4482 = vmatpush1.msra.mxu0 0.0
    %4483 = vmatprep.subr.mxu0 0.0
    %4484 = vmatpush1.msra.mxu0 0.0
    %4485 = vmatprep.subr.mxu0 0.0
    %4486 = vmatpush1.msra.mxu0 0.0
    %4487 = vmatprep.subr.mxu0 0.0
    %4488 = vmatpush1.msra.mxu0 0.0
    %4489 = vmatprep.subr.mxu0 0.0
    %4490 = vmatpush1.msra.mxu0 0.0
    %4491 = vmatprep.subr.mxu0 0.0
    %4492 = vmatpush1.msra.mxu0 0.0
    %4493 = vmatprep.subr.mxu0 0.0
    %4494 = vmatpush1.msra.mxu0 0.0
    %4495 = vmatprep.subr.mxu0 0.0
    %4496 = vmatpush1.msra.mxu0 0.0
    %4497 = vmatprep.subr.mxu0 0.0
    %4498 = vmatpush1.msra.mxu0 0.0
    %4499 = vmatprep.subr.mxu0 0.0
    %4500 = vmatpush1.msra.mxu0 0.0
    %4501 = vmatprep.subr.mxu0 0.0
    %4502 = vmatpush1.msra.mxu0 0.0
    %4503 = vmatprep.subr.mxu0 0.0
    %4504 = vmatpush1.msra.mxu0 0.0
    %4505 = vmatprep.subr.mxu0 0.0
    %4506 = vmatpush1.msra.mxu0 0.0
    %4507 = vmatprep.subr.mxu0 0.0
    %4508 = vmatpush1.msra.mxu0 0.0
    %4509 = vmatprep.mubr.f32.mxu0 0.0
    %4510 = vmatmul.mubr.f32.gmra.mrb[0].mxu0 %v4434
    %v4511 = vpop.f32.mrb[0].mxu0
    %v4512 = vadd.f32 %v4431, %v4511
    %v4513 = vpop.f32.mrb[0].mxu0
    %4514 = vmatprep.mubr.f32.mxu0 0.0
    %4515 = vmatmul.mubr.f32.gmra.mrb[0].mxu0 %v4437
    %v4516 = vpop.f32.mrb[0].mxu0
    %v4517 = vadd.f32 %v4431, %v4516
    %v4518 = vpop.f32.mrb[0].mxu0
    %4519 = vmatprep.mubr.f32.mxu0 0.0
    %4520 = vmatmul.mubr.f32.gmra.mrb[0].mxu0 %v4440
    %v4521 = vpop.f32.mrb[0].mxu0
    %v4522 = vadd.f32 %v4431, %v4521
    %v4523 = vpop.f32.mrb[0].mxu0
    %4524 = vmatprep.mubr.f32.mxu0 0.0
    %4525 = vmatmul.mubr.f32.gmra.mrb[0].mxu0 %v4443
    %v4526 = vpop.f32.mrb[0].mxu0
    %v4527 = vadd.f32 %v4431, %v4526
    %v4528 = vpop.f32.mrb[0].mxu0
    %4529 = vdwg.mxu0
    %v4530 = vmul.f32 %v4512, 0.35355338
    %v4531 = vmul.f32 %v4517, 0.35355338
    %v4532 = vmul.f32 %v4522, 0.35355338
    %v4533 = vmul.f32 %v4527, 0.35355338
    %v4535 = vlaneseq
    %v4536 = vshrl.u32 %v4535, 7
    %v4537 = vsub.s32 0, %v4536
    %v4538 = vrot.slane %v4412, %v4537
    %v4541 = vsel %vm591, %v2873, 0
    %v4544 = vsel %vm591, %v2874, 0
    %4546 = vmatprep.subr.mxu0 0.0
    %4547 = vmatpush1.msra.mxu0 %v4407
    %4548 = vmatprep.subr.mxu0 0.0
    %4549 = vmatpush1.msra.mxu0 %v4408
    %4550 = vmatprep.subr.mxu0 0.0
    %4551 = vmatpush1.msra.mxu0 %v4409
    %4552 = vmatprep.subr.mxu0 0.0
    %4553 = vmatpush1.msra.mxu0 %v4410
    %4554 = vmatprep.subr.mxu0 0.0
    %4555 = vmatpush1.msra.mxu0 0.0
    %4556 = vmatprep.subr.mxu0 0.0
    %4557 = vmatpush1.msra.mxu0 0.0
    %4558 = vmatprep.subr.mxu0 0.0
    %4559 = vmatpush1.msra.mxu0 0.0
    %4560 = vmatprep.subr.mxu0 0.0
    %4561 = vmatpush1.msra.mxu0 0.0
    %4562 = vmatprep.subr.mxu0 0.0
    %4563 = vmatpush1.msra.mxu0 0.0
    %4564 = vmatprep.subr.mxu0 0.0
    %4565 = vmatpush1.msra.mxu0 0.0
    %4566 = vmatprep.subr.mxu0 0.0
    %4567 = vmatpush1.msra.mxu0 0.0
    %4568 = vmatprep.subr.mxu0 0.0
    %4569 = vmatpush1.msra.mxu0 0.0
    %4570 = vmatprep.subr.mxu0 0.0
    %4571 = vmatpush1.msra.mxu0 0.0
    %4572 = vmatprep.subr.mxu0 0.0
    %4573 = vmatpush1.msra.mxu0 0.0
    %4574 = vmatprep.subr.mxu0 0.0
    %4575 = vmatpush1.msra.mxu0 0.0
    %4576 = vmatprep.subr.mxu0 0.0
    %4577 = vmatpush1.msra.mxu0 0.0
    %4578 = vmatprep.subr.mxu0 0.0
    %4579 = vmatpush1.msra.mxu0 0.0
    %4580 = vmatprep.subr.mxu0 0.0
    %4581 = vmatpush1.msra.mxu0 0.0
    %4582 = vmatprep.subr.mxu0 0.0
    %4583 = vmatpush1.msra.mxu0 0.0
    %4584 = vmatprep.subr.mxu0 0.0
    %4585 = vmatpush1.msra.mxu0 0.0
    %4586 = vmatprep.subr.mxu0 0.0
    %4587 = vmatpush1.msra.mxu0 0.0
    %4588 = vmatprep.subr.mxu0 0.0
    %4589 = vmatpush1.msra.mxu0 0.0
    %4590 = vmatprep.subr.mxu0 0.0
    %4591 = vmatpush1.msra.mxu0 0.0
    %4592 = vmatprep.subr.mxu0 0.0
    %4593 = vmatpush1.msra.mxu0 0.0
    %4594 = vmatprep.subr.mxu0 0.0
    %4595 = vmatpush1.msra.mxu0 0.0
    %4596 = vmatprep.subr.mxu0 0.0
    %4597 = vmatpush1.msra.mxu0 0.0
    %4598 = vmatprep.subr.mxu0 0.0
    %4599 = vmatpush1.msra.mxu0 0.0
    %4600 = vmatprep.subr.mxu0 0.0
    %4601 = vmatpush1.msra.mxu0 0.0
    %4602 = vmatprep.subr.mxu0 0.0
    %4603 = vmatpush1.msra.mxu0 0.0
    %4604 = vmatprep.subr.mxu0 0.0
    %4605 = vmatpush1.msra.mxu0 0.0
    %4606 = vmatprep.subr.mxu0 0.0
    %4607 = vmatpush1.msra.mxu0 0.0
    %4608 = vmatprep.subr.mxu0 0.0
    %4609 = vmatpush1.msra.mxu0 0.0
    %4610 = vmatprep.mubr.f32.mxu0 0.0
    %4611 = vmatmul.mubr.f32.gmra.mrb[0].mxu0 %v4541
    %v4612 = vpop.f32.mrb[0].mxu0
    %v4613 = vadd.f32 %v4538, %v4612
    %v4614 = vpop.f32.mrb[0].mxu0
    %4615 = vmatprep.mubr.f32.mxu0 0.0
    %4616 = vmatmul.mubr.f32.gmra.mrb[0].mxu0 %v4544
    %v4617 = vpop.f32.mrb[0].mxu0
    %v4618 = vadd.f32 %v4538, %v4617
    %v4619 = vpop.f32.mrb[0].mxu0
    %4620 = vdwg.mxu0
    %v4622 = vlaneseq
    %v4623 = vshrl.u32 %v4622, 7
    %v4624 = vsub.s32 0, %v4623
    %v4625 = vrot.slane %v4419, %v4624
    %4627 = vmatprep.subr.mxu0 0.0
    %4628 = vmatpush1.msra.mxu0 %v4414
    %4629 = vmatprep.subr.mxu0 0.0
    %4630 = vmatpush1.msra.mxu0 %v4415
    %4631 = vmatprep.subr.mxu0 0.0
    %4632 = vmatpush1.msra.mxu0 %v4416
    %4633 = vmatprep.subr.mxu0 0.0
    %4634 = vmatpush1.msra.mxu0 %v4417
    %4635 = vmatprep.subr.mxu0 0.0
    %4636 = vmatpush1.msra.mxu0 0.0
    %4637 = vmatprep.subr.mxu0 0.0
    %4638 = vmatpush1.msra.mxu0 0.0
    %4639 = vmatprep.subr.mxu0 0.0
    %4640 = vmatpush1.msra.mxu0 0.0
    %4641 = vmatprep.subr.mxu0 0.0
    %4642 = vmatpush1.msra.mxu0 0.0
    %4643 = vmatprep.subr.mxu0 0.0
    %4644 = vmatpush1.msra.mxu0 0.0
    %4645 = vmatprep.subr.mxu0 0.0
    %4646 = vmatpush1.msra.mxu0 0.0
    %4647 = vmatprep.subr.mxu0 0.0
    %4648 = vmatpush1.msra.mxu0 0.0
    %4649 = vmatprep.subr.mxu0 0.0
    %4650 = vmatpush1.msra.mxu0 0.0
    %4651 = vmatprep.subr.mxu0 0.0
    %4652 = vmatpush1.msra.mxu0 0.0
    %4653 = vmatprep.subr.mxu0 0.0
    %4654 = vmatpush1.msra.mxu0 0.0
    %4655 = vmatprep.subr.mxu0 0.0
    %4656 = vmatpush1.msra.mxu0 0.0
    %4657 = vmatprep.subr.mxu0 0.0
    %4658 = vmatpush1.msra.mxu0 0.0
    %4659 = vmatprep.subr.mxu0 0.0
    %4660 = vmatpush1.msra.mxu0 0.0
    %4661 = vmatprep.subr.mxu0 0.0
    %4662 = vmatpush1.msra.mxu0 0.0
    %4663 = vmatprep.subr.mxu0 0.0
    %4664 = vmatpush1.msra.mxu0 0.0
    %4665 = vmatprep.subr.mxu0 0.0
    %4666 = vmatpush1.msra.mxu0 0.0
    %4667 = vmatprep.subr.mxu0 0.0
    %4668 = vmatpush1.msra.mxu0 0.0
    %4669 = vmatprep.subr.mxu0 0.0
    %4670 = vmatpush1.msra.mxu0 0.0
    %4671 = vmatprep.subr.mxu0 0.0
    %4672 = vmatpush1.msra.mxu0 0.0
    %4673 = vmatprep.subr.mxu0 0.0
    %4674 = vmatpush1.msra.mxu0 0.0
    %4675 = vmatprep.subr.mxu0 0.0
    %4676 = vmatpush1.msra.mxu0 0.0
    %4677 = vmatprep.subr.mxu0 0.0
    %4678 = vmatpush1.msra.mxu0 0.0
    %4679 = vmatprep.subr.mxu0 0.0
    %4680 = vmatpush1.msra.mxu0 0.0
    %4681 = vmatprep.subr.mxu0 0.0
    %4682 = vmatpush1.msra.mxu0 0.0
    %4683 = vmatprep.subr.mxu0 0.0
    %4684 = vmatpush1.msra.mxu0 0.0
    %4685 = vmatprep.subr.mxu0 0.0
    %4686 = vmatpush1.msra.mxu0 0.0
    %4687 = vmatprep.subr.mxu0 0.0
    %4688 = vmatpush1.msra.mxu0 0.0
    %4689 = vmatprep.subr.mxu0 0.0
    %4690 = vmatpush1.msra.mxu0 0.0
    %4691 = vmatprep.mubr.f32.mxu0 0.0
    %4692 = vmatmul.mubr.f32.gmra.mrb[0].mxu0 %v4541
    %v4693 = vpop.f32.mrb[0].mxu0
    %v4694 = vadd.f32 %v4625, %v4693
    %v4695 = vpop.f32.mrb[0].mxu0
    %4696 = vmatprep.mubr.f32.mxu0 0.0
    %4697 = vmatmul.mubr.f32.gmra.mrb[0].mxu0 %v4544
    %v4698 = vpop.f32.mrb[0].mxu0
    %v4699 = vadd.f32 %v4625, %v4698
    %v4700 = vpop.f32.mrb[0].mxu0
    %4701 = vdwg.mxu0
    %v4702 = vmul.f32 %v4530, %v489
    %v4703 = vmul.f32 %v4531, %v489
    %v4704 = vmul.f32 %v4532, %v489
    %v4705 = vmul.f32 %v4533, %v489
    %v4707 = vsel %vm591, %v4702, 0
    %v4710 = vsel %vm591, %v4703, 0
    %v4713 = vsel %vm591, %v4704, 0
    %v4716 = vsel %vm591, %v4705, 0
    %v4719 = vsel %vm591, %v4613, 0
    %v4722 = vsel %vm591, %v4618, 0
    %4724 = vmatprep.subr.mxu0 0.0
    %4725 = vmatpush1.xpose.msra.mxu0 %v4719
    %4726 = vmatprep.subr.mxu0 0.0
    %4727 = vmatpush1.xpose.msra.mxu0 %v4722
    %4728 = vmatprep.subr.mxu0 0.0
    %4729 = vmatpush1.xpose.msra.mxu0 0.0
    %4730 = vmatprep.subr.mxu0 0.0
    %4731 = vmatpush1.xpose.msra.mxu0 0.0
    %4732 = vmatprep.subr.mxu0 0.0
    %4733 = vmatpush1.xpose.msra.mxu0 0.0
    %4734 = vmatprep.subr.mxu0 0.0
    %4735 = vmatpush1.xpose.msra.mxu0 0.0
    %4736 = vmatprep.subr.mxu0 0.0
    %4737 = vmatpush1.xpose.msra.mxu0 0.0
    %4738 = vmatprep.subr.mxu0 0.0
    %4739 = vmatpush1.xpose.msra.mxu0 0.0
    %4740 = vmatprep.subr.mxu0 0.0
    %4741 = vmatpush1.xpose.msra.mxu0 0.0
    %4742 = vmatprep.subr.mxu0 0.0
    %4743 = vmatpush1.xpose.msra.mxu0 0.0
    %4744 = vmatprep.subr.mxu0 0.0
    %4745 = vmatpush1.xpose.msra.mxu0 0.0
    %4746 = vmatprep.subr.mxu0 0.0
    %4747 = vmatpush1.xpose.msra.mxu0 0.0
    %4748 = vmatprep.subr.mxu0 0.0
    %4749 = vmatpush1.xpose.msra.mxu0 0.0
    %4750 = vmatprep.subr.mxu0 0.0
    %4751 = vmatpush1.xpose.msra.mxu0 0.0
    %4752 = vmatprep.subr.mxu0 0.0
    %4753 = vmatpush1.xpose.msra.mxu0 0.0
    %4754 = vmatprep.subr.mxu0 0.0
    %4755 = vmatpush1.xpose.msra.mxu0 0.0
    %4756 = vmatprep.subr.mxu0 0.0
    %4757 = vmatpush1.xpose.msra.mxu0 0.0
    %4758 = vmatprep.subr.mxu0 0.0
    %4759 = vmatpush1.xpose.msra.mxu0 0.0
    %4760 = vmatprep.subr.mxu0 0.0
    %4761 = vmatpush1.xpose.msra.mxu0 0.0
    %4762 = vmatprep.subr.mxu0 0.0
    %4763 = vmatpush1.xpose.msra.mxu0 0.0
    %4764 = vmatprep.subr.mxu0 0.0
    %4765 = vmatpush1.xpose.msra.mxu0 0.0
    %4766 = vmatprep.subr.mxu0 0.0
    %4767 = vmatpush1.xpose.msra.mxu0 0.0
    %4768 = vmatprep.subr.mxu0 0.0
    %4769 = vmatpush1.xpose.msra.mxu0 0.0
    %4770 = vmatprep.subr.mxu0 0.0
    %4771 = vmatpush1.xpose.msra.mxu0 0.0
    %4772 = vmatprep.subr.mxu0 0.0
    %4773 = vmatpush1.xpose.msra.mxu0 0.0
    %4774 = vmatprep.subr.mxu0 0.0
    %4775 = vmatpush1.xpose.msra.mxu0 0.0
    %4776 = vmatprep.subr.mxu0 0.0
    %4777 = vmatpush1.xpose.msra.mxu0 0.0
    %4778 = vmatprep.subr.mxu0 0.0
    %4779 = vmatpush1.xpose.msra.mxu0 0.0
    %4780 = vmatprep.subr.mxu0 0.0
    %4781 = vmatpush1.xpose.msra.mxu0 0.0
    %4782 = vmatprep.subr.mxu0 0.0
    %4783 = vmatpush1.xpose.msra.mxu0 0.0
    %4784 = vmatprep.subr.mxu0 0.0
    %4785 = vmatpush1.xpose.msra.mxu0 0.0
    %4786 = vmatprep.subr.mxu0 0.0
    %4787 = vmatpush1.xpose.msra.mxu0 0.0
    %4788 = vmatprep.mubr.f32.mxu0 0.0
    %4789 = vmatmul.mubr.f32.gmra.mrb[0].mxu0 %v4707
    %v4790 = vpop.f32.mrb[0].mxu0
    %v4791 = vadd.f32 %v549, %v4790
    %v4792 = vpop.f32.mrb[0].mxu0
    %4793 = vmatprep.mubr.f32.mxu0 0.0
    %4794 = vmatmul.mubr.f32.gmra.mrb[0].mxu0 %v4710
    %v4795 = vpop.f32.mrb[0].mxu0
    %v4796 = vadd.f32 %v550, %v4795
    %v4797 = vpop.f32.mrb[0].mxu0
    %4798 = vmatprep.mubr.f32.mxu0 0.0
    %4799 = vmatmul.mubr.f32.gmra.mrb[0].mxu0 %v4713
    %v4800 = vpop.f32.mrb[0].mxu0
    %v4801 = vadd.f32 %v551, %v4800
    %v4802 = vpop.f32.mrb[0].mxu0
    %4803 = vmatprep.mubr.f32.mxu0 0.0
    %4804 = vmatmul.mubr.f32.gmra.mrb[0].mxu0 %v4716
    %v4805 = vpop.f32.mrb[0].mxu0
    %v4806 = vadd.f32 %v552, %v4805
    %v4807 = vpop.f32.mrb[0].mxu0
    %4808 = vdwg.mxu0
    %v4809 = vsel %vm1234, %v4791, -inf
    %4810 = vmax.xlane.f32.xlu0 %v4809
    %v4811 = vpop.xlane.xlu0 %4810
    %v4812 = vsel %vm1234, %v4796, -inf
    %4813 = vmax.xlane.f32.xlu0 %v4812
    %v4814 = vpop.xlane.xlu0 %4813
    %v4815 = vsel %vm1234, %v4801, -inf
    %4816 = vmax.xlane.f32.xlu0 %v4815
    %v4817 = vpop.xlane.xlu0 %4816
    %v4818 = vsel %vm1234, %v4806, -inf
    %4819 = vmax.xlane.f32.xlu0 %v4818
    %v4820 = vpop.xlane.xlu0 %4819
    %v4821 = vsub.f32 %v4791, %v4811
    %v4822 = vsub.f32 %v4796, %v4814
    %v4823 = vsub.f32 %v4801, %v4817
    %v4824 = vsub.f32 %v4806, %v4820
    %v4825 = vmul.f32 %v4821, 1.442695
    %v4826 = vpow.pop %v4825
    %v4827 = vmul.f32 %v4822, 1.442695
    %v4828 = vpow.pop %v4827
    %v4829 = vmul.f32 %v4823, 1.442695
    %v4830 = vpow.pop %v4829
    %v4831 = vmul.f32 %v4824, 1.442695
    %v4832 = vpow.pop %v4831
    %v4833 = vsel %vm1234, %v4826, 0.0
    %4834 = vadd.xlane.f32.xlu0 %v4833
    %v4835 = vpop.xlane.xlu0 %4834
    %v4836 = vsel %vm1234, %v4828, 0.0
    %4837 = vadd.xlane.f32.xlu0 %v4836
    %v4838 = vpop.xlane.xlu0 %4837
    %v4839 = vsel %vm1234, %v4830, 0.0
    %4840 = vadd.xlane.f32.xlu0 %v4839
    %v4841 = vpop.xlane.xlu0 %4840
    %v4842 = vsel %vm1234, %v4832, 0.0
    %4843 = vadd.xlane.f32.xlu0 %v4842
    %v4844 = vpop.xlane.xlu0 %4843
    %v4845 = vrcp.pop %v4835
    %v4846 = vrcp.pop %v4838
    %v4847 = vrcp.pop %v4841
    %v4848 = vrcp.pop %v4844
    %v4849 = vmul.f32 %v4826, %v4845
    %v4850 = vmul.f32 %v4828, %v4846
    %v4851 = vmul.f32 %v4830, %v4847
    %v4852 = vmul.f32 %v4832, %v4848
    %v4853 = vmul.f32 %v4694, %v489
    %v4854 = vmul.f32 %v4699, %v489
    %v4855 = vmul.f32 %v4530, %v494
    %v4856 = vmul.f32 %v4531, %v494
    %v4857 = vmul.f32 %v4532, %v494
    %v4858 = vmul.f32 %v4533, %v494
    %v4860 = vsel %vm591, %v4855, 0
    %v4863 = vsel %vm591, %v4856, 0
    %v4866 = vsel %vm591, %v4857, 0
    %v4869 = vsel %vm591, %v4858, 0
    %4871 = vmatprep.subr.mxu0 0.0
    %4872 = vmatpush1.xpose.msra.mxu0 %v4719
    %4873 = vmatprep.subr.mxu0 0.0
    %4874 = vmatpush1.xpose.msra.mxu0 %v4722
    %4875 = vmatprep.subr.mxu0 0.0
    %4876 = vmatpush1.xpose.msra.mxu0 0.0
    %4877 = vmatprep.subr.mxu0 0.0
    %4878 = vmatpush1.xpose.msra.mxu0 0.0
    %4879 = vmatprep.subr.mxu0 0.0
    %4880 = vmatpush1.xpose.msra.mxu0 0.0
    %4881 = vmatprep.subr.mxu0 0.0
    %4882 = vmatpush1.xpose.msra.mxu0 0.0
    %4883 = vmatprep.subr.mxu0 0.0
    %4884 = vmatpush1.xpose.msra.mxu0 0.0
    %4885 = vmatprep.subr.mxu0 0.0
    %4886 = vmatpush1.xpose.msra.mxu0 0.0
    %4887 = vmatprep.subr.mxu0 0.0
    %4888 = vmatpush1.xpose.msra.mxu0 0.0
    %4889 = vmatprep.subr.mxu0 0.0
    %4890 = vmatpush1.xpose.msra.mxu0 0.0
    %4891 = vmatprep.subr.mxu0 0.0
    %4892 = vmatpush1.xpose.msra.mxu0 0.0
    %4893 = vmatprep.subr.mxu0 0.0
    %4894 = vmatpush1.xpose.msra.mxu0 0.0
    %4895 = vmatprep.subr.mxu0 0.0
    %4896 = vmatpush1.xpose.msra.mxu0 0.0
    %4897 = vmatprep.subr.mxu0 0.0
    %4898 = vmatpush1.xpose.msra.mxu0 0.0
    %4899 = vmatprep.subr.mxu0 0.0
    %4900 = vmatpush1.xpose.msra.mxu0 0.0
    %4901 = vmatprep.subr.mxu0 0.0
    %4902 = vmatpush1.xpose.msra.mxu0 0.0
    %4903 = vmatprep.subr.mxu0 0.0
    %4904 = vmatpush1.xpose.msra.mxu0 0.0
    %4905 = vmatprep.subr.mxu0 0.0
    %4906 = vmatpush1.xpose.msra.mxu0 0.0
    %4907 = vmatprep.subr.mxu0 0.0
    %4908 = vmatpush1.xpose.msra.mxu0 0.0
    %4909 = vmatprep.subr.mxu0 0.0
    %4910 = vmatpush1.xpose.msra.mxu0 0.0
    %4911 = vmatprep.subr.mxu0 0.0
    %4912 = vmatpush1.xpose.msra.mxu0 0.0
    %4913 = vmatprep.subr.mxu0 0.0
    %4914 = vmatpush1.xpose.msra.mxu0 0.0
    %4915 = vmatprep.subr.mxu0 0.0
    %4916 = vmatpush1.xpose.msra.mxu0 0.0
    %4917 = vmatprep.subr.mxu0 0.0
    %4918 = vmatpush1.xpose.msra.mxu0 0.0
    %4919 = vmatprep.subr.mxu0 0.0
    %4920 = vmatpush1.xpose.msra.mxu0 0.0
    %4921 = vmatprep.subr.mxu0 0.0
    %4922 = vmatpush1.xpose.msra.mxu0 0.0
    %4923 = vmatprep.subr.mxu0 0.0
    %4924 = vmatpush1.xpose.msra.mxu0 0.0
    %4925 = vmatprep.subr.mxu0 0.0
    %4926 = vmatpush1.xpose.msra.mxu0 0.0
    %4927 = vmatprep.subr.mxu0 0.0
    %4928 = vmatpush1.xpose.msra.mxu0 0.0
    %4929 = vmatprep.subr.mxu0 0.0
    %4930 = vmatpush1.xpose.msra.mxu0 0.0
    %4931 = vmatprep.subr.mxu0 0.0
    %4932 = vmatpush1.xpose.msra.mxu0 0.0
    %4933 = vmatprep.subr.mxu0 0.0
    %4934 = vmatpush1.xpose.msra.mxu0 0.0
    %4935 = vmatprep.mubr.f32.mxu0 0.0
    %4936 = vmatmul.mubr.f32.gmra.mrb[0].mxu0 %v4860
    %v4937 = vpop.f32.mrb[0].mxu0
    %v4938 = vadd.f32 %v549, %v4937
    %v4939 = vpop.f32.mrb[0].mxu0
    %4940 = vmatprep.mubr.f32.mxu0 0.0
    %4941 = vmatmul.mubr.f32.gmra.mrb[0].mxu0 %v4863
    %v4942 = vpop.f32.mrb[0].mxu0
    %v4943 = vadd.f32 %v550, %v4942
    %v4944 = vpop.f32.mrb[0].mxu0
    %4945 = vmatprep.mubr.f32.mxu0 0.0
    %4946 = vmatmul.mubr.f32.gmra.mrb[0].mxu0 %v4866
    %v4947 = vpop.f32.mrb[0].mxu0
    %v4948 = vadd.f32 %v551, %v4947
    %v4949 = vpop.f32.mrb[0].mxu0
    %4950 = vmatprep.mubr.f32.mxu0 0.0
    %4951 = vmatmul.mubr.f32.gmra.mrb[0].mxu0 %v4869
    %v4952 = vpop.f32.mrb[0].mxu0
    %v4953 = vadd.f32 %v552, %v4952
    %v4954 = vpop.f32.mrb[0].mxu0
    %4955 = vdwg.mxu0
    %v4956 = vsel %vm1234, %v4938, -inf
    %4957 = vmax.xlane.f32.xlu0 %v4956
    %v4958 = vpop.xlane.xlu0 %4957
    %v4959 = vsel %vm1234, %v4943, -inf
    %4960 = vmax.xlane.f32.xlu0 %v4959
    %v4961 = vpop.xlane.xlu0 %4960
    %v4962 = vsel %vm1234, %v4948, -inf
    %4963 = vmax.xlane.f32.xlu0 %v4962
    %v4964 = vpop.xlane.xlu0 %4963
    %v4965 = vsel %vm1234, %v4953, -inf
    %4966 = vmax.xlane.f32.xlu0 %v4965
    %v4967 = vpop.xlane.xlu0 %4966
    %v4968 = vsub.f32 %v4938, %v4958
    %v4969 = vsub.f32 %v4943, %v4961
    %v4970 = vsub.f32 %v4948, %v4964
    %v4971 = vsub.f32 %v4953, %v4967
    %v4972 = vmul.f32 %v4968, 1.442695
    %v4973 = vpow.pop %v4972
    %v4974 = vmul.f32 %v4969, 1.442695
    %v4975 = vpow.pop %v4974
    %v4976 = vmul.f32 %v4970, 1.442695
    %v4977 = vpow.pop %v4976
    %v4978 = vmul.f32 %v4971, 1.442695
    %v4979 = vpow.pop %v4978
    %v4980 = vsel %vm1234, %v4973, 0.0
    %4981 = vadd.xlane.f32.xlu0 %v4980
    %v4982 = vpop.xlane.xlu0 %4981
    %v4983 = vsel %vm1234, %v4975, 0.0
    %4984 = vadd.xlane.f32.xlu0 %v4983
    %v4985 = vpop.xlane.xlu0 %4984
    %v4986 = vsel %vm1234, %v4977, 0.0
    %4987 = vadd.xlane.f32.xlu0 %v4986
    %v4988 = vpop.xlane.xlu0 %4987
    %v4989 = vsel %vm1234, %v4979, 0.0
    %4990 = vadd.xlane.f32.xlu0 %v4989
    %v4991 = vpop.xlane.xlu0 %4990
    %v4992 = vrcp.pop %v4982
    %v4993 = vrcp.pop %v4985
    %v4994 = vrcp.pop %v4988
    %v4995 = vrcp.pop %v4991
    %v4996 = vmul.f32 %v4973, %v4992
    %v4997 = vmul.f32 %v4975, %v4993
    %v4998 = vmul.f32 %v4977, %v4994
    %v4999 = vmul.f32 %v4979, %v4995
    %v5000 = vmul.f32 %v4694, %v494
    %v5001 = vmul.f32 %v4699, %v494
    %v5003 = vsel %vm1234, %v4996, 0
    %v5006 = vsel %vm1234, %v4997, 0
    %v5009 = vsel %vm1234, %v4998, 0
    %v5012 = vsel %vm1234, %v4999, 0
    %5014 = vmatprep.subr.mxu0 0.0
    %5015 = vmatpush1.msra.mxu0 %v5000
    %5016 = vmatprep.subr.mxu0 0.0
    %5017 = vmatpush1.msra.mxu0 %v5001
    %5018 = vmatprep.subr.mxu0 0.0
    %5019 = vmatpush1.msra.mxu0 0.0
    %5020 = vmatprep.subr.mxu0 0.0
    %5021 = vmatpush1.msra.mxu0 0.0
    %5022 = vmatprep.subr.mxu0 0.0
    %5023 = vmatpush1.msra.mxu0 0.0
    %5024 = vmatprep.subr.mxu0 0.0
    %5025 = vmatpush1.msra.mxu0 0.0
    %5026 = vmatprep.subr.mxu0 0.0
    %5027 = vmatpush1.msra.mxu0 0.0
    %5028 = vmatprep.subr.mxu0 0.0
    %5029 = vmatpush1.msra.mxu0 0.0
    %5030 = vmatprep.subr.mxu0 0.0
    %5031 = vmatpush1.msra.mxu0 0.0
    %5032 = vmatprep.subr.mxu0 0.0
    %5033 = vmatpush1.msra.mxu0 0.0
    %5034 = vmatprep.subr.mxu0 0.0
    %5035 = vmatpush1.msra.mxu0 0.0
    %5036 = vmatprep.subr.mxu0 0.0
    %5037 = vmatpush1.msra.mxu0 0.0
    %5038 = vmatprep.subr.mxu0 0.0
    %5039 = vmatpush1.msra.mxu0 0.0
    %5040 = vmatprep.subr.mxu0 0.0
    %5041 = vmatpush1.msra.mxu0 0.0
    %5042 = vmatprep.subr.mxu0 0.0
    %5043 = vmatpush1.msra.mxu0 0.0
    %5044 = vmatprep.subr.mxu0 0.0
    %5045 = vmatpush1.msra.mxu0 0.0
    %5046 = vmatprep.subr.mxu0 0.0
    %5047 = vmatpush1.msra.mxu0 0.0
    %5048 = vmatprep.subr.mxu0 0.0
    %5049 = vmatpush1.msra.mxu0 0.0
    %5050 = vmatprep.subr.mxu0 0.0
    %5051 = vmatpush1.msra.mxu0 0.0
    %5052 = vmatprep.subr.mxu0 0.0
    %5053 = vmatpush1.msra.mxu0 0.0
    %5054 = vmatprep.subr.mxu0 0.0
    %5055 = vmatpush1.msra.mxu0 0.0
    %5056 = vmatprep.subr.mxu0 0.0
    %5057 = vmatpush1.msra.mxu0 0.0
    %5058 = vmatprep.subr.mxu0 0.0
    %5059 = vmatpush1.msra.mxu0 0.0
    %5060 = vmatprep.subr.mxu0 0.0
    %5061 = vmatpush1.msra.mxu0 0.0
    %5062 = vmatprep.subr.mxu0 0.0
    %5063 = vmatpush1.msra.mxu0 0.0
    %5064 = vmatprep.subr.mxu0 0.0
    %5065 = vmatpush1.msra.mxu0 0.0
    %5066 = vmatprep.subr.mxu0 0.0
    %5067 = vmatpush1.msra.mxu0 0.0
    %5068 = vmatprep.subr.mxu0 0.0
    %5069 = vmatpush1.msra.mxu0 0.0
    %5070 = vmatprep.subr.mxu0 0.0
    %5071 = vmatpush1.msra.mxu0 0.0
    %5072 = vmatprep.subr.mxu0 0.0
    %5073 = vmatpush1.msra.mxu0 0.0
    %5074 = vmatprep.subr.mxu0 0.0
    %5075 = vmatpush1.msra.mxu0 0.0
    %5076 = vmatprep.subr.mxu0 0.0
    %5077 = vmatpush1.msra.mxu0 0.0
    %5078 = vmatprep.mubr.f32.mxu0 0.0
    %5079 = vmatmul.mubr.f32.gmra.mrb[0].mxu0 %v5003
    %v5080 = vpop.f32.mrb[0].mxu0
    %v5081 = vadd.f32 0.0, %v5080
    %v5082 = vpop.f32.mrb[0].mxu0
    %5083 = vmatprep.mubr.f32.mxu0 0.0
    %5084 = vmatmul.mubr.f32.gmra.mrb[0].mxu0 %v5006
    %v5085 = vpop.f32.mrb[0].mxu0
    %v5086 = vadd.f32 0.0, %v5085
    %v5087 = vpop.f32.mrb[0].mxu0
    %5088 = vmatprep.mubr.f32.mxu0 0.0
    %5089 = vmatmul.mubr.f32.gmra.mrb[0].mxu0 %v5009
    %v5090 = vpop.f32.mrb[0].mxu0
    %v5091 = vadd.f32 0.0, %v5090
    %v5092 = vpop.f32.mrb[0].mxu0
    %5093 = vmatprep.mubr.f32.mxu0 0.0
    %5094 = vmatmul.mubr.f32.gmra.mrb[0].mxu0 %v5012
    %v5095 = vpop.f32.mrb[0].mxu0
    %v5096 = vadd.f32 0.0, %v5095
    %v5097 = vpop.f32.mrb[0].mxu0
    %5098 = vdwg.mxu0
    %v5100 = vsel %vm1234, %v4849, 0
    %v5103 = vsel %vm1234, %v4850, 0
    %v5106 = vsel %vm1234, %v4851, 0
    %v5109 = vsel %vm1234, %v4852, 0
    %5111 = vmatprep.subr.mxu0 0.0
    %5112 = vmatpush1.msra.mxu0 %v4853
    %5113 = vmatprep.subr.mxu0 0.0
    %5114 = vmatpush1.msra.mxu0 %v4854
    %5115 = vmatprep.subr.mxu0 0.0
    %5116 = vmatpush1.msra.mxu0 0.0
    %5117 = vmatprep.subr.mxu0 0.0
    %5118 = vmatpush1.msra.mxu0 0.0
    %5119 = vmatprep.subr.mxu0 0.0
    %5120 = vmatpush1.msra.mxu0 0.0
    %5121 = vmatprep.subr.mxu0 0.0
    %5122 = vmatpush1.msra.mxu0 0.0
    %5123 = vmatprep.subr.mxu0 0.0
    %5124 = vmatpush1.msra.mxu0 0.0
    %5125 = vmatprep.subr.mxu0 0.0
    %5126 = vmatpush1.msra.mxu0 0.0
    %5127 = vmatprep.subr.mxu0 0.0
    %5128 = vmatpush1.msra.mxu0 0.0
    %5129 = vmatprep.subr.mxu0 0.0
    %5130 = vmatpush1.msra.mxu0 0.0
    %5131 = vmatprep.subr.mxu0 0.0
    %5132 = vmatpush1.msra.mxu0 0.0
    %5133 = vmatprep.subr.mxu0 0.0
    %5134 = vmatpush1.msra.mxu0 0.0
    %5135 = vmatprep.subr.mxu0 0.0
    %5136 = vmatpush1.msra.mxu0 0.0
    %5137 = vmatprep.subr.mxu0 0.0
    %5138 = vmatpush1.msra.mxu0 0.0
    %5139 = vmatprep.subr.mxu0 0.0
    %5140 = vmatpush1.msra.mxu0 0.0
    %5141 = vmatprep.subr.mxu0 0.0
    %5142 = vmatpush1.msra.mxu0 0.0
    %5143 = vmatprep.subr.mxu0 0.0
    %5144 = vmatpush1.msra.mxu0 0.0
    %5145 = vmatprep.subr.mxu0 0.0
    %5146 = vmatpush1.msra.mxu0 0.0
    %5147 = vmatprep.subr.mxu0 0.0
    %5148 = vmatpush1.msra.mxu0 0.0
    %5149 = vmatprep.subr.mxu0 0.0
    %5150 = vmatpush1.msra.mxu0 0.0
    %5151 = vmatprep.subr.mxu0 0.0
    %5152 = vmatpush1.msra.mxu0 0.0
    %5153 = vmatprep.subr.mxu0 0.0
    %5154 = vmatpush1.msra.mxu0 0.0
    %5155 = vmatprep.subr.mxu0 0.0
    %5156 = vmatpush1.msra.mxu0 0.0
    %5157 = vmatprep.subr.mxu0 0.0
    %5158 = vmatpush1.msra.mxu0 0.0
    %5159 = vmatprep.subr.mxu0 0.0
    %5160 = vmatpush1.msra.mxu0 0.0
    %5161 = vmatprep.subr.mxu0 0.0
    %5162 = vmatpush1.msra.mxu0 0.0
    %5163 = vmatprep.subr.mxu0 0.0
    %5164 = vmatpush1.msra.mxu0 0.0
    %5165 = vmatprep.subr.mxu0 0.0
    %5166 = vmatpush1.msra.mxu0 0.0
    %5167 = vmatprep.subr.mxu0 0.0
    %5168 = vmatpush1.msra.mxu0 0.0
    %5169 = vmatprep.subr.mxu0 0.0
    %5170 = vmatpush1.msra.mxu0 0.0
    %5171 = vmatprep.subr.mxu0 0.0
    %5172 = vmatpush1.msra.mxu0 0.0
    %5173 = vmatprep.subr.mxu0 0.0
    %5174 = vmatpush1.msra.mxu0 0.0
    %5175 = vmatprep.mubr.f32.mxu0 0.0
    %5176 = vmatmul.mubr.f32.gmra.mrb[0].mxu0 %v5100
    %v5177 = vpop.f32.mrb[0].mxu0
    %v5178 = vadd.f32 %v5081, %v5177
    %v5179 = vpop.f32.mrb[0].mxu0
    %5180 = vmatprep.mubr.f32.mxu0 0.0
    %5181 = vmatmul.mubr.f32.gmra.mrb[0].mxu0 %v5103
    %v5182 = vpop.f32.mrb[0].mxu0
    %v5183 = vadd.f32 %v5086, %v5182
    %v5184 = vpop.f32.mrb[0].mxu0
    %5185 = vmatprep.mubr.f32.mxu0 0.0
    %5186 = vmatmul.mubr.f32.gmra.mrb[0].mxu0 %v5106
    %v5187 = vpop.f32.mrb[0].mxu0
    %v5188 = vadd.f32 %v5091, %v5187
    %v5189 = vpop.f32.mrb[0].mxu0
    %5190 = vmatprep.mubr.f32.mxu0 0.0
    %5191 = vmatmul.mubr.f32.gmra.mrb[0].mxu0 %v5109
    %v5192 = vpop.f32.mrb[0].mxu0
    %v5193 = vadd.f32 %v5096, %v5192
    %v5194 = vpop.f32.mrb[0].mxu0
    %5195 = vdwg.mxu0
    %v5196 = vmul.f32 %v4530, %v499
    %v5197 = vmul.f32 %v4531, %v499
    %v5198 = vmul.f32 %v4532, %v499
    %v5199 = vmul.f32 %v4533, %v499
    %v5201 = vsel %vm591, %v5196, 0
    %v5204 = vsel %vm591, %v5197, 0
    %v5207 = vsel %vm591, %v5198, 0
    %v5210 = vsel %vm591, %v5199, 0
    %5212 = vmatprep.subr.mxu0 0.0
    %5213 = vmatpush1.xpose.msra.mxu0 %v4719
    %5214 = vmatprep.subr.mxu0 0.0
    %5215 = vmatpush1.xpose.msra.mxu0 %v4722
    %5216 = vmatprep.subr.mxu0 0.0
    %5217 = vmatpush1.xpose.msra.mxu0 0.0
    %5218 = vmatprep.subr.mxu0 0.0
    %5219 = vmatpush1.xpose.msra.mxu0 0.0
    %5220 = vmatprep.subr.mxu0 0.0
    %5221 = vmatpush1.xpose.msra.mxu0 0.0
    %5222 = vmatprep.subr.mxu0 0.0
    %5223 = vmatpush1.xpose.msra.mxu0 0.0
    %5224 = vmatprep.subr.mxu0 0.0
    %5225 = vmatpush1.xpose.msra.mxu0 0.0
    %5226 = vmatprep.subr.mxu0 0.0
    %5227 = vmatpush1.xpose.msra.mxu0 0.0
    %5228 = vmatprep.subr.mxu0 0.0
    %5229 = vmatpush1.xpose.msra.mxu0 0.0
    %5230 = vmatprep.subr.mxu0 0.0
    %5231 = vmatpush1.xpose.msra.mxu0 0.0
    %5232 = vmatprep.subr.mxu0 0.0
    %5233 = vmatpush1.xpose.msra.mxu0 0.0
    %5234 = vmatprep.subr.mxu0 0.0
    %5235 = vmatpush1.xpose.msra.mxu0 0.0
    %5236 = vmatprep.subr.mxu0 0.0
    %5237 = vmatpush1.xpose.msra.mxu0 0.0
    %5238 = vmatprep.subr.mxu0 0.0
    %5239 = vmatpush1.xpose.msra.mxu0 0.0
    %5240 = vmatprep.subr.mxu0 0.0
    %5241 = vmatpush1.xpose.msra.mxu0 0.0
    %5242 = vmatprep.subr.mxu0 0.0
    %5243 = vmatpush1.xpose.msra.mxu0 0.0
    %5244 = vmatprep.subr.mxu0 0.0
    %5245 = vmatpush1.xpose.msra.mxu0 0.0
    %5246 = vmatprep.subr.mxu0 0.0
    %5247 = vmatpush1.xpose.msra.mxu0 0.0
    %5248 = vmatprep.subr.mxu0 0.0
    %5249 = vmatpush1.xpose.msra.mxu0 0.0
    %5250 = vmatprep.subr.mxu0 0.0
    %5251 = vmatpush1.xpose.msra.mxu0 0.0
    %5252 = vmatprep.subr.mxu0 0.0
    %5253 = vmatpush1.xpose.msra.mxu0 0.0
    %5254 = vmatprep.subr.mxu0 0.0
    %5255 = vmatpush1.xpose.msra.mxu0 0.0
    %5256 = vmatprep.subr.mxu0 0.0
    %5257 = vmatpush1.xpose.msra.mxu0 0.0
    %5258 = vmatprep.subr.mxu0 0.0
    %5259 = vmatpush1.xpose.msra.mxu0 0.0
    %5260 = vmatprep.subr.mxu0 0.0
    %5261 = vmatpush1.xpose.msra.mxu0 0.0
    %5262 = vmatprep.subr.mxu0 0.0
    %5263 = vmatpush1.xpose.msra.mxu0 0.0
    %5264 = vmatprep.subr.mxu0 0.0
    %5265 = vmatpush1.xpose.msra.mxu0 0.0
    %5266 = vmatprep.subr.mxu0 0.0
    %5267 = vmatpush1.xpose.msra.mxu0 0.0
    %5268 = vmatprep.subr.mxu0 0.0
    %5269 = vmatpush1.xpose.msra.mxu0 0.0
    %5270 = vmatprep.subr.mxu0 0.0
    %5271 = vmatpush1.xpose.msra.mxu0 0.0
    %5272 = vmatprep.subr.mxu0 0.0
    %5273 = vmatpush1.xpose.msra.mxu0 0.0
    %5274 = vmatprep.subr.mxu0 0.0
    %5275 = vmatpush1.xpose.msra.mxu0 0.0
    %5276 = vmatprep.mubr.f32.mxu0 0.0
    %5277 = vmatmul.mubr.f32.gmra.mrb[0].mxu0 %v5201
    %v5278 = vpop.f32.mrb[0].mxu0
    %v5279 = vadd.f32 %v549, %v5278
    %v5280 = vpop.f32.mrb[0].mxu0
    %5281 = vmatprep.mubr.f32.mxu0 0.0
    %5282 = vmatmul.mubr.f32.gmra.mrb[0].mxu0 %v5204
    %v5283 = vpop.f32.mrb[0].mxu0
    %v5284 = vadd.f32 %v550, %v5283
    %v5285 = vpop.f32.mrb[0].mxu0
    %5286 = vmatprep.mubr.f32.mxu0 0.0
    %5287 = vmatmul.mubr.f32.gmra.mrb[0].mxu0 %v5207
    %v5288 = vpop.f32.mrb[0].mxu0
    %v5289 = vadd.f32 %v551, %v5288
    %v5290 = vpop.f32.mrb[0].mxu0
    %5291 = vmatprep.mubr.f32.mxu0 0.0
    %5292 = vmatmul.mubr.f32.gmra.mrb[0].mxu0 %v5210
    %v5293 = vpop.f32.mrb[0].mxu0
    %v5294 = vadd.f32 %v552, %v5293
    %v5295 = vpop.f32.mrb[0].mxu0
    %5296 = vdwg.mxu0
    %v5297 = vsel %vm1234, %v5279, -inf
    %5298 = vmax.xlane.f32.xlu0 %v5297
    %v5299 = vpop.xlane.xlu0 %5298
    %v5300 = vsel %vm1234, %v5284, -inf
    %5301 = vmax.xlane.f32.xlu0 %v5300
    %v5302 = vpop.xlane.xlu0 %5301
    %v5303 = vsel %vm1234, %v5289, -inf
    %5304 = vmax.xlane.f32.xlu0 %v5303
    %v5305 = vpop.xlane.xlu0 %5304
    %v5306 = vsel %vm1234, %v5294, -inf
    %5307 = vmax.xlane.f32.xlu0 %v5306
    %v5308 = vpop.xlane.xlu0 %5307
    %v5309 = vsub.f32 %v5279, %v5299
    %v5310 = vsub.f32 %v5284, %v5302
    %v5311 = vsub.f32 %v5289, %v5305
    %v5312 = vsub.f32 %v5294, %v5308
    %v5313 = vmul.f32 %v5309, 1.442695
    %v5314 = vpow.pop %v5313
    %v5315 = vmul.f32 %v5310, 1.442695
    %v5316 = vpow.pop %v5315
    %v5317 = vmul.f32 %v5311, 1.442695
    %v5318 = vpow.pop %v5317
    %v5319 = vmul.f32 %v5312, 1.442695
    %v5320 = vpow.pop %v5319
    %v5321 = vsel %vm1234, %v5314, 0.0
    %5322 = vadd.xlane.f32.xlu0 %v5321
    %v5323 = vpop.xlane.xlu0 %5322
    %v5324 = vsel %vm1234, %v5316, 0.0
    %5325 = vadd.xlane.f32.xlu0 %v5324
    %v5326 = vpop.xlane.xlu0 %5325
    %v5327 = vsel %vm1234, %v5318, 0.0
    %5328 = vadd.xlane.f32.xlu0 %v5327
    %v5329 = vpop.xlane.xlu0 %5328
    %v5330 = vsel %vm1234, %v5320, 0.0
    %5331 = vadd.xlane.f32.xlu0 %v5330
    %v5332 = vpop.xlane.xlu0 %5331
    %v5333 = vrcp.pop %v5323
    %v5334 = vrcp.pop %v5326
    %v5335 = vrcp.pop %v5329
    %v5336 = vrcp.pop %v5332
    %v5337 = vmul.f32 %v5314, %v5333
    %v5338 = vmul.f32 %v5316, %v5334
    %v5339 = vmul.f32 %v5318, %v5335
    %v5340 = vmul.f32 %v5320, %v5336
    %v5341 = vmul.f32 %v4694, %v499
    %v5342 = vmul.f32 %v4699, %v499
    %v5344 = vsel %vm1234, %v5337, 0
    %v5347 = vsel %vm1234, %v5338, 0
    %v5350 = vsel %vm1234, %v5339, 0
    %v5353 = vsel %vm1234, %v5340, 0
    %5355 = vmatprep.subr.mxu0 0.0
    %5356 = vmatpush1.msra.mxu0 %v5341
    %5357 = vmatprep.subr.mxu0 0.0
    %5358 = vmatpush1.msra.mxu0 %v5342
    %5359 = vmatprep.subr.mxu0 0.0
    %5360 = vmatpush1.msra.mxu0 0.0
    %5361 = vmatprep.subr.mxu0 0.0
    %5362 = vmatpush1.msra.mxu0 0.0
    %5363 = vmatprep.subr.mxu0 0.0
    %5364 = vmatpush1.msra.mxu0 0.0
    %5365 = vmatprep.subr.mxu0 0.0
    %5366 = vmatpush1.msra.mxu0 0.0
    %5367 = vmatprep.subr.mxu0 0.0
    %5368 = vmatpush1.msra.mxu0 0.0
    %5369 = vmatprep.subr.mxu0 0.0
    %5370 = vmatpush1.msra.mxu0 0.0
    %5371 = vmatprep.subr.mxu0 0.0
    %5372 = vmatpush1.msra.mxu0 0.0
    %5373 = vmatprep.subr.mxu0 0.0
    %5374 = vmatpush1.msra.mxu0 0.0
    %5375 = vmatprep.subr.mxu0 0.0
    %5376 = vmatpush1.msra.mxu0 0.0
    %5377 = vmatprep.subr.mxu0 0.0
    %5378 = vmatpush1.msra.mxu0 0.0
    %5379 = vmatprep.subr.mxu0 0.0
    %5380 = vmatpush1.msra.mxu0 0.0
    %5381 = vmatprep.subr.mxu0 0.0
    %5382 = vmatpush1.msra.mxu0 0.0
    %5383 = vmatprep.subr.mxu0 0.0
    %5384 = vmatpush1.msra.mxu0 0.0
    %5385 = vmatprep.subr.mxu0 0.0
    %5386 = vmatpush1.msra.mxu0 0.0
    %5387 = vmatprep.subr.mxu0 0.0
    %5388 = vmatpush1.msra.mxu0 0.0
    %5389 = vmatprep.subr.mxu0 0.0
    %5390 = vmatpush1.msra.mxu0 0.0
    %5391 = vmatprep.subr.mxu0 0.0
    %5392 = vmatpush1.msra.mxu0 0.0
    %5393 = vmatprep.subr.mxu0 0.0
    %5394 = vmatpush1.msra.mxu0 0.0
    %5395 = vmatprep.subr.mxu0 0.0
    %5396 = vmatpush1.msra.mxu0 0.0
    %5397 = vmatprep.subr.mxu0 0.0
    %5398 = vmatpush1.msra.mxu0 0.0
    %5399 = vmatprep.subr.mxu0 0.0
    %5400 = vmatpush1.msra.mxu0 0.0
    %5401 = vmatprep.subr.mxu0 0.0
    %5402 = vmatpush1.msra.mxu0 0.0
    %5403 = vmatprep.subr.mxu0 0.0
    %5404 = vmatpush1.msra.mxu0 0.0
    %5405 = vmatprep.subr.mxu0 0.0
    %5406 = vmatpush1.msra.mxu0 0.0
    %5407 = vmatprep.subr.mxu0 0.0
    %5408 = vmatpush1.msra.mxu0 0.0
    %5409 = vmatprep.subr.mxu0 0.0
    %5410 = vmatpush1.msra.mxu0 0.0
    %5411 = vmatprep.subr.mxu0 0.0
    %5412 = vmatpush1.msra.mxu0 0.0
    %5413 = vmatprep.subr.mxu0 0.0
    %5414 = vmatpush1.msra.mxu0 0.0
    %5415 = vmatprep.subr.mxu0 0.0
    %5416 = vmatpush1.msra.mxu0 0.0
    %5417 = vmatprep.subr.mxu0 0.0
    %5418 = vmatpush1.msra.mxu0 0.0
    %5419 = vmatprep.mubr.f32.mxu0 0.0
    %5420 = vmatmul.mubr.f32.gmra.mrb[0].mxu0 %v5344
    %v5421 = vpop.f32.mrb[0].mxu0
    %v5422 = vadd.f32 0.0, %v5421
    %v5423 = vpop.f32.mrb[0].mxu0
    %5424 = vmatprep.mubr.f32.mxu0 0.0
    %5425 = vmatmul.mubr.f32.gmra.mrb[0].mxu0 %v5347
    %v5426 = vpop.f32.mrb[0].mxu0
    %v5427 = vadd.f32 0.0, %v5426
    %v5428 = vpop.f32.mrb[0].mxu0
    %5429 = vmatprep.mubr.f32.mxu0 0.0
    %5430 = vmatmul.mubr.f32.gmra.mrb[0].mxu0 %v5350
    %v5431 = vpop.f32.mrb[0].mxu0
    %v5432 = vadd.f32 0.0, %v5431
    %v5433 = vpop.f32.mrb[0].mxu0
    %5434 = vmatprep.mubr.f32.mxu0 0.0
    %5435 = vmatmul.mubr.f32.gmra.mrb[0].mxu0 %v5353
    %v5436 = vpop.f32.mrb[0].mxu0
    %v5437 = vadd.f32 0.0, %v5436
    %v5438 = vpop.f32.mrb[0].mxu0
    %5439 = vdwg.mxu0
    %v5440 = vadd.f32 %v5178, %v5422
    %v5441 = vadd.f32 %v5183, %v5427
    %v5442 = vadd.f32 %v5188, %v5432
    %v5443 = vadd.f32 %v5193, %v5437
    %v5444 = vmul.f32 %v4530, %v504
    %v5445 = vmul.f32 %v4531, %v504
    %v5446 = vmul.f32 %v4532, %v504
    %v5447 = vmul.f32 %v4533, %v504
    %v5449 = vsel %vm591, %v5444, 0
    %v5452 = vsel %vm591, %v5445, 0
    %v5455 = vsel %vm591, %v5446, 0
    %v5458 = vsel %vm591, %v5447, 0
    %5460 = vmatprep.subr.mxu0 0.0
    %5461 = vmatpush1.xpose.msra.mxu0 %v4719
    %5462 = vmatprep.subr.mxu0 0.0
    %5463 = vmatpush1.xpose.msra.mxu0 %v4722
    %5464 = vmatprep.subr.mxu0 0.0
    %5465 = vmatpush1.xpose.msra.mxu0 0.0
    %5466 = vmatprep.subr.mxu0 0.0
    %5467 = vmatpush1.xpose.msra.mxu0 0.0
    %5468 = vmatprep.subr.mxu0 0.0
    %5469 = vmatpush1.xpose.msra.mxu0 0.0
    %5470 = vmatprep.subr.mxu0 0.0
    %5471 = vmatpush1.xpose.msra.mxu0 0.0
    %5472 = vmatprep.subr.mxu0 0.0
    %5473 = vmatpush1.xpose.msra.mxu0 0.0
    %5474 = vmatprep.subr.mxu0 0.0
    %5475 = vmatpush1.xpose.msra.mxu0 0.0
    %5476 = vmatprep.subr.mxu0 0.0
    %5477 = vmatpush1.xpose.msra.mxu0 0.0
    %5478 = vmatprep.subr.mxu0 0.0
    %5479 = vmatpush1.xpose.msra.mxu0 0.0
    %5480 = vmatprep.subr.mxu0 0.0
    %5481 = vmatpush1.xpose.msra.mxu0 0.0
    %5482 = vmatprep.subr.mxu0 0.0
    %5483 = vmatpush1.xpose.msra.mxu0 0.0
    %5484 = vmatprep.subr.mxu0 0.0
    %5485 = vmatpush1.xpose.msra.mxu0 0.0
    %5486 = vmatprep.subr.mxu0 0.0
    %5487 = vmatpush1.xpose.msra.mxu0 0.0
    %5488 = vmatprep.subr.mxu0 0.0
    %5489 = vmatpush1.xpose.msra.mxu0 0.0
    %5490 = vmatprep.subr.mxu0 0.0
    %5491 = vmatpush1.xpose.msra.mxu0 0.0
    %5492 = vmatprep.subr.mxu0 0.0
    %5493 = vmatpush1.xpose.msra.mxu0 0.0
    %5494 = vmatprep.subr.mxu0 0.0
    %5495 = vmatpush1.xpose.msra.mxu0 0.0
    %5496 = vmatprep.subr.mxu0 0.0
    %5497 = vmatpush1.xpose.msra.mxu0 0.0
    %5498 = vmatprep.subr.mxu0 0.0
    %5499 = vmatpush1.xpose.msra.mxu0 0.0
    %5500 = vmatprep.subr.mxu0 0.0
    %5501 = vmatpush1.xpose.msra.mxu0 0.0
    %5502 = vmatprep.subr.mxu0 0.0
    %5503 = vmatpush1.xpose.msra.mxu0 0.0
    %5504 = vmatprep.subr.mxu0 0.0
    %5505 = vmatpush1.xpose.msra.mxu0 0.0
    %5506 = vmatprep.subr.mxu0 0.0
    %5507 = vmatpush1.xpose.msra.mxu0 0.0
    %5508 = vmatprep.subr.mxu0 0.0
    %5509 = vmatpush1.xpose.msra.mxu0 0.0
    %5510 = vmatprep.subr.mxu0 0.0
    %5511 = vmatpush1.xpose.msra.mxu0 0.0
    %5512 = vmatprep.subr.mxu0 0.0
    %5513 = vmatpush1.xpose.msra.mxu0 0.0
    %5514 = vmatprep.subr.mxu0 0.0
    %5515 = vmatpush1.xpose.msra.mxu0 0.0
    %5516 = vmatprep.subr.mxu0 0.0
    %5517 = vmatpush1.xpose.msra.mxu0 0.0
    %5518 = vmatprep.subr.mxu0 0.0
    %5519 = vmatpush1.xpose.msra.mxu0 0.0
    %5520 = vmatprep.subr.mxu0 0.0
    %5521 = vmatpush1.xpose.msra.mxu0 0.0
    %5522 = vmatprep.subr.mxu0 0.0
    %5523 = vmatpush1.xpose.msra.mxu0 0.0
    %5524 = vmatprep.mubr.f32.mxu0 0.0
    %5525 = vmatmul.mubr.f32.gmra.mrb[0].mxu0 %v5449
    %v5526 = vpop.f32.mrb[0].mxu0
    %v5527 = vadd.f32 %v549, %v5526
    %v5528 = vpop.f32.mrb[0].mxu0
    %5529 = vmatprep.mubr.f32.mxu0 0.0
    %5530 = vmatmul.mubr.f32.gmra.mrb[0].mxu0 %v5452
    %v5531 = vpop.f32.mrb[0].mxu0
    %v5532 = vadd.f32 %v550, %v5531
    %v5533 = vpop.f32.mrb[0].mxu0
    %5534 = vmatprep.mubr.f32.mxu0 0.0
    %5535 = vmatmul.mubr.f32.gmra.mrb[0].mxu0 %v5455
    %v5536 = vpop.f32.mrb[0].mxu0
    %v5537 = vadd.f32 %v551, %v5536
    %v5538 = vpop.f32.mrb[0].mxu0
    %5539 = vmatprep.mubr.f32.mxu0 0.0
    %5540 = vmatmul.mubr.f32.gmra.mrb[0].mxu0 %v5458
    %v5541 = vpop.f32.mrb[0].mxu0
    %v5542 = vadd.f32 %v552, %v5541
    %v5543 = vpop.f32.mrb[0].mxu0
    %5544 = vdwg.mxu0
    %v5545 = vsel %vm1234, %v5527, -inf
    %5546 = vmax.xlane.f32.xlu0 %v5545
    %v5547 = vpop.xlane.xlu0 %5546
    %v5548 = vsel %vm1234, %v5532, -inf
    %5549 = vmax.xlane.f32.xlu0 %v5548
    %v5550 = vpop.xlane.xlu0 %5549
    %v5551 = vsel %vm1234, %v5537, -inf
    %5552 = vmax.xlane.f32.xlu0 %v5551
    %v5553 = vpop.xlane.xlu0 %5552
    %v5554 = vsel %vm1234, %v5542, -inf
    %5555 = vmax.xlane.f32.xlu0 %v5554
    %v5556 = vpop.xlane.xlu0 %5555
    %v5557 = vsub.f32 %v5527, %v5547
    %v5558 = vsub.f32 %v5532, %v5550
    %v5559 = vsub.f32 %v5537, %v5553
    %v5560 = vsub.f32 %v5542, %v5556
    %v5561 = vmul.f32 %v5557, 1.442695
    %v5562 = vpow.pop %v5561
    %v5563 = vmul.f32 %v5558, 1.442695
    %v5564 = vpow.pop %v5563
    %v5565 = vmul.f32 %v5559, 1.442695
    %v5566 = vpow.pop %v5565
    %v5567 = vmul.f32 %v5560, 1.442695
    %v5568 = vpow.pop %v5567
    %v5569 = vsel %vm1234, %v5562, 0.0
    %5570 = vadd.xlane.f32.xlu0 %v5569
    %v5571 = vpop.xlane.xlu0 %5570
    %v5572 = vsel %vm1234, %v5564, 0.0
    %5573 = vadd.xlane.f32.xlu0 %v5572
    %v5574 = vpop.xlane.xlu0 %5573
    %v5575 = vsel %vm1234, %v5566, 0.0
    %5576 = vadd.xlane.f32.xlu0 %v5575
    %v5577 = vpop.xlane.xlu0 %5576
    %v5578 = vsel %vm1234, %v5568, 0.0
    %5579 = vadd.xlane.f32.xlu0 %v5578
    %v5580 = vpop.xlane.xlu0 %5579
    %v5581 = vrcp.pop %v5571
    %v5582 = vrcp.pop %v5574
    %v5583 = vrcp.pop %v5577
    %v5584 = vrcp.pop %v5580
    %v5585 = vmul.f32 %v5562, %v5581
    %v5586 = vmul.f32 %v5564, %v5582
    %v5587 = vmul.f32 %v5566, %v5583
    %v5588 = vmul.f32 %v5568, %v5584
    %v5589 = vmul.f32 %v4694, %v504
    %v5590 = vmul.f32 %v4699, %v504
    %v5592 = vsel %vm1234, %v5585, 0
    %v5595 = vsel %vm1234, %v5586, 0
    %v5598 = vsel %vm1234, %v5587, 0
    %v5601 = vsel %vm1234, %v5588, 0
    %5603 = vmatprep.subr.mxu0 0.0
    %5604 = vmatpush1.msra.mxu0 %v5589
    %5605 = vmatprep.subr.mxu0 0.0
    %5606 = vmatpush1.msra.mxu0 %v5590
    %5607 = vmatprep.subr.mxu0 0.0
    %5608 = vmatpush1.msra.mxu0 0.0
    %5609 = vmatprep.subr.mxu0 0.0
    %5610 = vmatpush1.msra.mxu0 0.0
    %5611 = vmatprep.subr.mxu0 0.0
    %5612 = vmatpush1.msra.mxu0 0.0
    %5613 = vmatprep.subr.mxu0 0.0
    %5614 = vmatpush1.msra.mxu0 0.0
    %5615 = vmatprep.subr.mxu0 0.0
    %5616 = vmatpush1.msra.mxu0 0.0
    %5617 = vmatprep.subr.mxu0 0.0
    %5618 = vmatpush1.msra.mxu0 0.0
    %5619 = vmatprep.subr.mxu0 0.0
    %5620 = vmatpush1.msra.mxu0 0.0
    %5621 = vmatprep.subr.mxu0 0.0
    %5622 = vmatpush1.msra.mxu0 0.0
    %5623 = vmatprep.subr.mxu0 0.0
    %5624 = vmatpush1.msra.mxu0 0.0
    %5625 = vmatprep.subr.mxu0 0.0
    %5626 = vmatpush1.msra.mxu0 0.0
    %5627 = vmatprep.subr.mxu0 0.0
    %5628 = vmatpush1.msra.mxu0 0.0
    %5629 = vmatprep.subr.mxu0 0.0
    %5630 = vmatpush1.msra.mxu0 0.0
    %5631 = vmatprep.subr.mxu0 0.0
    %5632 = vmatpush1.msra.mxu0 0.0
    %5633 = vmatprep.subr.mxu0 0.0
    %5634 = vmatpush1.msra.mxu0 0.0
    %5635 = vmatprep.subr.mxu0 0.0
    %5636 = vmatpush1.msra.mxu0 0.0
    %5637 = vmatprep.subr.mxu0 0.0
    %5638 = vmatpush1.msra.mxu0 0.0
    %5639 = vmatprep.subr.mxu0 0.0
    %5640 = vmatpush1.msra.mxu0 0.0
    %5641 = vmatprep.subr.mxu0 0.0
    %5642 = vmatpush1.msra.mxu0 0.0
    %5643 = vmatprep.subr.mxu0 0.0
    %5644 = vmatpush1.msra.mxu0 0.0
    %5645 = vmatprep.subr.mxu0 0.0
    %5646 = vmatpush1.msra.mxu0 0.0
    %5647 = vmatprep.subr.mxu0 0.0
    %5648 = vmatpush1.msra.mxu0 0.0
    %5649 = vmatprep.subr.mxu0 0.0
    %5650 = vmatpush1.msra.mxu0 0.0
    %5651 = vmatprep.subr.mxu0 0.0
    %5652 = vmatpush1.msra.mxu0 0.0
    %5653 = vmatprep.subr.mxu0 0.0
    %5654 = vmatpush1.msra.mxu0 0.0
    %5655 = vmatprep.subr.mxu0 0.0
    %5656 = vmatpush1.msra.mxu0 0.0
    %5657 = vmatprep.subr.mxu0 0.0
    %5658 = vmatpush1.msra.mxu0 0.0
    %5659 = vmatprep.subr.mxu0 0.0
    %5660 = vmatpush1.msra.mxu0 0.0
    %5661 = vmatprep.subr.mxu0 0.0
    %5662 = vmatpush1.msra.mxu0 0.0
    %5663 = vmatprep.subr.mxu0 0.0
    %5664 = vmatpush1.msra.mxu0 0.0
    %5665 = vmatprep.subr.mxu0 0.0
    %5666 = vmatpush1.msra.mxu0 0.0
    %5667 = vmatprep.mubr.f32.mxu0 0.0
    %5668 = vmatmul.mubr.f32.gmra.mrb[0].mxu0 %v5592
    %v5669 = vpop.f32.mrb[0].mxu0
    %v5670 = vadd.f32 0.0, %v5669
    %v5671 = vpop.f32.mrb[0].mxu0
    %5672 = vmatprep.mubr.f32.mxu0 0.0
    %5673 = vmatmul.mubr.f32.gmra.mrb[0].mxu0 %v5595
    %v5674 = vpop.f32.mrb[0].mxu0
    %v5675 = vadd.f32 0.0, %v5674
    %v5676 = vpop.f32.mrb[0].mxu0
    %5677 = vmatprep.mubr.f32.mxu0 0.0
    %5678 = vmatmul.mubr.f32.gmra.mrb[0].mxu0 %v5598
    %v5679 = vpop.f32.mrb[0].mxu0
    %v5680 = vadd.f32 0.0, %v5679
    %v5681 = vpop.f32.mrb[0].mxu0
    %5682 = vmatprep.mubr.f32.mxu0 0.0
    %5683 = vmatmul.mubr.f32.gmra.mrb[0].mxu0 %v5601
    %v5684 = vpop.f32.mrb[0].mxu0
    %v5685 = vadd.f32 0.0, %v5684
    %v5686 = vpop.f32.mrb[0].mxu0
    %5687 = vdwg.mxu0
    %v5688 = vadd.f32 %v5440, %v5670
    %v5689 = vadd.f32 %v5441, %v5675
    %v5690 = vadd.f32 %v5442, %v5680
    %v5691 = vadd.f32 %v5443, %v5685
    %v5693 = vlaneseq
    %v5694 = vshrl.u32 %v5693, 7
    %v5695 = vsub.s32 0, %v5694
    %v5696 = vrot.slane %v4426, %v5695
    %v5699 = vsel %vm591, %v5688, 0
    %v5702 = vsel %vm591, %v5689, 0
    %v5705 = vsel %vm591, %v5690, 0
    %v5708 = vsel %vm591, %v5691, 0
    %5710 = vmatprep.subr.mxu0 0.0
    %5711 = vmatpush1.msra.mxu0 %v4421
    %5712 = vmatprep.subr.mxu0 0.0
    %5713 = vmatpush1.msra.mxu0 %v4422
    %5714 = vmatprep.subr.mxu0 0.0
    %5715 = vmatpush1.msra.mxu0 %v4423
    %5716 = vmatprep.subr.mxu0 0.0
    %5717 = vmatpush1.msra.mxu0 %v4424
    %5718 = vmatprep.subr.mxu0 0.0
    %5719 = vmatpush1.msra.mxu0 0.0
    %5720 = vmatprep.subr.mxu0 0.0
    %5721 = vmatpush1.msra.mxu0 0.0
    %5722 = vmatprep.subr.mxu0 0.0
    %5723 = vmatpush1.msra.mxu0 0.0
    %5724 = vmatprep.subr.mxu0 0.0
    %5725 = vmatpush1.msra.mxu0 0.0
    %5726 = vmatprep.subr.mxu0 0.0
    %5727 = vmatpush1.msra.mxu0 0.0
    %5728 = vmatprep.subr.mxu0 0.0
    %5729 = vmatpush1.msra.mxu0 0.0
    %5730 = vmatprep.subr.mxu0 0.0
    %5731 = vmatpush1.msra.mxu0 0.0
    %5732 = vmatprep.subr.mxu0 0.0
    %5733 = vmatpush1.msra.mxu0 0.0
    %5734 = vmatprep.subr.mxu0 0.0
    %5735 = vmatpush1.msra.mxu0 0.0
    %5736 = vmatprep.subr.mxu0 0.0
    %5737 = vmatpush1.msra.mxu0 0.0
    %5738 = vmatprep.subr.mxu0 0.0
    %5739 = vmatpush1.msra.mxu0 0.0
    %5740 = vmatprep.subr.mxu0 0.0
    %5741 = vmatpush1.msra.mxu0 0.0
    %5742 = vmatprep.subr.mxu0 0.0
    %5743 = vmatpush1.msra.mxu0 0.0
    %5744 = vmatprep.subr.mxu0 0.0
    %5745 = vmatpush1.msra.mxu0 0.0
    %5746 = vmatprep.subr.mxu0 0.0
    %5747 = vmatpush1.msra.mxu0 0.0
    %5748 = vmatprep.subr.mxu0 0.0
    %5749 = vmatpush1.msra.mxu0 0.0
    %5750 = vmatprep.subr.mxu0 0.0
    %5751 = vmatpush1.msra.mxu0 0.0
    %5752 = vmatprep.subr.mxu0 0.0
    %5753 = vmatpush1.msra.mxu0 0.0
    %5754 = vmatprep.subr.mxu0 0.0
    %5755 = vmatpush1.msra.mxu0 0.0
    %5756 = vmatprep.subr.mxu0 0.0
    %5757 = vmatpush1.msra.mxu0 0.0
    %5758 = vmatprep.subr.mxu0 0.0
    %5759 = vmatpush1.msra.mxu0 0.0
    %5760 = vmatprep.subr.mxu0 0.0
    %5761 = vmatpush1.msra.mxu0 0.0
    %5762 = vmatprep.subr.mxu0 0.0
    %5763 = vmatpush1.msra.mxu0 0.0
    %5764 = vmatprep.subr.mxu0 0.0
    %5765 = vmatpush1.msra.mxu0 0.0
    %5766 = vmatprep.subr.mxu0 0.0
    %5767 = vmatpush1.msra.mxu0 0.0
    %5768 = vmatprep.subr.mxu0 0.0
    %5769 = vmatpush1.msra.mxu0 0.0
    %5770 = vmatprep.subr.mxu0 0.0
    %5771 = vmatpush1.msra.mxu0 0.0
    %5772 = vmatprep.subr.mxu0 0.0
    %5773 = vmatpush1.msra.mxu0 0.0
    %5774 = vmatprep.mubr.f32.mxu0 0.0
    %5775 = vmatmul.mubr.f32.gmra.mrb[0].mxu0 %v5699
    %v5776 = vpop.f32.mrb[0].mxu0
    %v5777 = vadd.f32 %v5696, %v5776
    %v5778 = vpop.f32.mrb[0].mxu0
    %5779 = vmatprep.mubr.f32.mxu0 0.0
    %5780 = vmatmul.mubr.f32.gmra.mrb[0].mxu0 %v5702
    %v5781 = vpop.f32.mrb[0].mxu0
    %v5782 = vadd.f32 %v5696, %v5781
    %v5783 = vpop.f32.mrb[0].mxu0
    %5784 = vmatprep.mubr.f32.mxu0 0.0
    %5785 = vmatmul.mubr.f32.gmra.mrb[0].mxu0 %v5705
    %v5786 = vpop.f32.mrb[0].mxu0
    %v5787 = vadd.f32 %v5696, %v5786
    %v5788 = vpop.f32.mrb[0].mxu0
    %5789 = vmatprep.mubr.f32.mxu0 0.0
    %5790 = vmatmul.mubr.f32.gmra.mrb[0].mxu0 %v5708
    %v5791 = vpop.f32.mrb[0].mxu0
    %v5792 = vadd.f32 %v5696, %v5791
    %v5793 = vpop.f32.mrb[0].mxu0
    %5794 = vdwg.mxu0
    %v5795 = vadd.f32 %v4391, %v5777
    %v5796 = vadd.f32 %v4392, %v5782
    %v5797 = vadd.f32 %v4393, %v5787
    %v5798 = vadd.f32 %v4394, %v5792
    %s5799 = scalar_lea.vmem [#allocation28], 1
    %v5800 = vld [vmem:[%s5799] sm:$0x1]
    %s5801 = scalar_lea.vmem [#allocation30], 1
    %v5802 = vld [vmem:[%s5801] sm:$0x1]
    %v5803 = vsel %vm591, %v5795, 0.0
    %5804 = vadd.xlane.f32.xlu0 %v5803
    %v5805 = vpop.xlane.xlu0 %5804
    %v5806 = vsel %vm591, %v5796, 0.0
    %5807 = vadd.xlane.f32.xlu0 %v5806
    %v5808 = vpop.xlane.xlu0 %5807
    %v5809 = vsel %vm591, %v5797, 0.0
    %5810 = vadd.xlane.f32.xlu0 %v5809
    %v5811 = vpop.xlane.xlu0 %5810
    %v5812 = vsel %vm591, %v5798, 0.0
    %5813 = vadd.xlane.f32.xlu0 %v5812
    %v5814 = vpop.xlane.xlu0 %5813
    %v5815 = vmul.f32 %v5805, %v791
    %v5816 = vmul.f32 %v5808, %v791
    %v5817 = vmul.f32 %v5811, %v791
    %v5818 = vmul.f32 %v5814, %v791
    %v5819 = vsub.f32 %v5795, %v5815
    %v5820 = vsub.f32 %v5796, %v5816
    %v5821 = vsub.f32 %v5797, %v5817
    %v5822 = vsub.f32 %v5798, %v5818
    %v5823 = vmul.f32 %v5819, %v5819
    %v5824 = vmul.f32 %v5820, %v5820
    %v5825 = vmul.f32 %v5821, %v5821
    %v5826 = vmul.f32 %v5822, %v5822
    %v5827 = vsel %vm591, %v5823, 0.0
    %5828 = vadd.xlane.f32.xlu0 %v5827
    %v5829 = vpop.xlane.xlu0 %5828
    %v5830 = vsel %vm591, %v5824, 0.0
    %5831 = vadd.xlane.f32.xlu0 %v5830
    %v5832 = vpop.xlane.xlu0 %5831
    %v5833 = vsel %vm591, %v5825, 0.0
    %5834 = vadd.xlane.f32.xlu0 %v5833
    %v5835 = vpop.xlane.xlu0 %5834
    %v5836 = vsel %vm591, %v5826, 0.0
    %5837 = vadd.xlane.f32.xlu0 %v5836
    %v5838 = vpop.xlane.xlu0 %5837
    %v5839 = vmul.f32 %v5829, %v791
    %v5840 = vmul.f32 %v5832, %v791
    %v5841 = vmul.f32 %v5835, %v791
    %v5842 = vmul.f32 %v5838, %v791
    %v5843 = vadd.f32 %v5839, 1e-05
    %v5844 = vadd.f32 %v5840, 1e-05
    %v5845 = vadd.f32 %v5841, 1e-05
    %v5846 = vadd.f32 %v5842, 1e-05
    %v5847 = vrsqrt.pop %v5843
    %v5848 = vrsqrt.pop %v5844
    %v5849 = vrsqrt.pop %v5845
    %v5850 = vrsqrt.pop %v5846
    %v5851 = vmul.f32 %v5819, %v5847
    %v5852 = vmul.f32 %v5820, %v5848
    %v5853 = vmul.f32 %v5821, %v5849
    %v5854 = vmul.f32 %v5822, %v5850
    %v5856 = vlaneseq
    %v5857 = vshrl.u32 %v5856, 7
    %v5858 = vsub.s32 0, %v5857
    %v5859 = vrot.slane %v5800, %v5858
    %v5861 = vmul.f32 %v5851, %v5859
    %v5862 = vmul.f32 %v5852, %v5859
    %v5863 = vmul.f32 %v5853, %v5859
    %v5864 = vmul.f32 %v5854, %v5859
    %v5866 = vlaneseq
    %v5867 = vshrl.u32 %v5866, 7
    %v5868 = vsub.s32 0, %v5867
    %v5869 = vrot.slane %v5802, %v5868
    %v5871 = vadd.f32 %v5861, %v5869
    %v5872 = vadd.f32 %v5862, %v5869
    %v5873 = vadd.f32 %v5863, %v5869
    %v5874 = vadd.f32 %v5864, %v5869
    %s5875 = scalar_lea.vmem [#allocation31], 32
    %v5876 = vld [vmem:[%s5875] sm:$0xff]
    %v5877 = vld [vmem:[%s5875 + $0x8] sm:$0xff]
    %v5878 = vld [vmem:[%s5875 + $0x10] sm:$0xff]
    %v5879 = vld [vmem:[%s5875 + $0x18] sm:$0xff]
    %s5880 = scalar_lea.vmem [#allocation33], 1
    %v5881 = vld [vmem:[%s5880] sm:$0x1]
    %v5883 = vlaneseq
    %v5884 = vshrl.u32 %v5883, 7
    %v5885 = vsub.s32 0, %v5884
    %v5886 = vrot.slane %v5881, %v5885
    %v5889 = vsel %vm591, %v5871, 0
    %v5892 = vsel %vm591, %v5872, 0
    %v5895 = vsel %vm591, %v5873, 0
    %v5898 = vsel %vm591, %v5874, 0
    %5900 = vmatprep.subr.mxu0 0.0
    %5901 = vmatpush1.msra.mxu0 %v5876
    %5902 = vmatprep.subr.mxu0 0.0
    %5903 = vmatpush1.msra.mxu0 %v5877
    %5904 = vmatprep.subr.mxu0 0.0
    %5905 = vmatpush1.msra.mxu0 %v5878
    %5906 = vmatprep.subr.mxu0 0.0
    %5907 = vmatpush1.msra.mxu0 %v5879
    %5908 = vmatprep.subr.mxu0 0.0
    %5909 = vmatpush1.msra.mxu0 0.0
    %5910 = vmatprep.subr.mxu0 0.0
    %5911 = vmatpush1.msra.mxu0 0.0
    %5912 = vmatprep.subr.mxu0 0.0
    %5913 = vmatpush1.msra.mxu0 0.0
    %5914 = vmatprep.subr.mxu0 0.0
    %5915 = vmatpush1.msra.mxu0 0.0
    %5916 = vmatprep.subr.mxu0 0.0
    %5917 = vmatpush1.msra.mxu0 0.0
    %5918 = vmatprep.subr.mxu0 0.0
    %5919 = vmatpush1.msra.mxu0 0.0
    %5920 = vmatprep.subr.mxu0 0.0
    %5921 = vmatpush1.msra.mxu0 0.0
    %5922 = vmatprep.subr.mxu0 0.0
    %5923 = vmatpush1.msra.mxu0 0.0
    %5924 = vmatprep.subr.mxu0 0.0
    %5925 = vmatpush1.msra.mxu0 0.0
    %5926 = vmatprep.subr.mxu0 0.0
    %5927 = vmatpush1.msra.mxu0 0.0
    %5928 = vmatprep.subr.mxu0 0.0
    %5929 = vmatpush1.msra.mxu0 0.0
    %5930 = vmatprep.subr.mxu0 0.0
    %5931 = vmatpush1.msra.mxu0 0.0
    %5932 = vmatprep.subr.mxu0 0.0
    %5933 = vmatpush1.msra.mxu0 0.0
    %5934 = vmatprep.subr.mxu0 0.0
    %5935 = vmatpush1.msra.mxu0 0.0
    %5936 = vmatprep.subr.mxu0 0.0
    %5937 = vmatpush1.msra.mxu0 0.0
    %5938 = vmatprep.subr.mxu0 0.0
    %5939 = vmatpush1.msra.mxu0 0.0
    %5940 = vmatprep.subr.mxu0 0.0
    %5941 = vmatpush1.msra.mxu0 0.0
    %5942 = vmatprep.subr.mxu0 0.0
    %5943 = vmatpush1.msra.mxu0 0.0
    %5944 = vmatprep.subr.mxu0 0.0
    %5945 = vmatpush1.msra.mxu0 0.0
    %5946 = vmatprep.subr.mxu0 0.0
    %5947 = vmatpush1.msra.mxu0 0.0
    %5948 = vmatprep.subr.mxu0 0.0
    %5949 = vmatpush1.msra.mxu0 0.0
    %5950 = vmatprep.subr.mxu0 0.0
    %5951 = vmatpush1.msra.mxu0 0.0
    %5952 = vmatprep.subr.mxu0 0.0
    %5953 = vmatpush1.msra.mxu0 0.0
    %5954 = vmatprep.subr.mxu0 0.0
    %5955 = vmatpush1.msra.mxu0 0.0
    %5956 = vmatprep.subr.mxu0 0.0
    %5957 = vmatpush1.msra.mxu0 0.0
    %5958 = vmatprep.subr.mxu0 0.0
    %5959 = vmatpush1.msra.mxu0 0.0
    %5960 = vmatprep.subr.mxu0 0.0
    %5961 = vmatpush1.msra.mxu0 0.0
    %5962 = vmatprep.subr.mxu0 0.0
    %5963 = vmatpush1.msra.mxu0 0.0
    %5964 = vmatprep.mubr.f32.mxu0 0.0
    %5965 = vmatmul.mubr.f32.gmra.mrb[0].mxu0 %v5889
    %v5966 = vpop.f32.mrb[0].mxu0
    %v5967 = vadd.f32 %v5886, %v5966
    %v5968 = vpop.f32.mrb[0].mxu0
    %5969 = vmatprep.mubr.f32.mxu0 0.0
    %5970 = vmatmul.mubr.f32.gmra.mrb[0].mxu0 %v5892
    %v5971 = vpop.f32.mrb[0].mxu0
    %v5972 = vadd.f32 %v5886, %v5971
    %v5973 = vpop.f32.mrb[0].mxu0
    %5974 = vmatprep.mubr.f32.mxu0 0.0
    %5975 = vmatmul.mubr.f32.gmra.mrb[0].mxu0 %v5895
    %v5976 = vpop.f32.mrb[0].mxu0
    %v5977 = vadd.f32 %v5886, %v5976
    %v5978 = vpop.f32.mrb[0].mxu0
    %5979 = vmatprep.mubr.f32.mxu0 0.0
    %5980 = vmatmul.mubr.f32.gmra.mrb[0].mxu0 %v5898
    %v5981 = vpop.f32.mrb[0].mxu0
    %v5982 = vadd.f32 %v5886, %v5981
    %v5983 = vpop.f32.mrb[0].mxu0
    %5984 = vdwg.mxu0
    %v5985 = vmul.f32 %v5967, %v5967
    %v5986 = vmul.f32 %v5972, %v5972
    %v5987 = vmul.f32 %v5977, %v5977
    %v5988 = vmul.f32 %v5982, %v5982
    %v5989 = vmul.f32 %v5967, %v5985
    %v5990 = vmul.f32 %v5972, %v5986
    %v5991 = vmul.f32 %v5977, %v5987
    %v5992 = vmul.f32 %v5982, %v5988
    %v5993 = vmul.f32 %v5989, 0.044715
    %v5994 = vmul.f32 %v5990, 0.044715
    %v5995 = vmul.f32 %v5991, 0.044715
    %v5996 = vmul.f32 %v5992, 0.044715
    %v5997 = vadd.f32 %v5967, %v5993
    %v5998 = vadd.f32 %v5972, %v5994
    %v5999 = vadd.f32 %v5977, %v5995
    %v6000 = vadd.f32 %v5982, %v5996
    %v6001 = vmul.f32 %v5997, 0.7978846
    %v6002 = vmul.f32 %v5998, 0.7978846
    %v6003 = vmul.f32 %v5999, 0.7978846
    %v6004 = vmul.f32 %v6000, 0.7978846
    %v6005 = vtanh.pop %v6001
    %v6006 = vtanh.pop %v6002
    %v6007 = vtanh.pop %v6003
    %v6008 = vtanh.pop %v6004
    %v6009 = vadd.f32 %v6005, 1.0
    %v6010 = vadd.f32 %v6006, 1.0
    %v6011 = vadd.f32 %v6007, 1.0
    %v6012 = vadd.f32 %v6008, 1.0
    %v6013 = vmul.f32 %v6009, 0.5
    %v6014 = vmul.f32 %v6010, 0.5
    %v6015 = vmul.f32 %v6011, 0.5
    %v6016 = vmul.f32 %v6012, 0.5
    %v6017 = vmul.f32 %v5967, %v6013
    %v6018 = vmul.f32 %v5972, %v6014
    %v6019 = vmul.f32 %v5977, %v6015
    %v6020 = vmul.f32 %v5982, %v6016
    %s6021 = scalar_lea.vmem %s65, 128
    %v6022 = vld [vmem:[%s6021] sm:$0xff]
    %v6023 = vld [vmem:[%s6021 + $0x8] sm:$0xff]
    %v6024 = vld [vmem:[%s6021 + $0x10] sm:$0xff]
    %v6025 = vld [vmem:[%s6021 + $0x18] sm:$0xff]
    %v6026 = vld [vmem:[%s6021 + $0x20] sm:$0xff]
    %v6027 = vld [vmem:[%s6021 + $0x28] sm:$0xff]
    %v6028 = vld [vmem:[%s6021 + $0x30] sm:$0xff]
    %v6029 = vld [vmem:[%s6021 + $0x38] sm:$0xff]
    %v6030 = vld [vmem:[%s6021 + $0x40] sm:$0xff]
    %v6031 = vld [vmem:[%s6021 + $0x48] sm:$0xff]
    %v6032 = vld [vmem:[%s6021 + $0x50] sm:$0xff]
    %v6033 = vld [vmem:[%s6021 + $0x58] sm:$0xff]
    %v6034 = vld [vmem:[%s6021 + $0x60] sm:$0xff]
    %v6035 = vld [vmem:[%s6021 + $0x68] sm:$0xff]
    %v6036 = vld [vmem:[%s6021 + $0x70] sm:$0xff]
    %v6037 = vld [vmem:[%s6021 + $0x78] sm:$0xff]
    %s6038 = scalar_lea.vmem [#allocation34], 1
    %v6039 = vld [vmem:[%s6038] sm:$0x1]
    %v6041 = vlaneseq
    %v6042 = vshrl.u32 %v6041, 7
    %v6043 = vsub.s32 0, %v6042
    %v6044 = vrot.slane %v6039, %v6043
    %6046 = vmatprep.subr.mxu0 0.0
    %6047 = vmatpush1.msra.mxu0 %v6022
    %6048 = vmatprep.subr.mxu0 0.0
    %6049 = vmatpush1.msra.mxu0 %v6023
    %6050 = vmatprep.subr.mxu0 0.0
    %6051 = vmatpush1.msra.mxu0 %v6024
    %6052 = vmatprep.subr.mxu0 0.0
    %6053 = vmatpush1.msra.mxu0 %v6025
    %6054 = vmatprep.subr.mxu0 0.0
    %6055 = vmatpush1.msra.mxu0 %v6026
    %6056 = vmatprep.subr.mxu0 0.0
    %6057 = vmatpush1.msra.mxu0 %v6027
    %6058 = vmatprep.subr.mxu0 0.0
    %6059 = vmatpush1.msra.mxu0 %v6028
    %6060 = vmatprep.subr.mxu0 0.0
    %6061 = vmatpush1.msra.mxu0 %v6029
    %6062 = vmatprep.subr.mxu0 0.0
    %6063 = vmatpush1.msra.mxu0 %v6030
    %6064 = vmatprep.subr.mxu0 0.0
    %6065 = vmatpush1.msra.mxu0 %v6031
    %6066 = vmatprep.subr.mxu0 0.0
    %6067 = vmatpush1.msra.mxu0 %v6032
    %6068 = vmatprep.subr.mxu0 0.0
    %6069 = vmatpush1.msra.mxu0 %v6033
    %6070 = vmatprep.subr.mxu0 0.0
    %6071 = vmatpush1.msra.mxu0 %v6034
    %6072 = vmatprep.subr.mxu0 0.0
    %6073 = vmatpush1.msra.mxu0 %v6035
    %6074 = vmatprep.subr.mxu0 0.0
    %6075 = vmatpush1.msra.mxu0 %v6036
    %6076 = vmatprep.subr.mxu0 0.0
    %6077 = vmatpush1.msra.mxu0 %v6037
    %6078 = vmatprep.subr.mxu0 0.0
    %6079 = vmatpush1.msra.mxu0 0.0
    %6080 = vmatprep.subr.mxu0 0.0
    %6081 = vmatpush1.msra.mxu0 0.0
    %6082 = vmatprep.subr.mxu0 0.0
    %6083 = vmatpush1.msra.mxu0 0.0
    %6084 = vmatprep.subr.mxu0 0.0
    %6085 = vmatpush1.msra.mxu0 0.0
    %6086 = vmatprep.subr.mxu0 0.0
    %6087 = vmatpush1.msra.mxu0 0.0
    %6088 = vmatprep.subr.mxu0 0.0
    %6089 = vmatpush1.msra.mxu0 0.0
    %6090 = vmatprep.subr.mxu0 0.0
    %6091 = vmatpush1.msra.mxu0 0.0
    %6092 = vmatprep.subr.mxu0 0.0
    %6093 = vmatpush1.msra.mxu0 0.0
    %6094 = vmatprep.subr.mxu0 0.0
    %6095 = vmatpush1.msra.mxu0 0.0
    %6096 = vmatprep.subr.mxu0 0.0
    %6097 = vmatpush1.msra.mxu0 0.0
    %6098 = vmatprep.subr.mxu0 0.0
    %6099 = vmatpush1.msra.mxu0 0.0
    %6100 = vmatprep.subr.mxu0 0.0
    %6101 = vmatpush1.msra.mxu0 0.0
    %6102 = vmatprep.subr.mxu0 0.0
    %6103 = vmatpush1.msra.mxu0 0.0
    %6104 = vmatprep.subr.mxu0 0.0
    %6105 = vmatpush1.msra.mxu0 0.0
    %6106 = vmatprep.subr.mxu0 0.0
    %6107 = vmatpush1.msra.mxu0 0.0
    %6108 = vmatprep.subr.mxu0 0.0
    %6109 = vmatpush1.msra.mxu0 0.0
    %6110 = vmatprep.mubr.f32.mxu0 0.0
    %6111 = vmatmul.mubr.f32.gmra.mrb[0].mxu0 %v6017
    %v6112 = vpop.f32.mrb[0].mxu0
    %v6113 = vadd.f32 %v6044, %v6112
    %v6114 = vpop.f32.mrb[0].mxu0
    %6115 = vmatprep.mubr.f32.mxu0 0.0
    %6116 = vmatmul.mubr.f32.gmra.mrb[0].mxu0 %v6018
    %v6117 = vpop.f32.mrb[0].mxu0
    %v6118 = vadd.f32 %v6044, %v6117
    %v6119 = vpop.f32.mrb[0].mxu0
    %6120 = vmatprep.mubr.f32.mxu0 0.0
    %6121 = vmatmul.mubr.f32.gmra.mrb[0].mxu0 %v6019
    %v6122 = vpop.f32.mrb[0].mxu0
    %v6123 = vadd.f32 %v6044, %v6122
    %v6124 = vpop.f32.mrb[0].mxu0
    %6125 = vmatprep.mubr.f32.mxu0 0.0
    %6126 = vmatmul.mubr.f32.gmra.mrb[0].mxu0 %v6020
    %v6127 = vpop.f32.mrb[0].mxu0
    %v6128 = vadd.f32 %v6044, %v6127
    %v6129 = vpop.f32.mrb[0].mxu0
    %6130 = vdwg.mxu0
    %v6131 = vadd.f32 %v5871, %v6113
    %v6132 = vadd.f32 %v5872, %v6118
    %v6133 = vadd.f32 %v5873, %v6123
    %v6134 = vadd.f32 %v5874, %v6128
    %s6135 = scalar_lea.vmem [#allocation36], 1
    %v6136 = vld [vmem:[%s6135] sm:$0x1]
    %s6137 = scalar_lea.vmem [#allocation37], 1
    %v6138 = vld [vmem:[%s6137] sm:$0x1]
    %v6139 = vsel %vm591, %v6131, 0.0
    %6140 = vadd.xlane.f32.xlu0 %v6139
    %v6141 = vpop.xlane.xlu0 %6140
    %v6142 = vsel %vm591, %v6132, 0.0
    %6143 = vadd.xlane.f32.xlu0 %v6142
    %v6144 = vpop.xlane.xlu0 %6143
    %v6145 = vsel %vm591, %v6133, 0.0
    %6146 = vadd.xlane.f32.xlu0 %v6145
    %v6147 = vpop.xlane.xlu0 %6146
    %v6148 = vsel %vm591, %v6134, 0.0
    %6149 = vadd.xlane.f32.xlu0 %v6148
    %v6150 = vpop.xlane.xlu0 %6149
    %v6151 = vmul.f32 %v6141, %v791
    %v6152 = vmul.f32 %v6144, %v791
    %v6153 = vmul.f32 %v6147, %v791
    %v6154 = vmul.f32 %v6150, %v791
    %v6155 = vsub.f32 %v6131, %v6151
    %v6156 = vsub.f32 %v6132, %v6152
    %v6157 = vsub.f32 %v6133, %v6153
    %v6158 = vsub.f32 %v6134, %v6154
    %v6159 = vmul.f32 %v6155, %v6155
    %v6160 = vmul.f32 %v6156, %v6156
    %v6161 = vmul.f32 %v6157, %v6157
    %v6162 = vmul.f32 %v6158, %v6158
    %v6163 = vsel %vm591, %v6159, 0.0
    %6164 = vadd.xlane.f32.xlu0 %v6163
    %v6165 = vpop.xlane.xlu0 %6164
    %v6166 = vsel %vm591, %v6160, 0.0
    %6167 = vadd.xlane.f32.xlu0 %v6166
    %v6168 = vpop.xlane.xlu0 %6167
    %v6169 = vsel %vm591, %v6161, 0.0
    %6170 = vadd.xlane.f32.xlu0 %v6169
    %v6171 = vpop.xlane.xlu0 %6170
    %v6172 = vsel %vm591, %v6162, 0.0
    %6173 = vadd.xlane.f32.xlu0 %v6172
    %v6174 = vpop.xlane.xlu0 %6173
    %v6175 = vmul.f32 %v6165, %v791
    %v6176 = vmul.f32 %v6168, %v791
    %v6177 = vmul.f32 %v6171, %v791
    %v6178 = vmul.f32 %v6174, %v791
    %v6179 = vadd.f32 %v6175, 1e-05
    %v6180 = vadd.f32 %v6176, 1e-05
    %v6181 = vadd.f32 %v6177, 1e-05
    %v6182 = vadd.f32 %v6178, 1e-05
    %v6183 = vrsqrt.pop %v6179
    %v6184 = vrsqrt.pop %v6180
    %v6185 = vrsqrt.pop %v6181
    %v6186 = vrsqrt.pop %v6182
    %v6187 = vmul.f32 %v6155, %v6183
    %v6188 = vmul.f32 %v6156, %v6184
    %v6189 = vmul.f32 %v6157, %v6185
    %v6190 = vmul.f32 %v6158, %v6186
    %v6192 = vlaneseq
    %v6193 = vshrl.u32 %v6192, 7
    %v6194 = vsub.s32 0, %v6193
    %v6195 = vrot.slane %v6136, %v6194
    %v6197 = vmul.f32 %v6187, %v6195
    %v6198 = vmul.f32 %v6188, %v6195
    %v6199 = vmul.f32 %v6189, %v6195
    %v6200 = vmul.f32 %v6190, %v6195
    %v6202 = vlaneseq
    %v6203 = vshrl.u32 %v6202, 7
    %v6204 = vsub.s32 0, %v6203
    %v6205 = vrot.slane %v6138, %v6204
    %v6207 = vadd.f32 %v6197, %v6205
    %v6208 = vadd.f32 %v6198, %v6205
    %v6209 = vadd.f32 %v6199, %v6205
    %v6210 = vadd.f32 %v6200, %v6205
    %v6211 = vld [vmem:[%s73] sm:$0xff]
    %v6212 = vld [vmem:[%s73 + $0x8] sm:$0xff]
    %v6213 = vld [vmem:[%s73 + $0x10] sm:$0xff]
    %v6214 = vld [vmem:[%s73 + $0x18] sm:$0xff]
    %v6215 = vld [vmem:[%s75] sm:$0x1]
    %v6217 = vlaneseq
    %v6218 = vshrl.u32 %v6217, 7
    %v6219 = vsub.s32 0, %v6218
    %v6220 = vrot.slane %v6215, %v6219
    %v6223 = vsel %vm591, %v6207, 0
    %v6226 = vsel %vm591, %v6208, 0
    %v6229 = vsel %vm591, %v6209, 0
    %v6232 = vsel %vm591, %v6210, 0
    %6234 = vmatprep.subr.mxu0 0.0
    %6235 = vmatpush1.msra.mxu0 %v6211
    %6236 = vmatprep.subr.mxu0 0.0
    %6237 = vmatpush1.msra.mxu0 %v6212
    %6238 = vmatprep.subr.mxu0 0.0
    %6239 = vmatpush1.msra.mxu0 %v6213
    %6240 = vmatprep.subr.mxu0 0.0
    %6241 = vmatpush1.msra.mxu0 %v6214
    %6242 = vmatprep.subr.mxu0 0.0
    %6243 = vmatpush1.msra.mxu0 0.0
    %6244 = vmatprep.subr.mxu0 0.0
    %6245 = vmatpush1.msra.mxu0 0.0
    %6246 = vmatprep.subr.mxu0 0.0
    %6247 = vmatpush1.msra.mxu0 0.0
    %6248 = vmatprep.subr.mxu0 0.0
    %6249 = vmatpush1.msra.mxu0 0.0
    %6250 = vmatprep.subr.mxu0 0.0
    %6251 = vmatpush1.msra.mxu0 0.0
    %6252 = vmatprep.subr.mxu0 0.0
    %6253 = vmatpush1.msra.mxu0 0.0
    %6254 = vmatprep.subr.mxu0 0.0
    %6255 = vmatpush1.msra.mxu0 0.0
    %6256 = vmatprep.subr.mxu0 0.0
    %6257 = vmatpush1.msra.mxu0 0.0
    %6258 = vmatprep.subr.mxu0 0.0
    %6259 = vmatpush1.msra.mxu0 0.0
    %6260 = vmatprep.subr.mxu0 0.0
    %6261 = vmatpush1.msra.mxu0 0.0
    %6262 = vmatprep.subr.mxu0 0.0
    %6263 = vmatpush1.msra.mxu0 0.0
    %6264 = vmatprep.subr.mxu0 0.0
    %6265 = vmatpush1.msra.mxu0 0.0
    %6266 = vmatprep.subr.mxu0 0.0
    %6267 = vmatpush1.msra.mxu0 0.0
    %6268 = vmatprep.subr.mxu0 0.0
    %6269 = vmatpush1.msra.mxu0 0.0
    %6270 = vmatprep.subr.mxu0 0.0
    %6271 = vmatpush1.msra.mxu0 0.0
    %6272 = vmatprep.subr.mxu0 0.0
    %6273 = vmatpush1.msra.mxu0 0.0
    %6274 = vmatprep.subr.mxu0 0.0
    %6275 = vmatpush1.msra.mxu0 0.0
    %6276 = vmatprep.subr.mxu0 0.0
    %6277 = vmatpush1.msra.mxu0 0.0
    %6278 = vmatprep.subr.mxu0 0.0
    %6279 = vmatpush1.msra.mxu0 0.0
    %6280 = vmatprep.subr.mxu0 0.0
    %6281 = vmatpush1.msra.mxu0 0.0
    %6282 = vmatprep.subr.mxu0 0.0
    %6283 = vmatpush1.msra.mxu0 0.0
    %6284 = vmatprep.subr.mxu0 0.0
    %6285 = vmatpush1.msra.mxu0 0.0
    %6286 = vmatprep.subr.mxu0 0.0
    %6287 = vmatpush1.msra.mxu0 0.0
    %6288 = vmatprep.subr.mxu0 0.0
    %6289 = vmatpush1.msra.mxu0 0.0
    %6290 = vmatprep.subr.mxu0 0.0
    %6291 = vmatpush1.msra.mxu0 0.0
    %6292 = vmatprep.subr.mxu0 0.0
    %6293 = vmatpush1.msra.mxu0 0.0
    %6294 = vmatprep.subr.mxu0 0.0
    %6295 = vmatpush1.msra.mxu0 0.0
    %6296 = vmatprep.subr.mxu0 0.0
    %6297 = vmatpush1.msra.mxu0 0.0
    %6298 = vmatprep.mubr.f32.mxu0 0.0
    %6299 = vmatmul.mubr.f32.gmra.mrb[0].mxu0 %v6223
    %v6300 = vpop.f32.mrb[0].mxu0
    %v6301 = vadd.f32 %v6220, %v6300
    %v6302 = vpop.f32.mrb[0].mxu0
    %6303 = vmatprep.mubr.f32.mxu0 0.0
    %6304 = vmatmul.mubr.f32.gmra.mrb[0].mxu0 %v6226
    %v6305 = vpop.f32.mrb[0].mxu0
    %v6306 = vadd.f32 %v6220, %v6305
    %v6307 = vpop.f32.mrb[0].mxu0
    %6308 = vmatprep.mubr.f32.mxu0 0.0
    %6309 = vmatmul.mubr.f32.gmra.mrb[0].mxu0 %v6229
    %v6310 = vpop.f32.mrb[0].mxu0
    %v6311 = vadd.f32 %v6220, %v6310
    %v6312 = vpop.f32.mrb[0].mxu0
    %6313 = vmatprep.mubr.f32.mxu0 0.0
    %6314 = vmatmul.mubr.f32.gmra.mrb[0].mxu0 %v6232
    %v6315 = vpop.f32.mrb[0].mxu0
    %v6316 = vadd.f32 %v6220, %v6315
    %v6317 = vpop.f32.mrb[0].mxu0
    %6318 = vdwg.mxu0
    %vm6319 = vcmask 392192
    %6320 = vst.msk [vmem:[%s77] sm:$0xff] %vm6319, %v6301
    %6321 = vst.msk [vmem:[%s77 + $0x8] sm:$0xff] %vm6319, %v6306
    %6322 = vst.msk [vmem:[%s77 + $0x10] sm:$0xff] %vm6319, %v6311
    %6323 = vst.msk [vmem:[%s77 + $0x18] sm:$0xff] %vm6319, %v6316
    // Predicated region
    $region250: #{reader_decoder_forward.1} parent=1 // pred_check
      _
    $region251: #{reader_decoder_forward.1} parent=1 // pred_check_branch
      %6325 = sbr.rel (0) target = $region253
    $region252: #{reader_decoder_forward.1} parent=1 // pred_region
      _
    $region253: #{reader_decoder_forward.1} parent=1 // pred_fallthru
      _
    // Predicated region
    $region254: #{reader_decoder_forward.1} parent=1 // pred_check
      _
    $region255: #{reader_decoder_forward.1} parent=1 // pred_check_branch
      %6327 = sbr.rel (0) target = $region257
    $region256: #{reader_decoder_forward.1} parent=1 // pred_region
      _
    $region257: #{reader_decoder_forward.1} parent=1 // pred_fallthru
      _
    %6328 = vsyncpa [#allocation3], 1
    %6329 = vsyncpa [#allocation5], 1
    %6330 = vsyncpa [#allocation8], 1
    %6331 = vsyncpa [#allocation11], 1
    %6332 = vsyncpa [#allocation14], 1
    %6333 = vsyncpa [#allocation17], 1
    %6334 = vsyncpa [#allocation20], 1
    %6335 = vsyncpa [#allocation23], 1
    %6336 = vsyncpa [#allocation26], 1
    %6337 = vsyncpa [#allocation29], 1
    %6338 = vsyncpa [#allocation32], 1
    %6339 = vsyncpa [#allocation35], 1
    %6340 = vsyncpa [#allocation38], 1

</llo_original>
